<compile_context>
chip_gen: v7x
topology: tpu7x:2x2x1
jax: 0.10.0
libtpu: 0.0.40
codegen_flags: <defaults>
</compile_context>

<pallas_src>
import functools
import math

import jax
import jax.numpy as jnp
from jax.experimental import pallas as pl
from jax.experimental.pallas import tpu as pltpu

_SQRT1_2 = 0.7071067811865476
_WOFF = 8  # sublane-aligned column offset of the image inside the padded scratch


def _erf_approx(x):
    # Abramowitz & Stegun 7.1.26 polynomial erf, |err| ~ 1.5e-7 (plus the
    # ~2^-12 approx-reciprocal error, still far below the check tolerance).
    # TODO(synk): switch to lax.erf if/when Mosaic exposes a native erf lowering.
    a1, a2, a3, a4, a5 = 0.254829592, -0.284496736, 1.421413741, -1.453152027, 1.061405429
    pp = 0.3275911
    s = jnp.where(x < 0.0, -1.0, 1.0)
    ax = jnp.abs(x)
    t = pl.reciprocal(1.0 + pp * ax, approx=True)      # EUP slot, not a VPU divide
    poly = ((((a5 * t + a4) * t + a3) * t + a2) * t + a1) * t
    return s * (1.0 - poly * jnp.exp(-ax * ax))         # exp -> EUP


def _gelu_exact(x):
    # matches torch.nn.GELU() (erf-based, not the tanh approximation)
    return 0.5 * x * (1.0 + _erf_approx(x * _SQRT1_2))


# ---------------------------------------------------------------------------
# Fused kernel (one image per grid step):
#   depthwise KxK conv -> LayerNorm(C) -> Linear -> GELU -> Linear
#   -> * gamma -> + residual
# ---------------------------------------------------------------------------
def _convnext_block_kernel(x_ref, dww_ref, dwb_ref, lnw_ref, lnb_ref,
                           w1_ref, b1_ref, w2_ref, b2_ref, g_ref,
                           o_ref, xp_ref, *, kernel_size, conv_dtype):
    _, H, W, C = x_ref.shape
    _, Hp, Wp, _ = xp_ref.shape
    K = kernel_size
    p = (K - 1) // 2

    # ---- zero halo strips only (interior is rewritten below every step) ----
    xp_ref[:, 0:p, :, :] = jnp.zeros((1, p, Wp, C), xp_ref.dtype)
    xp_ref[:, p + H:Hp, :, :] = jnp.zeros((1, p, Wp, C), xp_ref.dtype)
    xp_ref[:, p:p + H, 0:_WOFF, :] = jnp.zeros((1, H, _WOFF, C), xp_ref.dtype)
    xp_ref[:, p:p + H, _WOFF + W:Wp, :] = jnp.zeros((1, H, Wp - _WOFF - W, C),
                                                    xp_ref.dtype)
    # interior store at a sublane-aligned column offset
    xp_ref[:, p:p + H, _WOFF:_WOFF + W, :] = x_ref[...].astype(conv_dtype)

    # ---- depthwise KxK conv (VPU multiply-accumulate over taps) ----
    # One aligned read of the padded image; each horizontal tap is produced by
    # an XLU roll (static shift) and reused for all K vertical taps (major-dim
    # slices are free).  Accumulation stays in f32.
    dww = dww_ref[...].astype(conv_dtype)               # (K*K, C)
    xpv = xp_ref[...]                                    # (1, Hp, Wp, C)
    acc = jnp.zeros((1, H, W, C), jnp.float32)
    for dx in range(K):
        s = _WOFF - p + dx                               # window start column
        win = pltpu.roll(xpv, shift=(Wp - s) % Wp, axis=2)[:, :, :W, :]
        for dy in range(K):
            acc = acc + win[:, dy:dy + H] * dww[dy * K + dx]
    acc = acc + dwb_ref[...]

    # ---- LayerNorm over channels (eps=1e-6, biased variance — like torch) ----
    mean = jnp.mean(acc, axis=-1, keepdims=True)
    cen = acc - mean
    var = jnp.mean(cen * cen, axis=-1, keepdims=True)
    xn = cen * jax.lax.rsqrt(var + 1e-6)
    xn = xn * lnw_ref[...] + lnb_ref[...]

    # ---- MLP on the MXU: M = H*W rows, bf16 inputs / f32 accumulation ----
    M = H * W
    x2 = xn.reshape(M, C).astype(jnp.bfloat16)
    h = jnp.dot(x2, w1_ref[...], preferred_element_type=jnp.float32) + b1_ref[...]
    h = _gelu_exact(h)
    y = jnp.dot(h.astype(jnp.bfloat16), w2_ref[...],
                preferred_element_type=jnp.float32) + b2_ref[...]
    y = y.reshape(1, H, W, C)

    # ---- layer-scale gamma + residual (re-read x_ref: short live range) ----
    o_ref[...] = (y * g_ref[...] + x_ref[...].astype(jnp.float32)).astype(o_ref.dtype)


# ---------------------------------------------------------------------------
# Wrappers
# ---------------------------------------------------------------------------
def pack_params(p):
    """Reshape / cast the f32 parameter pytree into the kernel's layout."""
    K = p["dw_w"].shape[0]
    C = p["dw_w"].shape[-1]
    row = lambda v: v.reshape(1, -1).astype(jnp.float32)
    return dict(
        dw_w=p["dw_w"].reshape(K * K, C).astype(jnp.float32),
        dw_b=row(p["dw_b"]), ln_w=row(p["ln_w"]), ln_b=row(p["ln_b"]),
        w1=p["w1"].astype(jnp.bfloat16), b1=row(p["b1"]),
        w2=p["w2"].astype(jnp.bfloat16), b2=row(p["b2"]),
        gamma=row(p["gamma"]),
    )


def convnext_block(x, pk, *, conv_compute_dtype=jnp.float32):
    """Fused MyConvNeXtBlock forward.

    x: (N,H,W,C) NHWC;  pk: pack_params(...).
    conv_compute_dtype: jnp.bfloat16 halves VALU work / scratch on v6e & v7x;
    keep the f32 default on v5e (no bf16 VPU).
    """
    N, H, W, C = x.shape
    K = int(math.isqrt(pk["dw_w"].shape[0]))
    p = (K - 1) // 2
    assert p <= _WOFF, "halo placement assumes kernel_size <= 17"
    Hp, Wp = H + 2 * p, _WOFF + W + _WOFF

    args = (x, pk["dw_w"], pk["dw_b"], pk["ln_w"], pk["ln_b"],
            pk["w1"], pk["b1"], pk["w2"], pk["b2"], pk["gamma"])

    # weights: full block + constant index_map -> VMEM-resident across steps
    def resident(a):
        return pl.BlockSpec(a.shape, lambda n: (0, 0))

    img_spec = pl.BlockSpec((1, H, W, C), lambda n: (n, 0, 0, 0))

    return pl.pallas_call(
        functools.partial(_convnext_block_kernel, kernel_size=K,
                          conv_dtype=conv_compute_dtype),
        out_shape=jax.ShapeDtypeStruct((N, H, W, C), x.dtype),
        grid=(N,),
        in_specs=[img_spec] + [resident(a) for a in args[1:]],
        out_specs=img_spec,
        scratch_shapes=[pltpu.VMEM((1, Hp, Wp, C), conv_compute_dtype)],
        compiler_params=pltpu.CompilerParams(
            dimension_semantics=("parallel",),          # megacore on v7x
            vmem_limit_bytes=48 * 1024 * 1024,          # > 16/32 MiB defaults, < v7x 64 MiB
        ),
    )(*args)


# ---------------------------------------------------------------------------
# Deterministic synthetic parameters + pure-JAX reference
# ---------------------------------------------------------------------------
def init_convnext_block(key, dim, kernel_size=7, mlp_ratio=2, ls_init_value=1e-6):
    hidden = int(mlp_ratio * dim)
    k = jax.random.split(key, 4)
    kb = 1.0 / math.sqrt(kernel_size * kernel_size)   # depthwise fan_in = K*K (groups=dim)
    bnd1 = 1.0 / math.sqrt(dim)
    bnd2 = 1.0 / math.sqrt(hidden)
    return dict(
        dw_w=jax.random.uniform(k[0], (kernel_size, kernel_size, dim), jnp.float32, -kb, kb),
        dw_b=jax.random.uniform(k[1], (dim,), jnp.float32, -kb, kb),
        ln_w=jnp.ones((dim,), jnp.float32),
        ln_b=jnp.zeros((dim,), jnp.float32),
        w1=jax.random.uniform(k[2], (dim, hidden), jnp.float32, -bnd1, bnd1),
        b1=jnp.zeros((hidden,), jnp.float32),
        w2=jax.random.uniform(k[3], (hidden, dim), jnp.float32, -bnd2, bnd2),
        b2=jnp.zeros((dim,), jnp.float32),
        gamma=jnp.full((dim,), float(ls_init_value), jnp.float32),
    )


def convnext_block_ref(x, p):
    """Plain-JAX reference with PyTorch MyConvNeXtBlock semantics (NHWC)."""
    N, H, W, C = x.shape
    K = p["dw_w"].shape[0]
    pad = (K - 1) // 2
    xp = jnp.pad(x, ((0, 0), (pad, pad), (pad, pad), (0, 0)))
    acc = jnp.zeros_like(x)
    for dy in range(K):
        for dx in range(K):
            acc = acc + xp[:, dy:dy + H, dx:dx + W, :] * p["dw_w"][dy, dx]
    acc = acc + p["dw_b"]
    mean = acc.mean(-1, keepdims=True)
    var = ((acc - mean) ** 2).mean(-1, keepdims=True)
    xn = (acc - mean) * jax.lax.rsqrt(var + 1e-6) * p["ln_w"] + p["ln_b"]
    h = jax.nn.gelu(xn @ p["w1"] + p["b1"], approximate=False)
    y = h @ p["w2"] + p["b2"]
    return y * p["gamma"] + x


if __name__ == "__main__":
    N, H, W, DIM = 2, 16, 16, 128          # small but lane-dense (C = 128 lanes)
    key = jax.random.PRNGKey(0)
    kx, kp = jax.random.split(key)
    x = jax.random.normal(kx, (N, H, W, DIM), jnp.float32)
    # ls_init_value bumped from the 1e-6 default so the MLP path actually
    # contributes to the numerical check below.
    params = init_convnext_block(kp, DIM, kernel_size=7, mlp_ratio=2,
                                 ls_init_value=0.5)

    run = jax.jit(convnext_block)
    out = jax.block_until_ready(run(x, pack_params(params)))
    assert out.shape == (N, H, W, DIM), out.shape
    assert bool(jnp.all(jnp.isfinite(out)))

    ref = convnext_block_ref(x, params)
    err = float(jnp.max(jnp.abs(out - ref)))
    assert err < 5e-2, f"max abs err vs reference: {err}"
    print("KERNEL_OK")
</pallas_src>

<mosaic_0001>
module attributes {stable_mosaic.version = 11 : i64} {
  func.func @_convnext_block_kernel(%arg0: i32, %arg1: memref<1x16x16x128xf32, #tpu.memory_space<vmem>>, %arg2: memref<49x128xf32, #tpu.memory_space<vmem>>, %arg3: memref<1x128xf32, #tpu.memory_space<vmem>>, %arg4: memref<1x128xf32, #tpu.memory_space<vmem>>, %arg5: memref<1x128xf32, #tpu.memory_space<vmem>>, %arg6: memref<128x256xbf16, #tpu.memory_space<vmem>>, %arg7: memref<1x256xf32, #tpu.memory_space<vmem>>, %arg8: memref<256x128xbf16, #tpu.memory_space<vmem>>, %arg9: memref<1x128xf32, #tpu.memory_space<vmem>>, %arg10: memref<1x128xf32, #tpu.memory_space<vmem>>, %arg11: memref<1x16x16x128xf32, #tpu.memory_space<vmem>>, %arg12: memref<1x22x32x128xf32, #tpu.memory_space<vmem>>) attributes {dimension_semantics = [#tpu.dimension_semantics<parallel>], iteration_bounds = array<i64: 2>, scalar_prefetch = 0 : i64, scratch_operands = 1 : i64, tpu.core_type = #tpu.core_type<tc>, window_params = [{transform_indices = @transform_0, window_bounds = array<i64: 1, 16, 16, 128>}, {pipeline_mode = #tpu.pipeline_mode<synchronous>, transform_indices = @transform_1, window_bounds = array<i64: 49, 128>}, {pipeline_mode = #tpu.pipeline_mode<synchronous>, transform_indices = @transform_2, window_bounds = array<i64: 1, 128>}, {pipeline_mode = #tpu.pipeline_mode<synchronous>, transform_indices = @transform_3, window_bounds = array<i64: 1, 128>}, {pipeline_mode = #tpu.pipeline_mode<synchronous>, transform_indices = @transform_4, window_bounds = array<i64: 1, 128>}, {pipeline_mode = #tpu.pipeline_mode<synchronous>, transform_indices = @transform_5, window_bounds = array<i64: 128, 256>}, {pipeline_mode = #tpu.pipeline_mode<synchronous>, transform_indices = @transform_6, window_bounds = array<i64: 1, 256>}, {pipeline_mode = #tpu.pipeline_mode<synchronous>, transform_indices = @transform_7, window_bounds = array<i64: 256, 128>}, {pipeline_mode = #tpu.pipeline_mode<synchronous>, transform_indices = @transform_8, window_bounds = array<i64: 1, 128>}, {pipeline_mode = #tpu.pipeline_mode<synchronous>, transform_indices = @transform_9, window_bounds = array<i64: 1, 128>}, {transform_indices = @transform_10, window_bounds = array<i64: 1, 16, 16, 128>}]} {
    %cst = arith.constant 0.000000e+00 : f32
    %0 = vector.broadcast %cst : f32 to vector<1x3x32x128xf32>
    %c0 = arith.constant 0 : index
    %c0_0 = arith.constant 0 : index
    %c0_1 = arith.constant 0 : index
    %c0_2 = arith.constant 0 : index
    %1 = vector.load %arg12[%c0, %c0_0, %c0_1, %c0_2] : memref<1x22x32x128xf32, #tpu.memory_space<vmem>>, vector<1x3x32x128xf32>
    tpu.vector_store %arg12[%c0, %c0_0, %c0_1, %c0_2], %0 {strides = array<i32>} : memref<1x22x32x128xf32, #tpu.memory_space<vmem>>, vector<1x3x32x128xf32>,
    %cst_3 = arith.constant 0.000000e+00 : f32
    %2 = vector.broadcast %cst_3 : f32 to vector<1x3x32x128xf32>
    %c0_4 = arith.constant 0 : index
    %c19 = arith.constant 19 : index
    %c0_5 = arith.constant 0 : index
    %c0_6 = arith.constant 0 : index
    %3 = vector.load %arg12[%c0_4, %c19, %c0_5, %c0_6] : memref<1x22x32x128xf32, #tpu.memory_space<vmem>>, vector<1x3x32x128xf32>
    tpu.vector_store %arg12[%c0_4, %c19, %c0_5, %c0_6], %2 {strides = array<i32>} : memref<1x22x32x128xf32, #tpu.memory_space<vmem>>, vector<1x3x32x128xf32>,
    %cst_7 = arith.constant 0.000000e+00 : f32
    %4 = vector.broadcast %cst_7 : f32 to vector<1x16x8x128xf32>
    %c0_8 = arith.constant 0 : index
    %c3 = arith.constant 3 : index
    %c0_9 = arith.constant 0 : index
    %c0_10 = arith.constant 0 : index
    %5 = vector.load %arg12[%c0_8, %c3, %c0_9, %c0_10] : memref<1x22x32x128xf32, #tpu.memory_space<vmem>>, vector<1x16x8x128xf32>
    tpu.vector_store %arg12[%c0_8, %c3, %c0_9, %c0_10], %4 {strides = array<i32>} : memref<1x22x32x128xf32, #tpu.memory_space<vmem>>, vector<1x16x8x128xf32>,
    %cst_11 = arith.constant 0.000000e+00 : f32
    %6 = vector.broadcast %cst_11 : f32 to vector<1x16x8x128xf32>
    %c0_12 = arith.constant 0 : index
    %c3_13 = arith.constant 3 : index
    %c24 = arith.constant 24 : index
    %c0_14 = arith.constant 0 : index
    %7 = vector.load %arg12[%c0_12, %c3_13, %c24, %c0_14] : memref<1x22x32x128xf32, #tpu.memory_space<vmem>>, vector<1x16x8x128xf32>
    tpu.vector_store %arg12[%c0_12, %c3_13, %c24, %c0_14], %6 {strides = array<i32>} : memref<1x22x32x128xf32, #tpu.memory_space<vmem>>, vector<1x16x8x128xf32>,
    %c0_15 = arith.constant 0 : index
    %c0_16 = arith.constant 0 : index
    %c0_17 = arith.constant 0 : index
    %c0_18 = arith.constant 0 : index
    %8 = vector.load %arg1[%c0_15, %c0_16, %c0_17, %c0_18] : memref<1x16x16x128xf32, #tpu.memory_space<vmem>>, vector<1x16x16x128xf32>
    %c0_19 = arith.constant 0 : index
    %c3_20 = arith.constant 3 : index
    %c8 = arith.constant 8 : index
    %c0_21 = arith.constant 0 : index
    %9 = vector.load %arg12[%c0_19, %c3_20, %c8, %c0_21] : memref<1x22x32x128xf32, #tpu.memory_space<vmem>>, vector<1x16x16x128xf32>
    tpu.vector_store %arg12[%c0_19, %c3_20, %c8, %c0_21], %8 {strides = array<i32>} : memref<1x22x32x128xf32, #tpu.memory_space<vmem>>, vector<1x16x16x128xf32>,
    %c0_22 = arith.constant 0 : index
    %c0_23 = arith.constant 0 : index
    %10 = vector.load %arg2[%c0_22, %c0_23] : memref<49x128xf32, #tpu.memory_space<vmem>>, vector<49x128xf32>
    %c0_24 = arith.constant 0 : index
    %c0_25 = arith.constant 0 : index
    %c0_26 = arith.constant 0 : index
    %c0_27 = arith.constant 0 : index
    %11 = vector.load %arg12[%c0_24, %c0_25, %c0_26, %c0_27] : memref<1x22x32x128xf32, #tpu.memory_space<vmem>>, vector<1x22x32x128xf32>
    %cst_28 = arith.constant 0.000000e+00 : f32
    %12 = vector.broadcast %cst_28 : f32 to vector<1x16x16x128xf32>
    %c27_i32 = arith.constant 27 : i32
    %13 = tpu.dynamic_rotate %11 by %c27_i32 dim 2 : vector<1x22x32x128xf32>, i32 -> vector<1x22x32x128xf32>
    %14 = vector.extract_strided_slice %13 {offsets = [0, 0, 0, 0], sizes = [1, 22, 16, 128], strides = [1, 1, 1, 1]} : vector<1x22x32x128xf32> to vector<1x22x16x128xf32>
    %15 = vector.extract_strided_slice %14 {offsets = [0, 0, 0, 0], sizes = [1, 16, 16, 128], strides = [1, 1, 1, 1]} : vector<1x22x16x128xf32> to vector<1x16x16x128xf32>
    %16 = vector.extract_strided_slice %10 {offsets = [0, 0], sizes = [1, 128], strides = [1, 1]} : vector<49x128xf32> to vector<1x128xf32>
    %17 = vector.shape_cast %16 : vector<1x128xf32> to vector<128xf32>
    %18 = vector.shape_cast %17 : vector<128xf32> to vector<1x1x1x128xf32>
    %19 = vector.broadcast %18 : vector<1x1x1x128xf32> to vector<1x16x16x128xf32>
    %20 = arith.mulf %15, %19 : vector<1x16x16x128xf32>
    %21 = arith.addf %12, %20 : vector<1x16x16x128xf32>
    %22 = vector.extract_strided_slice %14 {offsets = [0, 1, 0, 0], sizes = [1, 16, 16, 128], strides = [1, 1, 1, 1]} : vector<1x22x16x128xf32> to vector<1x16x16x128xf32>
    %23 = vector.extract_strided_slice %10 {offsets = [7, 0], sizes = [1, 128], strides = [1, 1]} : vector<49x128xf32> to vector<1x128xf32>
    %24 = vector.shape_cast %23 : vector<1x128xf32> to vector<128xf32>
    %25 = vector.shape_cast %24 : vector<128xf32> to vector<1x1x1x128xf32>
    %26 = vector.broadcast %25 : vector<1x1x1x128xf32> to vector<1x16x16x128xf32>
    %27 = arith.mulf %22, %26 : vector<1x16x16x128xf32>
    %28 = arith.addf %21, %27 : vector<1x16x16x128xf32>
    %29 = vector.extract_strided_slice %14 {offsets = [0, 2, 0, 0], sizes = [1, 16, 16, 128], strides = [1, 1, 1, 1]} : vector<1x22x16x128xf32> to vector<1x16x16x128xf32>
    %30 = vector.extract_strided_slice %10 {offsets = [14, 0], sizes = [1, 128], strides = [1, 1]} : vector<49x128xf32> to vector<1x128xf32>
    %31 = vector.shape_cast %30 : vector<1x128xf32> to vector<128xf32>
    %32 = vector.shape_cast %31 : vector<128xf32> to vector<1x1x1x128xf32>
    %33 = vector.broadcast %32 : vector<1x1x1x128xf32> to vector<1x16x16x128xf32>
    %34 = arith.mulf %29, %33 : vector<1x16x16x128xf32>
    %35 = arith.addf %28, %34 : vector<1x16x16x128xf32>
    %36 = vector.extract_strided_slice %14 {offsets = [0, 3, 0, 0], sizes = [1, 16, 16, 128], strides = [1, 1, 1, 1]} : vector<1x22x16x128xf32> to vector<1x16x16x128xf32>
    %37 = vector.extract_strided_slice %10 {offsets = [21, 0], sizes = [1, 128], strides = [1, 1]} : vector<49x128xf32> to vector<1x128xf32>
    %38 = vector.shape_cast %37 : vector<1x128xf32> to vector<128xf32>
    %39 = vector.shape_cast %38 : vector<128xf32> to vector<1x1x1x128xf32>
    %40 = vector.broadcast %39 : vector<1x1x1x128xf32> to vector<1x16x16x128xf32>
    %41 = arith.mulf %36, %40 : vector<1x16x16x128xf32>
    %42 = arith.addf %35, %41 : vector<1x16x16x128xf32>
    %43 = vector.extract_strided_slice %14 {offsets = [0, 4, 0, 0], sizes = [1, 16, 16, 128], strides = [1, 1, 1, 1]} : vector<1x22x16x128xf32> to vector<1x16x16x128xf32>
    %44 = vector.extract_strided_slice %10 {offsets = [28, 0], sizes = [1, 128], strides = [1, 1]} : vector<49x128xf32> to vector<1x128xf32>
    %45 = vector.shape_cast %44 : vector<1x128xf32> to vector<128xf32>
    %46 = vector.shape_cast %45 : vector<128xf32> to vector<1x1x1x128xf32>
    %47 = vector.broadcast %46 : vector<1x1x1x128xf32> to vector<1x16x16x128xf32>
    %48 = arith.mulf %43, %47 : vector<1x16x16x128xf32>
    %49 = arith.addf %42, %48 : vector<1x16x16x128xf32>
    %50 = vector.extract_strided_slice %14 {offsets = [0, 5, 0, 0], sizes = [1, 16, 16, 128], strides = [1, 1, 1, 1]} : vector<1x22x16x128xf32> to vector<1x16x16x128xf32>
    %51 = vector.extract_strided_slice %10 {offsets = [35, 0], sizes = [1, 128], strides = [1, 1]} : vector<49x128xf32> to vector<1x128xf32>
    %52 = vector.shape_cast %51 : vector<1x128xf32> to vector<128xf32>
    %53 = vector.shape_cast %52 : vector<128xf32> to vector<1x1x1x128xf32>
    %54 = vector.broadcast %53 : vector<1x1x1x128xf32> to vector<1x16x16x128xf32>
    %55 = arith.mulf %50, %54 : vector<1x16x16x128xf32>
    %56 = arith.addf %49, %55 : vector<1x16x16x128xf32>
    %57 = vector.extract_strided_slice %14 {offsets = [0, 6, 0, 0], sizes = [1, 16, 16, 128], strides = [1, 1, 1, 1]} : vector<1x22x16x128xf32> to vector<1x16x16x128xf32>
    %58 = vector.extract_strided_slice %10 {offsets = [42, 0], sizes = [1, 128], strides = [1, 1]} : vector<49x128xf32> to vector<1x128xf32>
    %59 = vector.shape_cast %58 : vector<1x128xf32> to vector<128xf32>
    %60 = vector.shape_cast %59 : vector<128xf32> to vector<1x1x1x128xf32>
    %61 = vector.broadcast %60 : vector<1x1x1x128xf32> to vector<1x16x16x128xf32>
    %62 = arith.mulf %57, %61 : vector<1x16x16x128xf32>
    %63 = arith.addf %56, %62 : vector<1x16x16x128xf32>
    %c26_i32 = arith.constant 26 : i32
    %64 = tpu.dynamic_rotate %11 by %c26_i32 dim 2 : vector<1x22x32x128xf32>, i32 -> vector<1x22x32x128xf32>
    %65 = vector.extract_strided_slice %64 {offsets = [0, 0, 0, 0], sizes = [1, 22, 16, 128], strides = [1, 1, 1, 1]} : vector<1x22x32x128xf32> to vector<1x22x16x128xf32>
    %66 = vector.extract_strided_slice %65 {offsets = [0, 0, 0, 0], sizes = [1, 16, 16, 128], strides = [1, 1, 1, 1]} : vector<1x22x16x128xf32> to vector<1x16x16x128xf32>
    %67 = vector.extract_strided_slice %10 {offsets = [1, 0], sizes = [1, 128], strides = [1, 1]} : vector<49x128xf32> to vector<1x128xf32>
    %68 = vector.shape_cast %67 : vector<1x128xf32> to vector<128xf32>
    %69 = vector.shape_cast %68 : vector<128xf32> to vector<1x1x1x128xf32>
    %70 = vector.broadcast %69 : vector<1x1x1x128xf32> to vector<1x16x16x128xf32>
    %71 = arith.mulf %66, %70 : vector<1x16x16x128xf32>
    %72 = arith.addf %63, %71 : vector<1x16x16x128xf32>
    %73 = vector.extract_strided_slice %65 {offsets = [0, 1, 0, 0], sizes = [1, 16, 16, 128], strides = [1, 1, 1, 1]} : vector<1x22x16x128xf32> to vector<1x16x16x128xf32>
    %74 = vector.extract_strided_slice %10 {offsets = [8, 0], sizes = [1, 128], strides = [1, 1]} : vector<49x128xf32> to vector<1x128xf32>
    %75 = vector.shape_cast %74 : vector<1x128xf32> to vector<128xf32>
    %76 = vector.shape_cast %75 : vector<128xf32> to vector<1x1x1x128xf32>
    %77 = vector.broadcast %76 : vector<1x1x1x128xf32> to vector<1x16x16x128xf32>
    %78 = arith.mulf %73, %77 : vector<1x16x16x128xf32>
    %79 = arith.addf %72, %78 : vector<1x16x16x128xf32>
    %80 = vector.extract_strided_slice %65 {offsets = [0, 2, 0, 0], sizes = [1, 16, 16, 128], strides = [1, 1, 1, 1]} : vector<1x22x16x128xf32> to vector<1x16x16x128xf32>
    %81 = vector.extract_strided_slice %10 {offsets = [15, 0], sizes = [1, 128], strides = [1, 1]} : vector<49x128xf32> to vector<1x128xf32>
    %82 = vector.shape_cast %81 : vector<1x128xf32> to vector<128xf32>
    %83 = vector.shape_cast %82 : vector<128xf32> to vector<1x1x1x128xf32>
    %84 = vector.broadcast %83 : vector<1x1x1x128xf32> to vector<1x16x16x128xf32>
    %85 = arith.mulf %80, %84 : vector<1x16x16x128xf32>
    %86 = arith.addf %79, %85 : vector<1x16x16x128xf32>
    %87 = vector.extract_strided_slice %65 {offsets = [0, 3, 0, 0], sizes = [1, 16, 16, 128], strides = [1, 1, 1, 1]} : vector<1x22x16x128xf32> to vector<1x16x16x128xf32>
    %88 = vector.extract_strided_slice %10 {offsets = [22, 0], sizes = [1, 128], strides = [1, 1]} : vector<49x128xf32> to vector<1x128xf32>
    %89 = vector.shape_cast %88 : vector<1x128xf32> to vector<128xf32>
    %90 = vector.shape_cast %89 : vector<128xf32> to vector<1x1x1x128xf32>
    %91 = vector.broadcast %90 : vector<1x1x1x128xf32> to vector<1x16x16x128xf32>
    %92 = arith.mulf %87, %91 : vector<1x16x16x128xf32>
    %93 = arith.addf %86, %92 : vector<1x16x16x128xf32>
    %94 = vector.extract_strided_slice %65 {offsets = [0, 4, 0, 0], sizes = [1, 16, 16, 128], strides = [1, 1, 1, 1]} : vector<1x22x16x128xf32> to vector<1x16x16x128xf32>
    %95 = vector.extract_strided_slice %10 {offsets = [29, 0], sizes = [1, 128], strides = [1, 1]} : vector<49x128xf32> to vector<1x128xf32>
    %96 = vector.shape_cast %95 : vector<1x128xf32> to vector<128xf32>
    %97 = vector.shape_cast %96 : vector<128xf32> to vector<1x1x1x128xf32>
    %98 = vector.broadcast %97 : vector<1x1x1x128xf32> to vector<1x16x16x128xf32>
    %99 = arith.mulf %94, %98 : vector<1x16x16x128xf32>
    %100 = arith.addf %93, %99 : vector<1x16x16x128xf32>
    %101 = vector.extract_strided_slice %65 {offsets = [0, 5, 0, 0], sizes = [1, 16, 16, 128], strides = [1, 1, 1, 1]} : vector<1x22x16x128xf32> to vector<1x16x16x128xf32>
    %102 = vector.extract_strided_slice %10 {offsets = [36, 0], sizes = [1, 128], strides = [1, 1]} : vector<49x128xf32> to vector<1x128xf32>
    %103 = vector.shape_cast %102 : vector<1x128xf32> to vector<128xf32>
    %104 = vector.shape_cast %103 : vector<128xf32> to vector<1x1x1x128xf32>
    %105 = vector.broadcast %104 : vector<1x1x1x128xf32> to vector<1x16x16x128xf32>
    %106 = arith.mulf %101, %105 : vector<1x16x16x128xf32>
    %107 = arith.addf %100, %106 : vector<1x16x16x128xf32>
    %108 = vector.extract_strided_slice %65 {offsets = [0, 6, 0, 0], sizes = [1, 16, 16, 128], strides = [1, 1, 1, 1]} : vector<1x22x16x128xf32> to vector<1x16x16x128xf32>
    %109 = vector.extract_strided_slice %10 {offsets = [43, 0], sizes = [1, 128], strides = [1, 1]} : vector<49x128xf32> to vector<1x128xf32>
    %110 = vector.shape_cast %109 : vector<1x128xf32> to vector<128xf32>
    %111 = vector.shape_cast %110 : vector<128xf32> to vector<1x1x1x128xf32>
    %112 = vector.broadcast %111 : vector<1x1x1x128xf32> to vector<1x16x16x128xf32>
    %113 = arith.mulf %108, %112 : vector<1x16x16x128xf32>
    %114 = arith.addf %107, %113 : vector<1x16x16x128xf32>
    %c25_i32 = arith.constant 25 : i32
    %115 = tpu.dynamic_rotate %11 by %c25_i32 dim 2 : vector<1x22x32x128xf32>, i32 -> vector<1x22x32x128xf32>
    %116 = vector.extract_strided_slice %115 {offsets = [0, 0, 0, 0], sizes = [1, 22, 16, 128], strides = [1, 1, 1, 1]} : vector<1x22x32x128xf32> to vector<1x22x16x128xf32>
    %117 = vector.extract_strided_slice %116 {offsets = [0, 0, 0, 0], sizes = [1, 16, 16, 128], strides = [1, 1, 1, 1]} : vector<1x22x16x128xf32> to vector<1x16x16x128xf32>
    %118 = vector.extract_strided_slice %10 {offsets = [2, 0], sizes = [1, 128], strides = [1, 1]} : vector<49x128xf32> to vector<1x128xf32>
    %119 = vector.shape_cast %118 : vector<1x128xf32> to vector<128xf32>
    %120 = vector.shape_cast %119 : vector<128xf32> to vector<1x1x1x128xf32>
    %121 = vector.broadcast %120 : vector<1x1x1x128xf32> to vector<1x16x16x128xf32>
    %122 = arith.mulf %117, %121 : vector<1x16x16x128xf32>
    %123 = arith.addf %114, %122 : vector<1x16x16x128xf32>
    %124 = vector.extract_strided_slice %116 {offsets = [0, 1, 0, 0], sizes = [1, 16, 16, 128], strides = [1, 1, 1, 1]} : vector<1x22x16x128xf32> to vector<1x16x16x128xf32>
    %125 = vector.extract_strided_slice %10 {offsets = [9, 0], sizes = [1, 128], strides = [1, 1]} : vector<49x128xf32> to vector<1x128xf32>
    %126 = vector.shape_cast %125 : vector<1x128xf32> to vector<128xf32>
    %127 = vector.shape_cast %126 : vector<128xf32> to vector<1x1x1x128xf32>
    %128 = vector.broadcast %127 : vector<1x1x1x128xf32> to vector<1x16x16x128xf32>
    %129 = arith.mulf %124, %128 : vector<1x16x16x128xf32>
    %130 = arith.addf %123, %129 : vector<1x16x16x128xf32>
    %131 = vector.extract_strided_slice %116 {offsets = [0, 2, 0, 0], sizes = [1, 16, 16, 128], strides = [1, 1, 1, 1]} : vector<1x22x16x128xf32> to vector<1x16x16x128xf32>
    %132 = vector.extract_strided_slice %10 {offsets = [16, 0], sizes = [1, 128], strides = [1, 1]} : vector<49x128xf32> to vector<1x128xf32>
    %133 = vector.shape_cast %132 : vector<1x128xf32> to vector<128xf32>
    %134 = vector.shape_cast %133 : vector<128xf32> to vector<1x1x1x128xf32>
    %135 = vector.broadcast %134 : vector<1x1x1x128xf32> to vector<1x16x16x128xf32>
    %136 = arith.mulf %131, %135 : vector<1x16x16x128xf32>
    %137 = arith.addf %130, %136 : vector<1x16x16x128xf32>
    %138 = vector.extract_strided_slice %116 {offsets = [0, 3, 0, 0], sizes = [1, 16, 16, 128], strides = [1, 1, 1, 1]} : vector<1x22x16x128xf32> to vector<1x16x16x128xf32>
    %139 = vector.extract_strided_slice %10 {offsets = [23, 0], sizes = [1, 128], strides = [1, 1]} : vector<49x128xf32> to vector<1x128xf32>
    %140 = vector.shape_cast %139 : vector<1x128xf32> to vector<128xf32>
    %141 = vector.shape_cast %140 : vector<128xf32> to vector<1x1x1x128xf32>
    %142 = vector.broadcast %141 : vector<1x1x1x128xf32> to vector<1x16x16x128xf32>
    %143 = arith.mulf %138, %142 : vector<1x16x16x128xf32>
    %144 = arith.addf %137, %143 : vector<1x16x16x128xf32>
    %145 = vector.extract_strided_slice %116 {offsets = [0, 4, 0, 0], sizes = [1, 16, 16, 128], strides = [1, 1, 1, 1]} : vector<1x22x16x128xf32> to vector<1x16x16x128xf32>
    %146 = vector.extract_strided_slice %10 {offsets = [30, 0], sizes = [1, 128], strides = [1, 1]} : vector<49x128xf32> to vector<1x128xf32>
    %147 = vector.shape_cast %146 : vector<1x128xf32> to vector<128xf32>
    %148 = vector.shape_cast %147 : vector<128xf32> to vector<1x1x1x128xf32>
    %149 = vector.broadcast %148 : vector<1x1x1x128xf32> to vector<1x16x16x128xf32>
    %150 = arith.mulf %145, %149 : vector<1x16x16x128xf32>
    %151 = arith.addf %144, %150 : vector<1x16x16x128xf32>
    %152 = vector.extract_strided_slice %116 {offsets = [0, 5, 0, 0], sizes = [1, 16, 16, 128], strides = [1, 1, 1, 1]} : vector<1x22x16x128xf32> to vector<1x16x16x128xf32>
    %153 = vector.extract_strided_slice %10 {offsets = [37, 0], sizes = [1, 128], strides = [1, 1]} : vector<49x128xf32> to vector<1x128xf32>
    %154 = vector.shape_cast %153 : vector<1x128xf32> to vector<128xf32>
    %155 = vector.shape_cast %154 : vector<128xf32> to vector<1x1x1x128xf32>
    %156 = vector.broadcast %155 : vector<1x1x1x128xf32> to vector<1x16x16x128xf32>
    %157 = arith.mulf %152, %156 : vector<1x16x16x128xf32>
    %158 = arith.addf %151, %157 : vector<1x16x16x128xf32>
    %159 = vector.extract_strided_slice %116 {offsets = [0, 6, 0, 0], sizes = [1, 16, 16, 128], strides = [1, 1, 1, 1]} : vector<1x22x16x128xf32> to vector<1x16x16x128xf32>
    %160 = vector.extract_strided_slice %10 {offsets = [44, 0], sizes = [1, 128], strides = [1, 1]} : vector<49x128xf32> to vector<1x128xf32>
    %161 = vector.shape_cast %160 : vector<1x128xf32> to vector<128xf32>
    %162 = vector.shape_cast %161 : vector<128xf32> to vector<1x1x1x128xf32>
    %163 = vector.broadcast %162 : vector<1x1x1x128xf32> to vector<1x16x16x128xf32>
    %164 = arith.mulf %159, %163 : vector<1x16x16x128xf32>
    %165 = arith.addf %158, %164 : vector<1x16x16x128xf32>
    %c24_i32 = arith.constant 24 : i32
    %166 = tpu.dynamic_rotate %11 by %c24_i32 dim 2 : vector<1x22x32x128xf32>, i32 -> vector<1x22x32x128xf32>
    %167 = vector.extract_strided_slice %166 {offsets = [0, 0, 0, 0], sizes = [1, 22, 16, 128], strides = [1, 1, 1, 1]} : vector<1x22x32x128xf32> to vector<1x22x16x128xf32>
    %168 = vector.extract_strided_slice %167 {offsets = [0, 0, 0, 0], sizes = [1, 16, 16, 128], strides = [1, 1, 1, 1]} : vector<1x22x16x128xf32> to vector<1x16x16x128xf32>
    %169 = vector.extract_strided_slice %10 {offsets = [3, 0], sizes = [1, 128], strides = [1, 1]} : vector<49x128xf32> to vector<1x128xf32>
    %170 = vector.shape_cast %169 : vector<1x128xf32> to vector<128xf32>
    %171 = vector.shape_cast %170 : vector<128xf32> to vector<1x1x1x128xf32>
    %172 = vector.broadcast %171 : vector<1x1x1x128xf32> to vector<1x16x16x128xf32>
    %173 = arith.mulf %168, %172 : vector<1x16x16x128xf32>
    %174 = arith.addf %165, %173 : vector<1x16x16x128xf32>
    %175 = vector.extract_strided_slice %167 {offsets = [0, 1, 0, 0], sizes = [1, 16, 16, 128], strides = [1, 1, 1, 1]} : vector<1x22x16x128xf32> to vector<1x16x16x128xf32>
    %176 = vector.extract_strided_slice %10 {offsets = [10, 0], sizes = [1, 128], strides = [1, 1]} : vector<49x128xf32> to vector<1x128xf32>
    %177 = vector.shape_cast %176 : vector<1x128xf32> to vector<128xf32>
    %178 = vector.shape_cast %177 : vector<128xf32> to vector<1x1x1x128xf32>
    %179 = vector.broadcast %178 : vector<1x1x1x128xf32> to vector<1x16x16x128xf32>
    %180 = arith.mulf %175, %179 : vector<1x16x16x128xf32>
    %181 = arith.addf %174, %180 : vector<1x16x16x128xf32>
    %182 = vector.extract_strided_slice %167 {offsets = [0, 2, 0, 0], sizes = [1, 16, 16, 128], strides = [1, 1, 1, 1]} : vector<1x22x16x128xf32> to vector<1x16x16x128xf32>
    %183 = vector.extract_strided_slice %10 {offsets = [17, 0], sizes = [1, 128], strides = [1, 1]} : vector<49x128xf32> to vector<1x128xf32>
    %184 = vector.shape_cast %183 : vector<1x128xf32> to vector<128xf32>
    %185 = vector.shape_cast %184 : vector<128xf32> to vector<1x1x1x128xf32>
    %186 = vector.broadcast %185 : vector<1x1x1x128xf32> to vector<1x16x16x128xf32>
    %187 = arith.mulf %182, %186 : vector<1x16x16x128xf32>
    %188 = arith.addf %181, %187 : vector<1x16x16x128xf32>
    %189 = vector.extract_strided_slice %167 {offsets = [0, 3, 0, 0], sizes = [1, 16, 16, 128], strides = [1, 1, 1, 1]} : vector<1x22x16x128xf32> to vector<1x16x16x128xf32>
    %190 = vector.extract_strided_slice %10 {offsets = [24, 0], sizes = [1, 128], strides = [1, 1]} : vector<49x128xf32> to vector<1x128xf32>
    %191 = vector.shape_cast %190 : vector<1x128xf32> to vector<128xf32>
    %192 = vector.shape_cast %191 : vector<128xf32> to vector<1x1x1x128xf32>
    %193 = vector.broadcast %192 : vector<1x1x1x128xf32> to vector<1x16x16x128xf32>
    %194 = arith.mulf %189, %193 : vector<1x16x16x128xf32>
    %195 = arith.addf %188, %194 : vector<1x16x16x128xf32>
    %196 = vector.extract_strided_slice %167 {offsets = [0, 4, 0, 0], sizes = [1, 16, 16, 128], strides = [1, 1, 1, 1]} : vector<1x22x16x128xf32> to vector<1x16x16x128xf32>
    %197 = vector.extract_strided_slice %10 {offsets = [31, 0], sizes = [1, 128], strides = [1, 1]} : vector<49x128xf32> to vector<1x128xf32>
    %198 = vector.shape_cast %197 : vector<1x128xf32> to vector<128xf32>
    %199 = vector.shape_cast %198 : vector<128xf32> to vector<1x1x1x128xf32>
    %200 = vector.broadcast %199 : vector<1x1x1x128xf32> to vector<1x16x16x128xf32>
    %201 = arith.mulf %196, %200 : vector<1x16x16x128xf32>
    %202 = arith.addf %195, %201 : vector<1x16x16x128xf32>
    %203 = vector.extract_strided_slice %167 {offsets = [0, 5, 0, 0], sizes = [1, 16, 16, 128], strides = [1, 1, 1, 1]} : vector<1x22x16x128xf32> to vector<1x16x16x128xf32>
    %204 = vector.extract_strided_slice %10 {offsets = [38, 0], sizes = [1, 128], strides = [1, 1]} : vector<49x128xf32> to vector<1x128xf32>
    %205 = vector.shape_cast %204 : vector<1x128xf32> to vector<128xf32>
    %206 = vector.shape_cast %205 : vector<128xf32> to vector<1x1x1x128xf32>
    %207 = vector.broadcast %206 : vector<1x1x1x128xf32> to vector<1x16x16x128xf32>
    %208 = arith.mulf %203, %207 : vector<1x16x16x128xf32>
    %209 = arith.addf %202, %208 : vector<1x16x16x128xf32>
    %210 = vector.extract_strided_slice %167 {offsets = [0, 6, 0, 0], sizes = [1, 16, 16, 128], strides = [1, 1, 1, 1]} : vector<1x22x16x128xf32> to vector<1x16x16x128xf32>
    %211 = vector.extract_strided_slice %10 {offsets = [45, 0], sizes = [1, 128], strides = [1, 1]} : vector<49x128xf32> to vector<1x128xf32>
    %212 = vector.shape_cast %211 : vector<1x128xf32> to vector<128xf32>
    %213 = vector.shape_cast %212 : vector<128xf32> to vector<1x1x1x128xf32>
    %214 = vector.broadcast %213 : vector<1x1x1x128xf32> to vector<1x16x16x128xf32>
    %215 = arith.mulf %210, %214 : vector<1x16x16x128xf32>
    %216 = arith.addf %209, %215 : vector<1x16x16x128xf32>
    %c23_i32 = arith.constant 23 : i32
    %217 = tpu.dynamic_rotate %11 by %c23_i32 dim 2 : vector<1x22x32x128xf32>, i32 -> vector<1x22x32x128xf32>
    %218 = vector.extract_strided_slice %217 {offsets = [0, 0, 0, 0], sizes = [1, 22, 16, 128], strides = [1, 1, 1, 1]} : vector<1x22x32x128xf32> to vector<1x22x16x128xf32>
    %219 = vector.extract_strided_slice %218 {offsets = [0, 0, 0, 0], sizes = [1, 16, 16, 128], strides = [1, 1, 1, 1]} : vector<1x22x16x128xf32> to vector<1x16x16x128xf32>
    %220 = vector.extract_strided_slice %10 {offsets = [4, 0], sizes = [1, 128], strides = [1, 1]} : vector<49x128xf32> to vector<1x128xf32>
    %221 = vector.shape_cast %220 : vector<1x128xf32> to vector<128xf32>
    %222 = vector.shape_cast %221 : vector<128xf32> to vector<1x1x1x128xf32>
    %223 = vector.broadcast %222 : vector<1x1x1x128xf32> to vector<1x16x16x128xf32>
    %224 = arith.mulf %219, %223 : vector<1x16x16x128xf32>
    %225 = arith.addf %216, %224 : vector<1x16x16x128xf32>
    %226 = vector.extract_strided_slice %218 {offsets = [0, 1, 0, 0], sizes = [1, 16, 16, 128], strides = [1, 1, 1, 1]} : vector<1x22x16x128xf32> to vector<1x16x16x128xf32>
    %227 = vector.extract_strided_slice %10 {offsets = [11, 0], sizes = [1, 128], strides = [1, 1]} : vector<49x128xf32> to vector<1x128xf32>
    %228 = vector.shape_cast %227 : vector<1x128xf32> to vector<128xf32>
    %229 = vector.shape_cast %228 : vector<128xf32> to vector<1x1x1x128xf32>
    %230 = vector.broadcast %229 : vector<1x1x1x128xf32> to vector<1x16x16x128xf32>
    %231 = arith.mulf %226, %230 : vector<1x16x16x128xf32>
    %232 = arith.addf %225, %231 : vector<1x16x16x128xf32>
    %233 = vector.extract_strided_slice %218 {offsets = [0, 2, 0, 0], sizes = [1, 16, 16, 128], strides = [1, 1, 1, 1]} : vector<1x22x16x128xf32> to vector<1x16x16x128xf32>
    %234 = vector.extract_strided_slice %10 {offsets = [18, 0], sizes = [1, 128], strides = [1, 1]} : vector<49x128xf32> to vector<1x128xf32>
    %235 = vector.shape_cast %234 : vector<1x128xf32> to vector<128xf32>
    %236 = vector.shape_cast %235 : vector<128xf32> to vector<1x1x1x128xf32>
    %237 = vector.broadcast %236 : vector<1x1x1x128xf32> to vector<1x16x16x128xf32>
    %238 = arith.mulf %233, %237 : vector<1x16x16x128xf32>
    %239 = arith.addf %232, %238 : vector<1x16x16x128xf32>
    %240 = vector.extract_strided_slice %218 {offsets = [0, 3, 0, 0], sizes = [1, 16, 16, 128], strides = [1, 1, 1, 1]} : vector<1x22x16x128xf32> to vector<1x16x16x128xf32>
    %241 = vector.extract_strided_slice %10 {offsets = [25, 0], sizes = [1, 128], strides = [1, 1]} : vector<49x128xf32> to vector<1x128xf32>
    %242 = vector.shape_cast %241 : vector<1x128xf32> to vector<128xf32>
    %243 = vector.shape_cast %242 : vector<128xf32> to vector<1x1x1x128xf32>
    %244 = vector.broadcast %243 : vector<1x1x1x128xf32> to vector<1x16x16x128xf32>
    %245 = arith.mulf %240, %244 : vector<1x16x16x128xf32>
    %246 = arith.addf %239, %245 : vector<1x16x16x128xf32>
    %247 = vector.extract_strided_slice %218 {offsets = [0, 4, 0, 0], sizes = [1, 16, 16, 128], strides = [1, 1, 1, 1]} : vector<1x22x16x128xf32> to vector<1x16x16x128xf32>
    %248 = vector.extract_strided_slice %10 {offsets = [32, 0], sizes = [1, 128], strides = [1, 1]} : vector<49x128xf32> to vector<1x128xf32>
    %249 = vector.shape_cast %248 : vector<1x128xf32> to vector<128xf32>
    %250 = vector.shape_cast %249 : vector<128xf32> to vector<1x1x1x128xf32>
    %251 = vector.broadcast %250 : vector<1x1x1x128xf32> to vector<1x16x16x128xf32>
    %252 = arith.mulf %247, %251 : vector<1x16x16x128xf32>
    %253 = arith.addf %246, %252 : vector<1x16x16x128xf32>
    %254 = vector.extract_strided_slice %218 {offsets = [0, 5, 0, 0], sizes = [1, 16, 16, 128], strides = [1, 1, 1, 1]} : vector<1x22x16x128xf32> to vector<1x16x16x128xf32>
    %255 = vector.extract_strided_slice %10 {offsets = [39, 0], sizes = [1, 128], strides = [1, 1]} : vector<49x128xf32> to vector<1x128xf32>
    %256 = vector.shape_cast %255 : vector<1x128xf32> to vector<128xf32>
    %257 = vector.shape_cast %256 : vector<128xf32> to vector<1x1x1x128xf32>
    %258 = vector.broadcast %257 : vector<1x1x1x128xf32> to vector<1x16x16x128xf32>
    %259 = arith.mulf %254, %258 : vector<1x16x16x128xf32>
    %260 = arith.addf %253, %259 : vector<1x16x16x128xf32>
    %261 = vector.extract_strided_slice %218 {offsets = [0, 6, 0, 0], sizes = [1, 16, 16, 128], strides = [1, 1, 1, 1]} : vector<1x22x16x128xf32> to vector<1x16x16x128xf32>
    %262 = vector.extract_strided_slice %10 {offsets = [46, 0], sizes = [1, 128], strides = [1, 1]} : vector<49x128xf32> to vector<1x128xf32>
    %263 = vector.shape_cast %262 : vector<1x128xf32> to vector<128xf32>
    %264 = vector.shape_cast %263 : vector<128xf32> to vector<1x1x1x128xf32>
    %265 = vector.broadcast %264 : vector<1x1x1x128xf32> to vector<1x16x16x128xf32>
    %266 = arith.mulf %261, %265 : vector<1x16x16x128xf32>
    %267 = arith.addf %260, %266 : vector<1x16x16x128xf32>
    %c22_i32 = arith.constant 22 : i32
    %268 = tpu.dynamic_rotate %11 by %c22_i32 dim 2 : vector<1x22x32x128xf32>, i32 -> vector<1x22x32x128xf32>
    %269 = vector.extract_strided_slice %268 {offsets = [0, 0, 0, 0], sizes = [1, 22, 16, 128], strides = [1, 1, 1, 1]} : vector<1x22x32x128xf32> to vector<1x22x16x128xf32>
    %270 = vector.extract_strided_slice %269 {offsets = [0, 0, 0, 0], sizes = [1, 16, 16, 128], strides = [1, 1, 1, 1]} : vector<1x22x16x128xf32> to vector<1x16x16x128xf32>
    %271 = vector.extract_strided_slice %10 {offsets = [5, 0], sizes = [1, 128], strides = [1, 1]} : vector<49x128xf32> to vector<1x128xf32>
    %272 = vector.shape_cast %271 : vector<1x128xf32> to vector<128xf32>
    %273 = vector.shape_cast %272 : vector<128xf32> to vector<1x1x1x128xf32>
    %274 = vector.broadcast %273 : vector<1x1x1x128xf32> to vector<1x16x16x128xf32>
    %275 = arith.mulf %270, %274 : vector<1x16x16x128xf32>
    %276 = arith.addf %267, %275 : vector<1x16x16x128xf32>
    %277 = vector.extract_strided_slice %269 {offsets = [0, 1, 0, 0], sizes = [1, 16, 16, 128], strides = [1, 1, 1, 1]} : vector<1x22x16x128xf32> to vector<1x16x16x128xf32>
    %278 = vector.extract_strided_slice %10 {offsets = [12, 0], sizes = [1, 128], strides = [1, 1]} : vector<49x128xf32> to vector<1x128xf32>
    %279 = vector.shape_cast %278 : vector<1x128xf32> to vector<128xf32>
    %280 = vector.shape_cast %279 : vector<128xf32> to vector<1x1x1x128xf32>
    %281 = vector.broadcast %280 : vector<1x1x1x128xf32> to vector<1x16x16x128xf32>
    %282 = arith.mulf %277, %281 : vector<1x16x16x128xf32>
    %283 = arith.addf %276, %282 : vector<1x16x16x128xf32>
    %284 = vector.extract_strided_slice %269 {offsets = [0, 2, 0, 0], sizes = [1, 16, 16, 128], strides = [1, 1, 1, 1]} : vector<1x22x16x128xf32> to vector<1x16x16x128xf32>
    %285 = vector.extract_strided_slice %10 {offsets = [19, 0], sizes = [1, 128], strides = [1, 1]} : vector<49x128xf32> to vector<1x128xf32>
    %286 = vector.shape_cast %285 : vector<1x128xf32> to vector<128xf32>
    %287 = vector.shape_cast %286 : vector<128xf32> to vector<1x1x1x128xf32>
    %288 = vector.broadcast %287 : vector<1x1x1x128xf32> to vector<1x16x16x128xf32>
    %289 = arith.mulf %284, %288 : vector<1x16x16x128xf32>
    %290 = arith.addf %283, %289 : vector<1x16x16x128xf32>
    %291 = vector.extract_strided_slice %269 {offsets = [0, 3, 0, 0], sizes = [1, 16, 16, 128], strides = [1, 1, 1, 1]} : vector<1x22x16x128xf32> to vector<1x16x16x128xf32>
    %292 = vector.extract_strided_slice %10 {offsets = [26, 0], sizes = [1, 128], strides = [1, 1]} : vector<49x128xf32> to vector<1x128xf32>
    %293 = vector.shape_cast %292 : vector<1x128xf32> to vector<128xf32>
    %294 = vector.shape_cast %293 : vector<128xf32> to vector<1x1x1x128xf32>
    %295 = vector.broadcast %294 : vector<1x1x1x128xf32> to vector<1x16x16x128xf32>
    %296 = arith.mulf %291, %295 : vector<1x16x16x128xf32>
    %297 = arith.addf %290, %296 : vector<1x16x16x128xf32>
    %298 = vector.extract_strided_slice %269 {offsets = [0, 4, 0, 0], sizes = [1, 16, 16, 128], strides = [1, 1, 1, 1]} : vector<1x22x16x128xf32> to vector<1x16x16x128xf32>
    %299 = vector.extract_strided_slice %10 {offsets = [33, 0], sizes = [1, 128], strides = [1, 1]} : vector<49x128xf32> to vector<1x128xf32>
    %300 = vector.shape_cast %299 : vector<1x128xf32> to vector<128xf32>
    %301 = vector.shape_cast %300 : vector<128xf32> to vector<1x1x1x128xf32>
    %302 = vector.broadcast %301 : vector<1x1x1x128xf32> to vector<1x16x16x128xf32>
    %303 = arith.mulf %298, %302 : vector<1x16x16x128xf32>
    %304 = arith.addf %297, %303 : vector<1x16x16x128xf32>
    %305 = vector.extract_strided_slice %269 {offsets = [0, 5, 0, 0], sizes = [1, 16, 16, 128], strides = [1, 1, 1, 1]} : vector<1x22x16x128xf32> to vector<1x16x16x128xf32>
    %306 = vector.extract_strided_slice %10 {offsets = [40, 0], sizes = [1, 128], strides = [1, 1]} : vector<49x128xf32> to vector<1x128xf32>
    %307 = vector.shape_cast %306 : vector<1x128xf32> to vector<128xf32>
    %308 = vector.shape_cast %307 : vector<128xf32> to vector<1x1x1x128xf32>
    %309 = vector.broadcast %308 : vector<1x1x1x128xf32> to vector<1x16x16x128xf32>
    %310 = arith.mulf %305, %309 : vector<1x16x16x128xf32>
    %311 = arith.addf %304, %310 : vector<1x16x16x128xf32>
    %312 = vector.extract_strided_slice %269 {offsets = [0, 6, 0, 0], sizes = [1, 16, 16, 128], strides = [1, 1, 1, 1]} : vector<1x22x16x128xf32> to vector<1x16x16x128xf32>
    %313 = vector.extract_strided_slice %10 {offsets = [47, 0], sizes = [1, 128], strides = [1, 1]} : vector<49x128xf32> to vector<1x128xf32>
    %314 = vector.shape_cast %313 : vector<1x128xf32> to vector<128xf32>
    %315 = vector.shape_cast %314 : vector<128xf32> to vector<1x1x1x128xf32>
    %316 = vector.broadcast %315 : vector<1x1x1x128xf32> to vector<1x16x16x128xf32>
    %317 = arith.mulf %312, %316 : vector<1x16x16x128xf32>
    %318 = arith.addf %311, %317 : vector<1x16x16x128xf32>
    %c21_i32 = arith.constant 21 : i32
    %319 = tpu.dynamic_rotate %11 by %c21_i32 dim 2 : vector<1x22x32x128xf32>, i32 -> vector<1x22x32x128xf32>
    %320 = vector.extract_strided_slice %319 {offsets = [0, 0, 0, 0], sizes = [1, 22, 16, 128], strides = [1, 1, 1, 1]} : vector<1x22x32x128xf32> to vector<1x22x16x128xf32>
    %321 = vector.extract_strided_slice %320 {offsets = [0, 0, 0, 0], sizes = [1, 16, 16, 128], strides = [1, 1, 1, 1]} : vector<1x22x16x128xf32> to vector<1x16x16x128xf32>
    %322 = vector.extract_strided_slice %10 {offsets = [6, 0], sizes = [1, 128], strides = [1, 1]} : vector<49x128xf32> to vector<1x128xf32>
    %323 = vector.shape_cast %322 : vector<1x128xf32> to vector<128xf32>
    %324 = vector.shape_cast %323 : vector<128xf32> to vector<1x1x1x128xf32>
    %325 = vector.broadcast %324 : vector<1x1x1x128xf32> to vector<1x16x16x128xf32>
    %326 = arith.mulf %321, %325 : vector<1x16x16x128xf32>
    %327 = arith.addf %318, %326 : vector<1x16x16x128xf32>
    %328 = vector.extract_strided_slice %320 {offsets = [0, 1, 0, 0], sizes = [1, 16, 16, 128], strides = [1, 1, 1, 1]} : vector<1x22x16x128xf32> to vector<1x16x16x128xf32>
    %329 = vector.extract_strided_slice %10 {offsets = [13, 0], sizes = [1, 128], strides = [1, 1]} : vector<49x128xf32> to vector<1x128xf32>
    %330 = vector.shape_cast %329 : vector<1x128xf32> to vector<128xf32>
    %331 = vector.shape_cast %330 : vector<128xf32> to vector<1x1x1x128xf32>
    %332 = vector.broadcast %331 : vector<1x1x1x128xf32> to vector<1x16x16x128xf32>
    %333 = arith.mulf %328, %332 : vector<1x16x16x128xf32>
    %334 = arith.addf %327, %333 : vector<1x16x16x128xf32>
    %335 = vector.extract_strided_slice %320 {offsets = [0, 2, 0, 0], sizes = [1, 16, 16, 128], strides = [1, 1, 1, 1]} : vector<1x22x16x128xf32> to vector<1x16x16x128xf32>
    %336 = vector.extract_strided_slice %10 {offsets = [20, 0], sizes = [1, 128], strides = [1, 1]} : vector<49x128xf32> to vector<1x128xf32>
    %337 = vector.shape_cast %336 : vector<1x128xf32> to vector<128xf32>
    %338 = vector.shape_cast %337 : vector<128xf32> to vector<1x1x1x128xf32>
    %339 = vector.broadcast %338 : vector<1x1x1x128xf32> to vector<1x16x16x128xf32>
    %340 = arith.mulf %335, %339 : vector<1x16x16x128xf32>
    %341 = arith.addf %334, %340 : vector<1x16x16x128xf32>
    %342 = vector.extract_strided_slice %320 {offsets = [0, 3, 0, 0], sizes = [1, 16, 16, 128], strides = [1, 1, 1, 1]} : vector<1x22x16x128xf32> to vector<1x16x16x128xf32>
    %343 = vector.extract_strided_slice %10 {offsets = [27, 0], sizes = [1, 128], strides = [1, 1]} : vector<49x128xf32> to vector<1x128xf32>
    %344 = vector.shape_cast %343 : vector<1x128xf32> to vector<128xf32>
    %345 = vector.shape_cast %344 : vector<128xf32> to vector<1x1x1x128xf32>
    %346 = vector.broadcast %345 : vector<1x1x1x128xf32> to vector<1x16x16x128xf32>
    %347 = arith.mulf %342, %346 : vector<1x16x16x128xf32>
    %348 = arith.addf %341, %347 : vector<1x16x16x128xf32>
    %349 = vector.extract_strided_slice %320 {offsets = [0, 4, 0, 0], sizes = [1, 16, 16, 128], strides = [1, 1, 1, 1]} : vector<1x22x16x128xf32> to vector<1x16x16x128xf32>
    %350 = vector.extract_strided_slice %10 {offsets = [34, 0], sizes = [1, 128], strides = [1, 1]} : vector<49x128xf32> to vector<1x128xf32>
    %351 = vector.shape_cast %350 : vector<1x128xf32> to vector<128xf32>
    %352 = vector.shape_cast %351 : vector<128xf32> to vector<1x1x1x128xf32>
    %353 = vector.broadcast %352 : vector<1x1x1x128xf32> to vector<1x16x16x128xf32>
    %354 = arith.mulf %349, %353 : vector<1x16x16x128xf32>
    %355 = arith.addf %348, %354 : vector<1x16x16x128xf32>
    %356 = vector.extract_strided_slice %320 {offsets = [0, 5, 0, 0], sizes = [1, 16, 16, 128], strides = [1, 1, 1, 1]} : vector<1x22x16x128xf32> to vector<1x16x16x128xf32>
    %357 = vector.extract_strided_slice %10 {offsets = [41, 0], sizes = [1, 128], strides = [1, 1]} : vector<49x128xf32> to vector<1x128xf32>
    %358 = vector.shape_cast %357 : vector<1x128xf32> to vector<128xf32>
    %359 = vector.shape_cast %358 : vector<128xf32> to vector<1x1x1x128xf32>
    %360 = vector.broadcast %359 : vector<1x1x1x128xf32> to vector<1x16x16x128xf32>
    %361 = arith.mulf %356, %360 : vector<1x16x16x128xf32>
    %362 = arith.addf %355, %361 : vector<1x16x16x128xf32>
    %363 = vector.extract_strided_slice %320 {offsets = [0, 6, 0, 0], sizes = [1, 16, 16, 128], strides = [1, 1, 1, 1]} : vector<1x22x16x128xf32> to vector<1x16x16x128xf32>
    %364 = vector.extract_strided_slice %10 {offsets = [48, 0], sizes = [1, 128], strides = [1, 1]} : vector<49x128xf32> to vector<1x128xf32>
    %365 = vector.shape_cast %364 : vector<1x128xf32> to vector<128xf32>
    %366 = vector.shape_cast %365 : vector<128xf32> to vector<1x1x1x128xf32>
    %367 = vector.broadcast %366 : vector<1x1x1x128xf32> to vector<1x16x16x128xf32>
    %368 = arith.mulf %363, %367 : vector<1x16x16x128xf32>
    %369 = arith.addf %362, %368 : vector<1x16x16x128xf32>
    %c0_29 = arith.constant 0 : index
    %c0_30 = arith.constant 0 : index
    %370 = vector.load %arg3[%c0_29, %c0_30] : memref<1x128xf32, #tpu.memory_space<vmem>>, vector<1x128xf32>
    %371 = vector.shape_cast %370 : vector<1x128xf32> to vector<1x1x1x128xf32>
    %372 = vector.broadcast %371 : vector<1x1x1x128xf32> to vector<1x16x16x128xf32>
    %373 = arith.addf %369, %372 : vector<1x16x16x128xf32>
    %cst_31 = arith.constant dense<0.000000e+00> : vector<1x16x16xf32>
    %374 = vector.multi_reduction <add>, %373, %cst_31 [3] : vector<1x16x16x128xf32> to vector<1x16x16xf32>
    %375 = vector.shape_cast %374 : vector<1x16x16xf32> to vector<1x16x16x1xf32>
    %cst_32 = arith.constant 1.280000e+02 : f32
    %376 = vector.broadcast %cst_32 : f32 to vector<1x16x16x1xf32>
    %377 = arith.divf %375, %376 : vector<1x16x16x1xf32>
    %378 = vector.broadcast %377 : vector<1x16x16x1xf32> to vector<1x16x16x128xf32>
    %379 = arith.subf %373, %378 : vector<1x16x16x128xf32>
    %380 = arith.mulf %379, %379 : vector<1x16x16x128xf32>
    %cst_33 = arith.constant dense<0.000000e+00> : vector<1x16x16xf32>
    %381 = vector.multi_reduction <add>, %380, %cst_33 [3] : vector<1x16x16x128xf32> to vector<1x16x16xf32>
    %382 = vector.shape_cast %381 : vector<1x16x16xf32> to vector<1x16x16x1xf32>
    %cst_34 = arith.constant 1.280000e+02 : f32
    %383 = vector.broadcast %cst_34 : f32 to vector<1x16x16x1xf32>
    %384 = arith.divf %382, %383 : vector<1x16x16x1xf32>
    %cst_35 = arith.constant 9.99999997E-7 : f32
    %385 = vector.broadcast %cst_35 : f32 to vector<1x16x16x1xf32>
    %386 = arith.addf %384, %385 : vector<1x16x16x1xf32>
    %387 = math.rsqrt %386 : vector<1x16x16x1xf32>
    %388 = vector.broadcast %387 : vector<1x16x16x1xf32> to vector<1x16x16x128xf32>
    %389 = arith.mulf %379, %388 : vector<1x16x16x128xf32>
    %c0_36 = arith.constant 0 : index
    %c0_37 = arith.constant 0 : index
    %390 = vector.load %arg4[%c0_36, %c0_37] : memref<1x128xf32, #tpu.memory_space<vmem>>, vector<1x128xf32>
    %391 = vector.shape_cast %390 : vector<1x128xf32> to vector<1x1x1x128xf32>
    %392 = vector.broadcast %391 : vector<1x1x1x128xf32> to vector<1x16x16x128xf32>
    %393 = arith.mulf %389, %392 : vector<1x16x16x128xf32>
    %c0_38 = arith.constant 0 : index
    %c0_39 = arith.constant 0 : index
    %394 = vector.load %arg5[%c0_38, %c0_39] : memref<1x128xf32, #tpu.memory_space<vmem>>, vector<1x128xf32>
    %395 = vector.shape_cast %394 : vector<1x128xf32> to vector<1x1x1x128xf32>
    %396 = vector.broadcast %395 : vector<1x1x1x128xf32> to vector<1x16x16x128xf32>
    %397 = arith.addf %393, %396 : vector<1x16x16x128xf32>
    %398 = vector.shape_cast %397 : vector<1x16x16x128xf32> to vector<256x128xf32>
    %399 = arith.truncf %398 : vector<256x128xf32> to vector<256x128xbf16>
    %c0_40 = arith.constant 0 : index
    %c0_41 = arith.constant 0 : index
    %400 = vector.load %arg6[%c0_40, %c0_41] : memref<128x256xbf16, #tpu.memory_space<vmem>>, vector<128x256xbf16>
    %cst_42 = arith.constant dense<0.000000e+00> : vector<256x256xf32>
    %401 = tpu.matmul %399, %400, %cst_42 {dimension_numbers = #tpu.dot_dimension_numbers<[1], [0], [0], [1], [0, 0, 1, 1], [], []>} : vector<256x128xbf16>, vector<128x256xbf16>, vector<256x256xf32> -> vector<256x256xf32>
    %c0_43 = arith.constant 0 : index
    %c0_44 = arith.constant 0 : index
    %402 = vector.load %arg7[%c0_43, %c0_44] : memref<1x256xf32, #tpu.memory_space<vmem>>, vector<1x256xf32>
    %403 = vector.broadcast %402 : vector<1x256xf32> to vector<256x256xf32>
    %404 = arith.addf %401, %403 : vector<256x256xf32>
    %cst_45 = arith.constant 5.000000e-01 : f32
    %405 = vector.broadcast %cst_45 : f32 to vector<256x256xf32>
    %406 = arith.mulf %405, %404 : vector<256x256xf32>
    %cst_46 = arith.constant 0.707106769 : f32
    %407 = vector.broadcast %cst_46 : f32 to vector<256x256xf32>
    %408 = arith.mulf %404, %407 : vector<256x256xf32>
    %cst_47 = arith.constant 0.000000e+00 : f32
    %409 = vector.broadcast %cst_47 : f32 to vector<256x256xf32>
    %410 = arith.cmpf olt, %408, %409 : vector<256x256xf32>
    %cst_48 = arith.constant -1.000000e+00 : f32
    %cst_49 = arith.constant 1.000000e+00 : f32
    %411 = vector.broadcast %cst_48 : f32 to vector<256x256xf32>
    %412 = vector.broadcast %cst_49 : f32 to vector<256x256xf32>
    %413 = arith.select %410, %411, %412 : vector<256x256xi1>, vector<256x256xf32>
    %414 = math.absf %408 : vector<256x256xf32>
    %cst_50 = arith.constant 0.327591091 : f32
    %415 = vector.broadcast %cst_50 : f32 to vector<256x256xf32>
    %416 = arith.mulf %415, %414 : vector<256x256xf32>
    %cst_51 = arith.constant 1.000000e+00 : f32
    %417 = vector.broadcast %cst_51 : f32 to vector<256x256xf32>
    %418 = arith.addf %417, %416 : vector<256x256xf32>
    %419 = tpu.reciprocal %418 {approx = true} : vector<256x256xf32> -> vector<256x256xf32>
    %cst_52 = arith.constant 1.06140542 : f32
    %420 = vector.broadcast %cst_52 : f32 to vector<256x256xf32>
    %421 = arith.mulf %420, %419 : vector<256x256xf32>
    %cst_53 = arith.constant -1.45315206 : f32
    %422 = vector.broadcast %cst_53 : f32 to vector<256x256xf32>
    %423 = arith.addf %421, %422 : vector<256x256xf32>
    %424 = arith.mulf %423, %419 : vector<256x256xf32>
    %cst_54 = arith.constant 1.42141378 : f32
    %425 = vector.broadcast %cst_54 : f32 to vector<256x256xf32>
    %426 = arith.addf %424, %425 : vector<256x256xf32>
    %427 = arith.mulf %426, %419 : vector<256x256xf32>
    %cst_55 = arith.constant -0.284496725 : f32
    %428 = vector.broadcast %cst_55 : f32 to vector<256x256xf32>
    %429 = arith.addf %427, %428 : vector<256x256xf32>
    %430 = arith.mulf %429, %419 : vector<256x256xf32>
    %cst_56 = arith.constant 0.254829586 : f32
    %431 = vector.broadcast %cst_56 : f32 to vector<256x256xf32>
    %432 = arith.addf %430, %431 : vector<256x256xf32>
    %433 = arith.mulf %432, %419 : vector<256x256xf32>
    %cst_57 = arith.constant 0.000000e+00 : f32
    %434 = vector.broadcast %cst_57 : f32 to vector<256x256xf32>
    %435 = arith.subf %434, %414 : vector<256x256xf32>
    %436 = arith.mulf %435, %414 : vector<256x256xf32>
    %437 = math.exp %436 : vector<256x256xf32>
    %438 = arith.mulf %433, %437 : vector<256x256xf32>
    %cst_58 = arith.constant 1.000000e+00 : f32
    %439 = vector.broadcast %cst_58 : f32 to vector<256x256xf32>
    %440 = arith.subf %439, %438 : vector<256x256xf32>
    %441 = arith.mulf %413, %440 : vector<256x256xf32>
    %cst_59 = arith.constant 1.000000e+00 : f32
    %442 = vector.broadcast %cst_59 : f32 to vector<256x256xf32>
    %443 = arith.addf %442, %441 : vector<256x256xf32>
    %444 = arith.mulf %406, %443 : vector<256x256xf32>
    %445 = arith.truncf %444 : vector<256x256xf32> to vector<256x256xbf16>
    %c0_60 = arith.constant 0 : index
    %c0_61 = arith.constant 0 : index
    %446 = vector.load %arg8[%c0_60, %c0_61] : memref<256x128xbf16, #tpu.memory_space<vmem>>, vector<256x128xbf16>
    %cst_62 = arith.constant dense<0.000000e+00> : vector<256x128xf32>
    %447 = tpu.matmul %445, %446, %cst_62 {dimension_numbers = #tpu.dot_dimension_numbers<[1], [0], [0], [1], [0, 0, 1, 1], [], []>} : vector<256x256xbf16>, vector<256x128xbf16>, vector<256x128xf32> -> vector<256x128xf32>
    %c0_63 = arith.constant 0 : index
    %c0_64 = arith.constant 0 : index
    %448 = vector.load %arg9[%c0_63, %c0_64] : memref<1x128xf32, #tpu.memory_space<vmem>>, vector<1x128xf32>
    %449 = vector.broadcast %448 : vector<1x128xf32> to vector<256x128xf32>
    %450 = arith.addf %447, %449 : vector<256x128xf32>
    %451 = vector.shape_cast %450 : vector<256x128xf32> to vector<1x16x16x128xf32>
    %c0_65 = arith.constant 0 : index
    %c0_66 = arith.constant 0 : index
    %452 = vector.load %arg10[%c0_65, %c0_66] : memref<1x128xf32, #tpu.memory_space<vmem>>, vector<1x128xf32>
    %453 = vector.shape_cast %452 : vector<1x128xf32> to vector<1x1x1x128xf32>
    %454 = vector.broadcast %453 : vector<1x1x1x128xf32> to vector<1x16x16x128xf32>
    %455 = arith.mulf %451, %454 : vector<1x16x16x128xf32>
    %c0_67 = arith.constant 0 : index
    %c0_68 = arith.constant 0 : index
    %c0_69 = arith.constant 0 : index
    %c0_70 = arith.constant 0 : index
    %456 = vector.load %arg1[%c0_67, %c0_68, %c0_69, %c0_70] : memref<1x16x16x128xf32, #tpu.memory_space<vmem>>, vector<1x16x16x128xf32>
    %457 = arith.addf %455, %456 : vector<1x16x16x128xf32>
    %c0_71 = arith.constant 0 : index
    %c0_72 = arith.constant 0 : index
    %c0_73 = arith.constant 0 : index
    %c0_74 = arith.constant 0 : index
    %458 = vector.load %arg11[%c0_71, %c0_72, %c0_73, %c0_74] : memref<1x16x16x128xf32, #tpu.memory_space<vmem>>, vector<1x16x16x128xf32>
    tpu.vector_store %arg11[%c0_71, %c0_72, %c0_73, %c0_74], %457 {strides = array<i32>} : memref<1x16x16x128xf32, #tpu.memory_space<vmem>>, vector<1x16x16x128xf32>,
    return
  }
  func.func @transform_0(%arg0: i32) -> (i32, i32, i32, i32) {
    %c0_i32 = arith.constant 0 : i32
    %c0_i32_0 = arith.constant 0 : i32
    %c0_i32_1 = arith.constant 0 : i32
    %c0_i32_2 = arith.constant 0 : i32
    return %arg0, %c0_i32, %c0_i32_0, %c0_i32_1 : i32, i32, i32, i32
  }
  func.func @transform_1(%arg0: i32) -> (i32, i32) {
    %c0_i32 = arith.constant 0 : i32
    %c0_i32_0 = arith.constant 0 : i32
    %c0_i32_1 = arith.constant 0 : i32
    return %c0_i32, %c0_i32_0 : i32, i32
  }
  func.func @transform_2(%arg0: i32) -> (i32, i32) {
    %c0_i32 = arith.constant 0 : i32
    %c0_i32_0 = arith.constant 0 : i32
    %c0_i32_1 = arith.constant 0 : i32
    return %c0_i32, %c0_i32_0 : i32, i32
  }
  func.func @transform_3(%arg0: i32) -> (i32, i32) {
    %c0_i32 = arith.constant 0 : i32
    %c0_i32_0 = arith.constant 0 : i32
    %c0_i32_1 = arith.constant 0 : i32
    return %c0_i32, %c0_i32_0 : i32, i32
  }
  func.func @transform_4(%arg0: i32) -> (i32, i32) {
    %c0_i32 = arith.constant 0 : i32
    %c0_i32_0 = arith.constant 0 : i32
    %c0_i32_1 = arith.constant 0 : i32
    return %c0_i32, %c0_i32_0 : i32, i32
  }
  func.func @transform_5(%arg0: i32) -> (i32, i32) {
    %c0_i32 = arith.constant 0 : i32
    %c0_i32_0 = arith.constant 0 : i32
    %c0_i32_1 = arith.constant 0 : i32
    return %c0_i32, %c0_i32_0 : i32, i32
  }
  func.func @transform_6(%arg0: i32) -> (i32, i32) {
    %c0_i32 = arith.constant 0 : i32
    %c0_i32_0 = arith.constant 0 : i32
    %c0_i32_1 = arith.constant 0 : i32
    return %c0_i32, %c0_i32_0 : i32, i32
  }
  func.func @transform_7(%arg0: i32) -> (i32, i32) {
    %c0_i32 = arith.constant 0 : i32
    %c0_i32_0 = arith.constant 0 : i32
    %c0_i32_1 = arith.constant 0 : i32
    return %c0_i32, %c0_i32_0 : i32, i32
  }
  func.func @transform_8(%arg0: i32) -> (i32, i32) {
    %c0_i32 = arith.constant 0 : i32
    %c0_i32_0 = arith.constant 0 : i32
    %c0_i32_1 = arith.constant 0 : i32
    return %c0_i32, %c0_i32_0 : i32, i32
  }
  func.func @transform_9(%arg0: i32) -> (i32, i32) {
    %c0_i32 = arith.constant 0 : i32
    %c0_i32_0 = arith.constant 0 : i32
    %c0_i32_1 = arith.constant 0 : i32
    return %c0_i32, %c0_i32_0 : i32, i32
  }
  func.func @transform_10(%arg0: i32) -> (i32, i32, i32, i32) {
    %c0_i32 = arith.constant 0 : i32
    %c0_i32_0 = arith.constant 0 : i32
    %c0_i32_1 = arith.constant 0 : i32
    %c0_i32_2 = arith.constant 0 : i32
    return %arg0, %c0_i32, %c0_i32_0, %c0_i32_1 : i32, i32, i32, i32
  }
}

</mosaic_0001>

<llo_original>
// kernel: convnext_block.1
$region0: #{convnext_block.1}
  #allocation0 [shape = 'u32[]', space=smem, size = 0x4, offset = 0x4, fixed_abs, tag = 'smem constant byte address 0x4 - core index']
  #allocation1 [shape = 'u32[144,128]{1,0:T(1,128)}', space=vmem, size = 0x12000, scoped, tag = 'internal scratch']
  #allocation2 [shape = 'f32[1,22,32,128]{3,2,1,0:T(8,128)}', space=vmem, size = 0x58000, scoped, tag = 'scratch operand']
  %s0 = inlined_call_operand.hbm [shape: f32[2,16,16,128], index: 0, kind: input, shape index: {}]
  %s1 = inlined_call_operand.hbm [shape: f32[49,128], index: 1, kind: input, shape index: {}]
  %s2 = inlined_call_operand.vmem [shape: f32[1,128], index: 2, kind: input, shape index: {}]
  %s3 = inlined_call_operand.vmem [shape: f32[1,128], index: 3, kind: input, shape index: {}]
  %s4 = inlined_call_operand.vmem [shape: f32[1,128], index: 4, kind: input, shape index: {}]
  %s5 = inlined_call_operand.hbm [shape: bf16[128,256], index: 5, kind: input, shape index: {}]
  %s6 = inlined_call_operand.vmem [shape: f32[1,256], index: 6, kind: input, shape index: {}]
  %s7 = inlined_call_operand.hbm [shape: bf16[256,128], index: 7, kind: input, shape index: {}]
  %s8 = inlined_call_operand.vmem [shape: f32[1,128], index: 8, kind: input, shape index: {}]
  %s9 = inlined_call_operand.vmem [shape: f32[1,128], index: 9, kind: input, shape index: {}]
  %s10 = inlined_call_operand.hbm [shape: f32[2,16,16,128], index: 10, kind: output, shape index: {}]
  %s11 = sld [smem:[#allocation0]]
  $region89: #{convnext_block.1} parent=0
    _
  %s13 = ssub.s32 1, %s11
  %s14 = scalar_select 0, %s13, %s11
  $region1: #{convnext_block.1} parent=0
    #allocation3 [shape = 'u8[262144]{0}', space=vmem, size = 0x40000, scoped, tag = 'input window, operand 0']
    #allocation4 [shape = 's32[2]{0}', space=sflag, size = 0x8, scoped, tag = 'scoped memory for convnext_block.1']
    #allocation5 [shape = 's32[2]{0}', space=sflag, size = 0x8, scoped, tag = 'scoped memory for convnext_block.1']
    #allocation6 [shape = 'u8[28672]{0}', space=vmem, size = 0x7000, scoped, tag = 'input window, operand 1, single buffered']
    #allocation7 [shape = 's32[1]{0}', space=sflag, size = 0x4, scoped, tag = 'scoped memory for convnext_block.1']
    #allocation8 [shape = 'u8[65536]{0}', space=vmem, size = 0x10000, scoped, tag = 'input window, operand 5, single buffered']
    #allocation9 [shape = 'u8[65536]{0}', space=vmem, size = 0x10000, scoped, tag = 'input window, operand 7, single buffered']
    #allocation10 [shape = 's32[1]{0}', space=sflag, size = 0x4, scoped, tag = 'scoped memory for convnext_block.1']
    #allocation11 [shape = 'u8[262144]{0}', space=vmem, size = 0x40000, scoped, tag = 'output window, operand 0']
    %15 = vsyncpa [#allocation4], 0
    %s16 = scalar_lea.sflag [#allocation4], 1
    %17 = vsyncpa %s16, 0
    %18 = vsyncpa [#allocation7], 0
    %19 = vsyncpa [#allocation10], 0
    %20 = vsyncpa [#allocation5], 0
    %s21 = scalar_lea.sflag [#allocation5], 1
    %22 = vsyncpa %s21, 0
    loop: start=0, step=1, limit=4
    $region2: #{convnext_block.1} parent=1 // loop_pre_header
      _
    $region3: #{convnext_block.1} parent=1 // loop_header
      %s24 = sphi 0, %s28
      %p25 = scmp.ge.s32.totalorder %s24, 4
      %s34 = sphi 0, %s36
      %s37 = sphi 0, %s34
      %s38 = sphi 0, %s37
      %s54 = sphi 0, %s38
      %s58 = sphi 0, %s58
      %s60 = sphi 0, %s58
      %s61 = sphi 0, %s60
      %s75 = sphi 0, %s61
      %s79 = sphi 0, %s79
      %s81 = sphi 0, %s79
      %s82 = sphi 0, %s81
      %s96 = sphi 0, %s82
      %s100 = sphi 0, %s100
      %s102 = sphi 0, %s100
      %s103 = sphi 0, %s102
      %s117 = sphi 0, %s103
      %s121 = sphi 0, %s121
      %s123 = sphi 0, %s121
      %s124 = sphi 0, %s123
      %s138 = sphi 0, %s124
      %s142 = sphi 0, %s142
      %s144 = sphi 0, %s142
      %s145 = sphi 0, %s144
      %s159 = sphi 0, %s145
      %s163 = sphi 0, %s163
      %s165 = sphi 0, %s163
      %s166 = sphi 0, %s165
      %s180 = sphi 0, %s166
      %s184 = sphi 0, %s184
      %s186 = sphi 0, %s184
      %s187 = sphi 0, %s186
      %s201 = sphi 0, %s187
      %s205 = sphi 0, %s205
      %s207 = sphi 0, %s205
      %s208 = sphi 0, %s207
      %s222 = sphi 0, %s208
      %s226 = sphi 0, %s226
      %s228 = sphi 0, %s226
      %s229 = sphi 0, %s228
      %s243 = sphi 0, %s229
      %s249 = sphi 0, %s251
      %s252 = sphi 0, %s249
      %s253 = sphi 0, %s252
      %s269 = sphi 0, %s253
    $region4: #{convnext_block.1} parent=1 // loop_header_branch
      %27 = sbr.rel (%p25) target = $region8
    $region5: #{convnext_block.1} parent=1 // loop_body
      %s29 = ssub.s32 %s24, 1
      %s30 = ssub.s32 %s24, 2
      %s31 = sadd.s32 %s24, 1
      %s32 = ssub.s32 %s24, %s31
      %p33 = scmp.eq.s32.totalorder %s32, 0
      %s35 = sadd.s32 %s34, 1
      %s36 = scalar_select %p33, %s34, %s35
      %p39 = pneg %p33
      %p40 = scmp.eq.s32.totalorder %s24, 1
      %p41 = por %p39, %p40
      %p42 = scmp.ne.s32.totalorder %s34, %s37
      %p43 = scmp.eq.s32.totalorder %s24, 0
      %p44 = por %p42, %p43
      %p45 = scmp.ne.s32.totalorder %s34, %s37
      %p46 = scmp.eq.s32.totalorder %s29, 1
      %p47 = por %p45, %p46
      %p48 = scmp.ne.s32.totalorder %s37, %s38
      %p49 = scmp.eq.s32.totalorder %s29, 0
      %p50 = por %p48, %p49
      %p51 = scmp.ne.s32.totalorder %s37, %s38
      %p52 = scmp.eq.s32.totalorder %s30, 1
      %p53 = por %p51, %p52
      %p55 = scmp.ne.s32.totalorder %s38, %s54
      %p56 = scmp.eq.s32.totalorder %s30, 0
      %p57 = por %p55, %p56
      %s59 = sadd.s32 %s58, 1
      %p62 = scmp.eq.s32.totalorder %s24, 1
      %p63 = scmp.ne.s32.totalorder %s58, %s60
      %p64 = scmp.eq.s32.totalorder %s24, 0
      %p65 = por %p63, %p64
      %p66 = scmp.ne.s32.totalorder %s58, %s60
      %p67 = scmp.eq.s32.totalorder %s29, 1
      %p68 = por %p66, %p67
      %p69 = scmp.ne.s32.totalorder %s60, %s61
      %p70 = scmp.eq.s32.totalorder %s29, 0
      %p71 = por %p69, %p70
      %p72 = scmp.ne.s32.totalorder %s60, %s61
      %p73 = scmp.eq.s32.totalorder %s30, 1
      %p74 = por %p72, %p73
      %p76 = scmp.ne.s32.totalorder %s61, %s75
      %p77 = scmp.eq.s32.totalorder %s30, 0
      %p78 = por %p76, %p77
      %s80 = sadd.s32 %s79, 1
      %p83 = scmp.eq.s32.totalorder %s24, 1
      %p84 = scmp.ne.s32.totalorder %s79, %s81
      %p85 = scmp.eq.s32.totalorder %s24, 0
      %p86 = por %p84, %p85
      %p87 = scmp.ne.s32.totalorder %s79, %s81
      %p88 = scmp.eq.s32.totalorder %s29, 1
      %p89 = por %p87, %p88
      %p90 = scmp.ne.s32.totalorder %s81, %s82
      %p91 = scmp.eq.s32.totalorder %s29, 0
      %p92 = por %p90, %p91
      %p93 = scmp.ne.s32.totalorder %s81, %s82
      %p94 = scmp.eq.s32.totalorder %s30, 1
      %p95 = por %p93, %p94
      %p97 = scmp.ne.s32.totalorder %s82, %s96
      %p98 = scmp.eq.s32.totalorder %s30, 0
      %p99 = por %p97, %p98
      %s101 = sadd.s32 %s100, 1
      %p104 = scmp.eq.s32.totalorder %s24, 1
      %p105 = scmp.ne.s32.totalorder %s100, %s102
      %p106 = scmp.eq.s32.totalorder %s24, 0
      %p107 = por %p105, %p106
      %p108 = scmp.ne.s32.totalorder %s100, %s102
      %p109 = scmp.eq.s32.totalorder %s29, 1
      %p110 = por %p108, %p109
      %p111 = scmp.ne.s32.totalorder %s102, %s103
      %p112 = scmp.eq.s32.totalorder %s29, 0
      %p113 = por %p111, %p112
      %p114 = scmp.ne.s32.totalorder %s102, %s103
      %p115 = scmp.eq.s32.totalorder %s30, 1
      %p116 = por %p114, %p115
      %p118 = scmp.ne.s32.totalorder %s103, %s117
      %p119 = scmp.eq.s32.totalorder %s30, 0
      %p120 = por %p118, %p119
      %s122 = sadd.s32 %s121, 1
      %p125 = scmp.eq.s32.totalorder %s24, 1
      %p126 = scmp.ne.s32.totalorder %s121, %s123
      %p127 = scmp.eq.s32.totalorder %s24, 0
      %p128 = por %p126, %p127
      %p129 = scmp.ne.s32.totalorder %s121, %s123
      %p130 = scmp.eq.s32.totalorder %s29, 1
      %p131 = por %p129, %p130
      %p132 = scmp.ne.s32.totalorder %s123, %s124
      %p133 = scmp.eq.s32.totalorder %s29, 0
      %p134 = por %p132, %p133
      %p135 = scmp.ne.s32.totalorder %s123, %s124
      %p136 = scmp.eq.s32.totalorder %s30, 1
      %p137 = por %p135, %p136
      %p139 = scmp.ne.s32.totalorder %s124, %s138
      %p140 = scmp.eq.s32.totalorder %s30, 0
      %p141 = por %p139, %p140
      %s143 = sadd.s32 %s142, 1
      %p146 = scmp.eq.s32.totalorder %s24, 1
      %p147 = scmp.ne.s32.totalorder %s142, %s144
      %p148 = scmp.eq.s32.totalorder %s24, 0
      %p149 = por %p147, %p148
      %p150 = scmp.ne.s32.totalorder %s142, %s144
      %p151 = scmp.eq.s32.totalorder %s29, 1
      %p152 = por %p150, %p151
      %p153 = scmp.ne.s32.totalorder %s144, %s145
      %p154 = scmp.eq.s32.totalorder %s29, 0
      %p155 = por %p153, %p154
      %p156 = scmp.ne.s32.totalorder %s144, %s145
      %p157 = scmp.eq.s32.totalorder %s30, 1
      %p158 = por %p156, %p157
      %p160 = scmp.ne.s32.totalorder %s145, %s159
      %p161 = scmp.eq.s32.totalorder %s30, 0
      %p162 = por %p160, %p161
      %s164 = sadd.s32 %s163, 1
      %p167 = scmp.eq.s32.totalorder %s24, 1
      %p168 = scmp.ne.s32.totalorder %s163, %s165
      %p169 = scmp.eq.s32.totalorder %s24, 0
      %p170 = por %p168, %p169
      %p171 = scmp.ne.s32.totalorder %s163, %s165
      %p172 = scmp.eq.s32.totalorder %s29, 1
      %p173 = por %p171, %p172
      %p174 = scmp.ne.s32.totalorder %s165, %s166
      %p175 = scmp.eq.s32.totalorder %s29, 0
      %p176 = por %p174, %p175
      %p177 = scmp.ne.s32.totalorder %s165, %s166
      %p178 = scmp.eq.s32.totalorder %s30, 1
      %p179 = por %p177, %p178
      %p181 = scmp.ne.s32.totalorder %s166, %s180
      %p182 = scmp.eq.s32.totalorder %s30, 0
      %p183 = por %p181, %p182
      %s185 = sadd.s32 %s184, 1
      %p188 = scmp.eq.s32.totalorder %s24, 1
      %p189 = scmp.ne.s32.totalorder %s184, %s186
      %p190 = scmp.eq.s32.totalorder %s24, 0
      %p191 = por %p189, %p190
      %p192 = scmp.ne.s32.totalorder %s184, %s186
      %p193 = scmp.eq.s32.totalorder %s29, 1
      %p194 = por %p192, %p193
      %p195 = scmp.ne.s32.totalorder %s186, %s187
      %p196 = scmp.eq.s32.totalorder %s29, 0
      %p197 = por %p195, %p196
      %p198 = scmp.ne.s32.totalorder %s186, %s187
      %p199 = scmp.eq.s32.totalorder %s30, 1
      %p200 = por %p198, %p199
      %p202 = scmp.ne.s32.totalorder %s187, %s201
      %p203 = scmp.eq.s32.totalorder %s30, 0
      %p204 = por %p202, %p203
      %s206 = sadd.s32 %s205, 1
      %p209 = scmp.eq.s32.totalorder %s24, 1
      %p210 = scmp.ne.s32.totalorder %s205, %s207
      %p211 = scmp.eq.s32.totalorder %s24, 0
      %p212 = por %p210, %p211
      %p213 = scmp.ne.s32.totalorder %s205, %s207
      %p214 = scmp.eq.s32.totalorder %s29, 1
      %p215 = por %p213, %p214
      %p216 = scmp.ne.s32.totalorder %s207, %s208
      %p217 = scmp.eq.s32.totalorder %s29, 0
      %p218 = por %p216, %p217
      %p219 = scmp.ne.s32.totalorder %s207, %s208
      %p220 = scmp.eq.s32.totalorder %s30, 1
      %p221 = por %p219, %p220
      %p223 = scmp.ne.s32.totalorder %s208, %s222
      %p224 = scmp.eq.s32.totalorder %s30, 0
      %p225 = por %p223, %p224
      %s227 = sadd.s32 %s226, 1
      %p230 = scmp.eq.s32.totalorder %s24, 1
      %p231 = scmp.ne.s32.totalorder %s226, %s228
      %p232 = scmp.eq.s32.totalorder %s24, 0
      %p233 = por %p231, %p232
      %p234 = scmp.ne.s32.totalorder %s226, %s228
      %p235 = scmp.eq.s32.totalorder %s29, 1
      %p236 = por %p234, %p235
      %p237 = scmp.ne.s32.totalorder %s228, %s229
      %p238 = scmp.eq.s32.totalorder %s29, 0
      %p239 = por %p237, %p238
      %p240 = scmp.ne.s32.totalorder %s228, %s229
      %p241 = scmp.eq.s32.totalorder %s30, 1
      %p242 = por %p240, %p241
      %p244 = scmp.ne.s32.totalorder %s229, %s243
      %p245 = scmp.eq.s32.totalorder %s30, 0
      %p246 = por %p244, %p245
      %s247 = ssub.s32 %s24, %s31
      %p248 = scmp.eq.s32.totalorder %s247, 0
      %s250 = sadd.s32 %s249, 1
      %s251 = scalar_select %p248, %s249, %s250
      %p254 = pneg %p248
      %p255 = scmp.eq.s32.totalorder %s24, 1
      %p256 = por %p254, %p255
      %p257 = scmp.ne.s32.totalorder %s249, %s252
      %p258 = scmp.eq.s32.totalorder %s24, 0
      %p259 = por %p257, %p258
      %p260 = scmp.ne.s32.totalorder %s249, %s252
      %p261 = scmp.eq.s32.totalorder %s29, 1
      %p262 = por %p260, %p261
      %p263 = scmp.ne.s32.totalorder %s252, %s253
      %p264 = scmp.eq.s32.totalorder %s29, 0
      %p265 = por %p263, %p264
      %p266 = scmp.ne.s32.totalorder %s252, %s253
      %p267 = scmp.eq.s32.totalorder %s30, 1
      %p268 = por %p266, %p267
      %p270 = scmp.ne.s32.totalorder %s253, %s269
      %p271 = scmp.eq.s32.totalorder %s30, 0
      %p272 = por %p270, %p271
      %p273 = scmp.le.s32.totalorder 1, %s24
      %p274 = scmp.lt.s32.totalorder %s24, 3
      %p275 = pnand %p273, %p274
      %p276 = pneg %p275
      // Predicated region
      $region9: #{convnext_block.1} parent=5 // pred_check
        _
      $region10: #{convnext_block.1} parent=5 // pred_check_branch
        %278 = sbr.rel (%p275) target = $region12
      $region11: #{convnext_block.1} parent=5 // pred_region
        %s279 = ssub.s32 %s24, 1
        // Predicated region
        $region13: #{convnext_block.1} parent=11 // pred_check
          %p280 = pneg %p71
        $region14: #{convnext_block.1} parent=11 // pred_check_branch
          %282 = sbr.rel (%p280) target = $region16
        $region15: #{convnext_block.1} parent=11 // pred_region
          %s284 = ssub.s32 896, 896
          %285 = vsyncadd [#allocation7], %s284
          %s286 = sshll.u32 [#allocation6], 4
          %s287 = int_to_ptr.vmem [resolvable:$true] %s286
          %292 = dma.hbm_to_vmem [thread:$0]  %s1, 896, %s287, [#allocation7], 128, 128, 8
        $region16: #{convnext_block.1} parent=11 // pred_fallthru
          _
        // Predicated region
        $region17: #{convnext_block.1} parent=11 // pred_check
          %p293 = pneg %p92
        $region18: #{convnext_block.1} parent=11 // pred_check_branch
          %295 = sbr.rel (%p293) target = $region20
        $region19: #{convnext_block.1} parent=11 // pred_region
          _
        $region20: #{convnext_block.1} parent=11 // pred_fallthru
          _
        // Predicated region
        $region21: #{convnext_block.1} parent=11 // pred_check
          %p296 = pneg %p113
        $region22: #{convnext_block.1} parent=11 // pred_check_branch
          %298 = sbr.rel (%p296) target = $region24
        $region23: #{convnext_block.1} parent=11 // pred_region
          _
        $region24: #{convnext_block.1} parent=11 // pred_fallthru
          _
        // Predicated region
        $region25: #{convnext_block.1} parent=11 // pred_check
          %p299 = pneg %p134
        $region26: #{convnext_block.1} parent=11 // pred_check_branch
          %301 = sbr.rel (%p299) target = $region28
        $region27: #{convnext_block.1} parent=11 // pred_region
          _
        $region28: #{convnext_block.1} parent=11 // pred_fallthru
          _
        // Predicated region
        $region29: #{convnext_block.1} parent=11 // pred_check
          %p302 = pneg %p155
        $region30: #{convnext_block.1} parent=11 // pred_check_branch
          %304 = sbr.rel (%p302) target = $region32
        $region31: #{convnext_block.1} parent=11 // pred_region
          %s306 = ssub.s32 2048, 2048
          %307 = vsyncadd [#allocation7], %s306
          %s308 = sshll.u32 [#allocation8], 4
          %s309 = int_to_ptr.vmem [resolvable:$true] %s308
          %314 = dma.hbm_to_vmem [thread:$0]  %s5, 2048, %s309, [#allocation7], 128, 128, 8
        $region32: #{convnext_block.1} parent=11 // pred_fallthru
          _
        // Predicated region
        $region33: #{convnext_block.1} parent=11 // pred_check
          %p315 = pneg %p176
        $region34: #{convnext_block.1} parent=11 // pred_check_branch
          %317 = sbr.rel (%p315) target = $region36
        $region35: #{convnext_block.1} parent=11 // pred_region
          _
        $region36: #{convnext_block.1} parent=11 // pred_fallthru
          _
        // Predicated region
        $region37: #{convnext_block.1} parent=11 // pred_check
          %p318 = pneg %p197
        $region38: #{convnext_block.1} parent=11 // pred_check_branch
          %320 = sbr.rel (%p318) target = $region40
        $region39: #{convnext_block.1} parent=11 // pred_region
          %s322 = ssub.s32 2048, 2048
          %323 = vsyncadd [#allocation10], %s322
          %s324 = sshll.u32 [#allocation9], 4
          %s325 = int_to_ptr.vmem [resolvable:$true] %s324
          %330 = dma.hbm_to_vmem [thread:$0]  %s7, 2048, %s325, [#allocation10], 64, 64, 4
        $region40: #{convnext_block.1} parent=11 // pred_fallthru
          _
        // Predicated region
        $region41: #{convnext_block.1} parent=11 // pred_check
          %p331 = pneg %p218
        $region42: #{convnext_block.1} parent=11 // pred_check_branch
          %333 = sbr.rel (%p331) target = $region44
        $region43: #{convnext_block.1} parent=11 // pred_region
          _
        $region44: #{convnext_block.1} parent=11 // pred_fallthru
          _
        // Predicated region
        $region45: #{convnext_block.1} parent=11 // pred_check
          %p334 = pneg %p239
        $region46: #{convnext_block.1} parent=11 // pred_check_branch
          %336 = sbr.rel (%p334) target = $region48
        $region47: #{convnext_block.1} parent=11 // pred_region
          _
        $region48: #{convnext_block.1} parent=11 // pred_fallthru
          _
      $region12: #{convnext_block.1} parent=5 // pred_fallthru
        _
      %p337 = scmp.lt.s32.totalorder %s24, 2
      // Predicated region
      $region49: #{convnext_block.1} parent=5 // pred_check
        %p338 = pneg %p337
      $region50: #{convnext_block.1} parent=5 // pred_check_branch
        %340 = sbr.rel (%p338) target = $region52
      $region51: #{convnext_block.1} parent=5 // pred_region
        // Predicated region
        $region53: #{convnext_block.1} parent=51 // pred_check
          %p341 = pneg %p44
        $region54: #{convnext_block.1} parent=51 // pred_check_branch
          %343 = sbr.rel (%p341) target = $region56
        $region55: #{convnext_block.1} parent=51 // pred_region
          %s344 = sand.u32 %s34, 1
          %s345 = scalar_lea.sflag [#allocation4], %s344
          %s346 = sand.u32 %s34, 1
          %s347 = smul.addr %s346, 256
          %s348 = scalar_lea.vmem [#allocation3], %s347
          %s350 = ssub.s32 4096, 4096
          %351 = vsyncadd %s345, %s350
          %s352 = smul.addr %s24, 32
          %s353 = smul.addr %s352, 128
          %s354 = scalar_lea.hbm %s0, %s353
          %s355 = sshll.u32 %s348, 4
          %s356 = int_to_ptr.vmem [resolvable:$true] %s355
          %361 = dma.hbm_to_vmem [thread:$0]  %s354, 4096, %s356, %s345, 128, 128, 8
        $region56: #{convnext_block.1} parent=51 // pred_fallthru
          _
      $region52: #{convnext_block.1} parent=5 // pred_fallthru
        _
      %p362 = scmp.le.s32.totalorder 1, %s24
      %p363 = scmp.lt.s32.totalorder %s24, 3
      %p364 = pnand %p362, %p363
      %p365 = pneg %p364
      // Predicated region
      $region57: #{convnext_block.1} parent=5 // pred_check
        _
      $region58: #{convnext_block.1} parent=5 // pred_check_branch
        %367 = sbr.rel (%p364) target = $region60
      $region59: #{convnext_block.1} parent=5 // pred_region
        %s368 = ssub.s32 %s24, 1
        %s369 = sand.u32 %s37, 1
        %s370 = scalar_lea.sflag [#allocation4], %s369
        %s371 = sand.u32 %s37, 1
        %s372 = smul.addr %s371, 256
        %s373 = scalar_lea.vmem [#allocation3], %s372
        // Predicated region
        $region61: #{convnext_block.1} parent=59 // pred_check
          %p374 = pneg %p50
        $region62: #{convnext_block.1} parent=59 // pred_check_branch
          %376 = sbr.rel (%p374) target = $region64
        $region63: #{convnext_block.1} parent=59 // pred_region
          %377 = dma.done %s370, 4096
        $region64: #{convnext_block.1} parent=59 // pred_fallthru
          _
        // Predicated region
        $region65: #{convnext_block.1} parent=59 // pred_check
          %p378 = pneg %p71
        $region66: #{convnext_block.1} parent=59 // pred_check_branch
          %380 = sbr.rel (%p378) target = $region68
        $region67: #{convnext_block.1} parent=59 // pred_region
          %381 = dma.done [#allocation7], 896
        $region68: #{convnext_block.1} parent=59 // pred_fallthru
          _
        // Predicated region
        $region69: #{convnext_block.1} parent=59 // pred_check
          %p382 = pneg %p155
        $region70: #{convnext_block.1} parent=59 // pred_check_branch
          %384 = sbr.rel (%p382) target = $region72
        $region71: #{convnext_block.1} parent=59 // pred_region
          %385 = dma.done [#allocation7], 2048
        $region72: #{convnext_block.1} parent=59 // pred_fallthru
          _
        // Predicated region
        $region73: #{convnext_block.1} parent=59 // pred_check
          %p386 = pneg %p197
        $region74: #{convnext_block.1} parent=59 // pred_check_branch
          %388 = sbr.rel (%p386) target = $region76
        $region75: #{convnext_block.1} parent=59 // pred_region
          %389 = dma.done [#allocation10], 2048
        $region76: #{convnext_block.1} parent=59 // pred_fallthru
          _
        %s390 = sand.u32 %s37, 1
        %s391 = scalar_lea.sflag [#allocation4], %s390
        %s392 = sand.u32 %s37, 1
        %s393 = smul.addr %s392, 256
        %s394 = scalar_lea.vmem [#allocation3], %s393
        %p395 = pneg %p50
        %p396 = pneg %p47
        %p397 = pneg %p71
        %p398 = pneg %p68
        %p399 = pneg %p92
        %p400 = pneg %p89
        %p401 = pneg %p113
        %p402 = pneg %p110
        %p403 = pneg %p134
        %p404 = pneg %p131
        %p405 = pneg %p155
        %p406 = pneg %p152
        %p407 = pneg %p176
        %p408 = pneg %p173
        %p409 = pneg %p197
        %p410 = pneg %p194
        %p411 = pneg %p218
        %p412 = pneg %p215
        %p413 = pneg %p239
        %p414 = pneg %p236
        %p415 = pneg %p265
        %p416 = pneg %p262
        %s417 = sand.u32 %s252, 1
        %s418 = scalar_lea.sflag [#allocation5], %s417
        %s419 = sand.u32 %s252, 1
        %s420 = smul.addr %s419, 256
        %s421 = scalar_lea.vmem [#allocation11], %s420
        %423 = vst [vmem:[#allocation2] sm:$0xff] 0.0
        %424 = vst [vmem:[#allocation2 + $0x8] sm:$0xff] 0.0
        %425 = vst [vmem:[#allocation2 + $0x10] sm:$0xff] 0.0
        %426 = vst [vmem:[#allocation2 + $0x18] sm:$0xff] 0.0
        %427 = vst [vmem:[#allocation2 + $0x20] sm:$0xff] 0.0
        %428 = vst [vmem:[#allocation2 + $0x28] sm:$0xff] 0.0
        %429 = vst [vmem:[#allocation2 + $0x30] sm:$0xff] 0.0
        %430 = vst [vmem:[#allocation2 + $0x38] sm:$0xff] 0.0
        %431 = vst [vmem:[#allocation2 + $0x40] sm:$0xff] 0.0
        %432 = vst [vmem:[#allocation2 + $0x48] sm:$0xff] 0.0
        %433 = vst [vmem:[#allocation2 + $0x50] sm:$0xff] 0.0
        %434 = vst [vmem:[#allocation2 + $0x58] sm:$0xff] 0.0
        %s435 = scalar_lea.vmem [#allocation2], 608
        %436 = vst [vmem:[%s435] sm:$0xff] 0.0
        %437 = vst [vmem:[%s435 + $0x8] sm:$0xff] 0.0
        %438 = vst [vmem:[%s435 + $0x10] sm:$0xff] 0.0
        %439 = vst [vmem:[%s435 + $0x18] sm:$0xff] 0.0
        %440 = vst [vmem:[%s435 + $0x20] sm:$0xff] 0.0
        %441 = vst [vmem:[%s435 + $0x28] sm:$0xff] 0.0
        %442 = vst [vmem:[%s435 + $0x30] sm:$0xff] 0.0
        %443 = vst [vmem:[%s435 + $0x38] sm:$0xff] 0.0
        %444 = vst [vmem:[%s435 + $0x40] sm:$0xff] 0.0
        %445 = vst [vmem:[%s435 + $0x48] sm:$0xff] 0.0
        %446 = vst [vmem:[%s435 + $0x50] sm:$0xff] 0.0
        %447 = vst [vmem:[%s435 + $0x58] sm:$0xff] 0.0
        %s448 = scalar_lea.vmem [#allocation2], 96
        %449 = vst [vmem:[%s448] sm:$0xff] 0.0
        %450 = vst [vmem:[%s448 + $0x20] sm:$0xff] 0.0
        %451 = vst [vmem:[%s448 + $0x40] sm:$0xff] 0.0
        %452 = vst [vmem:[%s448 + $0x60] sm:$0xff] 0.0
        %453 = vst [vmem:[%s448 + $0x80] sm:$0xff] 0.0
        %454 = vst [vmem:[%s448 + $0xa0] sm:$0xff] 0.0
        %455 = vst [vmem:[%s448 + $0xc0] sm:$0xff] 0.0
        %456 = vst [vmem:[%s448 + $0xe0] sm:$0xff] 0.0
        %457 = vst [vmem:[%s448 + $0x100] sm:$0xff] 0.0
        %458 = vst [vmem:[%s448 + $0x120] sm:$0xff] 0.0
        %459 = vst [vmem:[%s448 + $0x140] sm:$0xff] 0.0
        %460 = vst [vmem:[%s448 + $0x160] sm:$0xff] 0.0
        %461 = vst [vmem:[%s448 + $0x180] sm:$0xff] 0.0
        %462 = vst [vmem:[%s448 + $0x1a0] sm:$0xff] 0.0
        %463 = vst [vmem:[%s448 + $0x1c0] sm:$0xff] 0.0
        %464 = vst [vmem:[%s448 + $0x1e0] sm:$0xff] 0.0
        %465 = vst [vmem:[%s448 + $0x18] sm:$0xff] 0.0
        %466 = vst [vmem:[%s448 + $0x38] sm:$0xff] 0.0
        %467 = vst [vmem:[%s448 + $0x58] sm:$0xff] 0.0
        %468 = vst [vmem:[%s448 + $0x78] sm:$0xff] 0.0
        %469 = vst [vmem:[%s448 + $0x98] sm:$0xff] 0.0
        %470 = vst [vmem:[%s448 + $0xb8] sm:$0xff] 0.0
        %471 = vst [vmem:[%s448 + $0xd8] sm:$0xff] 0.0
        %472 = vst [vmem:[%s448 + $0xf8] sm:$0xff] 0.0
        %473 = vst [vmem:[%s448 + $0x118] sm:$0xff] 0.0
        %474 = vst [vmem:[%s448 + $0x138] sm:$0xff] 0.0
        %475 = vst [vmem:[%s448 + $0x158] sm:$0xff] 0.0
        %476 = vst [vmem:[%s448 + $0x178] sm:$0xff] 0.0
        %477 = vst [vmem:[%s448 + $0x198] sm:$0xff] 0.0
        %478 = vst [vmem:[%s448 + $0x1b8] sm:$0xff] 0.0
        %479 = vst [vmem:[%s448 + $0x1d8] sm:$0xff] 0.0
        %480 = vst [vmem:[%s448 + $0x1f8] sm:$0xff] 0.0
        %v481 = vld [vmem:[%s373] sm:$0xff]
        %v482 = vld [vmem:[%s373 + $0x8] sm:$0xff]
        %v483 = vld [vmem:[%s373 + $0x10] sm:$0xff]
        %v484 = vld [vmem:[%s373 + $0x18] sm:$0xff]
        %v485 = vld [vmem:[%s373 + $0x20] sm:$0xff]
        %v486 = vld [vmem:[%s373 + $0x28] sm:$0xff]
        %v487 = vld [vmem:[%s373 + $0x30] sm:$0xff]
        %v488 = vld [vmem:[%s373 + $0x38] sm:$0xff]
        %v489 = vld [vmem:[%s373 + $0x40] sm:$0xff]
        %v490 = vld [vmem:[%s373 + $0x48] sm:$0xff]
        %v491 = vld [vmem:[%s373 + $0x50] sm:$0xff]
        %v492 = vld [vmem:[%s373 + $0x58] sm:$0xff]
        %v493 = vld [vmem:[%s373 + $0x60] sm:$0xff]
        %v494 = vld [vmem:[%s373 + $0x68] sm:$0xff]
        %v495 = vld [vmem:[%s373 + $0x70] sm:$0xff]
        %v496 = vld [vmem:[%s373 + $0x78] sm:$0xff]
        %v497 = vld [vmem:[%s373 + $0x80] sm:$0xff]
        %v498 = vld [vmem:[%s373 + $0x88] sm:$0xff]
        %v499 = vld [vmem:[%s373 + $0x90] sm:$0xff]
        %v500 = vld [vmem:[%s373 + $0x98] sm:$0xff]
        %v501 = vld [vmem:[%s373 + $0xa0] sm:$0xff]
        %v502 = vld [vmem:[%s373 + $0xa8] sm:$0xff]
        %v503 = vld [vmem:[%s373 + $0xb0] sm:$0xff]
        %v504 = vld [vmem:[%s373 + $0xb8] sm:$0xff]
        %v505 = vld [vmem:[%s373 + $0xc0] sm:$0xff]
        %v506 = vld [vmem:[%s373 + $0xc8] sm:$0xff]
        %v507 = vld [vmem:[%s373 + $0xd0] sm:$0xff]
        %v508 = vld [vmem:[%s373 + $0xd8] sm:$0xff]
        %v509 = vld [vmem:[%s373 + $0xe0] sm:$0xff]
        %v510 = vld [vmem:[%s373 + $0xe8] sm:$0xff]
        %v511 = vld [vmem:[%s373 + $0xf0] sm:$0xff]
        %v512 = vld [vmem:[%s373 + $0xf8] sm:$0xff]
        %513 = vst [vmem:[%s448 + $0x8] sm:$0xff] %v481
        %514 = vst [vmem:[%s448 + $0x10] sm:$0xff] %v482
        %515 = vst [vmem:[%s448 + $0x28] sm:$0xff] %v483
        %516 = vst [vmem:[%s448 + $0x30] sm:$0xff] %v484
        %517 = vst [vmem:[%s448 + $0x48] sm:$0xff] %v485
        %518 = vst [vmem:[%s448 + $0x50] sm:$0xff] %v486
        %519 = vst [vmem:[%s448 + $0x68] sm:$0xff] %v487
        %520 = vst [vmem:[%s448 + $0x70] sm:$0xff] %v488
        %521 = vst [vmem:[%s448 + $0x88] sm:$0xff] %v489
        %522 = vst [vmem:[%s448 + $0x90] sm:$0xff] %v490
        %523 = vst [vmem:[%s448 + $0xa8] sm:$0xff] %v491
        %524 = vst [vmem:[%s448 + $0xb0] sm:$0xff] %v492
        %525 = vst [vmem:[%s448 + $0xc8] sm:$0xff] %v493
        %526 = vst [vmem:[%s448 + $0xd0] sm:$0xff] %v494
        %527 = vst [vmem:[%s448 + $0xe8] sm:$0xff] %v495
        %528 = vst [vmem:[%s448 + $0xf0] sm:$0xff] %v496
        %529 = vst [vmem:[%s448 + $0x108] sm:$0xff] %v497
        %530 = vst [vmem:[%s448 + $0x110] sm:$0xff] %v498
        %531 = vst [vmem:[%s448 + $0x128] sm:$0xff] %v499
        %532 = vst [vmem:[%s448 + $0x130] sm:$0xff] %v500
        %533 = vst [vmem:[%s448 + $0x148] sm:$0xff] %v501
        %534 = vst [vmem:[%s448 + $0x150] sm:$0xff] %v502
        %535 = vst [vmem:[%s448 + $0x168] sm:$0xff] %v503
        %536 = vst [vmem:[%s448 + $0x170] sm:$0xff] %v504
        %537 = vst [vmem:[%s448 + $0x188] sm:$0xff] %v505
        %538 = vst [vmem:[%s448 + $0x190] sm:$0xff] %v506
        %539 = vst [vmem:[%s448 + $0x1a8] sm:$0xff] %v507
        %540 = vst [vmem:[%s448 + $0x1b0] sm:$0xff] %v508
        %541 = vst [vmem:[%s448 + $0x1c8] sm:$0xff] %v509
        %542 = vst [vmem:[%s448 + $0x1d0] sm:$0xff] %v510
        %543 = vst [vmem:[%s448 + $0x1e8] sm:$0xff] %v511
        %544 = vst [vmem:[%s448 + $0x1f0] sm:$0xff] %v512
        %v545 = vld [vmem:[#allocation6] sm:$0xff]
        %v546 = vld [vmem:[#allocation6 + $0x8] sm:$0xff]
        %v547 = vld [vmem:[#allocation6 + $0x10] sm:$0xff]
        %v548 = vld [vmem:[#allocation6 + $0x18] sm:$0xff]
        %v549 = vld [vmem:[#allocation6 + $0x20] sm:$0xff]
        %v550 = vld [vmem:[#allocation6 + $0x28] sm:$0xff]
        %v551 = vld [vmem:[#allocation6 + $0x30] sm:$0x1]
        %v552 = vld [vmem:[#allocation2] sm:$0xff]
        %v553 = vld [vmem:[#allocation2 + $0x8] sm:$0xff]
        %v554 = vld [vmem:[#allocation2 + $0x10] sm:$0xff]
        %v555 = vld [vmem:[#allocation2 + $0x18] sm:$0xff]
        %v556 = vld [vmem:[#allocation2 + $0x20] sm:$0xff]
        %v557 = vld [vmem:[#allocation2 + $0x28] sm:$0xff]
        %v558 = vld [vmem:[#allocation2 + $0x30] sm:$0xff]
        %v559 = vld [vmem:[#allocation2 + $0x38] sm:$0xff]
        %v560 = vld [vmem:[#allocation2 + $0x40] sm:$0xff]
        %v561 = vld [vmem:[#allocation2 + $0x48] sm:$0xff]
        %v562 = vld [vmem:[#allocation2 + $0x50] sm:$0xff]
        %v563 = vld [vmem:[#allocation2 + $0x58] sm:$0xff]
        %v564 = vld [vmem:[#allocation2 + $0x60] sm:$0xff]
        %v565 = vld [vmem:[#allocation2 + $0x68] sm:$0xff]
        %v566 = vld [vmem:[#allocation2 + $0x70] sm:$0xff]
        %v567 = vld [vmem:[#allocation2 + $0x78] sm:$0xff]
        %v568 = vld [vmem:[#allocation2 + $0x80] sm:$0xff]
        %v569 = vld [vmem:[#allocation2 + $0x88] sm:$0xff]
        %v570 = vld [vmem:[#allocation2 + $0x90] sm:$0xff]
        %v571 = vld [vmem:[#allocation2 + $0x98] sm:$0xff]
        %v572 = vld [vmem:[#allocation2 + $0xa0] sm:$0xff]
        %v573 = vld [vmem:[#allocation2 + $0xa8] sm:$0xff]
        %v574 = vld [vmem:[#allocation2 + $0xb0] sm:$0xff]
        %v575 = vld [vmem:[#allocation2 + $0xb8] sm:$0xff]
        %v576 = vld [vmem:[#allocation2 + $0xc0] sm:$0xff]
        %v577 = vld [vmem:[#allocation2 + $0xc8] sm:$0xff]
        %v578 = vld [vmem:[#allocation2 + $0xd0] sm:$0xff]
        %v579 = vld [vmem:[#allocation2 + $0xd8] sm:$0xff]
        %v580 = vld [vmem:[#allocation2 + $0xe0] sm:$0xff]
        %v581 = vld [vmem:[#allocation2 + $0xe8] sm:$0xff]
        %v582 = vld [vmem:[#allocation2 + $0xf0] sm:$0xff]
        %v583 = vld [vmem:[#allocation2 + $0xf8] sm:$0xff]
        %v584 = vld [vmem:[#allocation2 + $0x100] sm:$0xff]
        %v585 = vld [vmem:[#allocation2 + $0x108] sm:$0xff]
        %v586 = vld [vmem:[#allocation2 + $0x110] sm:$0xff]
        %v587 = vld [vmem:[#allocation2 + $0x118] sm:$0xff]
        %v588 = vld [vmem:[#allocation2 + $0x120] sm:$0xff]
        %v589 = vld [vmem:[#allocation2 + $0x128] sm:$0xff]
        %v590 = vld [vmem:[#allocation2 + $0x130] sm:$0xff]
        %v591 = vld [vmem:[#allocation2 + $0x138] sm:$0xff]
        %v592 = vld [vmem:[#allocation2 + $0x140] sm:$0xff]
        %v593 = vld [vmem:[#allocation2 + $0x148] sm:$0xff]
        %v594 = vld [vmem:[#allocation2 + $0x150] sm:$0xff]
        %v595 = vld [vmem:[#allocation2 + $0x158] sm:$0xff]
        %v596 = vld [vmem:[#allocation2 + $0x160] sm:$0xff]
        %v597 = vld [vmem:[#allocation2 + $0x168] sm:$0xff]
        %v598 = vld [vmem:[#allocation2 + $0x170] sm:$0xff]
        %v599 = vld [vmem:[#allocation2 + $0x178] sm:$0xff]
        %v600 = vld [vmem:[#allocation2 + $0x180] sm:$0xff]
        %v601 = vld [vmem:[#allocation2 + $0x188] sm:$0xff]
        %v602 = vld [vmem:[#allocation2 + $0x190] sm:$0xff]
        %v603 = vld [vmem:[#allocation2 + $0x198] sm:$0xff]
        %v604 = vld [vmem:[#allocation2 + $0x1a0] sm:$0xff]
        %v605 = vld [vmem:[#allocation2 + $0x1a8] sm:$0xff]
        %v606 = vld [vmem:[#allocation2 + $0x1b0] sm:$0xff]
        %v607 = vld [vmem:[#allocation2 + $0x1b8] sm:$0xff]
        %v608 = vld [vmem:[#allocation2 + $0x1c0] sm:$0xff]
        %v609 = vld [vmem:[#allocation2 + $0x1c8] sm:$0xff]
        %v610 = vld [vmem:[#allocation2 + $0x1d0] sm:$0xff]
        %v611 = vld [vmem:[#allocation2 + $0x1d8] sm:$0xff]
        %v612 = vld [vmem:[#allocation2 + $0x1e0] sm:$0xff]
        %v613 = vld [vmem:[#allocation2 + $0x1e8] sm:$0xff]
        %v614 = vld [vmem:[#allocation2 + $0x1f0] sm:$0xff]
        %v615 = vld [vmem:[#allocation2 + $0x1f8] sm:$0xff]
        %v616 = vld [vmem:[#allocation2 + $0x200] sm:$0xff]
        %v617 = vld [vmem:[#allocation2 + $0x208] sm:$0xff]
        %v618 = vld [vmem:[#allocation2 + $0x210] sm:$0xff]
        %v619 = vld [vmem:[#allocation2 + $0x218] sm:$0xff]
        %v620 = vld [vmem:[#allocation2 + $0x220] sm:$0xff]
        %v621 = vld [vmem:[#allocation2 + $0x228] sm:$0xff]
        %v622 = vld [vmem:[#allocation2 + $0x230] sm:$0xff]
        %v623 = vld [vmem:[#allocation2 + $0x238] sm:$0xff]
        %v624 = vld [vmem:[#allocation2 + $0x240] sm:$0xff]
        %v625 = vld [vmem:[#allocation2 + $0x248] sm:$0xff]
        %v626 = vld [vmem:[#allocation2 + $0x250] sm:$0xff]
        %v627 = vld [vmem:[#allocation2 + $0x258] sm:$0xff]
        %v628 = vld [vmem:[#allocation2 + $0x260] sm:$0xff]
        %v629 = vld [vmem:[#allocation2 + $0x268] sm:$0xff]
        %v630 = vld [vmem:[#allocation2 + $0x270] sm:$0xff]
        %v631 = vld [vmem:[#allocation2 + $0x278] sm:$0xff]
        %v632 = vld [vmem:[#allocation2 + $0x280] sm:$0xff]
        %v633 = vld [vmem:[#allocation2 + $0x288] sm:$0xff]
        %v634 = vld [vmem:[#allocation2 + $0x290] sm:$0xff]
        %v635 = vld [vmem:[#allocation2 + $0x298] sm:$0xff]
        %v636 = vld [vmem:[#allocation2 + $0x2a0] sm:$0xff]
        %v637 = vld [vmem:[#allocation2 + $0x2a8] sm:$0xff]
        %v638 = vld [vmem:[#allocation2 + $0x2b0] sm:$0xff]
        %v639 = vld [vmem:[#allocation2 + $0x2b8] sm:$0xff]
        %v640 = vrot.slane %v552, 5
        %v641 = vrot.slane %v556, 5
        %v642 = vrot.slane %v560, 5
        %v643 = vrot.slane %v564, 5
        %v644 = vrot.slane %v568, 5
        %v645 = vrot.slane %v572, 5
        %v646 = vrot.slane %v576, 5
        %v647 = vrot.slane %v580, 5
        %v648 = vrot.slane %v584, 5
        %v649 = vrot.slane %v588, 5
        %v650 = vrot.slane %v592, 5
        %v651 = vrot.slane %v596, 5
        %v652 = vrot.slane %v600, 5
        %v653 = vrot.slane %v604, 5
        %v654 = vrot.slane %v608, 5
        %v655 = vrot.slane %v612, 5
        %v656 = vrot.slane %v616, 5
        %v657 = vrot.slane %v620, 5
        %v658 = vrot.slane %v624, 5
        %v659 = vrot.slane %v628, 5
        %v660 = vrot.slane %v632, 5
        %v661 = vrot.slane %v636, 5
        %v662 = vrot.slane %v553, 5
        %v663 = vrot.slane %v557, 5
        %v664 = vrot.slane %v561, 5
        %v665 = vrot.slane %v565, 5
        %v666 = vrot.slane %v569, 5
        %v667 = vrot.slane %v573, 5
        %v668 = vrot.slane %v577, 5
        %v669 = vrot.slane %v581, 5
        %v670 = vrot.slane %v585, 5
        %v671 = vrot.slane %v589, 5
        %v672 = vrot.slane %v593, 5
        %v673 = vrot.slane %v597, 5
        %v674 = vrot.slane %v601, 5
        %v675 = vrot.slane %v605, 5
        %v676 = vrot.slane %v609, 5
        %v677 = vrot.slane %v613, 5
        %v678 = vrot.slane %v617, 5
        %v679 = vrot.slane %v621, 5
        %v680 = vrot.slane %v625, 5
        %v681 = vrot.slane %v629, 5
        %v682 = vrot.slane %v633, 5
        %v683 = vrot.slane %v637, 5
        %v684 = vrot.slane %v554, 5
        %v685 = vrot.slane %v558, 5
        %v686 = vrot.slane %v562, 5
        %v687 = vrot.slane %v566, 5
        %v688 = vrot.slane %v570, 5
        %v689 = vrot.slane %v574, 5
        %v690 = vrot.slane %v578, 5
        %v691 = vrot.slane %v582, 5
        %v692 = vrot.slane %v586, 5
        %v693 = vrot.slane %v590, 5
        %v694 = vrot.slane %v594, 5
        %v695 = vrot.slane %v598, 5
        %v696 = vrot.slane %v602, 5
        %v697 = vrot.slane %v606, 5
        %v698 = vrot.slane %v610, 5
        %v699 = vrot.slane %v614, 5
        %v700 = vrot.slane %v618, 5
        %v701 = vrot.slane %v622, 5
        %v702 = vrot.slane %v626, 5
        %v703 = vrot.slane %v630, 5
        %v704 = vrot.slane %v634, 5
        %v705 = vrot.slane %v638, 5
        %v706 = vlaneseq
        %v707 = vshrl.u32 %v706, 7
        %vm708 = vcmp.lt.s32.totalorder %v707, 3
        %v709 = vsel %vm708, %v662, %v684
        %v710 = vsel %vm708, %v663, %v685
        %v711 = vsel %vm708, %v664, %v686
        %v712 = vsel %vm708, %v665, %v687
        %v713 = vsel %vm708, %v666, %v688
        %v714 = vsel %vm708, %v667, %v689
        %v715 = vsel %vm708, %v668, %v690
        %v716 = vsel %vm708, %v669, %v691
        %v717 = vsel %vm708, %v670, %v692
        %v718 = vsel %vm708, %v671, %v693
        %v719 = vsel %vm708, %v672, %v694
        %v720 = vsel %vm708, %v673, %v695
        %v721 = vsel %vm708, %v674, %v696
        %v722 = vsel %vm708, %v675, %v697
        %v723 = vsel %vm708, %v676, %v698
        %v724 = vsel %vm708, %v677, %v699
        %v725 = vsel %vm708, %v678, %v700
        %v726 = vsel %vm708, %v679, %v701
        %v727 = vsel %vm708, %v680, %v702
        %v728 = vsel %vm708, %v681, %v703
        %v729 = vsel %vm708, %v682, %v704
        %v730 = vsel %vm708, %v683, %v705
        %v731 = vsel %vm708, %v640, %v662
        %v732 = vsel %vm708, %v641, %v663
        %v733 = vsel %vm708, %v642, %v664
        %v734 = vsel %vm708, %v643, %v665
        %v735 = vsel %vm708, %v644, %v666
        %v736 = vsel %vm708, %v645, %v667
        %v737 = vsel %vm708, %v646, %v668
        %v738 = vsel %vm708, %v647, %v669
        %v739 = vsel %vm708, %v648, %v670
        %v740 = vsel %vm708, %v649, %v671
        %v741 = vsel %vm708, %v650, %v672
        %v742 = vsel %vm708, %v651, %v673
        %v743 = vsel %vm708, %v652, %v674
        %v744 = vsel %vm708, %v653, %v675
        %v745 = vsel %vm708, %v654, %v676
        %v746 = vsel %vm708, %v655, %v677
        %v747 = vsel %vm708, %v656, %v678
        %v748 = vsel %vm708, %v657, %v679
        %v749 = vsel %vm708, %v658, %v680
        %v750 = vsel %vm708, %v659, %v681
        %v751 = vsel %vm708, %v660, %v682
        %v752 = vsel %vm708, %v661, %v683
        %v753 = vlaneseq
        %v754 = vshrl.u32 %v753, 7
        %v755 = vsub.s32 0, %v754
        %v756 = vrot.slane %v545, %v755
        %v757 = vmul.f32 %v731, %v756
        %v758 = vmul.f32 %v709, %v756
        %v759 = vmul.f32 %v732, %v756
        %v760 = vmul.f32 %v710, %v756
        %v761 = vmul.f32 %v733, %v756
        %v762 = vmul.f32 %v711, %v756
        %v763 = vmul.f32 %v734, %v756
        %v764 = vmul.f32 %v712, %v756
        %v765 = vmul.f32 %v735, %v756
        %v766 = vmul.f32 %v713, %v756
        %v767 = vmul.f32 %v736, %v756
        %v768 = vmul.f32 %v714, %v756
        %v769 = vmul.f32 %v737, %v756
        %v770 = vmul.f32 %v715, %v756
        %v771 = vmul.f32 %v738, %v756
        %v772 = vmul.f32 %v716, %v756
        %v773 = vmul.f32 %v739, %v756
        %v774 = vmul.f32 %v717, %v756
        %v775 = vmul.f32 %v740, %v756
        %v776 = vmul.f32 %v718, %v756
        %v777 = vmul.f32 %v741, %v756
        %v778 = vmul.f32 %v719, %v756
        %v779 = vmul.f32 %v742, %v756
        %v780 = vmul.f32 %v720, %v756
        %v781 = vmul.f32 %v743, %v756
        %v782 = vmul.f32 %v721, %v756
        %v783 = vmul.f32 %v744, %v756
        %v784 = vmul.f32 %v722, %v756
        %v785 = vmul.f32 %v745, %v756
        %v786 = vmul.f32 %v723, %v756
        %v787 = vmul.f32 %v746, %v756
        %v788 = vmul.f32 %v724, %v756
        %v789 = vadd.f32 %v757, 0.0
        %v790 = vadd.f32 %v758, 0.0
        %v791 = vadd.f32 %v759, 0.0
        %v792 = vadd.f32 %v760, 0.0
        %v793 = vadd.f32 %v761, 0.0
        %v794 = vadd.f32 %v762, 0.0
        %v795 = vadd.f32 %v763, 0.0
        %v796 = vadd.f32 %v764, 0.0
        %v797 = vadd.f32 %v765, 0.0
        %v798 = vadd.f32 %v766, 0.0
        %v799 = vadd.f32 %v767, 0.0
        %v800 = vadd.f32 %v768, 0.0
        %v801 = vadd.f32 %v769, 0.0
        %v802 = vadd.f32 %v770, 0.0
        %v803 = vadd.f32 %v771, 0.0
        %v804 = vadd.f32 %v772, 0.0
        %v805 = vadd.f32 %v773, 0.0
        %v806 = vadd.f32 %v774, 0.0
        %v807 = vadd.f32 %v775, 0.0
        %v808 = vadd.f32 %v776, 0.0
        %v809 = vadd.f32 %v777, 0.0
        %v810 = vadd.f32 %v778, 0.0
        %v811 = vadd.f32 %v779, 0.0
        %v812 = vadd.f32 %v780, 0.0
        %v813 = vadd.f32 %v781, 0.0
        %v814 = vadd.f32 %v782, 0.0
        %v815 = vadd.f32 %v783, 0.0
        %v816 = vadd.f32 %v784, 0.0
        %v817 = vadd.f32 %v785, 0.0
        %v818 = vadd.f32 %v786, 0.0
        %v819 = vadd.f32 %v787, 0.0
        %v820 = vadd.f32 %v788, 0.0
        %v821 = vlaneseq
        %v822 = vshrl.u32 %v821, 7
        %v823 = vsub.s32 7, %v822
        %v824 = vrot.slane %v545, %v823
        %v825 = vmul.f32 %v732, %v824
        %v826 = vmul.f32 %v710, %v824
        %v827 = vmul.f32 %v733, %v824
        %v828 = vmul.f32 %v711, %v824
        %v829 = vmul.f32 %v734, %v824
        %v830 = vmul.f32 %v712, %v824
        %v831 = vmul.f32 %v735, %v824
        %v832 = vmul.f32 %v713, %v824
        %v833 = vmul.f32 %v736, %v824
        %v834 = vmul.f32 %v714, %v824
        %v835 = vmul.f32 %v737, %v824
        %v836 = vmul.f32 %v715, %v824
        %v837 = vmul.f32 %v738, %v824
        %v838 = vmul.f32 %v716, %v824
        %v839 = vmul.f32 %v739, %v824
        %v840 = vmul.f32 %v717, %v824
        %v841 = vmul.f32 %v740, %v824
        %v842 = vmul.f32 %v718, %v824
        %v843 = vmul.f32 %v741, %v824
        %v844 = vmul.f32 %v719, %v824
        %v845 = vmul.f32 %v742, %v824
        %v846 = vmul.f32 %v720, %v824
        %v847 = vmul.f32 %v743, %v824
        %v848 = vmul.f32 %v721, %v824
        %v849 = vmul.f32 %v744, %v824
        %v850 = vmul.f32 %v722, %v824
        %v851 = vmul.f32 %v745, %v824
        %v852 = vmul.f32 %v723, %v824
        %v853 = vmul.f32 %v746, %v824
        %v854 = vmul.f32 %v724, %v824
        %v855 = vmul.f32 %v747, %v824
        %v856 = vmul.f32 %v725, %v824
        %v857 = vadd.f32 %v789, %v825
        %v858 = vadd.f32 %v790, %v826
        %v859 = vadd.f32 %v791, %v827
        %v860 = vadd.f32 %v792, %v828
        %v861 = vadd.f32 %v793, %v829
        %v862 = vadd.f32 %v794, %v830
        %v863 = vadd.f32 %v795, %v831
        %v864 = vadd.f32 %v796, %v832
        %v865 = vadd.f32 %v797, %v833
        %v866 = vadd.f32 %v798, %v834
        %v867 = vadd.f32 %v799, %v835
        %v868 = vadd.f32 %v800, %v836
        %v869 = vadd.f32 %v801, %v837
        %v870 = vadd.f32 %v802, %v838
        %v871 = vadd.f32 %v803, %v839
        %v872 = vadd.f32 %v804, %v840
        %v873 = vadd.f32 %v805, %v841
        %v874 = vadd.f32 %v806, %v842
        %v875 = vadd.f32 %v807, %v843
        %v876 = vadd.f32 %v808, %v844
        %v877 = vadd.f32 %v809, %v845
        %v878 = vadd.f32 %v810, %v846
        %v879 = vadd.f32 %v811, %v847
        %v880 = vadd.f32 %v812, %v848
        %v881 = vadd.f32 %v813, %v849
        %v882 = vadd.f32 %v814, %v850
        %v883 = vadd.f32 %v815, %v851
        %v884 = vadd.f32 %v816, %v852
        %v885 = vadd.f32 %v817, %v853
        %v886 = vadd.f32 %v818, %v854
        %v887 = vadd.f32 %v819, %v855
        %v888 = vadd.f32 %v820, %v856
        %v889 = vlaneseq
        %v890 = vshrl.u32 %v889, 7
        %v891 = vsub.s32 6, %v890
        %v892 = vrot.slane %v546, %v891
        %v893 = vmul.f32 %v733, %v892
        %v894 = vmul.f32 %v711, %v892
        %v895 = vmul.f32 %v734, %v892
        %v896 = vmul.f32 %v712, %v892
        %v897 = vmul.f32 %v735, %v892
        %v898 = vmul.f32 %v713, %v892
        %v899 = vmul.f32 %v736, %v892
        %v900 = vmul.f32 %v714, %v892
        %v901 = vmul.f32 %v737, %v892
        %v902 = vmul.f32 %v715, %v892
        %v903 = vmul.f32 %v738, %v892
        %v904 = vmul.f32 %v716, %v892
        %v905 = vmul.f32 %v739, %v892
        %v906 = vmul.f32 %v717, %v892
        %v907 = vmul.f32 %v740, %v892
        %v908 = vmul.f32 %v718, %v892
        %v909 = vmul.f32 %v741, %v892
        %v910 = vmul.f32 %v719, %v892
        %v911 = vmul.f32 %v742, %v892
        %v912 = vmul.f32 %v720, %v892
        %v913 = vmul.f32 %v743, %v892
        %v914 = vmul.f32 %v721, %v892
        %v915 = vmul.f32 %v744, %v892
        %v916 = vmul.f32 %v722, %v892
        %v917 = vmul.f32 %v745, %v892
        %v918 = vmul.f32 %v723, %v892
        %v919 = vmul.f32 %v746, %v892
        %v920 = vmul.f32 %v724, %v892
        %v921 = vmul.f32 %v747, %v892
        %v922 = vmul.f32 %v725, %v892
        %v923 = vmul.f32 %v748, %v892
        %v924 = vmul.f32 %v726, %v892
        %v925 = vadd.f32 %v857, %v893
        %v926 = vadd.f32 %v858, %v894
        %v927 = vadd.f32 %v859, %v895
        %v928 = vadd.f32 %v860, %v896
        %v929 = vadd.f32 %v861, %v897
        %v930 = vadd.f32 %v862, %v898
        %v931 = vadd.f32 %v863, %v899
        %v932 = vadd.f32 %v864, %v900
        %v933 = vadd.f32 %v865, %v901
        %v934 = vadd.f32 %v866, %v902
        %v935 = vadd.f32 %v867, %v903
        %v936 = vadd.f32 %v868, %v904
        %v937 = vadd.f32 %v869, %v905
        %v938 = vadd.f32 %v870, %v906
        %v939 = vadd.f32 %v871, %v907
        %v940 = vadd.f32 %v872, %v908
        %v941 = vadd.f32 %v873, %v909
        %v942 = vadd.f32 %v874, %v910
        %v943 = vadd.f32 %v875, %v911
        %v944 = vadd.f32 %v876, %v912
        %v945 = vadd.f32 %v877, %v913
        %v946 = vadd.f32 %v878, %v914
        %v947 = vadd.f32 %v879, %v915
        %v948 = vadd.f32 %v880, %v916
        %v949 = vadd.f32 %v881, %v917
        %v950 = vadd.f32 %v882, %v918
        %v951 = vadd.f32 %v883, %v919
        %v952 = vadd.f32 %v884, %v920
        %v953 = vadd.f32 %v885, %v921
        %v954 = vadd.f32 %v886, %v922
        %v955 = vadd.f32 %v887, %v923
        %v956 = vadd.f32 %v888, %v924
        %v957 = vlaneseq
        %v958 = vshrl.u32 %v957, 7
        %v959 = vsub.s32 5, %v958
        %v960 = vrot.slane %v547, %v959
        %v961 = vmul.f32 %v734, %v960
        %v962 = vmul.f32 %v712, %v960
        %v963 = vmul.f32 %v735, %v960
        %v964 = vmul.f32 %v713, %v960
        %v965 = vmul.f32 %v736, %v960
        %v966 = vmul.f32 %v714, %v960
        %v967 = vmul.f32 %v737, %v960
        %v968 = vmul.f32 %v715, %v960
        %v969 = vmul.f32 %v738, %v960
        %v970 = vmul.f32 %v716, %v960
        %v971 = vmul.f32 %v739, %v960
        %v972 = vmul.f32 %v717, %v960
        %v973 = vmul.f32 %v740, %v960
        %v974 = vmul.f32 %v718, %v960
        %v975 = vmul.f32 %v741, %v960
        %v976 = vmul.f32 %v719, %v960
        %v977 = vmul.f32 %v742, %v960
        %v978 = vmul.f32 %v720, %v960
        %v979 = vmul.f32 %v743, %v960
        %v980 = vmul.f32 %v721, %v960
        %v981 = vmul.f32 %v744, %v960
        %v982 = vmul.f32 %v722, %v960
        %v983 = vmul.f32 %v745, %v960
        %v984 = vmul.f32 %v723, %v960
        %v985 = vmul.f32 %v746, %v960
        %v986 = vmul.f32 %v724, %v960
        %v987 = vmul.f32 %v747, %v960
        %v988 = vmul.f32 %v725, %v960
        %v989 = vmul.f32 %v748, %v960
        %v990 = vmul.f32 %v726, %v960
        %v991 = vmul.f32 %v749, %v960
        %v992 = vmul.f32 %v727, %v960
        %v993 = vadd.f32 %v925, %v961
        %v994 = vadd.f32 %v926, %v962
        %v995 = vadd.f32 %v927, %v963
        %v996 = vadd.f32 %v928, %v964
        %v997 = vadd.f32 %v929, %v965
        %v998 = vadd.f32 %v930, %v966
        %v999 = vadd.f32 %v931, %v967
        %v1000 = vadd.f32 %v932, %v968
        %v1001 = vadd.f32 %v933, %v969
        %v1002 = vadd.f32 %v934, %v970
        %v1003 = vadd.f32 %v935, %v971
        %v1004 = vadd.f32 %v936, %v972
        %v1005 = vadd.f32 %v937, %v973
        %v1006 = vadd.f32 %v938, %v974
        %v1007 = vadd.f32 %v939, %v975
        %v1008 = vadd.f32 %v940, %v976
        %v1009 = vadd.f32 %v941, %v977
        %v1010 = vadd.f32 %v942, %v978
        %v1011 = vadd.f32 %v943, %v979
        %v1012 = vadd.f32 %v944, %v980
        %v1013 = vadd.f32 %v945, %v981
        %v1014 = vadd.f32 %v946, %v982
        %v1015 = vadd.f32 %v947, %v983
        %v1016 = vadd.f32 %v948, %v984
        %v1017 = vadd.f32 %v949, %v985
        %v1018 = vadd.f32 %v950, %v986
        %v1019 = vadd.f32 %v951, %v987
        %v1020 = vadd.f32 %v952, %v988
        %v1021 = vadd.f32 %v953, %v989
        %v1022 = vadd.f32 %v954, %v990
        %v1023 = vadd.f32 %v955, %v991
        %v1024 = vadd.f32 %v956, %v992
        %v1025 = vlaneseq
        %v1026 = vshrl.u32 %v1025, 7
        %v1027 = vsub.s32 4, %v1026
        %v1028 = vrot.slane %v548, %v1027
        %v1029 = vmul.f32 %v735, %v1028
        %v1030 = vmul.f32 %v713, %v1028
        %v1031 = vmul.f32 %v736, %v1028
        %v1032 = vmul.f32 %v714, %v1028
        %v1033 = vmul.f32 %v737, %v1028
        %v1034 = vmul.f32 %v715, %v1028
        %v1035 = vmul.f32 %v738, %v1028
        %v1036 = vmul.f32 %v716, %v1028
        %v1037 = vmul.f32 %v739, %v1028
        %v1038 = vmul.f32 %v717, %v1028
        %v1039 = vmul.f32 %v740, %v1028
        %v1040 = vmul.f32 %v718, %v1028
        %v1041 = vmul.f32 %v741, %v1028
        %v1042 = vmul.f32 %v719, %v1028
        %v1043 = vmul.f32 %v742, %v1028
        %v1044 = vmul.f32 %v720, %v1028
        %v1045 = vmul.f32 %v743, %v1028
        %v1046 = vmul.f32 %v721, %v1028
        %v1047 = vmul.f32 %v744, %v1028
        %v1048 = vmul.f32 %v722, %v1028
        %v1049 = vmul.f32 %v745, %v1028
        %v1050 = vmul.f32 %v723, %v1028
        %v1051 = vmul.f32 %v746, %v1028
        %v1052 = vmul.f32 %v724, %v1028
        %v1053 = vmul.f32 %v747, %v1028
        %v1054 = vmul.f32 %v725, %v1028
        %v1055 = vmul.f32 %v748, %v1028
        %v1056 = vmul.f32 %v726, %v1028
        %v1057 = vmul.f32 %v749, %v1028
        %v1058 = vmul.f32 %v727, %v1028
        %v1059 = vmul.f32 %v750, %v1028
        %v1060 = vmul.f32 %v728, %v1028
        %v1061 = vadd.f32 %v993, %v1029
        %v1062 = vadd.f32 %v994, %v1030
        %v1063 = vadd.f32 %v995, %v1031
        %v1064 = vadd.f32 %v996, %v1032
        %v1065 = vadd.f32 %v997, %v1033
        %v1066 = vadd.f32 %v998, %v1034
        %v1067 = vadd.f32 %v999, %v1035
        %v1068 = vadd.f32 %v1000, %v1036
        %v1069 = vadd.f32 %v1001, %v1037
        %v1070 = vadd.f32 %v1002, %v1038
        %v1071 = vadd.f32 %v1003, %v1039
        %v1072 = vadd.f32 %v1004, %v1040
        %v1073 = vadd.f32 %v1005, %v1041
        %v1074 = vadd.f32 %v1006, %v1042
        %v1075 = vadd.f32 %v1007, %v1043
        %v1076 = vadd.f32 %v1008, %v1044
        %v1077 = vadd.f32 %v1009, %v1045
        %v1078 = vadd.f32 %v1010, %v1046
        %v1079 = vadd.f32 %v1011, %v1047
        %v1080 = vadd.f32 %v1012, %v1048
        %v1081 = vadd.f32 %v1013, %v1049
        %v1082 = vadd.f32 %v1014, %v1050
        %v1083 = vadd.f32 %v1015, %v1051
        %v1084 = vadd.f32 %v1016, %v1052
        %v1085 = vadd.f32 %v1017, %v1053
        %v1086 = vadd.f32 %v1018, %v1054
        %v1087 = vadd.f32 %v1019, %v1055
        %v1088 = vadd.f32 %v1020, %v1056
        %v1089 = vadd.f32 %v1021, %v1057
        %v1090 = vadd.f32 %v1022, %v1058
        %v1091 = vadd.f32 %v1023, %v1059
        %v1092 = vadd.f32 %v1024, %v1060
        %v1093 = vlaneseq
        %v1094 = vshrl.u32 %v1093, 7
        %v1095 = vsub.s32 3, %v1094
        %v1096 = vrot.slane %v549, %v1095
        %v1097 = vmul.f32 %v736, %v1096
        %v1098 = vmul.f32 %v714, %v1096
        %v1099 = vmul.f32 %v737, %v1096
        %v1100 = vmul.f32 %v715, %v1096
        %v1101 = vmul.f32 %v738, %v1096
        %v1102 = vmul.f32 %v716, %v1096
        %v1103 = vmul.f32 %v739, %v1096
        %v1104 = vmul.f32 %v717, %v1096
        %v1105 = vmul.f32 %v740, %v1096
        %v1106 = vmul.f32 %v718, %v1096
        %v1107 = vmul.f32 %v741, %v1096
        %v1108 = vmul.f32 %v719, %v1096
        %v1109 = vmul.f32 %v742, %v1096
        %v1110 = vmul.f32 %v720, %v1096
        %v1111 = vmul.f32 %v743, %v1096
        %v1112 = vmul.f32 %v721, %v1096
        %v1113 = vmul.f32 %v744, %v1096
        %v1114 = vmul.f32 %v722, %v1096
        %v1115 = vmul.f32 %v745, %v1096
        %v1116 = vmul.f32 %v723, %v1096
        %v1117 = vmul.f32 %v746, %v1096
        %v1118 = vmul.f32 %v724, %v1096
        %v1119 = vmul.f32 %v747, %v1096
        %v1120 = vmul.f32 %v725, %v1096
        %v1121 = vmul.f32 %v748, %v1096
        %v1122 = vmul.f32 %v726, %v1096
        %v1123 = vmul.f32 %v749, %v1096
        %v1124 = vmul.f32 %v727, %v1096
        %v1125 = vmul.f32 %v750, %v1096
        %v1126 = vmul.f32 %v728, %v1096
        %v1127 = vmul.f32 %v751, %v1096
        %v1128 = vmul.f32 %v729, %v1096
        %v1129 = vadd.f32 %v1061, %v1097
        %v1130 = vadd.f32 %v1062, %v1098
        %v1131 = vadd.f32 %v1063, %v1099
        %v1132 = vadd.f32 %v1064, %v1100
        %v1133 = vadd.f32 %v1065, %v1101
        %v1134 = vadd.f32 %v1066, %v1102
        %v1135 = vadd.f32 %v1067, %v1103
        %v1136 = vadd.f32 %v1068, %v1104
        %v1137 = vadd.f32 %v1069, %v1105
        %v1138 = vadd.f32 %v1070, %v1106
        %v1139 = vadd.f32 %v1071, %v1107
        %v1140 = vadd.f32 %v1072, %v1108
        %v1141 = vadd.f32 %v1073, %v1109
        %v1142 = vadd.f32 %v1074, %v1110
        %v1143 = vadd.f32 %v1075, %v1111
        %v1144 = vadd.f32 %v1076, %v1112
        %v1145 = vadd.f32 %v1077, %v1113
        %v1146 = vadd.f32 %v1078, %v1114
        %v1147 = vadd.f32 %v1079, %v1115
        %v1148 = vadd.f32 %v1080, %v1116
        %v1149 = vadd.f32 %v1081, %v1117
        %v1150 = vadd.f32 %v1082, %v1118
        %v1151 = vadd.f32 %v1083, %v1119
        %v1152 = vadd.f32 %v1084, %v1120
        %v1153 = vadd.f32 %v1085, %v1121
        %v1154 = vadd.f32 %v1086, %v1122
        %v1155 = vadd.f32 %v1087, %v1123
        %v1156 = vadd.f32 %v1088, %v1124
        %v1157 = vadd.f32 %v1089, %v1125
        %v1158 = vadd.f32 %v1090, %v1126
        %v1159 = vadd.f32 %v1091, %v1127
        %v1160 = vadd.f32 %v1092, %v1128
        %v1161 = vlaneseq
        %v1162 = vshrl.u32 %v1161, 7
        %v1163 = vsub.s32 2, %v1162
        %v1164 = vrot.slane %v550, %v1163
        %v1165 = vmul.f32 %v737, %v1164
        %v1166 = vmul.f32 %v715, %v1164
        %v1167 = vmul.f32 %v738, %v1164
        %v1168 = vmul.f32 %v716, %v1164
        %v1169 = vmul.f32 %v739, %v1164
        %v1170 = vmul.f32 %v717, %v1164
        %v1171 = vmul.f32 %v740, %v1164
        %v1172 = vmul.f32 %v718, %v1164
        %v1173 = vmul.f32 %v741, %v1164
        %v1174 = vmul.f32 %v719, %v1164
        %v1175 = vmul.f32 %v742, %v1164
        %v1176 = vmul.f32 %v720, %v1164
        %v1177 = vmul.f32 %v743, %v1164
        %v1178 = vmul.f32 %v721, %v1164
        %v1179 = vmul.f32 %v744, %v1164
        %v1180 = vmul.f32 %v722, %v1164
        %v1181 = vmul.f32 %v745, %v1164
        %v1182 = vmul.f32 %v723, %v1164
        %v1183 = vmul.f32 %v746, %v1164
        %v1184 = vmul.f32 %v724, %v1164
        %v1185 = vmul.f32 %v747, %v1164
        %v1186 = vmul.f32 %v725, %v1164
        %v1187 = vmul.f32 %v748, %v1164
        %v1188 = vmul.f32 %v726, %v1164
        %v1189 = vmul.f32 %v749, %v1164
        %v1190 = vmul.f32 %v727, %v1164
        %v1191 = vmul.f32 %v750, %v1164
        %v1192 = vmul.f32 %v728, %v1164
        %v1193 = vmul.f32 %v751, %v1164
        %v1194 = vmul.f32 %v729, %v1164
        %v1195 = vmul.f32 %v752, %v1164
        %v1196 = vmul.f32 %v730, %v1164
        %v1197 = vadd.f32 %v1129, %v1165
        %v1198 = vadd.f32 %v1130, %v1166
        %v1199 = vadd.f32 %v1131, %v1167
        %v1200 = vadd.f32 %v1132, %v1168
        %v1201 = vadd.f32 %v1133, %v1169
        %v1202 = vadd.f32 %v1134, %v1170
        %v1203 = vadd.f32 %v1135, %v1171
        %v1204 = vadd.f32 %v1136, %v1172
        %v1205 = vadd.f32 %v1137, %v1173
        %v1206 = vadd.f32 %v1138, %v1174
        %v1207 = vadd.f32 %v1139, %v1175
        %v1208 = vadd.f32 %v1140, %v1176
        %v1209 = vadd.f32 %v1141, %v1177
        %v1210 = vadd.f32 %v1142, %v1178
        %v1211 = vadd.f32 %v1143, %v1179
        %v1212 = vadd.f32 %v1144, %v1180
        %v1213 = vadd.f32 %v1145, %v1181
        %v1214 = vadd.f32 %v1146, %v1182
        %v1215 = vadd.f32 %v1147, %v1183
        %v1216 = vadd.f32 %v1148, %v1184
        %v1217 = vadd.f32 %v1149, %v1185
        %v1218 = vadd.f32 %v1150, %v1186
        %v1219 = vadd.f32 %v1151, %v1187
        %v1220 = vadd.f32 %v1152, %v1188
        %v1221 = vadd.f32 %v1153, %v1189
        %v1222 = vadd.f32 %v1154, %v1190
        %v1223 = vadd.f32 %v1155, %v1191
        %v1224 = vadd.f32 %v1156, %v1192
        %v1225 = vadd.f32 %v1157, %v1193
        %v1226 = vadd.f32 %v1158, %v1194
        %v1227 = vadd.f32 %v1159, %v1195
        %v1228 = vadd.f32 %v1160, %v1196
        %v1229 = vrot.slane %v552, 6
        %v1230 = vrot.slane %v556, 6
        %v1231 = vrot.slane %v560, 6
        %v1232 = vrot.slane %v564, 6
        %v1233 = vrot.slane %v568, 6
        %v1234 = vrot.slane %v572, 6
        %v1235 = vrot.slane %v576, 6
        %v1236 = vrot.slane %v580, 6
        %v1237 = vrot.slane %v584, 6
        %v1238 = vrot.slane %v588, 6
        %v1239 = vrot.slane %v592, 6
        %v1240 = vrot.slane %v596, 6
        %v1241 = vrot.slane %v600, 6
        %v1242 = vrot.slane %v604, 6
        %v1243 = vrot.slane %v608, 6
        %v1244 = vrot.slane %v612, 6
        %v1245 = vrot.slane %v616, 6
        %v1246 = vrot.slane %v620, 6
        %v1247 = vrot.slane %v624, 6
        %v1248 = vrot.slane %v628, 6
        %v1249 = vrot.slane %v632, 6
        %v1250 = vrot.slane %v636, 6
        %v1251 = vrot.slane %v553, 6
        %v1252 = vrot.slane %v557, 6
        %v1253 = vrot.slane %v561, 6
        %v1254 = vrot.slane %v565, 6
        %v1255 = vrot.slane %v569, 6
        %v1256 = vrot.slane %v573, 6
        %v1257 = vrot.slane %v577, 6
        %v1258 = vrot.slane %v581, 6
        %v1259 = vrot.slane %v585, 6
        %v1260 = vrot.slane %v589, 6
        %v1261 = vrot.slane %v593, 6
        %v1262 = vrot.slane %v597, 6
        %v1263 = vrot.slane %v601, 6
        %v1264 = vrot.slane %v605, 6
        %v1265 = vrot.slane %v609, 6
        %v1266 = vrot.slane %v613, 6
        %v1267 = vrot.slane %v617, 6
        %v1268 = vrot.slane %v621, 6
        %v1269 = vrot.slane %v625, 6
        %v1270 = vrot.slane %v629, 6
        %v1271 = vrot.slane %v633, 6
        %v1272 = vrot.slane %v637, 6
        %v1273 = vrot.slane %v554, 6
        %v1274 = vrot.slane %v558, 6
        %v1275 = vrot.slane %v562, 6
        %v1276 = vrot.slane %v566, 6
        %v1277 = vrot.slane %v570, 6
        %v1278 = vrot.slane %v574, 6
        %v1279 = vrot.slane %v578, 6
        %v1280 = vrot.slane %v582, 6
        %v1281 = vrot.slane %v586, 6
        %v1282 = vrot.slane %v590, 6
        %v1283 = vrot.slane %v594, 6
        %v1284 = vrot.slane %v598, 6
        %v1285 = vrot.slane %v602, 6
        %v1286 = vrot.slane %v606, 6
        %v1287 = vrot.slane %v610, 6
        %v1288 = vrot.slane %v614, 6
        %v1289 = vrot.slane %v618, 6
        %v1290 = vrot.slane %v622, 6
        %v1291 = vrot.slane %v626, 6
        %v1292 = vrot.slane %v630, 6
        %v1293 = vrot.slane %v634, 6
        %v1294 = vrot.slane %v638, 6
        %vm1295 = vcmp.lt.s32.totalorder %v707, 2
        %v1296 = vsel %vm1295, %v1251, %v1273
        %v1297 = vsel %vm1295, %v1252, %v1274
        %v1298 = vsel %vm1295, %v1253, %v1275
        %v1299 = vsel %vm1295, %v1254, %v1276
        %v1300 = vsel %vm1295, %v1255, %v1277
        %v1301 = vsel %vm1295, %v1256, %v1278
        %v1302 = vsel %vm1295, %v1257, %v1279
        %v1303 = vsel %vm1295, %v1258, %v1280
        %v1304 = vsel %vm1295, %v1259, %v1281
        %v1305 = vsel %vm1295, %v1260, %v1282
        %v1306 = vsel %vm1295, %v1261, %v1283
        %v1307 = vsel %vm1295, %v1262, %v1284
        %v1308 = vsel %vm1295, %v1263, %v1285
        %v1309 = vsel %vm1295, %v1264, %v1286
        %v1310 = vsel %vm1295, %v1265, %v1287
        %v1311 = vsel %vm1295, %v1266, %v1288
        %v1312 = vsel %vm1295, %v1267, %v1289
        %v1313 = vsel %vm1295, %v1268, %v1290
        %v1314 = vsel %vm1295, %v1269, %v1291
        %v1315 = vsel %vm1295, %v1270, %v1292
        %v1316 = vsel %vm1295, %v1271, %v1293
        %v1317 = vsel %vm1295, %v1272, %v1294
        %v1318 = vsel %vm1295, %v1229, %v1251
        %v1319 = vsel %vm1295, %v1230, %v1252
        %v1320 = vsel %vm1295, %v1231, %v1253
        %v1321 = vsel %vm1295, %v1232, %v1254
        %v1322 = vsel %vm1295, %v1233, %v1255
        %v1323 = vsel %vm1295, %v1234, %v1256
        %v1324 = vsel %vm1295, %v1235, %v1257
        %v1325 = vsel %vm1295, %v1236, %v1258
        %v1326 = vsel %vm1295, %v1237, %v1259
        %v1327 = vsel %vm1295, %v1238, %v1260
        %v1328 = vsel %vm1295, %v1239, %v1261
        %v1329 = vsel %vm1295, %v1240, %v1262
        %v1330 = vsel %vm1295, %v1241, %v1263
        %v1331 = vsel %vm1295, %v1242, %v1264
        %v1332 = vsel %vm1295, %v1243, %v1265
        %v1333 = vsel %vm1295, %v1244, %v1266
        %v1334 = vsel %vm1295, %v1245, %v1267
        %v1335 = vsel %vm1295, %v1246, %v1268
        %v1336 = vsel %vm1295, %v1247, %v1269
        %v1337 = vsel %vm1295, %v1248, %v1270
        %v1338 = vsel %vm1295, %v1249, %v1271
        %v1339 = vsel %vm1295, %v1250, %v1272
        %v1340 = vlaneseq
        %v1341 = vshrl.u32 %v1340, 7
        %v1342 = vsub.s32 1, %v1341
        %v1343 = vrot.slane %v545, %v1342
        %v1344 = vmul.f32 %v1318, %v1343
        %v1345 = vmul.f32 %v1296, %v1343
        %v1346 = vmul.f32 %v1319, %v1343
        %v1347 = vmul.f32 %v1297, %v1343
        %v1348 = vmul.f32 %v1320, %v1343
        %v1349 = vmul.f32 %v1298, %v1343
        %v1350 = vmul.f32 %v1321, %v1343
        %v1351 = vmul.f32 %v1299, %v1343
        %v1352 = vmul.f32 %v1322, %v1343
        %v1353 = vmul.f32 %v1300, %v1343
        %v1354 = vmul.f32 %v1323, %v1343
        %v1355 = vmul.f32 %v1301, %v1343
        %v1356 = vmul.f32 %v1324, %v1343
        %v1357 = vmul.f32 %v1302, %v1343
        %v1358 = vmul.f32 %v1325, %v1343
        %v1359 = vmul.f32 %v1303, %v1343
        %v1360 = vmul.f32 %v1326, %v1343
        %v1361 = vmul.f32 %v1304, %v1343
        %v1362 = vmul.f32 %v1327, %v1343
        %v1363 = vmul.f32 %v1305, %v1343
        %v1364 = vmul.f32 %v1328, %v1343
        %v1365 = vmul.f32 %v1306, %v1343
        %v1366 = vmul.f32 %v1329, %v1343
        %v1367 = vmul.f32 %v1307, %v1343
        %v1368 = vmul.f32 %v1330, %v1343
        %v1369 = vmul.f32 %v1308, %v1343
        %v1370 = vmul.f32 %v1331, %v1343
        %v1371 = vmul.f32 %v1309, %v1343
        %v1372 = vmul.f32 %v1332, %v1343
        %v1373 = vmul.f32 %v1310, %v1343
        %v1374 = vmul.f32 %v1333, %v1343
        %v1375 = vmul.f32 %v1311, %v1343
        %v1376 = vadd.f32 %v1197, %v1344
        %v1377 = vadd.f32 %v1198, %v1345
        %v1378 = vadd.f32 %v1199, %v1346
        %v1379 = vadd.f32 %v1200, %v1347
        %v1380 = vadd.f32 %v1201, %v1348
        %v1381 = vadd.f32 %v1202, %v1349
        %v1382 = vadd.f32 %v1203, %v1350
        %v1383 = vadd.f32 %v1204, %v1351
        %v1384 = vadd.f32 %v1205, %v1352
        %v1385 = vadd.f32 %v1206, %v1353
        %v1386 = vadd.f32 %v1207, %v1354
        %v1387 = vadd.f32 %v1208, %v1355
        %v1388 = vadd.f32 %v1209, %v1356
        %v1389 = vadd.f32 %v1210, %v1357
        %v1390 = vadd.f32 %v1211, %v1358
        %v1391 = vadd.f32 %v1212, %v1359
        %v1392 = vadd.f32 %v1213, %v1360
        %v1393 = vadd.f32 %v1214, %v1361
        %v1394 = vadd.f32 %v1215, %v1362
        %v1395 = vadd.f32 %v1216, %v1363
        %v1396 = vadd.f32 %v1217, %v1364
        %v1397 = vadd.f32 %v1218, %v1365
        %v1398 = vadd.f32 %v1219, %v1366
        %v1399 = vadd.f32 %v1220, %v1367
        %v1400 = vadd.f32 %v1221, %v1368
        %v1401 = vadd.f32 %v1222, %v1369
        %v1402 = vadd.f32 %v1223, %v1370
        %v1403 = vadd.f32 %v1224, %v1371
        %v1404 = vadd.f32 %v1225, %v1372
        %v1405 = vadd.f32 %v1226, %v1373
        %v1406 = vadd.f32 %v1227, %v1374
        %v1407 = vadd.f32 %v1228, %v1375
        %v1408 = vlaneseq
        %v1409 = vshrl.u32 %v1408, 7
        %v1410 = vsub.s32 0, %v1409
        %v1411 = vrot.slane %v546, %v1410
        %v1412 = vmul.f32 %v1319, %v1411
        %v1413 = vmul.f32 %v1297, %v1411
        %v1414 = vmul.f32 %v1320, %v1411
        %v1415 = vmul.f32 %v1298, %v1411
        %v1416 = vmul.f32 %v1321, %v1411
        %v1417 = vmul.f32 %v1299, %v1411
        %v1418 = vmul.f32 %v1322, %v1411
        %v1419 = vmul.f32 %v1300, %v1411
        %v1420 = vmul.f32 %v1323, %v1411
        %v1421 = vmul.f32 %v1301, %v1411
        %v1422 = vmul.f32 %v1324, %v1411
        %v1423 = vmul.f32 %v1302, %v1411
        %v1424 = vmul.f32 %v1325, %v1411
        %v1425 = vmul.f32 %v1303, %v1411
        %v1426 = vmul.f32 %v1326, %v1411
        %v1427 = vmul.f32 %v1304, %v1411
        %v1428 = vmul.f32 %v1327, %v1411
        %v1429 = vmul.f32 %v1305, %v1411
        %v1430 = vmul.f32 %v1328, %v1411
        %v1431 = vmul.f32 %v1306, %v1411
        %v1432 = vmul.f32 %v1329, %v1411
        %v1433 = vmul.f32 %v1307, %v1411
        %v1434 = vmul.f32 %v1330, %v1411
        %v1435 = vmul.f32 %v1308, %v1411
        %v1436 = vmul.f32 %v1331, %v1411
        %v1437 = vmul.f32 %v1309, %v1411
        %v1438 = vmul.f32 %v1332, %v1411
        %v1439 = vmul.f32 %v1310, %v1411
        %v1440 = vmul.f32 %v1333, %v1411
        %v1441 = vmul.f32 %v1311, %v1411
        %v1442 = vmul.f32 %v1334, %v1411
        %v1443 = vmul.f32 %v1312, %v1411
        %v1444 = vadd.f32 %v1376, %v1412
        %v1445 = vadd.f32 %v1377, %v1413
        %v1446 = vadd.f32 %v1378, %v1414
        %v1447 = vadd.f32 %v1379, %v1415
        %v1448 = vadd.f32 %v1380, %v1416
        %v1449 = vadd.f32 %v1381, %v1417
        %v1450 = vadd.f32 %v1382, %v1418
        %v1451 = vadd.f32 %v1383, %v1419
        %v1452 = vadd.f32 %v1384, %v1420
        %v1453 = vadd.f32 %v1385, %v1421
        %v1454 = vadd.f32 %v1386, %v1422
        %v1455 = vadd.f32 %v1387, %v1423
        %v1456 = vadd.f32 %v1388, %v1424
        %v1457 = vadd.f32 %v1389, %v1425
        %v1458 = vadd.f32 %v1390, %v1426
        %v1459 = vadd.f32 %v1391, %v1427
        %v1460 = vadd.f32 %v1392, %v1428
        %v1461 = vadd.f32 %v1393, %v1429
        %v1462 = vadd.f32 %v1394, %v1430
        %v1463 = vadd.f32 %v1395, %v1431
        %v1464 = vadd.f32 %v1396, %v1432
        %v1465 = vadd.f32 %v1397, %v1433
        %v1466 = vadd.f32 %v1398, %v1434
        %v1467 = vadd.f32 %v1399, %v1435
        %v1468 = vadd.f32 %v1400, %v1436
        %v1469 = vadd.f32 %v1401, %v1437
        %v1470 = vadd.f32 %v1402, %v1438
        %v1471 = vadd.f32 %v1403, %v1439
        %v1472 = vadd.f32 %v1404, %v1440
        %v1473 = vadd.f32 %v1405, %v1441
        %v1474 = vadd.f32 %v1406, %v1442
        %v1475 = vadd.f32 %v1407, %v1443
        %v1476 = vlaneseq
        %v1477 = vshrl.u32 %v1476, 7
        %v1478 = vsub.s32 7, %v1477
        %v1479 = vrot.slane %v546, %v1478
        %v1480 = vmul.f32 %v1320, %v1479
        %v1481 = vmul.f32 %v1298, %v1479
        %v1482 = vmul.f32 %v1321, %v1479
        %v1483 = vmul.f32 %v1299, %v1479
        %v1484 = vmul.f32 %v1322, %v1479
        %v1485 = vmul.f32 %v1300, %v1479
        %v1486 = vmul.f32 %v1323, %v1479
        %v1487 = vmul.f32 %v1301, %v1479
        %v1488 = vmul.f32 %v1324, %v1479
        %v1489 = vmul.f32 %v1302, %v1479
        %v1490 = vmul.f32 %v1325, %v1479
        %v1491 = vmul.f32 %v1303, %v1479
        %v1492 = vmul.f32 %v1326, %v1479
        %v1493 = vmul.f32 %v1304, %v1479
        %v1494 = vmul.f32 %v1327, %v1479
        %v1495 = vmul.f32 %v1305, %v1479
        %v1496 = vmul.f32 %v1328, %v1479
        %v1497 = vmul.f32 %v1306, %v1479
        %v1498 = vmul.f32 %v1329, %v1479
        %v1499 = vmul.f32 %v1307, %v1479
        %v1500 = vmul.f32 %v1330, %v1479
        %v1501 = vmul.f32 %v1308, %v1479
        %v1502 = vmul.f32 %v1331, %v1479
        %v1503 = vmul.f32 %v1309, %v1479
        %v1504 = vmul.f32 %v1332, %v1479
        %v1505 = vmul.f32 %v1310, %v1479
        %v1506 = vmul.f32 %v1333, %v1479
        %v1507 = vmul.f32 %v1311, %v1479
        %v1508 = vmul.f32 %v1334, %v1479
        %v1509 = vmul.f32 %v1312, %v1479
        %v1510 = vmul.f32 %v1335, %v1479
        %v1511 = vmul.f32 %v1313, %v1479
        %v1512 = vadd.f32 %v1444, %v1480
        %v1513 = vadd.f32 %v1445, %v1481
        %v1514 = vadd.f32 %v1446, %v1482
        %v1515 = vadd.f32 %v1447, %v1483
        %v1516 = vadd.f32 %v1448, %v1484
        %v1517 = vadd.f32 %v1449, %v1485
        %v1518 = vadd.f32 %v1450, %v1486
        %v1519 = vadd.f32 %v1451, %v1487
        %v1520 = vadd.f32 %v1452, %v1488
        %v1521 = vadd.f32 %v1453, %v1489
        %v1522 = vadd.f32 %v1454, %v1490
        %v1523 = vadd.f32 %v1455, %v1491
        %v1524 = vadd.f32 %v1456, %v1492
        %v1525 = vadd.f32 %v1457, %v1493
        %v1526 = vadd.f32 %v1458, %v1494
        %v1527 = vadd.f32 %v1459, %v1495
        %v1528 = vadd.f32 %v1460, %v1496
        %v1529 = vadd.f32 %v1461, %v1497
        %v1530 = vadd.f32 %v1462, %v1498
        %v1531 = vadd.f32 %v1463, %v1499
        %v1532 = vadd.f32 %v1464, %v1500
        %v1533 = vadd.f32 %v1465, %v1501
        %v1534 = vadd.f32 %v1466, %v1502
        %v1535 = vadd.f32 %v1467, %v1503
        %v1536 = vadd.f32 %v1468, %v1504
        %v1537 = vadd.f32 %v1469, %v1505
        %v1538 = vadd.f32 %v1470, %v1506
        %v1539 = vadd.f32 %v1471, %v1507
        %v1540 = vadd.f32 %v1472, %v1508
        %v1541 = vadd.f32 %v1473, %v1509
        %v1542 = vadd.f32 %v1474, %v1510
        %v1543 = vadd.f32 %v1475, %v1511
        %v1544 = vlaneseq
        %v1545 = vshrl.u32 %v1544, 7
        %v1546 = vsub.s32 6, %v1545
        %v1547 = vrot.slane %v547, %v1546
        %v1548 = vmul.f32 %v1321, %v1547
        %v1549 = vmul.f32 %v1299, %v1547
        %v1550 = vmul.f32 %v1322, %v1547
        %v1551 = vmul.f32 %v1300, %v1547
        %v1552 = vmul.f32 %v1323, %v1547
        %v1553 = vmul.f32 %v1301, %v1547
        %v1554 = vmul.f32 %v1324, %v1547
        %v1555 = vmul.f32 %v1302, %v1547
        %v1556 = vmul.f32 %v1325, %v1547
        %v1557 = vmul.f32 %v1303, %v1547
        %v1558 = vmul.f32 %v1326, %v1547
        %v1559 = vmul.f32 %v1304, %v1547
        %v1560 = vmul.f32 %v1327, %v1547
        %v1561 = vmul.f32 %v1305, %v1547
        %v1562 = vmul.f32 %v1328, %v1547
        %v1563 = vmul.f32 %v1306, %v1547
        %v1564 = vmul.f32 %v1329, %v1547
        %v1565 = vmul.f32 %v1307, %v1547
        %v1566 = vmul.f32 %v1330, %v1547
        %v1567 = vmul.f32 %v1308, %v1547
        %v1568 = vmul.f32 %v1331, %v1547
        %v1569 = vmul.f32 %v1309, %v1547
        %v1570 = vmul.f32 %v1332, %v1547
        %v1571 = vmul.f32 %v1310, %v1547
        %v1572 = vmul.f32 %v1333, %v1547
        %v1573 = vmul.f32 %v1311, %v1547
        %v1574 = vmul.f32 %v1334, %v1547
        %v1575 = vmul.f32 %v1312, %v1547
        %v1576 = vmul.f32 %v1335, %v1547
        %v1577 = vmul.f32 %v1313, %v1547
        %v1578 = vmul.f32 %v1336, %v1547
        %v1579 = vmul.f32 %v1314, %v1547
        %v1580 = vadd.f32 %v1512, %v1548
        %v1581 = vadd.f32 %v1513, %v1549
        %v1582 = vadd.f32 %v1514, %v1550
        %v1583 = vadd.f32 %v1515, %v1551
        %v1584 = vadd.f32 %v1516, %v1552
        %v1585 = vadd.f32 %v1517, %v1553
        %v1586 = vadd.f32 %v1518, %v1554
        %v1587 = vadd.f32 %v1519, %v1555
        %v1588 = vadd.f32 %v1520, %v1556
        %v1589 = vadd.f32 %v1521, %v1557
        %v1590 = vadd.f32 %v1522, %v1558
        %v1591 = vadd.f32 %v1523, %v1559
        %v1592 = vadd.f32 %v1524, %v1560
        %v1593 = vadd.f32 %v1525, %v1561
        %v1594 = vadd.f32 %v1526, %v1562
        %v1595 = vadd.f32 %v1527, %v1563
        %v1596 = vadd.f32 %v1528, %v1564
        %v1597 = vadd.f32 %v1529, %v1565
        %v1598 = vadd.f32 %v1530, %v1566
        %v1599 = vadd.f32 %v1531, %v1567
        %v1600 = vadd.f32 %v1532, %v1568
        %v1601 = vadd.f32 %v1533, %v1569
        %v1602 = vadd.f32 %v1534, %v1570
        %v1603 = vadd.f32 %v1535, %v1571
        %v1604 = vadd.f32 %v1536, %v1572
        %v1605 = vadd.f32 %v1537, %v1573
        %v1606 = vadd.f32 %v1538, %v1574
        %v1607 = vadd.f32 %v1539, %v1575
        %v1608 = vadd.f32 %v1540, %v1576
        %v1609 = vadd.f32 %v1541, %v1577
        %v1610 = vadd.f32 %v1542, %v1578
        %v1611 = vadd.f32 %v1543, %v1579
        %v1612 = vlaneseq
        %v1613 = vshrl.u32 %v1612, 7
        %v1614 = vsub.s32 5, %v1613
        %v1615 = vrot.slane %v548, %v1614
        %v1616 = vmul.f32 %v1322, %v1615
        %v1617 = vmul.f32 %v1300, %v1615
        %v1618 = vmul.f32 %v1323, %v1615
        %v1619 = vmul.f32 %v1301, %v1615
        %v1620 = vmul.f32 %v1324, %v1615
        %v1621 = vmul.f32 %v1302, %v1615
        %v1622 = vmul.f32 %v1325, %v1615
        %v1623 = vmul.f32 %v1303, %v1615
        %v1624 = vmul.f32 %v1326, %v1615
        %v1625 = vmul.f32 %v1304, %v1615
        %v1626 = vmul.f32 %v1327, %v1615
        %v1627 = vmul.f32 %v1305, %v1615
        %v1628 = vmul.f32 %v1328, %v1615
        %v1629 = vmul.f32 %v1306, %v1615
        %v1630 = vmul.f32 %v1329, %v1615
        %v1631 = vmul.f32 %v1307, %v1615
        %v1632 = vmul.f32 %v1330, %v1615
        %v1633 = vmul.f32 %v1308, %v1615
        %v1634 = vmul.f32 %v1331, %v1615
        %v1635 = vmul.f32 %v1309, %v1615
        %v1636 = vmul.f32 %v1332, %v1615
        %v1637 = vmul.f32 %v1310, %v1615
        %v1638 = vmul.f32 %v1333, %v1615
        %v1639 = vmul.f32 %v1311, %v1615
        %v1640 = vmul.f32 %v1334, %v1615
        %v1641 = vmul.f32 %v1312, %v1615
        %v1642 = vmul.f32 %v1335, %v1615
        %v1643 = vmul.f32 %v1313, %v1615
        %v1644 = vmul.f32 %v1336, %v1615
        %v1645 = vmul.f32 %v1314, %v1615
        %v1646 = vmul.f32 %v1337, %v1615
        %v1647 = vmul.f32 %v1315, %v1615
        %v1648 = vadd.f32 %v1580, %v1616
        %v1649 = vadd.f32 %v1581, %v1617
        %v1650 = vadd.f32 %v1582, %v1618
        %v1651 = vadd.f32 %v1583, %v1619
        %v1652 = vadd.f32 %v1584, %v1620
        %v1653 = vadd.f32 %v1585, %v1621
        %v1654 = vadd.f32 %v1586, %v1622
        %v1655 = vadd.f32 %v1587, %v1623
        %v1656 = vadd.f32 %v1588, %v1624
        %v1657 = vadd.f32 %v1589, %v1625
        %v1658 = vadd.f32 %v1590, %v1626
        %v1659 = vadd.f32 %v1591, %v1627
        %v1660 = vadd.f32 %v1592, %v1628
        %v1661 = vadd.f32 %v1593, %v1629
        %v1662 = vadd.f32 %v1594, %v1630
        %v1663 = vadd.f32 %v1595, %v1631
        %v1664 = vadd.f32 %v1596, %v1632
        %v1665 = vadd.f32 %v1597, %v1633
        %v1666 = vadd.f32 %v1598, %v1634
        %v1667 = vadd.f32 %v1599, %v1635
        %v1668 = vadd.f32 %v1600, %v1636
        %v1669 = vadd.f32 %v1601, %v1637
        %v1670 = vadd.f32 %v1602, %v1638
        %v1671 = vadd.f32 %v1603, %v1639
        %v1672 = vadd.f32 %v1604, %v1640
        %v1673 = vadd.f32 %v1605, %v1641
        %v1674 = vadd.f32 %v1606, %v1642
        %v1675 = vadd.f32 %v1607, %v1643
        %v1676 = vadd.f32 %v1608, %v1644
        %v1677 = vadd.f32 %v1609, %v1645
        %v1678 = vadd.f32 %v1610, %v1646
        %v1679 = vadd.f32 %v1611, %v1647
        %v1680 = vlaneseq
        %v1681 = vshrl.u32 %v1680, 7
        %v1682 = vsub.s32 4, %v1681
        %v1683 = vrot.slane %v549, %v1682
        %v1684 = vmul.f32 %v1323, %v1683
        %v1685 = vmul.f32 %v1301, %v1683
        %v1686 = vmul.f32 %v1324, %v1683
        %v1687 = vmul.f32 %v1302, %v1683
        %v1688 = vmul.f32 %v1325, %v1683
        %v1689 = vmul.f32 %v1303, %v1683
        %v1690 = vmul.f32 %v1326, %v1683
        %v1691 = vmul.f32 %v1304, %v1683
        %v1692 = vmul.f32 %v1327, %v1683
        %v1693 = vmul.f32 %v1305, %v1683
        %v1694 = vmul.f32 %v1328, %v1683
        %v1695 = vmul.f32 %v1306, %v1683
        %v1696 = vmul.f32 %v1329, %v1683
        %v1697 = vmul.f32 %v1307, %v1683
        %v1698 = vmul.f32 %v1330, %v1683
        %v1699 = vmul.f32 %v1308, %v1683
        %v1700 = vmul.f32 %v1331, %v1683
        %v1701 = vmul.f32 %v1309, %v1683
        %v1702 = vmul.f32 %v1332, %v1683
        %v1703 = vmul.f32 %v1310, %v1683
        %v1704 = vmul.f32 %v1333, %v1683
        %v1705 = vmul.f32 %v1311, %v1683
        %v1706 = vmul.f32 %v1334, %v1683
        %v1707 = vmul.f32 %v1312, %v1683
        %v1708 = vmul.f32 %v1335, %v1683
        %v1709 = vmul.f32 %v1313, %v1683
        %v1710 = vmul.f32 %v1336, %v1683
        %v1711 = vmul.f32 %v1314, %v1683
        %v1712 = vmul.f32 %v1337, %v1683
        %v1713 = vmul.f32 %v1315, %v1683
        %v1714 = vmul.f32 %v1338, %v1683
        %v1715 = vmul.f32 %v1316, %v1683
        %v1716 = vadd.f32 %v1648, %v1684
        %v1717 = vadd.f32 %v1649, %v1685
        %v1718 = vadd.f32 %v1650, %v1686
        %v1719 = vadd.f32 %v1651, %v1687
        %v1720 = vadd.f32 %v1652, %v1688
        %v1721 = vadd.f32 %v1653, %v1689
        %v1722 = vadd.f32 %v1654, %v1690
        %v1723 = vadd.f32 %v1655, %v1691
        %v1724 = vadd.f32 %v1656, %v1692
        %v1725 = vadd.f32 %v1657, %v1693
        %v1726 = vadd.f32 %v1658, %v1694
        %v1727 = vadd.f32 %v1659, %v1695
        %v1728 = vadd.f32 %v1660, %v1696
        %v1729 = vadd.f32 %v1661, %v1697
        %v1730 = vadd.f32 %v1662, %v1698
        %v1731 = vadd.f32 %v1663, %v1699
        %v1732 = vadd.f32 %v1664, %v1700
        %v1733 = vadd.f32 %v1665, %v1701
        %v1734 = vadd.f32 %v1666, %v1702
        %v1735 = vadd.f32 %v1667, %v1703
        %v1736 = vadd.f32 %v1668, %v1704
        %v1737 = vadd.f32 %v1669, %v1705
        %v1738 = vadd.f32 %v1670, %v1706
        %v1739 = vadd.f32 %v1671, %v1707
        %v1740 = vadd.f32 %v1672, %v1708
        %v1741 = vadd.f32 %v1673, %v1709
        %v1742 = vadd.f32 %v1674, %v1710
        %v1743 = vadd.f32 %v1675, %v1711
        %v1744 = vadd.f32 %v1676, %v1712
        %v1745 = vadd.f32 %v1677, %v1713
        %v1746 = vadd.f32 %v1678, %v1714
        %v1747 = vadd.f32 %v1679, %v1715
        %v1748 = vlaneseq
        %v1749 = vshrl.u32 %v1748, 7
        %v1750 = vsub.s32 3, %v1749
        %v1751 = vrot.slane %v550, %v1750
        %v1752 = vmul.f32 %v1324, %v1751
        %v1753 = vmul.f32 %v1302, %v1751
        %v1754 = vmul.f32 %v1325, %v1751
        %v1755 = vmul.f32 %v1303, %v1751
        %v1756 = vmul.f32 %v1326, %v1751
        %v1757 = vmul.f32 %v1304, %v1751
        %v1758 = vmul.f32 %v1327, %v1751
        %v1759 = vmul.f32 %v1305, %v1751
        %v1760 = vmul.f32 %v1328, %v1751
        %v1761 = vmul.f32 %v1306, %v1751
        %v1762 = vmul.f32 %v1329, %v1751
        %v1763 = vmul.f32 %v1307, %v1751
        %v1764 = vmul.f32 %v1330, %v1751
        %v1765 = vmul.f32 %v1308, %v1751
        %v1766 = vmul.f32 %v1331, %v1751
        %v1767 = vmul.f32 %v1309, %v1751
        %v1768 = vmul.f32 %v1332, %v1751
        %v1769 = vmul.f32 %v1310, %v1751
        %v1770 = vmul.f32 %v1333, %v1751
        %v1771 = vmul.f32 %v1311, %v1751
        %v1772 = vmul.f32 %v1334, %v1751
        %v1773 = vmul.f32 %v1312, %v1751
        %v1774 = vmul.f32 %v1335, %v1751
        %v1775 = vmul.f32 %v1313, %v1751
        %v1776 = vmul.f32 %v1336, %v1751
        %v1777 = vmul.f32 %v1314, %v1751
        %v1778 = vmul.f32 %v1337, %v1751
        %v1779 = vmul.f32 %v1315, %v1751
        %v1780 = vmul.f32 %v1338, %v1751
        %v1781 = vmul.f32 %v1316, %v1751
        %v1782 = vmul.f32 %v1339, %v1751
        %v1783 = vmul.f32 %v1317, %v1751
        %v1784 = vadd.f32 %v1716, %v1752
        %v1785 = vadd.f32 %v1717, %v1753
        %v1786 = vadd.f32 %v1718, %v1754
        %v1787 = vadd.f32 %v1719, %v1755
        %v1788 = vadd.f32 %v1720, %v1756
        %v1789 = vadd.f32 %v1721, %v1757
        %v1790 = vadd.f32 %v1722, %v1758
        %v1791 = vadd.f32 %v1723, %v1759
        %v1792 = vadd.f32 %v1724, %v1760
        %v1793 = vadd.f32 %v1725, %v1761
        %v1794 = vadd.f32 %v1726, %v1762
        %v1795 = vadd.f32 %v1727, %v1763
        %v1796 = vadd.f32 %v1728, %v1764
        %v1797 = vadd.f32 %v1729, %v1765
        %v1798 = vadd.f32 %v1730, %v1766
        %v1799 = vadd.f32 %v1731, %v1767
        %v1800 = vadd.f32 %v1732, %v1768
        %v1801 = vadd.f32 %v1733, %v1769
        %v1802 = vadd.f32 %v1734, %v1770
        %v1803 = vadd.f32 %v1735, %v1771
        %v1804 = vadd.f32 %v1736, %v1772
        %v1805 = vadd.f32 %v1737, %v1773
        %v1806 = vadd.f32 %v1738, %v1774
        %v1807 = vadd.f32 %v1739, %v1775
        %v1808 = vadd.f32 %v1740, %v1776
        %v1809 = vadd.f32 %v1741, %v1777
        %v1810 = vadd.f32 %v1742, %v1778
        %v1811 = vadd.f32 %v1743, %v1779
        %v1812 = vadd.f32 %v1744, %v1780
        %v1813 = vadd.f32 %v1745, %v1781
        %v1814 = vadd.f32 %v1746, %v1782
        %v1815 = vadd.f32 %v1747, %v1783
        %v1816 = vrot.slane %v552, 7
        %v1817 = vrot.slane %v556, 7
        %v1818 = vrot.slane %v560, 7
        %v1819 = vrot.slane %v564, 7
        %v1820 = vrot.slane %v568, 7
        %v1821 = vrot.slane %v572, 7
        %v1822 = vrot.slane %v576, 7
        %v1823 = vrot.slane %v580, 7
        %v1824 = vrot.slane %v584, 7
        %v1825 = vrot.slane %v588, 7
        %v1826 = vrot.slane %v592, 7
        %v1827 = vrot.slane %v596, 7
        %v1828 = vrot.slane %v600, 7
        %v1829 = vrot.slane %v604, 7
        %v1830 = vrot.slane %v608, 7
        %v1831 = vrot.slane %v612, 7
        %v1832 = vrot.slane %v616, 7
        %v1833 = vrot.slane %v620, 7
        %v1834 = vrot.slane %v624, 7
        %v1835 = vrot.slane %v628, 7
        %v1836 = vrot.slane %v632, 7
        %v1837 = vrot.slane %v636, 7
        %v1838 = vrot.slane %v553, 7
        %v1839 = vrot.slane %v557, 7
        %v1840 = vrot.slane %v561, 7
        %v1841 = vrot.slane %v565, 7
        %v1842 = vrot.slane %v569, 7
        %v1843 = vrot.slane %v573, 7
        %v1844 = vrot.slane %v577, 7
        %v1845 = vrot.slane %v581, 7
        %v1846 = vrot.slane %v585, 7
        %v1847 = vrot.slane %v589, 7
        %v1848 = vrot.slane %v593, 7
        %v1849 = vrot.slane %v597, 7
        %v1850 = vrot.slane %v601, 7
        %v1851 = vrot.slane %v605, 7
        %v1852 = vrot.slane %v609, 7
        %v1853 = vrot.slane %v613, 7
        %v1854 = vrot.slane %v617, 7
        %v1855 = vrot.slane %v621, 7
        %v1856 = vrot.slane %v625, 7
        %v1857 = vrot.slane %v629, 7
        %v1858 = vrot.slane %v633, 7
        %v1859 = vrot.slane %v637, 7
        %v1860 = vrot.slane %v554, 7
        %v1861 = vrot.slane %v558, 7
        %v1862 = vrot.slane %v562, 7
        %v1863 = vrot.slane %v566, 7
        %v1864 = vrot.slane %v570, 7
        %v1865 = vrot.slane %v574, 7
        %v1866 = vrot.slane %v578, 7
        %v1867 = vrot.slane %v582, 7
        %v1868 = vrot.slane %v586, 7
        %v1869 = vrot.slane %v590, 7
        %v1870 = vrot.slane %v594, 7
        %v1871 = vrot.slane %v598, 7
        %v1872 = vrot.slane %v602, 7
        %v1873 = vrot.slane %v606, 7
        %v1874 = vrot.slane %v610, 7
        %v1875 = vrot.slane %v614, 7
        %v1876 = vrot.slane %v618, 7
        %v1877 = vrot.slane %v622, 7
        %v1878 = vrot.slane %v626, 7
        %v1879 = vrot.slane %v630, 7
        %v1880 = vrot.slane %v634, 7
        %v1881 = vrot.slane %v638, 7
        %vm1882 = vcmp.lt.s32.totalorder %v707, 1
        %v1883 = vsel %vm1882, %v1838, %v1860
        %v1884 = vsel %vm1882, %v1839, %v1861
        %v1885 = vsel %vm1882, %v1840, %v1862
        %v1886 = vsel %vm1882, %v1841, %v1863
        %v1887 = vsel %vm1882, %v1842, %v1864
        %v1888 = vsel %vm1882, %v1843, %v1865
        %v1889 = vsel %vm1882, %v1844, %v1866
        %v1890 = vsel %vm1882, %v1845, %v1867
        %v1891 = vsel %vm1882, %v1846, %v1868
        %v1892 = vsel %vm1882, %v1847, %v1869
        %v1893 = vsel %vm1882, %v1848, %v1870
        %v1894 = vsel %vm1882, %v1849, %v1871
        %v1895 = vsel %vm1882, %v1850, %v1872
        %v1896 = vsel %vm1882, %v1851, %v1873
        %v1897 = vsel %vm1882, %v1852, %v1874
        %v1898 = vsel %vm1882, %v1853, %v1875
        %v1899 = vsel %vm1882, %v1854, %v1876
        %v1900 = vsel %vm1882, %v1855, %v1877
        %v1901 = vsel %vm1882, %v1856, %v1878
        %v1902 = vsel %vm1882, %v1857, %v1879
        %v1903 = vsel %vm1882, %v1858, %v1880
        %v1904 = vsel %vm1882, %v1859, %v1881
        %v1905 = vsel %vm1882, %v1816, %v1838
        %v1906 = vsel %vm1882, %v1817, %v1839
        %v1907 = vsel %vm1882, %v1818, %v1840
        %v1908 = vsel %vm1882, %v1819, %v1841
        %v1909 = vsel %vm1882, %v1820, %v1842
        %v1910 = vsel %vm1882, %v1821, %v1843
        %v1911 = vsel %vm1882, %v1822, %v1844
        %v1912 = vsel %vm1882, %v1823, %v1845
        %v1913 = vsel %vm1882, %v1824, %v1846
        %v1914 = vsel %vm1882, %v1825, %v1847
        %v1915 = vsel %vm1882, %v1826, %v1848
        %v1916 = vsel %vm1882, %v1827, %v1849
        %v1917 = vsel %vm1882, %v1828, %v1850
        %v1918 = vsel %vm1882, %v1829, %v1851
        %v1919 = vsel %vm1882, %v1830, %v1852
        %v1920 = vsel %vm1882, %v1831, %v1853
        %v1921 = vsel %vm1882, %v1832, %v1854
        %v1922 = vsel %vm1882, %v1833, %v1855
        %v1923 = vsel %vm1882, %v1834, %v1856
        %v1924 = vsel %vm1882, %v1835, %v1857
        %v1925 = vsel %vm1882, %v1836, %v1858
        %v1926 = vsel %vm1882, %v1837, %v1859
        %v1927 = vlaneseq
        %v1928 = vshrl.u32 %v1927, 7
        %v1929 = vsub.s32 2, %v1928
        %v1930 = vrot.slane %v545, %v1929
        %v1931 = vmul.f32 %v1905, %v1930
        %v1932 = vmul.f32 %v1883, %v1930
        %v1933 = vmul.f32 %v1906, %v1930
        %v1934 = vmul.f32 %v1884, %v1930
        %v1935 = vmul.f32 %v1907, %v1930
        %v1936 = vmul.f32 %v1885, %v1930
        %v1937 = vmul.f32 %v1908, %v1930
        %v1938 = vmul.f32 %v1886, %v1930
        %v1939 = vmul.f32 %v1909, %v1930
        %v1940 = vmul.f32 %v1887, %v1930
        %v1941 = vmul.f32 %v1910, %v1930
        %v1942 = vmul.f32 %v1888, %v1930
        %v1943 = vmul.f32 %v1911, %v1930
        %v1944 = vmul.f32 %v1889, %v1930
        %v1945 = vmul.f32 %v1912, %v1930
        %v1946 = vmul.f32 %v1890, %v1930
        %v1947 = vmul.f32 %v1913, %v1930
        %v1948 = vmul.f32 %v1891, %v1930
        %v1949 = vmul.f32 %v1914, %v1930
        %v1950 = vmul.f32 %v1892, %v1930
        %v1951 = vmul.f32 %v1915, %v1930
        %v1952 = vmul.f32 %v1893, %v1930
        %v1953 = vmul.f32 %v1916, %v1930
        %v1954 = vmul.f32 %v1894, %v1930
        %v1955 = vmul.f32 %v1917, %v1930
        %v1956 = vmul.f32 %v1895, %v1930
        %v1957 = vmul.f32 %v1918, %v1930
        %v1958 = vmul.f32 %v1896, %v1930
        %v1959 = vmul.f32 %v1919, %v1930
        %v1960 = vmul.f32 %v1897, %v1930
        %v1961 = vmul.f32 %v1920, %v1930
        %v1962 = vmul.f32 %v1898, %v1930
        %v1963 = vadd.f32 %v1784, %v1931
        %v1964 = vadd.f32 %v1785, %v1932
        %v1965 = vadd.f32 %v1786, %v1933
        %v1966 = vadd.f32 %v1787, %v1934
        %v1967 = vadd.f32 %v1788, %v1935
        %v1968 = vadd.f32 %v1789, %v1936
        %v1969 = vadd.f32 %v1790, %v1937
        %v1970 = vadd.f32 %v1791, %v1938
        %v1971 = vadd.f32 %v1792, %v1939
        %v1972 = vadd.f32 %v1793, %v1940
        %v1973 = vadd.f32 %v1794, %v1941
        %v1974 = vadd.f32 %v1795, %v1942
        %v1975 = vadd.f32 %v1796, %v1943
        %v1976 = vadd.f32 %v1797, %v1944
        %v1977 = vadd.f32 %v1798, %v1945
        %v1978 = vadd.f32 %v1799, %v1946
        %v1979 = vadd.f32 %v1800, %v1947
        %v1980 = vadd.f32 %v1801, %v1948
        %v1981 = vadd.f32 %v1802, %v1949
        %v1982 = vadd.f32 %v1803, %v1950
        %v1983 = vadd.f32 %v1804, %v1951
        %v1984 = vadd.f32 %v1805, %v1952
        %v1985 = vadd.f32 %v1806, %v1953
        %v1986 = vadd.f32 %v1807, %v1954
        %v1987 = vadd.f32 %v1808, %v1955
        %v1988 = vadd.f32 %v1809, %v1956
        %v1989 = vadd.f32 %v1810, %v1957
        %v1990 = vadd.f32 %v1811, %v1958
        %v1991 = vadd.f32 %v1812, %v1959
        %v1992 = vadd.f32 %v1813, %v1960
        %v1993 = vadd.f32 %v1814, %v1961
        %v1994 = vadd.f32 %v1815, %v1962
        %v1995 = vlaneseq
        %v1996 = vshrl.u32 %v1995, 7
        %v1997 = vsub.s32 1, %v1996
        %v1998 = vrot.slane %v546, %v1997
        %v1999 = vmul.f32 %v1906, %v1998
        %v2000 = vmul.f32 %v1884, %v1998
        %v2001 = vmul.f32 %v1907, %v1998
        %v2002 = vmul.f32 %v1885, %v1998
        %v2003 = vmul.f32 %v1908, %v1998
        %v2004 = vmul.f32 %v1886, %v1998
        %v2005 = vmul.f32 %v1909, %v1998
        %v2006 = vmul.f32 %v1887, %v1998
        %v2007 = vmul.f32 %v1910, %v1998
        %v2008 = vmul.f32 %v1888, %v1998
        %v2009 = vmul.f32 %v1911, %v1998
        %v2010 = vmul.f32 %v1889, %v1998
        %v2011 = vmul.f32 %v1912, %v1998
        %v2012 = vmul.f32 %v1890, %v1998
        %v2013 = vmul.f32 %v1913, %v1998
        %v2014 = vmul.f32 %v1891, %v1998
        %v2015 = vmul.f32 %v1914, %v1998
        %v2016 = vmul.f32 %v1892, %v1998
        %v2017 = vmul.f32 %v1915, %v1998
        %v2018 = vmul.f32 %v1893, %v1998
        %v2019 = vmul.f32 %v1916, %v1998
        %v2020 = vmul.f32 %v1894, %v1998
        %v2021 = vmul.f32 %v1917, %v1998
        %v2022 = vmul.f32 %v1895, %v1998
        %v2023 = vmul.f32 %v1918, %v1998
        %v2024 = vmul.f32 %v1896, %v1998
        %v2025 = vmul.f32 %v1919, %v1998
        %v2026 = vmul.f32 %v1897, %v1998
        %v2027 = vmul.f32 %v1920, %v1998
        %v2028 = vmul.f32 %v1898, %v1998
        %v2029 = vmul.f32 %v1921, %v1998
        %v2030 = vmul.f32 %v1899, %v1998
        %v2031 = vadd.f32 %v1963, %v1999
        %v2032 = vadd.f32 %v1964, %v2000
        %v2033 = vadd.f32 %v1965, %v2001
        %v2034 = vadd.f32 %v1966, %v2002
        %v2035 = vadd.f32 %v1967, %v2003
        %v2036 = vadd.f32 %v1968, %v2004
        %v2037 = vadd.f32 %v1969, %v2005
        %v2038 = vadd.f32 %v1970, %v2006
        %v2039 = vadd.f32 %v1971, %v2007
        %v2040 = vadd.f32 %v1972, %v2008
        %v2041 = vadd.f32 %v1973, %v2009
        %v2042 = vadd.f32 %v1974, %v2010
        %v2043 = vadd.f32 %v1975, %v2011
        %v2044 = vadd.f32 %v1976, %v2012
        %v2045 = vadd.f32 %v1977, %v2013
        %v2046 = vadd.f32 %v1978, %v2014
        %v2047 = vadd.f32 %v1979, %v2015
        %v2048 = vadd.f32 %v1980, %v2016
        %v2049 = vadd.f32 %v1981, %v2017
        %v2050 = vadd.f32 %v1982, %v2018
        %v2051 = vadd.f32 %v1983, %v2019
        %v2052 = vadd.f32 %v1984, %v2020
        %v2053 = vadd.f32 %v1985, %v2021
        %v2054 = vadd.f32 %v1986, %v2022
        %v2055 = vadd.f32 %v1987, %v2023
        %v2056 = vadd.f32 %v1988, %v2024
        %v2057 = vadd.f32 %v1989, %v2025
        %v2058 = vadd.f32 %v1990, %v2026
        %v2059 = vadd.f32 %v1991, %v2027
        %v2060 = vadd.f32 %v1992, %v2028
        %v2061 = vadd.f32 %v1993, %v2029
        %v2062 = vadd.f32 %v1994, %v2030
        %v2063 = vlaneseq
        %v2064 = vshrl.u32 %v2063, 7
        %v2065 = vsub.s32 0, %v2064
        %v2066 = vrot.slane %v547, %v2065
        %v2067 = vmul.f32 %v1907, %v2066
        %v2068 = vmul.f32 %v1885, %v2066
        %v2069 = vmul.f32 %v1908, %v2066
        %v2070 = vmul.f32 %v1886, %v2066
        %v2071 = vmul.f32 %v1909, %v2066
        %v2072 = vmul.f32 %v1887, %v2066
        %v2073 = vmul.f32 %v1910, %v2066
        %v2074 = vmul.f32 %v1888, %v2066
        %v2075 = vmul.f32 %v1911, %v2066
        %v2076 = vmul.f32 %v1889, %v2066
        %v2077 = vmul.f32 %v1912, %v2066
        %v2078 = vmul.f32 %v1890, %v2066
        %v2079 = vmul.f32 %v1913, %v2066
        %v2080 = vmul.f32 %v1891, %v2066
        %v2081 = vmul.f32 %v1914, %v2066
        %v2082 = vmul.f32 %v1892, %v2066
        %v2083 = vmul.f32 %v1915, %v2066
        %v2084 = vmul.f32 %v1893, %v2066
        %v2085 = vmul.f32 %v1916, %v2066
        %v2086 = vmul.f32 %v1894, %v2066
        %v2087 = vmul.f32 %v1917, %v2066
        %v2088 = vmul.f32 %v1895, %v2066
        %v2089 = vmul.f32 %v1918, %v2066
        %v2090 = vmul.f32 %v1896, %v2066
        %v2091 = vmul.f32 %v1919, %v2066
        %v2092 = vmul.f32 %v1897, %v2066
        %v2093 = vmul.f32 %v1920, %v2066
        %v2094 = vmul.f32 %v1898, %v2066
        %v2095 = vmul.f32 %v1921, %v2066
        %v2096 = vmul.f32 %v1899, %v2066
        %v2097 = vmul.f32 %v1922, %v2066
        %v2098 = vmul.f32 %v1900, %v2066
        %v2099 = vadd.f32 %v2031, %v2067
        %v2100 = vadd.f32 %v2032, %v2068
        %v2101 = vadd.f32 %v2033, %v2069
        %v2102 = vadd.f32 %v2034, %v2070
        %v2103 = vadd.f32 %v2035, %v2071
        %v2104 = vadd.f32 %v2036, %v2072
        %v2105 = vadd.f32 %v2037, %v2073
        %v2106 = vadd.f32 %v2038, %v2074
        %v2107 = vadd.f32 %v2039, %v2075
        %v2108 = vadd.f32 %v2040, %v2076
        %v2109 = vadd.f32 %v2041, %v2077
        %v2110 = vadd.f32 %v2042, %v2078
        %v2111 = vadd.f32 %v2043, %v2079
        %v2112 = vadd.f32 %v2044, %v2080
        %v2113 = vadd.f32 %v2045, %v2081
        %v2114 = vadd.f32 %v2046, %v2082
        %v2115 = vadd.f32 %v2047, %v2083
        %v2116 = vadd.f32 %v2048, %v2084
        %v2117 = vadd.f32 %v2049, %v2085
        %v2118 = vadd.f32 %v2050, %v2086
        %v2119 = vadd.f32 %v2051, %v2087
        %v2120 = vadd.f32 %v2052, %v2088
        %v2121 = vadd.f32 %v2053, %v2089
        %v2122 = vadd.f32 %v2054, %v2090
        %v2123 = vadd.f32 %v2055, %v2091
        %v2124 = vadd.f32 %v2056, %v2092
        %v2125 = vadd.f32 %v2057, %v2093
        %v2126 = vadd.f32 %v2058, %v2094
        %v2127 = vadd.f32 %v2059, %v2095
        %v2128 = vadd.f32 %v2060, %v2096
        %v2129 = vadd.f32 %v2061, %v2097
        %v2130 = vadd.f32 %v2062, %v2098
        %v2131 = vlaneseq
        %v2132 = vshrl.u32 %v2131, 7
        %v2133 = vsub.s32 7, %v2132
        %v2134 = vrot.slane %v547, %v2133
        %v2135 = vmul.f32 %v1908, %v2134
        %v2136 = vmul.f32 %v1886, %v2134
        %v2137 = vmul.f32 %v1909, %v2134
        %v2138 = vmul.f32 %v1887, %v2134
        %v2139 = vmul.f32 %v1910, %v2134
        %v2140 = vmul.f32 %v1888, %v2134
        %v2141 = vmul.f32 %v1911, %v2134
        %v2142 = vmul.f32 %v1889, %v2134
        %v2143 = vmul.f32 %v1912, %v2134
        %v2144 = vmul.f32 %v1890, %v2134
        %v2145 = vmul.f32 %v1913, %v2134
        %v2146 = vmul.f32 %v1891, %v2134
        %v2147 = vmul.f32 %v1914, %v2134
        %v2148 = vmul.f32 %v1892, %v2134
        %v2149 = vmul.f32 %v1915, %v2134
        %v2150 = vmul.f32 %v1893, %v2134
        %v2151 = vmul.f32 %v1916, %v2134
        %v2152 = vmul.f32 %v1894, %v2134
        %v2153 = vmul.f32 %v1917, %v2134
        %v2154 = vmul.f32 %v1895, %v2134
        %v2155 = vmul.f32 %v1918, %v2134
        %v2156 = vmul.f32 %v1896, %v2134
        %v2157 = vmul.f32 %v1919, %v2134
        %v2158 = vmul.f32 %v1897, %v2134
        %v2159 = vmul.f32 %v1920, %v2134
        %v2160 = vmul.f32 %v1898, %v2134
        %v2161 = vmul.f32 %v1921, %v2134
        %v2162 = vmul.f32 %v1899, %v2134
        %v2163 = vmul.f32 %v1922, %v2134
        %v2164 = vmul.f32 %v1900, %v2134
        %v2165 = vmul.f32 %v1923, %v2134
        %v2166 = vmul.f32 %v1901, %v2134
        %v2167 = vadd.f32 %v2099, %v2135
        %v2168 = vadd.f32 %v2100, %v2136
        %v2169 = vadd.f32 %v2101, %v2137
        %v2170 = vadd.f32 %v2102, %v2138
        %v2171 = vadd.f32 %v2103, %v2139
        %v2172 = vadd.f32 %v2104, %v2140
        %v2173 = vadd.f32 %v2105, %v2141
        %v2174 = vadd.f32 %v2106, %v2142
        %v2175 = vadd.f32 %v2107, %v2143
        %v2176 = vadd.f32 %v2108, %v2144
        %v2177 = vadd.f32 %v2109, %v2145
        %v2178 = vadd.f32 %v2110, %v2146
        %v2179 = vadd.f32 %v2111, %v2147
        %v2180 = vadd.f32 %v2112, %v2148
        %v2181 = vadd.f32 %v2113, %v2149
        %v2182 = vadd.f32 %v2114, %v2150
        %v2183 = vadd.f32 %v2115, %v2151
        %v2184 = vadd.f32 %v2116, %v2152
        %v2185 = vadd.f32 %v2117, %v2153
        %v2186 = vadd.f32 %v2118, %v2154
        %v2187 = vadd.f32 %v2119, %v2155
        %v2188 = vadd.f32 %v2120, %v2156
        %v2189 = vadd.f32 %v2121, %v2157
        %v2190 = vadd.f32 %v2122, %v2158
        %v2191 = vadd.f32 %v2123, %v2159
        %v2192 = vadd.f32 %v2124, %v2160
        %v2193 = vadd.f32 %v2125, %v2161
        %v2194 = vadd.f32 %v2126, %v2162
        %v2195 = vadd.f32 %v2127, %v2163
        %v2196 = vadd.f32 %v2128, %v2164
        %v2197 = vadd.f32 %v2129, %v2165
        %v2198 = vadd.f32 %v2130, %v2166
        %v2199 = vlaneseq
        %v2200 = vshrl.u32 %v2199, 7
        %v2201 = vsub.s32 6, %v2200
        %v2202 = vrot.slane %v548, %v2201
        %v2203 = vmul.f32 %v1909, %v2202
        %v2204 = vmul.f32 %v1887, %v2202
        %v2205 = vmul.f32 %v1910, %v2202
        %v2206 = vmul.f32 %v1888, %v2202
        %v2207 = vmul.f32 %v1911, %v2202
        %v2208 = vmul.f32 %v1889, %v2202
        %v2209 = vmul.f32 %v1912, %v2202
        %v2210 = vmul.f32 %v1890, %v2202
        %v2211 = vmul.f32 %v1913, %v2202
        %v2212 = vmul.f32 %v1891, %v2202
        %v2213 = vmul.f32 %v1914, %v2202
        %v2214 = vmul.f32 %v1892, %v2202
        %v2215 = vmul.f32 %v1915, %v2202
        %v2216 = vmul.f32 %v1893, %v2202
        %v2217 = vmul.f32 %v1916, %v2202
        %v2218 = vmul.f32 %v1894, %v2202
        %v2219 = vmul.f32 %v1917, %v2202
        %v2220 = vmul.f32 %v1895, %v2202
        %v2221 = vmul.f32 %v1918, %v2202
        %v2222 = vmul.f32 %v1896, %v2202
        %v2223 = vmul.f32 %v1919, %v2202
        %v2224 = vmul.f32 %v1897, %v2202
        %v2225 = vmul.f32 %v1920, %v2202
        %v2226 = vmul.f32 %v1898, %v2202
        %v2227 = vmul.f32 %v1921, %v2202
        %v2228 = vmul.f32 %v1899, %v2202
        %v2229 = vmul.f32 %v1922, %v2202
        %v2230 = vmul.f32 %v1900, %v2202
        %v2231 = vmul.f32 %v1923, %v2202
        %v2232 = vmul.f32 %v1901, %v2202
        %v2233 = vmul.f32 %v1924, %v2202
        %v2234 = vmul.f32 %v1902, %v2202
        %v2235 = vadd.f32 %v2167, %v2203
        %v2236 = vadd.f32 %v2168, %v2204
        %v2237 = vadd.f32 %v2169, %v2205
        %v2238 = vadd.f32 %v2170, %v2206
        %v2239 = vadd.f32 %v2171, %v2207
        %v2240 = vadd.f32 %v2172, %v2208
        %v2241 = vadd.f32 %v2173, %v2209
        %v2242 = vadd.f32 %v2174, %v2210
        %v2243 = vadd.f32 %v2175, %v2211
        %v2244 = vadd.f32 %v2176, %v2212
        %v2245 = vadd.f32 %v2177, %v2213
        %v2246 = vadd.f32 %v2178, %v2214
        %v2247 = vadd.f32 %v2179, %v2215
        %v2248 = vadd.f32 %v2180, %v2216
        %v2249 = vadd.f32 %v2181, %v2217
        %v2250 = vadd.f32 %v2182, %v2218
        %v2251 = vadd.f32 %v2183, %v2219
        %v2252 = vadd.f32 %v2184, %v2220
        %v2253 = vadd.f32 %v2185, %v2221
        %v2254 = vadd.f32 %v2186, %v2222
        %v2255 = vadd.f32 %v2187, %v2223
        %v2256 = vadd.f32 %v2188, %v2224
        %v2257 = vadd.f32 %v2189, %v2225
        %v2258 = vadd.f32 %v2190, %v2226
        %v2259 = vadd.f32 %v2191, %v2227
        %v2260 = vadd.f32 %v2192, %v2228
        %v2261 = vadd.f32 %v2193, %v2229
        %v2262 = vadd.f32 %v2194, %v2230
        %v2263 = vadd.f32 %v2195, %v2231
        %v2264 = vadd.f32 %v2196, %v2232
        %v2265 = vadd.f32 %v2197, %v2233
        %v2266 = vadd.f32 %v2198, %v2234
        %v2267 = vlaneseq
        %v2268 = vshrl.u32 %v2267, 7
        %v2269 = vsub.s32 5, %v2268
        %v2270 = vrot.slane %v549, %v2269
        %v2271 = vmul.f32 %v1910, %v2270
        %v2272 = vmul.f32 %v1888, %v2270
        %v2273 = vmul.f32 %v1911, %v2270
        %v2274 = vmul.f32 %v1889, %v2270
        %v2275 = vmul.f32 %v1912, %v2270
        %v2276 = vmul.f32 %v1890, %v2270
        %v2277 = vmul.f32 %v1913, %v2270
        %v2278 = vmul.f32 %v1891, %v2270
        %v2279 = vmul.f32 %v1914, %v2270
        %v2280 = vmul.f32 %v1892, %v2270
        %v2281 = vmul.f32 %v1915, %v2270
        %v2282 = vmul.f32 %v1893, %v2270
        %v2283 = vmul.f32 %v1916, %v2270
        %v2284 = vmul.f32 %v1894, %v2270
        %v2285 = vmul.f32 %v1917, %v2270
        %v2286 = vmul.f32 %v1895, %v2270
        %v2287 = vmul.f32 %v1918, %v2270
        %v2288 = vmul.f32 %v1896, %v2270
        %v2289 = vmul.f32 %v1919, %v2270
        %v2290 = vmul.f32 %v1897, %v2270
        %v2291 = vmul.f32 %v1920, %v2270
        %v2292 = vmul.f32 %v1898, %v2270
        %v2293 = vmul.f32 %v1921, %v2270
        %v2294 = vmul.f32 %v1899, %v2270
        %v2295 = vmul.f32 %v1922, %v2270
        %v2296 = vmul.f32 %v1900, %v2270
        %v2297 = vmul.f32 %v1923, %v2270
        %v2298 = vmul.f32 %v1901, %v2270
        %v2299 = vmul.f32 %v1924, %v2270
        %v2300 = vmul.f32 %v1902, %v2270
        %v2301 = vmul.f32 %v1925, %v2270
        %v2302 = vmul.f32 %v1903, %v2270
        %v2303 = vadd.f32 %v2235, %v2271
        %v2304 = vadd.f32 %v2236, %v2272
        %v2305 = vadd.f32 %v2237, %v2273
        %v2306 = vadd.f32 %v2238, %v2274
        %v2307 = vadd.f32 %v2239, %v2275
        %v2308 = vadd.f32 %v2240, %v2276
        %v2309 = vadd.f32 %v2241, %v2277
        %v2310 = vadd.f32 %v2242, %v2278
        %v2311 = vadd.f32 %v2243, %v2279
        %v2312 = vadd.f32 %v2244, %v2280
        %v2313 = vadd.f32 %v2245, %v2281
        %v2314 = vadd.f32 %v2246, %v2282
        %v2315 = vadd.f32 %v2247, %v2283
        %v2316 = vadd.f32 %v2248, %v2284
        %v2317 = vadd.f32 %v2249, %v2285
        %v2318 = vadd.f32 %v2250, %v2286
        %v2319 = vadd.f32 %v2251, %v2287
        %v2320 = vadd.f32 %v2252, %v2288
        %v2321 = vadd.f32 %v2253, %v2289
        %v2322 = vadd.f32 %v2254, %v2290
        %v2323 = vadd.f32 %v2255, %v2291
        %v2324 = vadd.f32 %v2256, %v2292
        %v2325 = vadd.f32 %v2257, %v2293
        %v2326 = vadd.f32 %v2258, %v2294
        %v2327 = vadd.f32 %v2259, %v2295
        %v2328 = vadd.f32 %v2260, %v2296
        %v2329 = vadd.f32 %v2261, %v2297
        %v2330 = vadd.f32 %v2262, %v2298
        %v2331 = vadd.f32 %v2263, %v2299
        %v2332 = vadd.f32 %v2264, %v2300
        %v2333 = vadd.f32 %v2265, %v2301
        %v2334 = vadd.f32 %v2266, %v2302
        %v2335 = vlaneseq
        %v2336 = vshrl.u32 %v2335, 7
        %v2337 = vsub.s32 4, %v2336
        %v2338 = vrot.slane %v550, %v2337
        %v2339 = vmul.f32 %v1911, %v2338
        %v2340 = vmul.f32 %v1889, %v2338
        %v2341 = vmul.f32 %v1912, %v2338
        %v2342 = vmul.f32 %v1890, %v2338
        %v2343 = vmul.f32 %v1913, %v2338
        %v2344 = vmul.f32 %v1891, %v2338
        %v2345 = vmul.f32 %v1914, %v2338
        %v2346 = vmul.f32 %v1892, %v2338
        %v2347 = vmul.f32 %v1915, %v2338
        %v2348 = vmul.f32 %v1893, %v2338
        %v2349 = vmul.f32 %v1916, %v2338
        %v2350 = vmul.f32 %v1894, %v2338
        %v2351 = vmul.f32 %v1917, %v2338
        %v2352 = vmul.f32 %v1895, %v2338
        %v2353 = vmul.f32 %v1918, %v2338
        %v2354 = vmul.f32 %v1896, %v2338
        %v2355 = vmul.f32 %v1919, %v2338
        %v2356 = vmul.f32 %v1897, %v2338
        %v2357 = vmul.f32 %v1920, %v2338
        %v2358 = vmul.f32 %v1898, %v2338
        %v2359 = vmul.f32 %v1921, %v2338
        %v2360 = vmul.f32 %v1899, %v2338
        %v2361 = vmul.f32 %v1922, %v2338
        %v2362 = vmul.f32 %v1900, %v2338
        %v2363 = vmul.f32 %v1923, %v2338
        %v2364 = vmul.f32 %v1901, %v2338
        %v2365 = vmul.f32 %v1924, %v2338
        %v2366 = vmul.f32 %v1902, %v2338
        %v2367 = vmul.f32 %v1925, %v2338
        %v2368 = vmul.f32 %v1903, %v2338
        %v2369 = vmul.f32 %v1926, %v2338
        %v2370 = vmul.f32 %v1904, %v2338
        %v2371 = vadd.f32 %v2303, %v2339
        %v2372 = vadd.f32 %v2304, %v2340
        %v2373 = vadd.f32 %v2305, %v2341
        %v2374 = vadd.f32 %v2306, %v2342
        %v2375 = vadd.f32 %v2307, %v2343
        %v2376 = vadd.f32 %v2308, %v2344
        %v2377 = vadd.f32 %v2309, %v2345
        %v2378 = vadd.f32 %v2310, %v2346
        %v2379 = vadd.f32 %v2311, %v2347
        %v2380 = vadd.f32 %v2312, %v2348
        %v2381 = vadd.f32 %v2313, %v2349
        %v2382 = vadd.f32 %v2314, %v2350
        %v2383 = vadd.f32 %v2315, %v2351
        %v2384 = vadd.f32 %v2316, %v2352
        %v2385 = vadd.f32 %v2317, %v2353
        %v2386 = vadd.f32 %v2318, %v2354
        %v2387 = vadd.f32 %v2319, %v2355
        %v2388 = vadd.f32 %v2320, %v2356
        %v2389 = vadd.f32 %v2321, %v2357
        %v2390 = vadd.f32 %v2322, %v2358
        %v2391 = vadd.f32 %v2323, %v2359
        %v2392 = vadd.f32 %v2324, %v2360
        %v2393 = vadd.f32 %v2325, %v2361
        %v2394 = vadd.f32 %v2326, %v2362
        %v2395 = vadd.f32 %v2327, %v2363
        %v2396 = vadd.f32 %v2328, %v2364
        %v2397 = vadd.f32 %v2329, %v2365
        %v2398 = vadd.f32 %v2330, %v2366
        %v2399 = vadd.f32 %v2331, %v2367
        %v2400 = vadd.f32 %v2332, %v2368
        %v2401 = vadd.f32 %v2333, %v2369
        %v2402 = vadd.f32 %v2334, %v2370
        %v2403 = vlaneseq
        %v2404 = vshrl.u32 %v2403, 7
        %v2405 = vsub.s32 3, %v2404
        %v2406 = vrot.slane %v545, %v2405
        %v2407 = vmul.f32 %v553, %v2406
        %v2408 = vmul.f32 %v554, %v2406
        %v2409 = vmul.f32 %v557, %v2406
        %v2410 = vmul.f32 %v558, %v2406
        %v2411 = vmul.f32 %v561, %v2406
        %v2412 = vmul.f32 %v562, %v2406
        %v2413 = vmul.f32 %v565, %v2406
        %v2414 = vmul.f32 %v566, %v2406
        %v2415 = vmul.f32 %v569, %v2406
        %v2416 = vmul.f32 %v570, %v2406
        %v2417 = vmul.f32 %v573, %v2406
        %v2418 = vmul.f32 %v574, %v2406
        %v2419 = vmul.f32 %v577, %v2406
        %v2420 = vmul.f32 %v578, %v2406
        %v2421 = vmul.f32 %v581, %v2406
        %v2422 = vmul.f32 %v582, %v2406
        %v2423 = vmul.f32 %v585, %v2406
        %v2424 = vmul.f32 %v586, %v2406
        %v2425 = vmul.f32 %v589, %v2406
        %v2426 = vmul.f32 %v590, %v2406
        %v2427 = vmul.f32 %v593, %v2406
        %v2428 = vmul.f32 %v594, %v2406
        %v2429 = vmul.f32 %v597, %v2406
        %v2430 = vmul.f32 %v598, %v2406
        %v2431 = vmul.f32 %v601, %v2406
        %v2432 = vmul.f32 %v602, %v2406
        %v2433 = vmul.f32 %v605, %v2406
        %v2434 = vmul.f32 %v606, %v2406
        %v2435 = vmul.f32 %v609, %v2406
        %v2436 = vmul.f32 %v610, %v2406
        %v2437 = vmul.f32 %v613, %v2406
        %v2438 = vmul.f32 %v614, %v2406
        %v2439 = vadd.f32 %v2371, %v2407
        %v2440 = vadd.f32 %v2372, %v2408
        %v2441 = vadd.f32 %v2373, %v2409
        %v2442 = vadd.f32 %v2374, %v2410
        %v2443 = vadd.f32 %v2375, %v2411
        %v2444 = vadd.f32 %v2376, %v2412
        %v2445 = vadd.f32 %v2377, %v2413
        %v2446 = vadd.f32 %v2378, %v2414
        %v2447 = vadd.f32 %v2379, %v2415
        %v2448 = vadd.f32 %v2380, %v2416
        %v2449 = vadd.f32 %v2381, %v2417
        %v2450 = vadd.f32 %v2382, %v2418
        %v2451 = vadd.f32 %v2383, %v2419
        %v2452 = vadd.f32 %v2384, %v2420
        %v2453 = vadd.f32 %v2385, %v2421
        %v2454 = vadd.f32 %v2386, %v2422
        %v2455 = vadd.f32 %v2387, %v2423
        %v2456 = vadd.f32 %v2388, %v2424
        %v2457 = vadd.f32 %v2389, %v2425
        %v2458 = vadd.f32 %v2390, %v2426
        %v2459 = vadd.f32 %v2391, %v2427
        %v2460 = vadd.f32 %v2392, %v2428
        %v2461 = vadd.f32 %v2393, %v2429
        %v2462 = vadd.f32 %v2394, %v2430
        %v2463 = vadd.f32 %v2395, %v2431
        %v2464 = vadd.f32 %v2396, %v2432
        %v2465 = vadd.f32 %v2397, %v2433
        %v2466 = vadd.f32 %v2398, %v2434
        %v2467 = vadd.f32 %v2399, %v2435
        %v2468 = vadd.f32 %v2400, %v2436
        %v2469 = vadd.f32 %v2401, %v2437
        %v2470 = vadd.f32 %v2402, %v2438
        %v2471 = vlaneseq
        %v2472 = vshrl.u32 %v2471, 7
        %v2473 = vsub.s32 2, %v2472
        %v2474 = vrot.slane %v546, %v2473
        %v2475 = vmul.f32 %v557, %v2474
        %v2476 = vmul.f32 %v558, %v2474
        %v2477 = vmul.f32 %v561, %v2474
        %v2478 = vmul.f32 %v562, %v2474
        %v2479 = vmul.f32 %v565, %v2474
        %v2480 = vmul.f32 %v566, %v2474
        %v2481 = vmul.f32 %v569, %v2474
        %v2482 = vmul.f32 %v570, %v2474
        %v2483 = vmul.f32 %v573, %v2474
        %v2484 = vmul.f32 %v574, %v2474
        %v2485 = vmul.f32 %v577, %v2474
        %v2486 = vmul.f32 %v578, %v2474
        %v2487 = vmul.f32 %v581, %v2474
        %v2488 = vmul.f32 %v582, %v2474
        %v2489 = vmul.f32 %v585, %v2474
        %v2490 = vmul.f32 %v586, %v2474
        %v2491 = vmul.f32 %v589, %v2474
        %v2492 = vmul.f32 %v590, %v2474
        %v2493 = vmul.f32 %v593, %v2474
        %v2494 = vmul.f32 %v594, %v2474
        %v2495 = vmul.f32 %v597, %v2474
        %v2496 = vmul.f32 %v598, %v2474
        %v2497 = vmul.f32 %v601, %v2474
        %v2498 = vmul.f32 %v602, %v2474
        %v2499 = vmul.f32 %v605, %v2474
        %v2500 = vmul.f32 %v606, %v2474
        %v2501 = vmul.f32 %v609, %v2474
        %v2502 = vmul.f32 %v610, %v2474
        %v2503 = vmul.f32 %v613, %v2474
        %v2504 = vmul.f32 %v614, %v2474
        %v2505 = vmul.f32 %v617, %v2474
        %v2506 = vmul.f32 %v618, %v2474
        %v2507 = vadd.f32 %v2439, %v2475
        %v2508 = vadd.f32 %v2440, %v2476
        %v2509 = vadd.f32 %v2441, %v2477
        %v2510 = vadd.f32 %v2442, %v2478
        %v2511 = vadd.f32 %v2443, %v2479
        %v2512 = vadd.f32 %v2444, %v2480
        %v2513 = vadd.f32 %v2445, %v2481
        %v2514 = vadd.f32 %v2446, %v2482
        %v2515 = vadd.f32 %v2447, %v2483
        %v2516 = vadd.f32 %v2448, %v2484
        %v2517 = vadd.f32 %v2449, %v2485
        %v2518 = vadd.f32 %v2450, %v2486
        %v2519 = vadd.f32 %v2451, %v2487
        %v2520 = vadd.f32 %v2452, %v2488
        %v2521 = vadd.f32 %v2453, %v2489
        %v2522 = vadd.f32 %v2454, %v2490
        %v2523 = vadd.f32 %v2455, %v2491
        %v2524 = vadd.f32 %v2456, %v2492
        %v2525 = vadd.f32 %v2457, %v2493
        %v2526 = vadd.f32 %v2458, %v2494
        %v2527 = vadd.f32 %v2459, %v2495
        %v2528 = vadd.f32 %v2460, %v2496
        %v2529 = vadd.f32 %v2461, %v2497
        %v2530 = vadd.f32 %v2462, %v2498
        %v2531 = vadd.f32 %v2463, %v2499
        %v2532 = vadd.f32 %v2464, %v2500
        %v2533 = vadd.f32 %v2465, %v2501
        %v2534 = vadd.f32 %v2466, %v2502
        %v2535 = vadd.f32 %v2467, %v2503
        %v2536 = vadd.f32 %v2468, %v2504
        %v2537 = vadd.f32 %v2469, %v2505
        %v2538 = vadd.f32 %v2470, %v2506
        %v2539 = vlaneseq
        %v2540 = vshrl.u32 %v2539, 7
        %v2541 = vsub.s32 1, %v2540
        %v2542 = vrot.slane %v547, %v2541
        %v2543 = vmul.f32 %v561, %v2542
        %v2544 = vmul.f32 %v562, %v2542
        %v2545 = vmul.f32 %v565, %v2542
        %v2546 = vmul.f32 %v566, %v2542
        %v2547 = vmul.f32 %v569, %v2542
        %v2548 = vmul.f32 %v570, %v2542
        %v2549 = vmul.f32 %v573, %v2542
        %v2550 = vmul.f32 %v574, %v2542
        %v2551 = vmul.f32 %v577, %v2542
        %v2552 = vmul.f32 %v578, %v2542
        %v2553 = vmul.f32 %v581, %v2542
        %v2554 = vmul.f32 %v582, %v2542
        %v2555 = vmul.f32 %v585, %v2542
        %v2556 = vmul.f32 %v586, %v2542
        %v2557 = vmul.f32 %v589, %v2542
        %v2558 = vmul.f32 %v590, %v2542
        %v2559 = vmul.f32 %v593, %v2542
        %v2560 = vmul.f32 %v594, %v2542
        %v2561 = vmul.f32 %v597, %v2542
        %v2562 = vmul.f32 %v598, %v2542
        %v2563 = vmul.f32 %v601, %v2542
        %v2564 = vmul.f32 %v602, %v2542
        %v2565 = vmul.f32 %v605, %v2542
        %v2566 = vmul.f32 %v606, %v2542
        %v2567 = vmul.f32 %v609, %v2542
        %v2568 = vmul.f32 %v610, %v2542
        %v2569 = vmul.f32 %v613, %v2542
        %v2570 = vmul.f32 %v614, %v2542
        %v2571 = vmul.f32 %v617, %v2542
        %v2572 = vmul.f32 %v618, %v2542
        %v2573 = vmul.f32 %v621, %v2542
        %v2574 = vmul.f32 %v622, %v2542
        %v2575 = vadd.f32 %v2507, %v2543
        %v2576 = vadd.f32 %v2508, %v2544
        %v2577 = vadd.f32 %v2509, %v2545
        %v2578 = vadd.f32 %v2510, %v2546
        %v2579 = vadd.f32 %v2511, %v2547
        %v2580 = vadd.f32 %v2512, %v2548
        %v2581 = vadd.f32 %v2513, %v2549
        %v2582 = vadd.f32 %v2514, %v2550
        %v2583 = vadd.f32 %v2515, %v2551
        %v2584 = vadd.f32 %v2516, %v2552
        %v2585 = vadd.f32 %v2517, %v2553
        %v2586 = vadd.f32 %v2518, %v2554
        %v2587 = vadd.f32 %v2519, %v2555
        %v2588 = vadd.f32 %v2520, %v2556
        %v2589 = vadd.f32 %v2521, %v2557
        %v2590 = vadd.f32 %v2522, %v2558
        %v2591 = vadd.f32 %v2523, %v2559
        %v2592 = vadd.f32 %v2524, %v2560
        %v2593 = vadd.f32 %v2525, %v2561
        %v2594 = vadd.f32 %v2526, %v2562
        %v2595 = vadd.f32 %v2527, %v2563
        %v2596 = vadd.f32 %v2528, %v2564
        %v2597 = vadd.f32 %v2529, %v2565
        %v2598 = vadd.f32 %v2530, %v2566
        %v2599 = vadd.f32 %v2531, %v2567
        %v2600 = vadd.f32 %v2532, %v2568
        %v2601 = vadd.f32 %v2533, %v2569
        %v2602 = vadd.f32 %v2534, %v2570
        %v2603 = vadd.f32 %v2535, %v2571
        %v2604 = vadd.f32 %v2536, %v2572
        %v2605 = vadd.f32 %v2537, %v2573
        %v2606 = vadd.f32 %v2538, %v2574
        %v2607 = vlaneseq
        %v2608 = vshrl.u32 %v2607, 7
        %v2609 = vsub.s32 0, %v2608
        %v2610 = vrot.slane %v548, %v2609
        %v2611 = vmul.f32 %v565, %v2610
        %v2612 = vmul.f32 %v566, %v2610
        %v2613 = vmul.f32 %v569, %v2610
        %v2614 = vmul.f32 %v570, %v2610
        %v2615 = vmul.f32 %v573, %v2610
        %v2616 = vmul.f32 %v574, %v2610
        %v2617 = vmul.f32 %v577, %v2610
        %v2618 = vmul.f32 %v578, %v2610
        %v2619 = vmul.f32 %v581, %v2610
        %v2620 = vmul.f32 %v582, %v2610
        %v2621 = vmul.f32 %v585, %v2610
        %v2622 = vmul.f32 %v586, %v2610
        %v2623 = vmul.f32 %v589, %v2610
        %v2624 = vmul.f32 %v590, %v2610
        %v2625 = vmul.f32 %v593, %v2610
        %v2626 = vmul.f32 %v594, %v2610
        %v2627 = vmul.f32 %v597, %v2610
        %v2628 = vmul.f32 %v598, %v2610
        %v2629 = vmul.f32 %v601, %v2610
        %v2630 = vmul.f32 %v602, %v2610
        %v2631 = vmul.f32 %v605, %v2610
        %v2632 = vmul.f32 %v606, %v2610
        %v2633 = vmul.f32 %v609, %v2610
        %v2634 = vmul.f32 %v610, %v2610
        %v2635 = vmul.f32 %v613, %v2610
        %v2636 = vmul.f32 %v614, %v2610
        %v2637 = vmul.f32 %v617, %v2610
        %v2638 = vmul.f32 %v618, %v2610
        %v2639 = vmul.f32 %v621, %v2610
        %v2640 = vmul.f32 %v622, %v2610
        %v2641 = vmul.f32 %v625, %v2610
        %v2642 = vmul.f32 %v626, %v2610
        %v2643 = vadd.f32 %v2575, %v2611
        %v2644 = vadd.f32 %v2576, %v2612
        %v2645 = vadd.f32 %v2577, %v2613
        %v2646 = vadd.f32 %v2578, %v2614
        %v2647 = vadd.f32 %v2579, %v2615
        %v2648 = vadd.f32 %v2580, %v2616
        %v2649 = vadd.f32 %v2581, %v2617
        %v2650 = vadd.f32 %v2582, %v2618
        %v2651 = vadd.f32 %v2583, %v2619
        %v2652 = vadd.f32 %v2584, %v2620
        %v2653 = vadd.f32 %v2585, %v2621
        %v2654 = vadd.f32 %v2586, %v2622
        %v2655 = vadd.f32 %v2587, %v2623
        %v2656 = vadd.f32 %v2588, %v2624
        %v2657 = vadd.f32 %v2589, %v2625
        %v2658 = vadd.f32 %v2590, %v2626
        %v2659 = vadd.f32 %v2591, %v2627
        %v2660 = vadd.f32 %v2592, %v2628
        %v2661 = vadd.f32 %v2593, %v2629
        %v2662 = vadd.f32 %v2594, %v2630
        %v2663 = vadd.f32 %v2595, %v2631
        %v2664 = vadd.f32 %v2596, %v2632
        %v2665 = vadd.f32 %v2597, %v2633
        %v2666 = vadd.f32 %v2598, %v2634
        %v2667 = vadd.f32 %v2599, %v2635
        %v2668 = vadd.f32 %v2600, %v2636
        %v2669 = vadd.f32 %v2601, %v2637
        %v2670 = vadd.f32 %v2602, %v2638
        %v2671 = vadd.f32 %v2603, %v2639
        %v2672 = vadd.f32 %v2604, %v2640
        %v2673 = vadd.f32 %v2605, %v2641
        %v2674 = vadd.f32 %v2606, %v2642
        %v2675 = vlaneseq
        %v2676 = vshrl.u32 %v2675, 7
        %v2677 = vsub.s32 7, %v2676
        %v2678 = vrot.slane %v548, %v2677
        %v2679 = vmul.f32 %v569, %v2678
        %v2680 = vmul.f32 %v570, %v2678
        %v2681 = vmul.f32 %v573, %v2678
        %v2682 = vmul.f32 %v574, %v2678
        %v2683 = vmul.f32 %v577, %v2678
        %v2684 = vmul.f32 %v578, %v2678
        %v2685 = vmul.f32 %v581, %v2678
        %v2686 = vmul.f32 %v582, %v2678
        %v2687 = vmul.f32 %v585, %v2678
        %v2688 = vmul.f32 %v586, %v2678
        %v2689 = vmul.f32 %v589, %v2678
        %v2690 = vmul.f32 %v590, %v2678
        %v2691 = vmul.f32 %v593, %v2678
        %v2692 = vmul.f32 %v594, %v2678
        %v2693 = vmul.f32 %v597, %v2678
        %v2694 = vmul.f32 %v598, %v2678
        %v2695 = vmul.f32 %v601, %v2678
        %v2696 = vmul.f32 %v602, %v2678
        %v2697 = vmul.f32 %v605, %v2678
        %v2698 = vmul.f32 %v606, %v2678
        %v2699 = vmul.f32 %v609, %v2678
        %v2700 = vmul.f32 %v610, %v2678
        %v2701 = vmul.f32 %v613, %v2678
        %v2702 = vmul.f32 %v614, %v2678
        %v2703 = vmul.f32 %v617, %v2678
        %v2704 = vmul.f32 %v618, %v2678
        %v2705 = vmul.f32 %v621, %v2678
        %v2706 = vmul.f32 %v622, %v2678
        %v2707 = vmul.f32 %v625, %v2678
        %v2708 = vmul.f32 %v626, %v2678
        %v2709 = vmul.f32 %v629, %v2678
        %v2710 = vmul.f32 %v630, %v2678
        %v2711 = vadd.f32 %v2643, %v2679
        %v2712 = vadd.f32 %v2644, %v2680
        %v2713 = vadd.f32 %v2645, %v2681
        %v2714 = vadd.f32 %v2646, %v2682
        %v2715 = vadd.f32 %v2647, %v2683
        %v2716 = vadd.f32 %v2648, %v2684
        %v2717 = vadd.f32 %v2649, %v2685
        %v2718 = vadd.f32 %v2650, %v2686
        %v2719 = vadd.f32 %v2651, %v2687
        %v2720 = vadd.f32 %v2652, %v2688
        %v2721 = vadd.f32 %v2653, %v2689
        %v2722 = vadd.f32 %v2654, %v2690
        %v2723 = vadd.f32 %v2655, %v2691
        %v2724 = vadd.f32 %v2656, %v2692
        %v2725 = vadd.f32 %v2657, %v2693
        %v2726 = vadd.f32 %v2658, %v2694
        %v2727 = vadd.f32 %v2659, %v2695
        %v2728 = vadd.f32 %v2660, %v2696
        %v2729 = vadd.f32 %v2661, %v2697
        %v2730 = vadd.f32 %v2662, %v2698
        %v2731 = vadd.f32 %v2663, %v2699
        %v2732 = vadd.f32 %v2664, %v2700
        %v2733 = vadd.f32 %v2665, %v2701
        %v2734 = vadd.f32 %v2666, %v2702
        %v2735 = vadd.f32 %v2667, %v2703
        %v2736 = vadd.f32 %v2668, %v2704
        %v2737 = vadd.f32 %v2669, %v2705
        %v2738 = vadd.f32 %v2670, %v2706
        %v2739 = vadd.f32 %v2671, %v2707
        %v2740 = vadd.f32 %v2672, %v2708
        %v2741 = vadd.f32 %v2673, %v2709
        %v2742 = vadd.f32 %v2674, %v2710
        %v2743 = vlaneseq
        %v2744 = vshrl.u32 %v2743, 7
        %v2745 = vsub.s32 6, %v2744
        %v2746 = vrot.slane %v549, %v2745
        %v2747 = vmul.f32 %v573, %v2746
        %v2748 = vmul.f32 %v574, %v2746
        %v2749 = vmul.f32 %v577, %v2746
        %v2750 = vmul.f32 %v578, %v2746
        %v2751 = vmul.f32 %v581, %v2746
        %v2752 = vmul.f32 %v582, %v2746
        %v2753 = vmul.f32 %v585, %v2746
        %v2754 = vmul.f32 %v586, %v2746
        %v2755 = vmul.f32 %v589, %v2746
        %v2756 = vmul.f32 %v590, %v2746
        %v2757 = vmul.f32 %v593, %v2746
        %v2758 = vmul.f32 %v594, %v2746
        %v2759 = vmul.f32 %v597, %v2746
        %v2760 = vmul.f32 %v598, %v2746
        %v2761 = vmul.f32 %v601, %v2746
        %v2762 = vmul.f32 %v602, %v2746
        %v2763 = vmul.f32 %v605, %v2746
        %v2764 = vmul.f32 %v606, %v2746
        %v2765 = vmul.f32 %v609, %v2746
        %v2766 = vmul.f32 %v610, %v2746
        %v2767 = vmul.f32 %v613, %v2746
        %v2768 = vmul.f32 %v614, %v2746
        %v2769 = vmul.f32 %v617, %v2746
        %v2770 = vmul.f32 %v618, %v2746
        %v2771 = vmul.f32 %v621, %v2746
        %v2772 = vmul.f32 %v622, %v2746
        %v2773 = vmul.f32 %v625, %v2746
        %v2774 = vmul.f32 %v626, %v2746
        %v2775 = vmul.f32 %v629, %v2746
        %v2776 = vmul.f32 %v630, %v2746
        %v2777 = vmul.f32 %v633, %v2746
        %v2778 = vmul.f32 %v634, %v2746
        %v2779 = vadd.f32 %v2711, %v2747
        %v2780 = vadd.f32 %v2712, %v2748
        %v2781 = vadd.f32 %v2713, %v2749
        %v2782 = vadd.f32 %v2714, %v2750
        %v2783 = vadd.f32 %v2715, %v2751
        %v2784 = vadd.f32 %v2716, %v2752
        %v2785 = vadd.f32 %v2717, %v2753
        %v2786 = vadd.f32 %v2718, %v2754
        %v2787 = vadd.f32 %v2719, %v2755
        %v2788 = vadd.f32 %v2720, %v2756
        %v2789 = vadd.f32 %v2721, %v2757
        %v2790 = vadd.f32 %v2722, %v2758
        %v2791 = vadd.f32 %v2723, %v2759
        %v2792 = vadd.f32 %v2724, %v2760
        %v2793 = vadd.f32 %v2725, %v2761
        %v2794 = vadd.f32 %v2726, %v2762
        %v2795 = vadd.f32 %v2727, %v2763
        %v2796 = vadd.f32 %v2728, %v2764
        %v2797 = vadd.f32 %v2729, %v2765
        %v2798 = vadd.f32 %v2730, %v2766
        %v2799 = vadd.f32 %v2731, %v2767
        %v2800 = vadd.f32 %v2732, %v2768
        %v2801 = vadd.f32 %v2733, %v2769
        %v2802 = vadd.f32 %v2734, %v2770
        %v2803 = vadd.f32 %v2735, %v2771
        %v2804 = vadd.f32 %v2736, %v2772
        %v2805 = vadd.f32 %v2737, %v2773
        %v2806 = vadd.f32 %v2738, %v2774
        %v2807 = vadd.f32 %v2739, %v2775
        %v2808 = vadd.f32 %v2740, %v2776
        %v2809 = vadd.f32 %v2741, %v2777
        %v2810 = vadd.f32 %v2742, %v2778
        %v2811 = vlaneseq
        %v2812 = vshrl.u32 %v2811, 7
        %v2813 = vsub.s32 5, %v2812
        %v2814 = vrot.slane %v550, %v2813
        %v2815 = vmul.f32 %v577, %v2814
        %v2816 = vmul.f32 %v578, %v2814
        %v2817 = vmul.f32 %v581, %v2814
        %v2818 = vmul.f32 %v582, %v2814
        %v2819 = vmul.f32 %v585, %v2814
        %v2820 = vmul.f32 %v586, %v2814
        %v2821 = vmul.f32 %v589, %v2814
        %v2822 = vmul.f32 %v590, %v2814
        %v2823 = vmul.f32 %v593, %v2814
        %v2824 = vmul.f32 %v594, %v2814
        %v2825 = vmul.f32 %v597, %v2814
        %v2826 = vmul.f32 %v598, %v2814
        %v2827 = vmul.f32 %v601, %v2814
        %v2828 = vmul.f32 %v602, %v2814
        %v2829 = vmul.f32 %v605, %v2814
        %v2830 = vmul.f32 %v606, %v2814
        %v2831 = vmul.f32 %v609, %v2814
        %v2832 = vmul.f32 %v610, %v2814
        %v2833 = vmul.f32 %v613, %v2814
        %v2834 = vmul.f32 %v614, %v2814
        %v2835 = vmul.f32 %v617, %v2814
        %v2836 = vmul.f32 %v618, %v2814
        %v2837 = vmul.f32 %v621, %v2814
        %v2838 = vmul.f32 %v622, %v2814
        %v2839 = vmul.f32 %v625, %v2814
        %v2840 = vmul.f32 %v626, %v2814
        %v2841 = vmul.f32 %v629, %v2814
        %v2842 = vmul.f32 %v630, %v2814
        %v2843 = vmul.f32 %v633, %v2814
        %v2844 = vmul.f32 %v634, %v2814
        %v2845 = vmul.f32 %v637, %v2814
        %v2846 = vmul.f32 %v638, %v2814
        %v2847 = vadd.f32 %v2779, %v2815
        %v2848 = vadd.f32 %v2780, %v2816
        %v2849 = vadd.f32 %v2781, %v2817
        %v2850 = vadd.f32 %v2782, %v2818
        %v2851 = vadd.f32 %v2783, %v2819
        %v2852 = vadd.f32 %v2784, %v2820
        %v2853 = vadd.f32 %v2785, %v2821
        %v2854 = vadd.f32 %v2786, %v2822
        %v2855 = vadd.f32 %v2787, %v2823
        %v2856 = vadd.f32 %v2788, %v2824
        %v2857 = vadd.f32 %v2789, %v2825
        %v2858 = vadd.f32 %v2790, %v2826
        %v2859 = vadd.f32 %v2791, %v2827
        %v2860 = vadd.f32 %v2792, %v2828
        %v2861 = vadd.f32 %v2793, %v2829
        %v2862 = vadd.f32 %v2794, %v2830
        %v2863 = vadd.f32 %v2795, %v2831
        %v2864 = vadd.f32 %v2796, %v2832
        %v2865 = vadd.f32 %v2797, %v2833
        %v2866 = vadd.f32 %v2798, %v2834
        %v2867 = vadd.f32 %v2799, %v2835
        %v2868 = vadd.f32 %v2800, %v2836
        %v2869 = vadd.f32 %v2801, %v2837
        %v2870 = vadd.f32 %v2802, %v2838
        %v2871 = vadd.f32 %v2803, %v2839
        %v2872 = vadd.f32 %v2804, %v2840
        %v2873 = vadd.f32 %v2805, %v2841
        %v2874 = vadd.f32 %v2806, %v2842
        %v2875 = vadd.f32 %v2807, %v2843
        %v2876 = vadd.f32 %v2808, %v2844
        %v2877 = vadd.f32 %v2809, %v2845
        %v2878 = vadd.f32 %v2810, %v2846
        %v2879 = vrot.slane %v553, 1
        %v2880 = vrot.slane %v557, 1
        %v2881 = vrot.slane %v561, 1
        %v2882 = vrot.slane %v565, 1
        %v2883 = vrot.slane %v569, 1
        %v2884 = vrot.slane %v573, 1
        %v2885 = vrot.slane %v577, 1
        %v2886 = vrot.slane %v581, 1
        %v2887 = vrot.slane %v585, 1
        %v2888 = vrot.slane %v589, 1
        %v2889 = vrot.slane %v593, 1
        %v2890 = vrot.slane %v597, 1
        %v2891 = vrot.slane %v601, 1
        %v2892 = vrot.slane %v605, 1
        %v2893 = vrot.slane %v609, 1
        %v2894 = vrot.slane %v613, 1
        %v2895 = vrot.slane %v617, 1
        %v2896 = vrot.slane %v621, 1
        %v2897 = vrot.slane %v625, 1
        %v2898 = vrot.slane %v629, 1
        %v2899 = vrot.slane %v633, 1
        %v2900 = vrot.slane %v637, 1
        %v2901 = vrot.slane %v554, 1
        %v2902 = vrot.slane %v558, 1
        %v2903 = vrot.slane %v562, 1
        %v2904 = vrot.slane %v566, 1
        %v2905 = vrot.slane %v570, 1
        %v2906 = vrot.slane %v574, 1
        %v2907 = vrot.slane %v578, 1
        %v2908 = vrot.slane %v582, 1
        %v2909 = vrot.slane %v586, 1
        %v2910 = vrot.slane %v590, 1
        %v2911 = vrot.slane %v594, 1
        %v2912 = vrot.slane %v598, 1
        %v2913 = vrot.slane %v602, 1
        %v2914 = vrot.slane %v606, 1
        %v2915 = vrot.slane %v610, 1
        %v2916 = vrot.slane %v614, 1
        %v2917 = vrot.slane %v618, 1
        %v2918 = vrot.slane %v622, 1
        %v2919 = vrot.slane %v626, 1
        %v2920 = vrot.slane %v630, 1
        %v2921 = vrot.slane %v634, 1
        %v2922 = vrot.slane %v638, 1
        %v2923 = vrot.slane %v555, 1
        %v2924 = vrot.slane %v559, 1
        %v2925 = vrot.slane %v563, 1
        %v2926 = vrot.slane %v567, 1
        %v2927 = vrot.slane %v571, 1
        %v2928 = vrot.slane %v575, 1
        %v2929 = vrot.slane %v579, 1
        %v2930 = vrot.slane %v583, 1
        %v2931 = vrot.slane %v587, 1
        %v2932 = vrot.slane %v591, 1
        %v2933 = vrot.slane %v595, 1
        %v2934 = vrot.slane %v599, 1
        %v2935 = vrot.slane %v603, 1
        %v2936 = vrot.slane %v607, 1
        %v2937 = vrot.slane %v611, 1
        %v2938 = vrot.slane %v615, 1
        %v2939 = vrot.slane %v619, 1
        %v2940 = vrot.slane %v623, 1
        %v2941 = vrot.slane %v627, 1
        %v2942 = vrot.slane %v631, 1
        %v2943 = vrot.slane %v635, 1
        %v2944 = vrot.slane %v639, 1
        %vm2945 = vcmp.lt.s32.totalorder %v707, 7
        %v2946 = vsel %vm2945, %v2901, %v2923
        %v2947 = vsel %vm2945, %v2902, %v2924
        %v2948 = vsel %vm2945, %v2903, %v2925
        %v2949 = vsel %vm2945, %v2904, %v2926
        %v2950 = vsel %vm2945, %v2905, %v2927
        %v2951 = vsel %vm2945, %v2906, %v2928
        %v2952 = vsel %vm2945, %v2907, %v2929
        %v2953 = vsel %vm2945, %v2908, %v2930
        %v2954 = vsel %vm2945, %v2909, %v2931
        %v2955 = vsel %vm2945, %v2910, %v2932
        %v2956 = vsel %vm2945, %v2911, %v2933
        %v2957 = vsel %vm2945, %v2912, %v2934
        %v2958 = vsel %vm2945, %v2913, %v2935
        %v2959 = vsel %vm2945, %v2914, %v2936
        %v2960 = vsel %vm2945, %v2915, %v2937
        %v2961 = vsel %vm2945, %v2916, %v2938
        %v2962 = vsel %vm2945, %v2917, %v2939
        %v2963 = vsel %vm2945, %v2918, %v2940
        %v2964 = vsel %vm2945, %v2919, %v2941
        %v2965 = vsel %vm2945, %v2920, %v2942
        %v2966 = vsel %vm2945, %v2921, %v2943
        %v2967 = vsel %vm2945, %v2922, %v2944
        %v2968 = vsel %vm2945, %v2879, %v2901
        %v2969 = vsel %vm2945, %v2880, %v2902
        %v2970 = vsel %vm2945, %v2881, %v2903
        %v2971 = vsel %vm2945, %v2882, %v2904
        %v2972 = vsel %vm2945, %v2883, %v2905
        %v2973 = vsel %vm2945, %v2884, %v2906
        %v2974 = vsel %vm2945, %v2885, %v2907
        %v2975 = vsel %vm2945, %v2886, %v2908
        %v2976 = vsel %vm2945, %v2887, %v2909
        %v2977 = vsel %vm2945, %v2888, %v2910
        %v2978 = vsel %vm2945, %v2889, %v2911
        %v2979 = vsel %vm2945, %v2890, %v2912
        %v2980 = vsel %vm2945, %v2891, %v2913
        %v2981 = vsel %vm2945, %v2892, %v2914
        %v2982 = vsel %vm2945, %v2893, %v2915
        %v2983 = vsel %vm2945, %v2894, %v2916
        %v2984 = vsel %vm2945, %v2895, %v2917
        %v2985 = vsel %vm2945, %v2896, %v2918
        %v2986 = vsel %vm2945, %v2897, %v2919
        %v2987 = vsel %vm2945, %v2898, %v2920
        %v2988 = vsel %vm2945, %v2899, %v2921
        %v2989 = vsel %vm2945, %v2900, %v2922
        %v2990 = vlaneseq
        %v2991 = vshrl.u32 %v2990, 7
        %v2992 = vsub.s32 4, %v2991
        %v2993 = vrot.slane %v545, %v2992
        %v2994 = vmul.f32 %v2968, %v2993
        %v2995 = vmul.f32 %v2946, %v2993
        %v2996 = vmul.f32 %v2969, %v2993
        %v2997 = vmul.f32 %v2947, %v2993
        %v2998 = vmul.f32 %v2970, %v2993
        %v2999 = vmul.f32 %v2948, %v2993
        %v3000 = vmul.f32 %v2971, %v2993
        %v3001 = vmul.f32 %v2949, %v2993
        %v3002 = vmul.f32 %v2972, %v2993
        %v3003 = vmul.f32 %v2950, %v2993
        %v3004 = vmul.f32 %v2973, %v2993
        %v3005 = vmul.f32 %v2951, %v2993
        %v3006 = vmul.f32 %v2974, %v2993
        %v3007 = vmul.f32 %v2952, %v2993
        %v3008 = vmul.f32 %v2975, %v2993
        %v3009 = vmul.f32 %v2953, %v2993
        %v3010 = vmul.f32 %v2976, %v2993
        %v3011 = vmul.f32 %v2954, %v2993
        %v3012 = vmul.f32 %v2977, %v2993
        %v3013 = vmul.f32 %v2955, %v2993
        %v3014 = vmul.f32 %v2978, %v2993
        %v3015 = vmul.f32 %v2956, %v2993
        %v3016 = vmul.f32 %v2979, %v2993
        %v3017 = vmul.f32 %v2957, %v2993
        %v3018 = vmul.f32 %v2980, %v2993
        %v3019 = vmul.f32 %v2958, %v2993
        %v3020 = vmul.f32 %v2981, %v2993
        %v3021 = vmul.f32 %v2959, %v2993
        %v3022 = vmul.f32 %v2982, %v2993
        %v3023 = vmul.f32 %v2960, %v2993
        %v3024 = vmul.f32 %v2983, %v2993
        %v3025 = vmul.f32 %v2961, %v2993
        %v3026 = vadd.f32 %v2847, %v2994
        %v3027 = vadd.f32 %v2848, %v2995
        %v3028 = vadd.f32 %v2849, %v2996
        %v3029 = vadd.f32 %v2850, %v2997
        %v3030 = vadd.f32 %v2851, %v2998
        %v3031 = vadd.f32 %v2852, %v2999
        %v3032 = vadd.f32 %v2853, %v3000
        %v3033 = vadd.f32 %v2854, %v3001
        %v3034 = vadd.f32 %v2855, %v3002
        %v3035 = vadd.f32 %v2856, %v3003
        %v3036 = vadd.f32 %v2857, %v3004
        %v3037 = vadd.f32 %v2858, %v3005
        %v3038 = vadd.f32 %v2859, %v3006
        %v3039 = vadd.f32 %v2860, %v3007
        %v3040 = vadd.f32 %v2861, %v3008
        %v3041 = vadd.f32 %v2862, %v3009
        %v3042 = vadd.f32 %v2863, %v3010
        %v3043 = vadd.f32 %v2864, %v3011
        %v3044 = vadd.f32 %v2865, %v3012
        %v3045 = vadd.f32 %v2866, %v3013
        %v3046 = vadd.f32 %v2867, %v3014
        %v3047 = vadd.f32 %v2868, %v3015
        %v3048 = vadd.f32 %v2869, %v3016
        %v3049 = vadd.f32 %v2870, %v3017
        %v3050 = vadd.f32 %v2871, %v3018
        %v3051 = vadd.f32 %v2872, %v3019
        %v3052 = vadd.f32 %v2873, %v3020
        %v3053 = vadd.f32 %v2874, %v3021
        %v3054 = vadd.f32 %v2875, %v3022
        %v3055 = vadd.f32 %v2876, %v3023
        %v3056 = vadd.f32 %v2877, %v3024
        %v3057 = vadd.f32 %v2878, %v3025
        %v3058 = vlaneseq
        %v3059 = vshrl.u32 %v3058, 7
        %v3060 = vsub.s32 3, %v3059
        %v3061 = vrot.slane %v546, %v3060
        %v3062 = vmul.f32 %v2969, %v3061
        %v3063 = vmul.f32 %v2947, %v3061
        %v3064 = vmul.f32 %v2970, %v3061
        %v3065 = vmul.f32 %v2948, %v3061
        %v3066 = vmul.f32 %v2971, %v3061
        %v3067 = vmul.f32 %v2949, %v3061
        %v3068 = vmul.f32 %v2972, %v3061
        %v3069 = vmul.f32 %v2950, %v3061
        %v3070 = vmul.f32 %v2973, %v3061
        %v3071 = vmul.f32 %v2951, %v3061
        %v3072 = vmul.f32 %v2974, %v3061
        %v3073 = vmul.f32 %v2952, %v3061
        %v3074 = vmul.f32 %v2975, %v3061
        %v3075 = vmul.f32 %v2953, %v3061
        %v3076 = vmul.f32 %v2976, %v3061
        %v3077 = vmul.f32 %v2954, %v3061
        %v3078 = vmul.f32 %v2977, %v3061
        %v3079 = vmul.f32 %v2955, %v3061
        %v3080 = vmul.f32 %v2978, %v3061
        %v3081 = vmul.f32 %v2956, %v3061
        %v3082 = vmul.f32 %v2979, %v3061
        %v3083 = vmul.f32 %v2957, %v3061
        %v3084 = vmul.f32 %v2980, %v3061
        %v3085 = vmul.f32 %v2958, %v3061
        %v3086 = vmul.f32 %v2981, %v3061
        %v3087 = vmul.f32 %v2959, %v3061
        %v3088 = vmul.f32 %v2982, %v3061
        %v3089 = vmul.f32 %v2960, %v3061
        %v3090 = vmul.f32 %v2983, %v3061
        %v3091 = vmul.f32 %v2961, %v3061
        %v3092 = vmul.f32 %v2984, %v3061
        %v3093 = vmul.f32 %v2962, %v3061
        %v3094 = vadd.f32 %v3026, %v3062
        %v3095 = vadd.f32 %v3027, %v3063
        %v3096 = vadd.f32 %v3028, %v3064
        %v3097 = vadd.f32 %v3029, %v3065
        %v3098 = vadd.f32 %v3030, %v3066
        %v3099 = vadd.f32 %v3031, %v3067
        %v3100 = vadd.f32 %v3032, %v3068
        %v3101 = vadd.f32 %v3033, %v3069
        %v3102 = vadd.f32 %v3034, %v3070
        %v3103 = vadd.f32 %v3035, %v3071
        %v3104 = vadd.f32 %v3036, %v3072
        %v3105 = vadd.f32 %v3037, %v3073
        %v3106 = vadd.f32 %v3038, %v3074
        %v3107 = vadd.f32 %v3039, %v3075
        %v3108 = vadd.f32 %v3040, %v3076
        %v3109 = vadd.f32 %v3041, %v3077
        %v3110 = vadd.f32 %v3042, %v3078
        %v3111 = vadd.f32 %v3043, %v3079
        %v3112 = vadd.f32 %v3044, %v3080
        %v3113 = vadd.f32 %v3045, %v3081
        %v3114 = vadd.f32 %v3046, %v3082
        %v3115 = vadd.f32 %v3047, %v3083
        %v3116 = vadd.f32 %v3048, %v3084
        %v3117 = vadd.f32 %v3049, %v3085
        %v3118 = vadd.f32 %v3050, %v3086
        %v3119 = vadd.f32 %v3051, %v3087
        %v3120 = vadd.f32 %v3052, %v3088
        %v3121 = vadd.f32 %v3053, %v3089
        %v3122 = vadd.f32 %v3054, %v3090
        %v3123 = vadd.f32 %v3055, %v3091
        %v3124 = vadd.f32 %v3056, %v3092
        %v3125 = vadd.f32 %v3057, %v3093
        %v3126 = vlaneseq
        %v3127 = vshrl.u32 %v3126, 7
        %v3128 = vsub.s32 2, %v3127
        %v3129 = vrot.slane %v547, %v3128
        %v3130 = vmul.f32 %v2970, %v3129
        %v3131 = vmul.f32 %v2948, %v3129
        %v3132 = vmul.f32 %v2971, %v3129
        %v3133 = vmul.f32 %v2949, %v3129
        %v3134 = vmul.f32 %v2972, %v3129
        %v3135 = vmul.f32 %v2950, %v3129
        %v3136 = vmul.f32 %v2973, %v3129
        %v3137 = vmul.f32 %v2951, %v3129
        %v3138 = vmul.f32 %v2974, %v3129
        %v3139 = vmul.f32 %v2952, %v3129
        %v3140 = vmul.f32 %v2975, %v3129
        %v3141 = vmul.f32 %v2953, %v3129
        %v3142 = vmul.f32 %v2976, %v3129
        %v3143 = vmul.f32 %v2954, %v3129
        %v3144 = vmul.f32 %v2977, %v3129
        %v3145 = vmul.f32 %v2955, %v3129
        %v3146 = vmul.f32 %v2978, %v3129
        %v3147 = vmul.f32 %v2956, %v3129
        %v3148 = vmul.f32 %v2979, %v3129
        %v3149 = vmul.f32 %v2957, %v3129
        %v3150 = vmul.f32 %v2980, %v3129
        %v3151 = vmul.f32 %v2958, %v3129
        %v3152 = vmul.f32 %v2981, %v3129
        %v3153 = vmul.f32 %v2959, %v3129
        %v3154 = vmul.f32 %v2982, %v3129
        %v3155 = vmul.f32 %v2960, %v3129
        %v3156 = vmul.f32 %v2983, %v3129
        %v3157 = vmul.f32 %v2961, %v3129
        %v3158 = vmul.f32 %v2984, %v3129
        %v3159 = vmul.f32 %v2962, %v3129
        %v3160 = vmul.f32 %v2985, %v3129
        %v3161 = vmul.f32 %v2963, %v3129
        %v3162 = vadd.f32 %v3094, %v3130
        %v3163 = vadd.f32 %v3095, %v3131
        %v3164 = vadd.f32 %v3096, %v3132
        %v3165 = vadd.f32 %v3097, %v3133
        %v3166 = vadd.f32 %v3098, %v3134
        %v3167 = vadd.f32 %v3099, %v3135
        %v3168 = vadd.f32 %v3100, %v3136
        %v3169 = vadd.f32 %v3101, %v3137
        %v3170 = vadd.f32 %v3102, %v3138
        %v3171 = vadd.f32 %v3103, %v3139
        %v3172 = vadd.f32 %v3104, %v3140
        %v3173 = vadd.f32 %v3105, %v3141
        %v3174 = vadd.f32 %v3106, %v3142
        %v3175 = vadd.f32 %v3107, %v3143
        %v3176 = vadd.f32 %v3108, %v3144
        %v3177 = vadd.f32 %v3109, %v3145
        %v3178 = vadd.f32 %v3110, %v3146
        %v3179 = vadd.f32 %v3111, %v3147
        %v3180 = vadd.f32 %v3112, %v3148
        %v3181 = vadd.f32 %v3113, %v3149
        %v3182 = vadd.f32 %v3114, %v3150
        %v3183 = vadd.f32 %v3115, %v3151
        %v3184 = vadd.f32 %v3116, %v3152
        %v3185 = vadd.f32 %v3117, %v3153
        %v3186 = vadd.f32 %v3118, %v3154
        %v3187 = vadd.f32 %v3119, %v3155
        %v3188 = vadd.f32 %v3120, %v3156
        %v3189 = vadd.f32 %v3121, %v3157
        %v3190 = vadd.f32 %v3122, %v3158
        %v3191 = vadd.f32 %v3123, %v3159
        %v3192 = vadd.f32 %v3124, %v3160
        %v3193 = vadd.f32 %v3125, %v3161
        %v3194 = vlaneseq
        %v3195 = vshrl.u32 %v3194, 7
        %v3196 = vsub.s32 1, %v3195
        %v3197 = vrot.slane %v548, %v3196
        %v3198 = vmul.f32 %v2971, %v3197
        %v3199 = vmul.f32 %v2949, %v3197
        %v3200 = vmul.f32 %v2972, %v3197
        %v3201 = vmul.f32 %v2950, %v3197
        %v3202 = vmul.f32 %v2973, %v3197
        %v3203 = vmul.f32 %v2951, %v3197
        %v3204 = vmul.f32 %v2974, %v3197
        %v3205 = vmul.f32 %v2952, %v3197
        %v3206 = vmul.f32 %v2975, %v3197
        %v3207 = vmul.f32 %v2953, %v3197
        %v3208 = vmul.f32 %v2976, %v3197
        %v3209 = vmul.f32 %v2954, %v3197
        %v3210 = vmul.f32 %v2977, %v3197
        %v3211 = vmul.f32 %v2955, %v3197
        %v3212 = vmul.f32 %v2978, %v3197
        %v3213 = vmul.f32 %v2956, %v3197
        %v3214 = vmul.f32 %v2979, %v3197
        %v3215 = vmul.f32 %v2957, %v3197
        %v3216 = vmul.f32 %v2980, %v3197
        %v3217 = vmul.f32 %v2958, %v3197
        %v3218 = vmul.f32 %v2981, %v3197
        %v3219 = vmul.f32 %v2959, %v3197
        %v3220 = vmul.f32 %v2982, %v3197
        %v3221 = vmul.f32 %v2960, %v3197
        %v3222 = vmul.f32 %v2983, %v3197
        %v3223 = vmul.f32 %v2961, %v3197
        %v3224 = vmul.f32 %v2984, %v3197
        %v3225 = vmul.f32 %v2962, %v3197
        %v3226 = vmul.f32 %v2985, %v3197
        %v3227 = vmul.f32 %v2963, %v3197
        %v3228 = vmul.f32 %v2986, %v3197
        %v3229 = vmul.f32 %v2964, %v3197
        %v3230 = vadd.f32 %v3162, %v3198
        %v3231 = vadd.f32 %v3163, %v3199
        %v3232 = vadd.f32 %v3164, %v3200
        %v3233 = vadd.f32 %v3165, %v3201
        %v3234 = vadd.f32 %v3166, %v3202
        %v3235 = vadd.f32 %v3167, %v3203
        %v3236 = vadd.f32 %v3168, %v3204
        %v3237 = vadd.f32 %v3169, %v3205
        %v3238 = vadd.f32 %v3170, %v3206
        %v3239 = vadd.f32 %v3171, %v3207
        %v3240 = vadd.f32 %v3172, %v3208
        %v3241 = vadd.f32 %v3173, %v3209
        %v3242 = vadd.f32 %v3174, %v3210
        %v3243 = vadd.f32 %v3175, %v3211
        %v3244 = vadd.f32 %v3176, %v3212
        %v3245 = vadd.f32 %v3177, %v3213
        %v3246 = vadd.f32 %v3178, %v3214
        %v3247 = vadd.f32 %v3179, %v3215
        %v3248 = vadd.f32 %v3180, %v3216
        %v3249 = vadd.f32 %v3181, %v3217
        %v3250 = vadd.f32 %v3182, %v3218
        %v3251 = vadd.f32 %v3183, %v3219
        %v3252 = vadd.f32 %v3184, %v3220
        %v3253 = vadd.f32 %v3185, %v3221
        %v3254 = vadd.f32 %v3186, %v3222
        %v3255 = vadd.f32 %v3187, %v3223
        %v3256 = vadd.f32 %v3188, %v3224
        %v3257 = vadd.f32 %v3189, %v3225
        %v3258 = vadd.f32 %v3190, %v3226
        %v3259 = vadd.f32 %v3191, %v3227
        %v3260 = vadd.f32 %v3192, %v3228
        %v3261 = vadd.f32 %v3193, %v3229
        %v3262 = vlaneseq
        %v3263 = vshrl.u32 %v3262, 7
        %v3264 = vsub.s32 0, %v3263
        %v3265 = vrot.slane %v549, %v3264
        %v3266 = vmul.f32 %v2972, %v3265
        %v3267 = vmul.f32 %v2950, %v3265
        %v3268 = vmul.f32 %v2973, %v3265
        %v3269 = vmul.f32 %v2951, %v3265
        %v3270 = vmul.f32 %v2974, %v3265
        %v3271 = vmul.f32 %v2952, %v3265
        %v3272 = vmul.f32 %v2975, %v3265
        %v3273 = vmul.f32 %v2953, %v3265
        %v3274 = vmul.f32 %v2976, %v3265
        %v3275 = vmul.f32 %v2954, %v3265
        %v3276 = vmul.f32 %v2977, %v3265
        %v3277 = vmul.f32 %v2955, %v3265
        %v3278 = vmul.f32 %v2978, %v3265
        %v3279 = vmul.f32 %v2956, %v3265
        %v3280 = vmul.f32 %v2979, %v3265
        %v3281 = vmul.f32 %v2957, %v3265
        %v3282 = vmul.f32 %v2980, %v3265
        %v3283 = vmul.f32 %v2958, %v3265
        %v3284 = vmul.f32 %v2981, %v3265
        %v3285 = vmul.f32 %v2959, %v3265
        %v3286 = vmul.f32 %v2982, %v3265
        %v3287 = vmul.f32 %v2960, %v3265
        %v3288 = vmul.f32 %v2983, %v3265
        %v3289 = vmul.f32 %v2961, %v3265
        %v3290 = vmul.f32 %v2984, %v3265
        %v3291 = vmul.f32 %v2962, %v3265
        %v3292 = vmul.f32 %v2985, %v3265
        %v3293 = vmul.f32 %v2963, %v3265
        %v3294 = vmul.f32 %v2986, %v3265
        %v3295 = vmul.f32 %v2964, %v3265
        %v3296 = vmul.f32 %v2987, %v3265
        %v3297 = vmul.f32 %v2965, %v3265
        %v3298 = vadd.f32 %v3230, %v3266
        %v3299 = vadd.f32 %v3231, %v3267
        %v3300 = vadd.f32 %v3232, %v3268
        %v3301 = vadd.f32 %v3233, %v3269
        %v3302 = vadd.f32 %v3234, %v3270
        %v3303 = vadd.f32 %v3235, %v3271
        %v3304 = vadd.f32 %v3236, %v3272
        %v3305 = vadd.f32 %v3237, %v3273
        %v3306 = vadd.f32 %v3238, %v3274
        %v3307 = vadd.f32 %v3239, %v3275
        %v3308 = vadd.f32 %v3240, %v3276
        %v3309 = vadd.f32 %v3241, %v3277
        %v3310 = vadd.f32 %v3242, %v3278
        %v3311 = vadd.f32 %v3243, %v3279
        %v3312 = vadd.f32 %v3244, %v3280
        %v3313 = vadd.f32 %v3245, %v3281
        %v3314 = vadd.f32 %v3246, %v3282
        %v3315 = vadd.f32 %v3247, %v3283
        %v3316 = vadd.f32 %v3248, %v3284
        %v3317 = vadd.f32 %v3249, %v3285
        %v3318 = vadd.f32 %v3250, %v3286
        %v3319 = vadd.f32 %v3251, %v3287
        %v3320 = vadd.f32 %v3252, %v3288
        %v3321 = vadd.f32 %v3253, %v3289
        %v3322 = vadd.f32 %v3254, %v3290
        %v3323 = vadd.f32 %v3255, %v3291
        %v3324 = vadd.f32 %v3256, %v3292
        %v3325 = vadd.f32 %v3257, %v3293
        %v3326 = vadd.f32 %v3258, %v3294
        %v3327 = vadd.f32 %v3259, %v3295
        %v3328 = vadd.f32 %v3260, %v3296
        %v3329 = vadd.f32 %v3261, %v3297
        %v3330 = vlaneseq
        %v3331 = vshrl.u32 %v3330, 7
        %v3332 = vsub.s32 7, %v3331
        %v3333 = vrot.slane %v549, %v3332
        %v3334 = vmul.f32 %v2973, %v3333
        %v3335 = vmul.f32 %v2951, %v3333
        %v3336 = vmul.f32 %v2974, %v3333
        %v3337 = vmul.f32 %v2952, %v3333
        %v3338 = vmul.f32 %v2975, %v3333
        %v3339 = vmul.f32 %v2953, %v3333
        %v3340 = vmul.f32 %v2976, %v3333
        %v3341 = vmul.f32 %v2954, %v3333
        %v3342 = vmul.f32 %v2977, %v3333
        %v3343 = vmul.f32 %v2955, %v3333
        %v3344 = vmul.f32 %v2978, %v3333
        %v3345 = vmul.f32 %v2956, %v3333
        %v3346 = vmul.f32 %v2979, %v3333
        %v3347 = vmul.f32 %v2957, %v3333
        %v3348 = vmul.f32 %v2980, %v3333
        %v3349 = vmul.f32 %v2958, %v3333
        %v3350 = vmul.f32 %v2981, %v3333
        %v3351 = vmul.f32 %v2959, %v3333
        %v3352 = vmul.f32 %v2982, %v3333
        %v3353 = vmul.f32 %v2960, %v3333
        %v3354 = vmul.f32 %v2983, %v3333
        %v3355 = vmul.f32 %v2961, %v3333
        %v3356 = vmul.f32 %v2984, %v3333
        %v3357 = vmul.f32 %v2962, %v3333
        %v3358 = vmul.f32 %v2985, %v3333
        %v3359 = vmul.f32 %v2963, %v3333
        %v3360 = vmul.f32 %v2986, %v3333
        %v3361 = vmul.f32 %v2964, %v3333
        %v3362 = vmul.f32 %v2987, %v3333
        %v3363 = vmul.f32 %v2965, %v3333
        %v3364 = vmul.f32 %v2988, %v3333
        %v3365 = vmul.f32 %v2966, %v3333
        %v3366 = vadd.f32 %v3298, %v3334
        %v3367 = vadd.f32 %v3299, %v3335
        %v3368 = vadd.f32 %v3300, %v3336
        %v3369 = vadd.f32 %v3301, %v3337
        %v3370 = vadd.f32 %v3302, %v3338
        %v3371 = vadd.f32 %v3303, %v3339
        %v3372 = vadd.f32 %v3304, %v3340
        %v3373 = vadd.f32 %v3305, %v3341
        %v3374 = vadd.f32 %v3306, %v3342
        %v3375 = vadd.f32 %v3307, %v3343
        %v3376 = vadd.f32 %v3308, %v3344
        %v3377 = vadd.f32 %v3309, %v3345
        %v3378 = vadd.f32 %v3310, %v3346
        %v3379 = vadd.f32 %v3311, %v3347
        %v3380 = vadd.f32 %v3312, %v3348
        %v3381 = vadd.f32 %v3313, %v3349
        %v3382 = vadd.f32 %v3314, %v3350
        %v3383 = vadd.f32 %v3315, %v3351
        %v3384 = vadd.f32 %v3316, %v3352
        %v3385 = vadd.f32 %v3317, %v3353
        %v3386 = vadd.f32 %v3318, %v3354
        %v3387 = vadd.f32 %v3319, %v3355
        %v3388 = vadd.f32 %v3320, %v3356
        %v3389 = vadd.f32 %v3321, %v3357
        %v3390 = vadd.f32 %v3322, %v3358
        %v3391 = vadd.f32 %v3323, %v3359
        %v3392 = vadd.f32 %v3324, %v3360
        %v3393 = vadd.f32 %v3325, %v3361
        %v3394 = vadd.f32 %v3326, %v3362
        %v3395 = vadd.f32 %v3327, %v3363
        %v3396 = vadd.f32 %v3328, %v3364
        %v3397 = vadd.f32 %v3329, %v3365
        %v3398 = vlaneseq
        %v3399 = vshrl.u32 %v3398, 7
        %v3400 = vsub.s32 6, %v3399
        %v3401 = vrot.slane %v550, %v3400
        %v3402 = vmul.f32 %v2974, %v3401
        %v3403 = vmul.f32 %v2952, %v3401
        %v3404 = vmul.f32 %v2975, %v3401
        %v3405 = vmul.f32 %v2953, %v3401
        %v3406 = vmul.f32 %v2976, %v3401
        %v3407 = vmul.f32 %v2954, %v3401
        %v3408 = vmul.f32 %v2977, %v3401
        %v3409 = vmul.f32 %v2955, %v3401
        %v3410 = vmul.f32 %v2978, %v3401
        %v3411 = vmul.f32 %v2956, %v3401
        %v3412 = vmul.f32 %v2979, %v3401
        %v3413 = vmul.f32 %v2957, %v3401
        %v3414 = vmul.f32 %v2980, %v3401
        %v3415 = vmul.f32 %v2958, %v3401
        %v3416 = vmul.f32 %v2981, %v3401
        %v3417 = vmul.f32 %v2959, %v3401
        %v3418 = vmul.f32 %v2982, %v3401
        %v3419 = vmul.f32 %v2960, %v3401
        %v3420 = vmul.f32 %v2983, %v3401
        %v3421 = vmul.f32 %v2961, %v3401
        %v3422 = vmul.f32 %v2984, %v3401
        %v3423 = vmul.f32 %v2962, %v3401
        %v3424 = vmul.f32 %v2985, %v3401
        %v3425 = vmul.f32 %v2963, %v3401
        %v3426 = vmul.f32 %v2986, %v3401
        %v3427 = vmul.f32 %v2964, %v3401
        %v3428 = vmul.f32 %v2987, %v3401
        %v3429 = vmul.f32 %v2965, %v3401
        %v3430 = vmul.f32 %v2988, %v3401
        %v3431 = vmul.f32 %v2966, %v3401
        %v3432 = vmul.f32 %v2989, %v3401
        %v3433 = vmul.f32 %v2967, %v3401
        %v3434 = vadd.f32 %v3366, %v3402
        %v3435 = vadd.f32 %v3367, %v3403
        %v3436 = vadd.f32 %v3368, %v3404
        %v3437 = vadd.f32 %v3369, %v3405
        %v3438 = vadd.f32 %v3370, %v3406
        %v3439 = vadd.f32 %v3371, %v3407
        %v3440 = vadd.f32 %v3372, %v3408
        %v3441 = vadd.f32 %v3373, %v3409
        %v3442 = vadd.f32 %v3374, %v3410
        %v3443 = vadd.f32 %v3375, %v3411
        %v3444 = vadd.f32 %v3376, %v3412
        %v3445 = vadd.f32 %v3377, %v3413
        %v3446 = vadd.f32 %v3378, %v3414
        %v3447 = vadd.f32 %v3379, %v3415
        %v3448 = vadd.f32 %v3380, %v3416
        %v3449 = vadd.f32 %v3381, %v3417
        %v3450 = vadd.f32 %v3382, %v3418
        %v3451 = vadd.f32 %v3383, %v3419
        %v3452 = vadd.f32 %v3384, %v3420
        %v3453 = vadd.f32 %v3385, %v3421
        %v3454 = vadd.f32 %v3386, %v3422
        %v3455 = vadd.f32 %v3387, %v3423
        %v3456 = vadd.f32 %v3388, %v3424
        %v3457 = vadd.f32 %v3389, %v3425
        %v3458 = vadd.f32 %v3390, %v3426
        %v3459 = vadd.f32 %v3391, %v3427
        %v3460 = vadd.f32 %v3392, %v3428
        %v3461 = vadd.f32 %v3393, %v3429
        %v3462 = vadd.f32 %v3394, %v3430
        %v3463 = vadd.f32 %v3395, %v3431
        %v3464 = vadd.f32 %v3396, %v3432
        %v3465 = vadd.f32 %v3397, %v3433
        %v3466 = vrot.slane %v553, 2
        %v3467 = vrot.slane %v557, 2
        %v3468 = vrot.slane %v561, 2
        %v3469 = vrot.slane %v565, 2
        %v3470 = vrot.slane %v569, 2
        %v3471 = vrot.slane %v573, 2
        %v3472 = vrot.slane %v577, 2
        %v3473 = vrot.slane %v581, 2
        %v3474 = vrot.slane %v585, 2
        %v3475 = vrot.slane %v589, 2
        %v3476 = vrot.slane %v593, 2
        %v3477 = vrot.slane %v597, 2
        %v3478 = vrot.slane %v601, 2
        %v3479 = vrot.slane %v605, 2
        %v3480 = vrot.slane %v609, 2
        %v3481 = vrot.slane %v613, 2
        %v3482 = vrot.slane %v617, 2
        %v3483 = vrot.slane %v621, 2
        %v3484 = vrot.slane %v625, 2
        %v3485 = vrot.slane %v629, 2
        %v3486 = vrot.slane %v633, 2
        %v3487 = vrot.slane %v637, 2
        %v3488 = vrot.slane %v554, 2
        %v3489 = vrot.slane %v558, 2
        %v3490 = vrot.slane %v562, 2
        %v3491 = vrot.slane %v566, 2
        %v3492 = vrot.slane %v570, 2
        %v3493 = vrot.slane %v574, 2
        %v3494 = vrot.slane %v578, 2
        %v3495 = vrot.slane %v582, 2
        %v3496 = vrot.slane %v586, 2
        %v3497 = vrot.slane %v590, 2
        %v3498 = vrot.slane %v594, 2
        %v3499 = vrot.slane %v598, 2
        %v3500 = vrot.slane %v602, 2
        %v3501 = vrot.slane %v606, 2
        %v3502 = vrot.slane %v610, 2
        %v3503 = vrot.slane %v614, 2
        %v3504 = vrot.slane %v618, 2
        %v3505 = vrot.slane %v622, 2
        %v3506 = vrot.slane %v626, 2
        %v3507 = vrot.slane %v630, 2
        %v3508 = vrot.slane %v634, 2
        %v3509 = vrot.slane %v638, 2
        %v3510 = vrot.slane %v555, 2
        %v3511 = vrot.slane %v559, 2
        %v3512 = vrot.slane %v563, 2
        %v3513 = vrot.slane %v567, 2
        %v3514 = vrot.slane %v571, 2
        %v3515 = vrot.slane %v575, 2
        %v3516 = vrot.slane %v579, 2
        %v3517 = vrot.slane %v583, 2
        %v3518 = vrot.slane %v587, 2
        %v3519 = vrot.slane %v591, 2
        %v3520 = vrot.slane %v595, 2
        %v3521 = vrot.slane %v599, 2
        %v3522 = vrot.slane %v603, 2
        %v3523 = vrot.slane %v607, 2
        %v3524 = vrot.slane %v611, 2
        %v3525 = vrot.slane %v615, 2
        %v3526 = vrot.slane %v619, 2
        %v3527 = vrot.slane %v623, 2
        %v3528 = vrot.slane %v627, 2
        %v3529 = vrot.slane %v631, 2
        %v3530 = vrot.slane %v635, 2
        %v3531 = vrot.slane %v639, 2
        %vm3532 = vcmp.lt.s32.totalorder %v707, 6
        %v3533 = vsel %vm3532, %v3488, %v3510
        %v3534 = vsel %vm3532, %v3489, %v3511
        %v3535 = vsel %vm3532, %v3490, %v3512
        %v3536 = vsel %vm3532, %v3491, %v3513
        %v3537 = vsel %vm3532, %v3492, %v3514
        %v3538 = vsel %vm3532, %v3493, %v3515
        %v3539 = vsel %vm3532, %v3494, %v3516
        %v3540 = vsel %vm3532, %v3495, %v3517
        %v3541 = vsel %vm3532, %v3496, %v3518
        %v3542 = vsel %vm3532, %v3497, %v3519
        %v3543 = vsel %vm3532, %v3498, %v3520
        %v3544 = vsel %vm3532, %v3499, %v3521
        %v3545 = vsel %vm3532, %v3500, %v3522
        %v3546 = vsel %vm3532, %v3501, %v3523
        %v3547 = vsel %vm3532, %v3502, %v3524
        %v3548 = vsel %vm3532, %v3503, %v3525
        %v3549 = vsel %vm3532, %v3504, %v3526
        %v3550 = vsel %vm3532, %v3505, %v3527
        %v3551 = vsel %vm3532, %v3506, %v3528
        %v3552 = vsel %vm3532, %v3507, %v3529
        %v3553 = vsel %vm3532, %v3508, %v3530
        %v3554 = vsel %vm3532, %v3509, %v3531
        %v3555 = vsel %vm3532, %v3466, %v3488
        %v3556 = vsel %vm3532, %v3467, %v3489
        %v3557 = vsel %vm3532, %v3468, %v3490
        %v3558 = vsel %vm3532, %v3469, %v3491
        %v3559 = vsel %vm3532, %v3470, %v3492
        %v3560 = vsel %vm3532, %v3471, %v3493
        %v3561 = vsel %vm3532, %v3472, %v3494
        %v3562 = vsel %vm3532, %v3473, %v3495
        %v3563 = vsel %vm3532, %v3474, %v3496
        %v3564 = vsel %vm3532, %v3475, %v3497
        %v3565 = vsel %vm3532, %v3476, %v3498
        %v3566 = vsel %vm3532, %v3477, %v3499
        %v3567 = vsel %vm3532, %v3478, %v3500
        %v3568 = vsel %vm3532, %v3479, %v3501
        %v3569 = vsel %vm3532, %v3480, %v3502
        %v3570 = vsel %vm3532, %v3481, %v3503
        %v3571 = vsel %vm3532, %v3482, %v3504
        %v3572 = vsel %vm3532, %v3483, %v3505
        %v3573 = vsel %vm3532, %v3484, %v3506
        %v3574 = vsel %vm3532, %v3485, %v3507
        %v3575 = vsel %vm3532, %v3486, %v3508
        %v3576 = vsel %vm3532, %v3487, %v3509
        %v3577 = vlaneseq
        %v3578 = vshrl.u32 %v3577, 7
        %v3579 = vsub.s32 5, %v3578
        %v3580 = vrot.slane %v545, %v3579
        %v3581 = vmul.f32 %v3555, %v3580
        %v3582 = vmul.f32 %v3533, %v3580
        %v3583 = vmul.f32 %v3556, %v3580
        %v3584 = vmul.f32 %v3534, %v3580
        %v3585 = vmul.f32 %v3557, %v3580
        %v3586 = vmul.f32 %v3535, %v3580
        %v3587 = vmul.f32 %v3558, %v3580
        %v3588 = vmul.f32 %v3536, %v3580
        %v3589 = vmul.f32 %v3559, %v3580
        %v3590 = vmul.f32 %v3537, %v3580
        %v3591 = vmul.f32 %v3560, %v3580
        %v3592 = vmul.f32 %v3538, %v3580
        %v3593 = vmul.f32 %v3561, %v3580
        %v3594 = vmul.f32 %v3539, %v3580
        %v3595 = vmul.f32 %v3562, %v3580
        %v3596 = vmul.f32 %v3540, %v3580
        %v3597 = vmul.f32 %v3563, %v3580
        %v3598 = vmul.f32 %v3541, %v3580
        %v3599 = vmul.f32 %v3564, %v3580
        %v3600 = vmul.f32 %v3542, %v3580
        %v3601 = vmul.f32 %v3565, %v3580
        %v3602 = vmul.f32 %v3543, %v3580
        %v3603 = vmul.f32 %v3566, %v3580
        %v3604 = vmul.f32 %v3544, %v3580
        %v3605 = vmul.f32 %v3567, %v3580
        %v3606 = vmul.f32 %v3545, %v3580
        %v3607 = vmul.f32 %v3568, %v3580
        %v3608 = vmul.f32 %v3546, %v3580
        %v3609 = vmul.f32 %v3569, %v3580
        %v3610 = vmul.f32 %v3547, %v3580
        %v3611 = vmul.f32 %v3570, %v3580
        %v3612 = vmul.f32 %v3548, %v3580
        %v3613 = vadd.f32 %v3434, %v3581
        %v3614 = vadd.f32 %v3435, %v3582
        %v3615 = vadd.f32 %v3436, %v3583
        %v3616 = vadd.f32 %v3437, %v3584
        %v3617 = vadd.f32 %v3438, %v3585
        %v3618 = vadd.f32 %v3439, %v3586
        %v3619 = vadd.f32 %v3440, %v3587
        %v3620 = vadd.f32 %v3441, %v3588
        %v3621 = vadd.f32 %v3442, %v3589
        %v3622 = vadd.f32 %v3443, %v3590
        %v3623 = vadd.f32 %v3444, %v3591
        %v3624 = vadd.f32 %v3445, %v3592
        %v3625 = vadd.f32 %v3446, %v3593
        %v3626 = vadd.f32 %v3447, %v3594
        %v3627 = vadd.f32 %v3448, %v3595
        %v3628 = vadd.f32 %v3449, %v3596
        %v3629 = vadd.f32 %v3450, %v3597
        %v3630 = vadd.f32 %v3451, %v3598
        %v3631 = vadd.f32 %v3452, %v3599
        %v3632 = vadd.f32 %v3453, %v3600
        %v3633 = vadd.f32 %v3454, %v3601
        %v3634 = vadd.f32 %v3455, %v3602
        %v3635 = vadd.f32 %v3456, %v3603
        %v3636 = vadd.f32 %v3457, %v3604
        %v3637 = vadd.f32 %v3458, %v3605
        %v3638 = vadd.f32 %v3459, %v3606
        %v3639 = vadd.f32 %v3460, %v3607
        %v3640 = vadd.f32 %v3461, %v3608
        %v3641 = vadd.f32 %v3462, %v3609
        %v3642 = vadd.f32 %v3463, %v3610
        %v3643 = vadd.f32 %v3464, %v3611
        %v3644 = vadd.f32 %v3465, %v3612
        %v3645 = vlaneseq
        %v3646 = vshrl.u32 %v3645, 7
        %v3647 = vsub.s32 4, %v3646
        %v3648 = vrot.slane %v546, %v3647
        %v3649 = vmul.f32 %v3556, %v3648
        %v3650 = vmul.f32 %v3534, %v3648
        %v3651 = vmul.f32 %v3557, %v3648
        %v3652 = vmul.f32 %v3535, %v3648
        %v3653 = vmul.f32 %v3558, %v3648
        %v3654 = vmul.f32 %v3536, %v3648
        %v3655 = vmul.f32 %v3559, %v3648
        %v3656 = vmul.f32 %v3537, %v3648
        %v3657 = vmul.f32 %v3560, %v3648
        %v3658 = vmul.f32 %v3538, %v3648
        %v3659 = vmul.f32 %v3561, %v3648
        %v3660 = vmul.f32 %v3539, %v3648
        %v3661 = vmul.f32 %v3562, %v3648
        %v3662 = vmul.f32 %v3540, %v3648
        %v3663 = vmul.f32 %v3563, %v3648
        %v3664 = vmul.f32 %v3541, %v3648
        %v3665 = vmul.f32 %v3564, %v3648
        %v3666 = vmul.f32 %v3542, %v3648
        %v3667 = vmul.f32 %v3565, %v3648
        %v3668 = vmul.f32 %v3543, %v3648
        %v3669 = vmul.f32 %v3566, %v3648
        %v3670 = vmul.f32 %v3544, %v3648
        %v3671 = vmul.f32 %v3567, %v3648
        %v3672 = vmul.f32 %v3545, %v3648
        %v3673 = vmul.f32 %v3568, %v3648
        %v3674 = vmul.f32 %v3546, %v3648
        %v3675 = vmul.f32 %v3569, %v3648
        %v3676 = vmul.f32 %v3547, %v3648
        %v3677 = vmul.f32 %v3570, %v3648
        %v3678 = vmul.f32 %v3548, %v3648
        %v3679 = vmul.f32 %v3571, %v3648
        %v3680 = vmul.f32 %v3549, %v3648
        %v3681 = vadd.f32 %v3613, %v3649
        %v3682 = vadd.f32 %v3614, %v3650
        %v3683 = vadd.f32 %v3615, %v3651
        %v3684 = vadd.f32 %v3616, %v3652
        %v3685 = vadd.f32 %v3617, %v3653
        %v3686 = vadd.f32 %v3618, %v3654
        %v3687 = vadd.f32 %v3619, %v3655
        %v3688 = vadd.f32 %v3620, %v3656
        %v3689 = vadd.f32 %v3621, %v3657
        %v3690 = vadd.f32 %v3622, %v3658
        %v3691 = vadd.f32 %v3623, %v3659
        %v3692 = vadd.f32 %v3624, %v3660
        %v3693 = vadd.f32 %v3625, %v3661
        %v3694 = vadd.f32 %v3626, %v3662
        %v3695 = vadd.f32 %v3627, %v3663
        %v3696 = vadd.f32 %v3628, %v3664
        %v3697 = vadd.f32 %v3629, %v3665
        %v3698 = vadd.f32 %v3630, %v3666
        %v3699 = vadd.f32 %v3631, %v3667
        %v3700 = vadd.f32 %v3632, %v3668
        %v3701 = vadd.f32 %v3633, %v3669
        %v3702 = vadd.f32 %v3634, %v3670
        %v3703 = vadd.f32 %v3635, %v3671
        %v3704 = vadd.f32 %v3636, %v3672
        %v3705 = vadd.f32 %v3637, %v3673
        %v3706 = vadd.f32 %v3638, %v3674
        %v3707 = vadd.f32 %v3639, %v3675
        %v3708 = vadd.f32 %v3640, %v3676
        %v3709 = vadd.f32 %v3641, %v3677
        %v3710 = vadd.f32 %v3642, %v3678
        %v3711 = vadd.f32 %v3643, %v3679
        %v3712 = vadd.f32 %v3644, %v3680
        %v3713 = vlaneseq
        %v3714 = vshrl.u32 %v3713, 7
        %v3715 = vsub.s32 3, %v3714
        %v3716 = vrot.slane %v547, %v3715
        %v3717 = vmul.f32 %v3557, %v3716
        %v3718 = vmul.f32 %v3535, %v3716
        %v3719 = vmul.f32 %v3558, %v3716
        %v3720 = vmul.f32 %v3536, %v3716
        %v3721 = vmul.f32 %v3559, %v3716
        %v3722 = vmul.f32 %v3537, %v3716
        %v3723 = vmul.f32 %v3560, %v3716
        %v3724 = vmul.f32 %v3538, %v3716
        %v3725 = vmul.f32 %v3561, %v3716
        %v3726 = vmul.f32 %v3539, %v3716
        %v3727 = vmul.f32 %v3562, %v3716
        %v3728 = vmul.f32 %v3540, %v3716
        %v3729 = vmul.f32 %v3563, %v3716
        %v3730 = vmul.f32 %v3541, %v3716
        %v3731 = vmul.f32 %v3564, %v3716
        %v3732 = vmul.f32 %v3542, %v3716
        %v3733 = vmul.f32 %v3565, %v3716
        %v3734 = vmul.f32 %v3543, %v3716
        %v3735 = vmul.f32 %v3566, %v3716
        %v3736 = vmul.f32 %v3544, %v3716
        %v3737 = vmul.f32 %v3567, %v3716
        %v3738 = vmul.f32 %v3545, %v3716
        %v3739 = vmul.f32 %v3568, %v3716
        %v3740 = vmul.f32 %v3546, %v3716
        %v3741 = vmul.f32 %v3569, %v3716
        %v3742 = vmul.f32 %v3547, %v3716
        %v3743 = vmul.f32 %v3570, %v3716
        %v3744 = vmul.f32 %v3548, %v3716
        %v3745 = vmul.f32 %v3571, %v3716
        %v3746 = vmul.f32 %v3549, %v3716
        %v3747 = vmul.f32 %v3572, %v3716
        %v3748 = vmul.f32 %v3550, %v3716
        %v3749 = vadd.f32 %v3681, %v3717
        %v3750 = vadd.f32 %v3682, %v3718
        %v3751 = vadd.f32 %v3683, %v3719
        %v3752 = vadd.f32 %v3684, %v3720
        %v3753 = vadd.f32 %v3685, %v3721
        %v3754 = vadd.f32 %v3686, %v3722
        %v3755 = vadd.f32 %v3687, %v3723
        %v3756 = vadd.f32 %v3688, %v3724
        %v3757 = vadd.f32 %v3689, %v3725
        %v3758 = vadd.f32 %v3690, %v3726
        %v3759 = vadd.f32 %v3691, %v3727
        %v3760 = vadd.f32 %v3692, %v3728
        %v3761 = vadd.f32 %v3693, %v3729
        %v3762 = vadd.f32 %v3694, %v3730
        %v3763 = vadd.f32 %v3695, %v3731
        %v3764 = vadd.f32 %v3696, %v3732
        %v3765 = vadd.f32 %v3697, %v3733
        %v3766 = vadd.f32 %v3698, %v3734
        %v3767 = vadd.f32 %v3699, %v3735
        %v3768 = vadd.f32 %v3700, %v3736
        %v3769 = vadd.f32 %v3701, %v3737
        %v3770 = vadd.f32 %v3702, %v3738
        %v3771 = vadd.f32 %v3703, %v3739
        %v3772 = vadd.f32 %v3704, %v3740
        %v3773 = vadd.f32 %v3705, %v3741
        %v3774 = vadd.f32 %v3706, %v3742
        %v3775 = vadd.f32 %v3707, %v3743
        %v3776 = vadd.f32 %v3708, %v3744
        %v3777 = vadd.f32 %v3709, %v3745
        %v3778 = vadd.f32 %v3710, %v3746
        %v3779 = vadd.f32 %v3711, %v3747
        %v3780 = vadd.f32 %v3712, %v3748
        %v3781 = vlaneseq
        %v3782 = vshrl.u32 %v3781, 7
        %v3783 = vsub.s32 2, %v3782
        %v3784 = vrot.slane %v548, %v3783
        %v3785 = vmul.f32 %v3558, %v3784
        %v3786 = vmul.f32 %v3536, %v3784
        %v3787 = vmul.f32 %v3559, %v3784
        %v3788 = vmul.f32 %v3537, %v3784
        %v3789 = vmul.f32 %v3560, %v3784
        %v3790 = vmul.f32 %v3538, %v3784
        %v3791 = vmul.f32 %v3561, %v3784
        %v3792 = vmul.f32 %v3539, %v3784
        %v3793 = vmul.f32 %v3562, %v3784
        %v3794 = vmul.f32 %v3540, %v3784
        %v3795 = vmul.f32 %v3563, %v3784
        %v3796 = vmul.f32 %v3541, %v3784
        %v3797 = vmul.f32 %v3564, %v3784
        %v3798 = vmul.f32 %v3542, %v3784
        %v3799 = vmul.f32 %v3565, %v3784
        %v3800 = vmul.f32 %v3543, %v3784
        %v3801 = vmul.f32 %v3566, %v3784
        %v3802 = vmul.f32 %v3544, %v3784
        %v3803 = vmul.f32 %v3567, %v3784
        %v3804 = vmul.f32 %v3545, %v3784
        %v3805 = vmul.f32 %v3568, %v3784
        %v3806 = vmul.f32 %v3546, %v3784
        %v3807 = vmul.f32 %v3569, %v3784
        %v3808 = vmul.f32 %v3547, %v3784
        %v3809 = vmul.f32 %v3570, %v3784
        %v3810 = vmul.f32 %v3548, %v3784
        %v3811 = vmul.f32 %v3571, %v3784
        %v3812 = vmul.f32 %v3549, %v3784
        %v3813 = vmul.f32 %v3572, %v3784
        %v3814 = vmul.f32 %v3550, %v3784
        %v3815 = vmul.f32 %v3573, %v3784
        %v3816 = vmul.f32 %v3551, %v3784
        %v3817 = vadd.f32 %v3749, %v3785
        %v3818 = vadd.f32 %v3750, %v3786
        %v3819 = vadd.f32 %v3751, %v3787
        %v3820 = vadd.f32 %v3752, %v3788
        %v3821 = vadd.f32 %v3753, %v3789
        %v3822 = vadd.f32 %v3754, %v3790
        %v3823 = vadd.f32 %v3755, %v3791
        %v3824 = vadd.f32 %v3756, %v3792
        %v3825 = vadd.f32 %v3757, %v3793
        %v3826 = vadd.f32 %v3758, %v3794
        %v3827 = vadd.f32 %v3759, %v3795
        %v3828 = vadd.f32 %v3760, %v3796
        %v3829 = vadd.f32 %v3761, %v3797
        %v3830 = vadd.f32 %v3762, %v3798
        %v3831 = vadd.f32 %v3763, %v3799
        %v3832 = vadd.f32 %v3764, %v3800
        %v3833 = vadd.f32 %v3765, %v3801
        %v3834 = vadd.f32 %v3766, %v3802
        %v3835 = vadd.f32 %v3767, %v3803
        %v3836 = vadd.f32 %v3768, %v3804
        %v3837 = vadd.f32 %v3769, %v3805
        %v3838 = vadd.f32 %v3770, %v3806
        %v3839 = vadd.f32 %v3771, %v3807
        %v3840 = vadd.f32 %v3772, %v3808
        %v3841 = vadd.f32 %v3773, %v3809
        %v3842 = vadd.f32 %v3774, %v3810
        %v3843 = vadd.f32 %v3775, %v3811
        %v3844 = vadd.f32 %v3776, %v3812
        %v3845 = vadd.f32 %v3777, %v3813
        %v3846 = vadd.f32 %v3778, %v3814
        %v3847 = vadd.f32 %v3779, %v3815
        %v3848 = vadd.f32 %v3780, %v3816
        %v3849 = vlaneseq
        %v3850 = vshrl.u32 %v3849, 7
        %v3851 = vsub.s32 1, %v3850
        %v3852 = vrot.slane %v549, %v3851
        %v3853 = vmul.f32 %v3559, %v3852
        %v3854 = vmul.f32 %v3537, %v3852
        %v3855 = vmul.f32 %v3560, %v3852
        %v3856 = vmul.f32 %v3538, %v3852
        %v3857 = vmul.f32 %v3561, %v3852
        %v3858 = vmul.f32 %v3539, %v3852
        %v3859 = vmul.f32 %v3562, %v3852
        %v3860 = vmul.f32 %v3540, %v3852
        %v3861 = vmul.f32 %v3563, %v3852
        %v3862 = vmul.f32 %v3541, %v3852
        %v3863 = vmul.f32 %v3564, %v3852
        %v3864 = vmul.f32 %v3542, %v3852
        %v3865 = vmul.f32 %v3565, %v3852
        %v3866 = vmul.f32 %v3543, %v3852
        %v3867 = vmul.f32 %v3566, %v3852
        %v3868 = vmul.f32 %v3544, %v3852
        %v3869 = vmul.f32 %v3567, %v3852
        %v3870 = vmul.f32 %v3545, %v3852
        %v3871 = vmul.f32 %v3568, %v3852
        %v3872 = vmul.f32 %v3546, %v3852
        %v3873 = vmul.f32 %v3569, %v3852
        %v3874 = vmul.f32 %v3547, %v3852
        %v3875 = vmul.f32 %v3570, %v3852
        %v3876 = vmul.f32 %v3548, %v3852
        %v3877 = vmul.f32 %v3571, %v3852
        %v3878 = vmul.f32 %v3549, %v3852
        %v3879 = vmul.f32 %v3572, %v3852
        %v3880 = vmul.f32 %v3550, %v3852
        %v3881 = vmul.f32 %v3573, %v3852
        %v3882 = vmul.f32 %v3551, %v3852
        %v3883 = vmul.f32 %v3574, %v3852
        %v3884 = vmul.f32 %v3552, %v3852
        %v3885 = vadd.f32 %v3817, %v3853
        %v3886 = vadd.f32 %v3818, %v3854
        %v3887 = vadd.f32 %v3819, %v3855
        %v3888 = vadd.f32 %v3820, %v3856
        %v3889 = vadd.f32 %v3821, %v3857
        %v3890 = vadd.f32 %v3822, %v3858
        %v3891 = vadd.f32 %v3823, %v3859
        %v3892 = vadd.f32 %v3824, %v3860
        %v3893 = vadd.f32 %v3825, %v3861
        %v3894 = vadd.f32 %v3826, %v3862
        %v3895 = vadd.f32 %v3827, %v3863
        %v3896 = vadd.f32 %v3828, %v3864
        %v3897 = vadd.f32 %v3829, %v3865
        %v3898 = vadd.f32 %v3830, %v3866
        %v3899 = vadd.f32 %v3831, %v3867
        %v3900 = vadd.f32 %v3832, %v3868
        %v3901 = vadd.f32 %v3833, %v3869
        %v3902 = vadd.f32 %v3834, %v3870
        %v3903 = vadd.f32 %v3835, %v3871
        %v3904 = vadd.f32 %v3836, %v3872
        %v3905 = vadd.f32 %v3837, %v3873
        %v3906 = vadd.f32 %v3838, %v3874
        %v3907 = vadd.f32 %v3839, %v3875
        %v3908 = vadd.f32 %v3840, %v3876
        %v3909 = vadd.f32 %v3841, %v3877
        %v3910 = vadd.f32 %v3842, %v3878
        %v3911 = vadd.f32 %v3843, %v3879
        %v3912 = vadd.f32 %v3844, %v3880
        %v3913 = vadd.f32 %v3845, %v3881
        %v3914 = vadd.f32 %v3846, %v3882
        %v3915 = vadd.f32 %v3847, %v3883
        %v3916 = vadd.f32 %v3848, %v3884
        %v3917 = vlaneseq
        %v3918 = vshrl.u32 %v3917, 7
        %v3919 = vsub.s32 0, %v3918
        %v3920 = vrot.slane %v550, %v3919
        %v3921 = vmul.f32 %v3560, %v3920
        %v3922 = vmul.f32 %v3538, %v3920
        %v3923 = vmul.f32 %v3561, %v3920
        %v3924 = vmul.f32 %v3539, %v3920
        %v3925 = vmul.f32 %v3562, %v3920
        %v3926 = vmul.f32 %v3540, %v3920
        %v3927 = vmul.f32 %v3563, %v3920
        %v3928 = vmul.f32 %v3541, %v3920
        %v3929 = vmul.f32 %v3564, %v3920
        %v3930 = vmul.f32 %v3542, %v3920
        %v3931 = vmul.f32 %v3565, %v3920
        %v3932 = vmul.f32 %v3543, %v3920
        %v3933 = vmul.f32 %v3566, %v3920
        %v3934 = vmul.f32 %v3544, %v3920
        %v3935 = vmul.f32 %v3567, %v3920
        %v3936 = vmul.f32 %v3545, %v3920
        %v3937 = vmul.f32 %v3568, %v3920
        %v3938 = vmul.f32 %v3546, %v3920
        %v3939 = vmul.f32 %v3569, %v3920
        %v3940 = vmul.f32 %v3547, %v3920
        %v3941 = vmul.f32 %v3570, %v3920
        %v3942 = vmul.f32 %v3548, %v3920
        %v3943 = vmul.f32 %v3571, %v3920
        %v3944 = vmul.f32 %v3549, %v3920
        %v3945 = vmul.f32 %v3572, %v3920
        %v3946 = vmul.f32 %v3550, %v3920
        %v3947 = vmul.f32 %v3573, %v3920
        %v3948 = vmul.f32 %v3551, %v3920
        %v3949 = vmul.f32 %v3574, %v3920
        %v3950 = vmul.f32 %v3552, %v3920
        %v3951 = vmul.f32 %v3575, %v3920
        %v3952 = vmul.f32 %v3553, %v3920
        %v3953 = vadd.f32 %v3885, %v3921
        %v3954 = vadd.f32 %v3886, %v3922
        %v3955 = vadd.f32 %v3887, %v3923
        %v3956 = vadd.f32 %v3888, %v3924
        %v3957 = vadd.f32 %v3889, %v3925
        %v3958 = vadd.f32 %v3890, %v3926
        %v3959 = vadd.f32 %v3891, %v3927
        %v3960 = vadd.f32 %v3892, %v3928
        %v3961 = vadd.f32 %v3893, %v3929
        %v3962 = vadd.f32 %v3894, %v3930
        %v3963 = vadd.f32 %v3895, %v3931
        %v3964 = vadd.f32 %v3896, %v3932
        %v3965 = vadd.f32 %v3897, %v3933
        %v3966 = vadd.f32 %v3898, %v3934
        %v3967 = vadd.f32 %v3899, %v3935
        %v3968 = vadd.f32 %v3900, %v3936
        %v3969 = vadd.f32 %v3901, %v3937
        %v3970 = vadd.f32 %v3902, %v3938
        %v3971 = vadd.f32 %v3903, %v3939
        %v3972 = vadd.f32 %v3904, %v3940
        %v3973 = vadd.f32 %v3905, %v3941
        %v3974 = vadd.f32 %v3906, %v3942
        %v3975 = vadd.f32 %v3907, %v3943
        %v3976 = vadd.f32 %v3908, %v3944
        %v3977 = vadd.f32 %v3909, %v3945
        %v3978 = vadd.f32 %v3910, %v3946
        %v3979 = vadd.f32 %v3911, %v3947
        %v3980 = vadd.f32 %v3912, %v3948
        %v3981 = vadd.f32 %v3913, %v3949
        %v3982 = vadd.f32 %v3914, %v3950
        %v3983 = vadd.f32 %v3915, %v3951
        %v3984 = vadd.f32 %v3916, %v3952
        %v3985 = vlaneseq
        %v3986 = vshrl.u32 %v3985, 7
        %v3987 = vsub.s32 7, %v3986
        %v3988 = vrot.slane %v550, %v3987
        %v3989 = vmul.f32 %v3561, %v3988
        %v3990 = vmul.f32 %v3539, %v3988
        %v3991 = vmul.f32 %v3562, %v3988
        %v3992 = vmul.f32 %v3540, %v3988
        %v3993 = vmul.f32 %v3563, %v3988
        %v3994 = vmul.f32 %v3541, %v3988
        %v3995 = vmul.f32 %v3564, %v3988
        %v3996 = vmul.f32 %v3542, %v3988
        %v3997 = vmul.f32 %v3565, %v3988
        %v3998 = vmul.f32 %v3543, %v3988
        %v3999 = vmul.f32 %v3566, %v3988
        %v4000 = vmul.f32 %v3544, %v3988
        %v4001 = vmul.f32 %v3567, %v3988
        %v4002 = vmul.f32 %v3545, %v3988
        %v4003 = vmul.f32 %v3568, %v3988
        %v4004 = vmul.f32 %v3546, %v3988
        %v4005 = vmul.f32 %v3569, %v3988
        %v4006 = vmul.f32 %v3547, %v3988
        %v4007 = vmul.f32 %v3570, %v3988
        %v4008 = vmul.f32 %v3548, %v3988
        %v4009 = vmul.f32 %v3571, %v3988
        %v4010 = vmul.f32 %v3549, %v3988
        %v4011 = vmul.f32 %v3572, %v3988
        %v4012 = vmul.f32 %v3550, %v3988
        %v4013 = vmul.f32 %v3573, %v3988
        %v4014 = vmul.f32 %v3551, %v3988
        %v4015 = vmul.f32 %v3574, %v3988
        %v4016 = vmul.f32 %v3552, %v3988
        %v4017 = vmul.f32 %v3575, %v3988
        %v4018 = vmul.f32 %v3553, %v3988
        %v4019 = vmul.f32 %v3576, %v3988
        %v4020 = vmul.f32 %v3554, %v3988
        %v4021 = vadd.f32 %v3953, %v3989
        %v4022 = vadd.f32 %v3954, %v3990
        %v4023 = vadd.f32 %v3955, %v3991
        %v4024 = vadd.f32 %v3956, %v3992
        %v4025 = vadd.f32 %v3957, %v3993
        %v4026 = vadd.f32 %v3958, %v3994
        %v4027 = vadd.f32 %v3959, %v3995
        %v4028 = vadd.f32 %v3960, %v3996
        %v4029 = vadd.f32 %v3961, %v3997
        %v4030 = vadd.f32 %v3962, %v3998
        %v4031 = vadd.f32 %v3963, %v3999
        %v4032 = vadd.f32 %v3964, %v4000
        %v4033 = vadd.f32 %v3965, %v4001
        %v4034 = vadd.f32 %v3966, %v4002
        %v4035 = vadd.f32 %v3967, %v4003
        %v4036 = vadd.f32 %v3968, %v4004
        %v4037 = vadd.f32 %v3969, %v4005
        %v4038 = vadd.f32 %v3970, %v4006
        %v4039 = vadd.f32 %v3971, %v4007
        %v4040 = vadd.f32 %v3972, %v4008
        %v4041 = vadd.f32 %v3973, %v4009
        %v4042 = vadd.f32 %v3974, %v4010
        %v4043 = vadd.f32 %v3975, %v4011
        %v4044 = vadd.f32 %v3976, %v4012
        %v4045 = vadd.f32 %v3977, %v4013
        %v4046 = vadd.f32 %v3978, %v4014
        %v4047 = vadd.f32 %v3979, %v4015
        %v4048 = vadd.f32 %v3980, %v4016
        %v4049 = vadd.f32 %v3981, %v4017
        %v4050 = vadd.f32 %v3982, %v4018
        %v4051 = vadd.f32 %v3983, %v4019
        %v4052 = vadd.f32 %v3984, %v4020
        %v4053 = vrot.slane %v553, 3
        %v4054 = vrot.slane %v557, 3
        %v4055 = vrot.slane %v561, 3
        %v4056 = vrot.slane %v565, 3
        %v4057 = vrot.slane %v569, 3
        %v4058 = vrot.slane %v573, 3
        %v4059 = vrot.slane %v577, 3
        %v4060 = vrot.slane %v581, 3
        %v4061 = vrot.slane %v585, 3
        %v4062 = vrot.slane %v589, 3
        %v4063 = vrot.slane %v593, 3
        %v4064 = vrot.slane %v597, 3
        %v4065 = vrot.slane %v601, 3
        %v4066 = vrot.slane %v605, 3
        %v4067 = vrot.slane %v609, 3
        %v4068 = vrot.slane %v613, 3
        %v4069 = vrot.slane %v617, 3
        %v4070 = vrot.slane %v621, 3
        %v4071 = vrot.slane %v625, 3
        %v4072 = vrot.slane %v629, 3
        %v4073 = vrot.slane %v633, 3
        %v4074 = vrot.slane %v637, 3
        %v4075 = vrot.slane %v554, 3
        %v4076 = vrot.slane %v558, 3
        %v4077 = vrot.slane %v562, 3
        %v4078 = vrot.slane %v566, 3
        %v4079 = vrot.slane %v570, 3
        %v4080 = vrot.slane %v574, 3
        %v4081 = vrot.slane %v578, 3
        %v4082 = vrot.slane %v582, 3
        %v4083 = vrot.slane %v586, 3
        %v4084 = vrot.slane %v590, 3
        %v4085 = vrot.slane %v594, 3
        %v4086 = vrot.slane %v598, 3
        %v4087 = vrot.slane %v602, 3
        %v4088 = vrot.slane %v606, 3
        %v4089 = vrot.slane %v610, 3
        %v4090 = vrot.slane %v614, 3
        %v4091 = vrot.slane %v618, 3
        %v4092 = vrot.slane %v622, 3
        %v4093 = vrot.slane %v626, 3
        %v4094 = vrot.slane %v630, 3
        %v4095 = vrot.slane %v634, 3
        %v4096 = vrot.slane %v638, 3
        %v4097 = vrot.slane %v555, 3
        %v4098 = vrot.slane %v559, 3
        %v4099 = vrot.slane %v563, 3
        %v4100 = vrot.slane %v567, 3
        %v4101 = vrot.slane %v571, 3
        %v4102 = vrot.slane %v575, 3
        %v4103 = vrot.slane %v579, 3
        %v4104 = vrot.slane %v583, 3
        %v4105 = vrot.slane %v587, 3
        %v4106 = vrot.slane %v591, 3
        %v4107 = vrot.slane %v595, 3
        %v4108 = vrot.slane %v599, 3
        %v4109 = vrot.slane %v603, 3
        %v4110 = vrot.slane %v607, 3
        %v4111 = vrot.slane %v611, 3
        %v4112 = vrot.slane %v615, 3
        %v4113 = vrot.slane %v619, 3
        %v4114 = vrot.slane %v623, 3
        %v4115 = vrot.slane %v627, 3
        %v4116 = vrot.slane %v631, 3
        %v4117 = vrot.slane %v635, 3
        %v4118 = vrot.slane %v639, 3
        %vm4119 = vcmp.lt.s32.totalorder %v707, 5
        %v4120 = vsel %vm4119, %v4075, %v4097
        %v4121 = vsel %vm4119, %v4076, %v4098
        %v4122 = vsel %vm4119, %v4077, %v4099
        %v4123 = vsel %vm4119, %v4078, %v4100
        %v4124 = vsel %vm4119, %v4079, %v4101
        %v4125 = vsel %vm4119, %v4080, %v4102
        %v4126 = vsel %vm4119, %v4081, %v4103
        %v4127 = vsel %vm4119, %v4082, %v4104
        %v4128 = vsel %vm4119, %v4083, %v4105
        %v4129 = vsel %vm4119, %v4084, %v4106
        %v4130 = vsel %vm4119, %v4085, %v4107
        %v4131 = vsel %vm4119, %v4086, %v4108
        %v4132 = vsel %vm4119, %v4087, %v4109
        %v4133 = vsel %vm4119, %v4088, %v4110
        %v4134 = vsel %vm4119, %v4089, %v4111
        %v4135 = vsel %vm4119, %v4090, %v4112
        %v4136 = vsel %vm4119, %v4091, %v4113
        %v4137 = vsel %vm4119, %v4092, %v4114
        %v4138 = vsel %vm4119, %v4093, %v4115
        %v4139 = vsel %vm4119, %v4094, %v4116
        %v4140 = vsel %vm4119, %v4095, %v4117
        %v4141 = vsel %vm4119, %v4096, %v4118
        %v4142 = vsel %vm4119, %v4053, %v4075
        %v4143 = vsel %vm4119, %v4054, %v4076
        %v4144 = vsel %vm4119, %v4055, %v4077
        %v4145 = vsel %vm4119, %v4056, %v4078
        %v4146 = vsel %vm4119, %v4057, %v4079
        %v4147 = vsel %vm4119, %v4058, %v4080
        %v4148 = vsel %vm4119, %v4059, %v4081
        %v4149 = vsel %vm4119, %v4060, %v4082
        %v4150 = vsel %vm4119, %v4061, %v4083
        %v4151 = vsel %vm4119, %v4062, %v4084
        %v4152 = vsel %vm4119, %v4063, %v4085
        %v4153 = vsel %vm4119, %v4064, %v4086
        %v4154 = vsel %vm4119, %v4065, %v4087
        %v4155 = vsel %vm4119, %v4066, %v4088
        %v4156 = vsel %vm4119, %v4067, %v4089
        %v4157 = vsel %vm4119, %v4068, %v4090
        %v4158 = vsel %vm4119, %v4069, %v4091
        %v4159 = vsel %vm4119, %v4070, %v4092
        %v4160 = vsel %vm4119, %v4071, %v4093
        %v4161 = vsel %vm4119, %v4072, %v4094
        %v4162 = vsel %vm4119, %v4073, %v4095
        %v4163 = vsel %vm4119, %v4074, %v4096
        %v4164 = vlaneseq
        %v4165 = vshrl.u32 %v4164, 7
        %v4166 = vsub.s32 6, %v4165
        %v4167 = vrot.slane %v545, %v4166
        %v4168 = vmul.f32 %v4142, %v4167
        %v4169 = vmul.f32 %v4120, %v4167
        %v4170 = vmul.f32 %v4143, %v4167
        %v4171 = vmul.f32 %v4121, %v4167
        %v4172 = vmul.f32 %v4144, %v4167
        %v4173 = vmul.f32 %v4122, %v4167
        %v4174 = vmul.f32 %v4145, %v4167
        %v4175 = vmul.f32 %v4123, %v4167
        %v4176 = vmul.f32 %v4146, %v4167
        %v4177 = vmul.f32 %v4124, %v4167
        %v4178 = vmul.f32 %v4147, %v4167
        %v4179 = vmul.f32 %v4125, %v4167
        %v4180 = vmul.f32 %v4148, %v4167
        %v4181 = vmul.f32 %v4126, %v4167
        %v4182 = vmul.f32 %v4149, %v4167
        %v4183 = vmul.f32 %v4127, %v4167
        %v4184 = vmul.f32 %v4150, %v4167
        %v4185 = vmul.f32 %v4128, %v4167
        %v4186 = vmul.f32 %v4151, %v4167
        %v4187 = vmul.f32 %v4129, %v4167
        %v4188 = vmul.f32 %v4152, %v4167
        %v4189 = vmul.f32 %v4130, %v4167
        %v4190 = vmul.f32 %v4153, %v4167
        %v4191 = vmul.f32 %v4131, %v4167
        %v4192 = vmul.f32 %v4154, %v4167
        %v4193 = vmul.f32 %v4132, %v4167
        %v4194 = vmul.f32 %v4155, %v4167
        %v4195 = vmul.f32 %v4133, %v4167
        %v4196 = vmul.f32 %v4156, %v4167
        %v4197 = vmul.f32 %v4134, %v4167
        %v4198 = vmul.f32 %v4157, %v4167
        %v4199 = vmul.f32 %v4135, %v4167
        %v4200 = vadd.f32 %v4021, %v4168
        %v4201 = vadd.f32 %v4022, %v4169
        %v4202 = vadd.f32 %v4023, %v4170
        %v4203 = vadd.f32 %v4024, %v4171
        %v4204 = vadd.f32 %v4025, %v4172
        %v4205 = vadd.f32 %v4026, %v4173
        %v4206 = vadd.f32 %v4027, %v4174
        %v4207 = vadd.f32 %v4028, %v4175
        %v4208 = vadd.f32 %v4029, %v4176
        %v4209 = vadd.f32 %v4030, %v4177
        %v4210 = vadd.f32 %v4031, %v4178
        %v4211 = vadd.f32 %v4032, %v4179
        %v4212 = vadd.f32 %v4033, %v4180
        %v4213 = vadd.f32 %v4034, %v4181
        %v4214 = vadd.f32 %v4035, %v4182
        %v4215 = vadd.f32 %v4036, %v4183
        %v4216 = vadd.f32 %v4037, %v4184
        %v4217 = vadd.f32 %v4038, %v4185
        %v4218 = vadd.f32 %v4039, %v4186
        %v4219 = vadd.f32 %v4040, %v4187
        %v4220 = vadd.f32 %v4041, %v4188
        %v4221 = vadd.f32 %v4042, %v4189
        %v4222 = vadd.f32 %v4043, %v4190
        %v4223 = vadd.f32 %v4044, %v4191
        %v4224 = vadd.f32 %v4045, %v4192
        %v4225 = vadd.f32 %v4046, %v4193
        %v4226 = vadd.f32 %v4047, %v4194
        %v4227 = vadd.f32 %v4048, %v4195
        %v4228 = vadd.f32 %v4049, %v4196
        %v4229 = vadd.f32 %v4050, %v4197
        %v4230 = vadd.f32 %v4051, %v4198
        %v4231 = vadd.f32 %v4052, %v4199
        %v4232 = vlaneseq
        %v4233 = vshrl.u32 %v4232, 7
        %v4234 = vsub.s32 5, %v4233
        %v4235 = vrot.slane %v546, %v4234
        %v4236 = vmul.f32 %v4143, %v4235
        %v4237 = vmul.f32 %v4121, %v4235
        %v4238 = vmul.f32 %v4144, %v4235
        %v4239 = vmul.f32 %v4122, %v4235
        %v4240 = vmul.f32 %v4145, %v4235
        %v4241 = vmul.f32 %v4123, %v4235
        %v4242 = vmul.f32 %v4146, %v4235
        %v4243 = vmul.f32 %v4124, %v4235
        %v4244 = vmul.f32 %v4147, %v4235
        %v4245 = vmul.f32 %v4125, %v4235
        %v4246 = vmul.f32 %v4148, %v4235
        %v4247 = vmul.f32 %v4126, %v4235
        %v4248 = vmul.f32 %v4149, %v4235
        %v4249 = vmul.f32 %v4127, %v4235
        %v4250 = vmul.f32 %v4150, %v4235
        %v4251 = vmul.f32 %v4128, %v4235
        %v4252 = vmul.f32 %v4151, %v4235
        %v4253 = vmul.f32 %v4129, %v4235
        %v4254 = vmul.f32 %v4152, %v4235
        %v4255 = vmul.f32 %v4130, %v4235
        %v4256 = vmul.f32 %v4153, %v4235
        %v4257 = vmul.f32 %v4131, %v4235
        %v4258 = vmul.f32 %v4154, %v4235
        %v4259 = vmul.f32 %v4132, %v4235
        %v4260 = vmul.f32 %v4155, %v4235
        %v4261 = vmul.f32 %v4133, %v4235
        %v4262 = vmul.f32 %v4156, %v4235
        %v4263 = vmul.f32 %v4134, %v4235
        %v4264 = vmul.f32 %v4157, %v4235
        %v4265 = vmul.f32 %v4135, %v4235
        %v4266 = vmul.f32 %v4158, %v4235
        %v4267 = vmul.f32 %v4136, %v4235
        %v4268 = vadd.f32 %v4200, %v4236
        %v4269 = vadd.f32 %v4201, %v4237
        %v4270 = vadd.f32 %v4202, %v4238
        %v4271 = vadd.f32 %v4203, %v4239
        %v4272 = vadd.f32 %v4204, %v4240
        %v4273 = vadd.f32 %v4205, %v4241
        %v4274 = vadd.f32 %v4206, %v4242
        %v4275 = vadd.f32 %v4207, %v4243
        %v4276 = vadd.f32 %v4208, %v4244
        %v4277 = vadd.f32 %v4209, %v4245
        %v4278 = vadd.f32 %v4210, %v4246
        %v4279 = vadd.f32 %v4211, %v4247
        %v4280 = vadd.f32 %v4212, %v4248
        %v4281 = vadd.f32 %v4213, %v4249
        %v4282 = vadd.f32 %v4214, %v4250
        %v4283 = vadd.f32 %v4215, %v4251
        %v4284 = vadd.f32 %v4216, %v4252
        %v4285 = vadd.f32 %v4217, %v4253
        %v4286 = vadd.f32 %v4218, %v4254
        %v4287 = vadd.f32 %v4219, %v4255
        %v4288 = vadd.f32 %v4220, %v4256
        %v4289 = vadd.f32 %v4221, %v4257
        %v4290 = vadd.f32 %v4222, %v4258
        %v4291 = vadd.f32 %v4223, %v4259
        %v4292 = vadd.f32 %v4224, %v4260
        %v4293 = vadd.f32 %v4225, %v4261
        %v4294 = vadd.f32 %v4226, %v4262
        %v4295 = vadd.f32 %v4227, %v4263
        %v4296 = vadd.f32 %v4228, %v4264
        %v4297 = vadd.f32 %v4229, %v4265
        %v4298 = vadd.f32 %v4230, %v4266
        %v4299 = vadd.f32 %v4231, %v4267
        %v4300 = vlaneseq
        %v4301 = vshrl.u32 %v4300, 7
        %v4302 = vsub.s32 4, %v4301
        %v4303 = vrot.slane %v547, %v4302
        %v4304 = vmul.f32 %v4144, %v4303
        %v4305 = vmul.f32 %v4122, %v4303
        %v4306 = vmul.f32 %v4145, %v4303
        %v4307 = vmul.f32 %v4123, %v4303
        %v4308 = vmul.f32 %v4146, %v4303
        %v4309 = vmul.f32 %v4124, %v4303
        %v4310 = vmul.f32 %v4147, %v4303
        %v4311 = vmul.f32 %v4125, %v4303
        %v4312 = vmul.f32 %v4148, %v4303
        %v4313 = vmul.f32 %v4126, %v4303
        %v4314 = vmul.f32 %v4149, %v4303
        %v4315 = vmul.f32 %v4127, %v4303
        %v4316 = vmul.f32 %v4150, %v4303
        %v4317 = vmul.f32 %v4128, %v4303
        %v4318 = vmul.f32 %v4151, %v4303
        %v4319 = vmul.f32 %v4129, %v4303
        %v4320 = vmul.f32 %v4152, %v4303
        %v4321 = vmul.f32 %v4130, %v4303
        %v4322 = vmul.f32 %v4153, %v4303
        %v4323 = vmul.f32 %v4131, %v4303
        %v4324 = vmul.f32 %v4154, %v4303
        %v4325 = vmul.f32 %v4132, %v4303
        %v4326 = vmul.f32 %v4155, %v4303
        %v4327 = vmul.f32 %v4133, %v4303
        %v4328 = vmul.f32 %v4156, %v4303
        %v4329 = vmul.f32 %v4134, %v4303
        %v4330 = vmul.f32 %v4157, %v4303
        %v4331 = vmul.f32 %v4135, %v4303
        %v4332 = vmul.f32 %v4158, %v4303
        %v4333 = vmul.f32 %v4136, %v4303
        %v4334 = vmul.f32 %v4159, %v4303
        %v4335 = vmul.f32 %v4137, %v4303
        %v4336 = vadd.f32 %v4268, %v4304
        %v4337 = vadd.f32 %v4269, %v4305
        %v4338 = vadd.f32 %v4270, %v4306
        %v4339 = vadd.f32 %v4271, %v4307
        %v4340 = vadd.f32 %v4272, %v4308
        %v4341 = vadd.f32 %v4273, %v4309
        %v4342 = vadd.f32 %v4274, %v4310
        %v4343 = vadd.f32 %v4275, %v4311
        %v4344 = vadd.f32 %v4276, %v4312
        %v4345 = vadd.f32 %v4277, %v4313
        %v4346 = vadd.f32 %v4278, %v4314
        %v4347 = vadd.f32 %v4279, %v4315
        %v4348 = vadd.f32 %v4280, %v4316
        %v4349 = vadd.f32 %v4281, %v4317
        %v4350 = vadd.f32 %v4282, %v4318
        %v4351 = vadd.f32 %v4283, %v4319
        %v4352 = vadd.f32 %v4284, %v4320
        %v4353 = vadd.f32 %v4285, %v4321
        %v4354 = vadd.f32 %v4286, %v4322
        %v4355 = vadd.f32 %v4287, %v4323
        %v4356 = vadd.f32 %v4288, %v4324
        %v4357 = vadd.f32 %v4289, %v4325
        %v4358 = vadd.f32 %v4290, %v4326
        %v4359 = vadd.f32 %v4291, %v4327
        %v4360 = vadd.f32 %v4292, %v4328
        %v4361 = vadd.f32 %v4293, %v4329
        %v4362 = vadd.f32 %v4294, %v4330
        %v4363 = vadd.f32 %v4295, %v4331
        %v4364 = vadd.f32 %v4296, %v4332
        %v4365 = vadd.f32 %v4297, %v4333
        %v4366 = vadd.f32 %v4298, %v4334
        %v4367 = vadd.f32 %v4299, %v4335
        %v4368 = vlaneseq
        %v4369 = vshrl.u32 %v4368, 7
        %v4370 = vsub.s32 3, %v4369
        %v4371 = vrot.slane %v548, %v4370
        %v4372 = vmul.f32 %v4145, %v4371
        %v4373 = vmul.f32 %v4123, %v4371
        %v4374 = vmul.f32 %v4146, %v4371
        %v4375 = vmul.f32 %v4124, %v4371
        %v4376 = vmul.f32 %v4147, %v4371
        %v4377 = vmul.f32 %v4125, %v4371
        %v4378 = vmul.f32 %v4148, %v4371
        %v4379 = vmul.f32 %v4126, %v4371
        %v4380 = vmul.f32 %v4149, %v4371
        %v4381 = vmul.f32 %v4127, %v4371
        %v4382 = vmul.f32 %v4150, %v4371
        %v4383 = vmul.f32 %v4128, %v4371
        %v4384 = vmul.f32 %v4151, %v4371
        %v4385 = vmul.f32 %v4129, %v4371
        %v4386 = vmul.f32 %v4152, %v4371
        %v4387 = vmul.f32 %v4130, %v4371
        %v4388 = vmul.f32 %v4153, %v4371
        %v4389 = vmul.f32 %v4131, %v4371
        %v4390 = vmul.f32 %v4154, %v4371
        %v4391 = vmul.f32 %v4132, %v4371
        %v4392 = vmul.f32 %v4155, %v4371
        %v4393 = vmul.f32 %v4133, %v4371
        %v4394 = vmul.f32 %v4156, %v4371
        %v4395 = vmul.f32 %v4134, %v4371
        %v4396 = vmul.f32 %v4157, %v4371
        %v4397 = vmul.f32 %v4135, %v4371
        %v4398 = vmul.f32 %v4158, %v4371
        %v4399 = vmul.f32 %v4136, %v4371
        %v4400 = vmul.f32 %v4159, %v4371
        %v4401 = vmul.f32 %v4137, %v4371
        %v4402 = vmul.f32 %v4160, %v4371
        %v4403 = vmul.f32 %v4138, %v4371
        %v4404 = vadd.f32 %v4336, %v4372
        %v4405 = vadd.f32 %v4337, %v4373
        %v4406 = vadd.f32 %v4338, %v4374
        %v4407 = vadd.f32 %v4339, %v4375
        %v4408 = vadd.f32 %v4340, %v4376
        %v4409 = vadd.f32 %v4341, %v4377
        %v4410 = vadd.f32 %v4342, %v4378
        %v4411 = vadd.f32 %v4343, %v4379
        %v4412 = vadd.f32 %v4344, %v4380
        %v4413 = vadd.f32 %v4345, %v4381
        %v4414 = vadd.f32 %v4346, %v4382
        %v4415 = vadd.f32 %v4347, %v4383
        %v4416 = vadd.f32 %v4348, %v4384
        %v4417 = vadd.f32 %v4349, %v4385
        %v4418 = vadd.f32 %v4350, %v4386
        %v4419 = vadd.f32 %v4351, %v4387
        %v4420 = vadd.f32 %v4352, %v4388
        %v4421 = vadd.f32 %v4353, %v4389
        %v4422 = vadd.f32 %v4354, %v4390
        %v4423 = vadd.f32 %v4355, %v4391
        %v4424 = vadd.f32 %v4356, %v4392
        %v4425 = vadd.f32 %v4357, %v4393
        %v4426 = vadd.f32 %v4358, %v4394
        %v4427 = vadd.f32 %v4359, %v4395
        %v4428 = vadd.f32 %v4360, %v4396
        %v4429 = vadd.f32 %v4361, %v4397
        %v4430 = vadd.f32 %v4362, %v4398
        %v4431 = vadd.f32 %v4363, %v4399
        %v4432 = vadd.f32 %v4364, %v4400
        %v4433 = vadd.f32 %v4365, %v4401
        %v4434 = vadd.f32 %v4366, %v4402
        %v4435 = vadd.f32 %v4367, %v4403
        %v4436 = vlaneseq
        %v4437 = vshrl.u32 %v4436, 7
        %v4438 = vsub.s32 2, %v4437
        %v4439 = vrot.slane %v549, %v4438
        %v4440 = vmul.f32 %v4146, %v4439
        %v4441 = vmul.f32 %v4124, %v4439
        %v4442 = vmul.f32 %v4147, %v4439
        %v4443 = vmul.f32 %v4125, %v4439
        %v4444 = vmul.f32 %v4148, %v4439
        %v4445 = vmul.f32 %v4126, %v4439
        %v4446 = vmul.f32 %v4149, %v4439
        %v4447 = vmul.f32 %v4127, %v4439
        %v4448 = vmul.f32 %v4150, %v4439
        %v4449 = vmul.f32 %v4128, %v4439
        %v4450 = vmul.f32 %v4151, %v4439
        %v4451 = vmul.f32 %v4129, %v4439
        %v4452 = vmul.f32 %v4152, %v4439
        %v4453 = vmul.f32 %v4130, %v4439
        %v4454 = vmul.f32 %v4153, %v4439
        %v4455 = vmul.f32 %v4131, %v4439
        %v4456 = vmul.f32 %v4154, %v4439
        %v4457 = vmul.f32 %v4132, %v4439
        %v4458 = vmul.f32 %v4155, %v4439
        %v4459 = vmul.f32 %v4133, %v4439
        %v4460 = vmul.f32 %v4156, %v4439
        %v4461 = vmul.f32 %v4134, %v4439
        %v4462 = vmul.f32 %v4157, %v4439
        %v4463 = vmul.f32 %v4135, %v4439
        %v4464 = vmul.f32 %v4158, %v4439
        %v4465 = vmul.f32 %v4136, %v4439
        %v4466 = vmul.f32 %v4159, %v4439
        %v4467 = vmul.f32 %v4137, %v4439
        %v4468 = vmul.f32 %v4160, %v4439
        %v4469 = vmul.f32 %v4138, %v4439
        %v4470 = vmul.f32 %v4161, %v4439
        %v4471 = vmul.f32 %v4139, %v4439
        %v4472 = vadd.f32 %v4404, %v4440
        %v4473 = vadd.f32 %v4405, %v4441
        %v4474 = vadd.f32 %v4406, %v4442
        %v4475 = vadd.f32 %v4407, %v4443
        %v4476 = vadd.f32 %v4408, %v4444
        %v4477 = vadd.f32 %v4409, %v4445
        %v4478 = vadd.f32 %v4410, %v4446
        %v4479 = vadd.f32 %v4411, %v4447
        %v4480 = vadd.f32 %v4412, %v4448
        %v4481 = vadd.f32 %v4413, %v4449
        %v4482 = vadd.f32 %v4414, %v4450
        %v4483 = vadd.f32 %v4415, %v4451
        %v4484 = vadd.f32 %v4416, %v4452
        %v4485 = vadd.f32 %v4417, %v4453
        %v4486 = vadd.f32 %v4418, %v4454
        %v4487 = vadd.f32 %v4419, %v4455
        %v4488 = vadd.f32 %v4420, %v4456
        %v4489 = vadd.f32 %v4421, %v4457
        %v4490 = vadd.f32 %v4422, %v4458
        %v4491 = vadd.f32 %v4423, %v4459
        %v4492 = vadd.f32 %v4424, %v4460
        %v4493 = vadd.f32 %v4425, %v4461
        %v4494 = vadd.f32 %v4426, %v4462
        %v4495 = vadd.f32 %v4427, %v4463
        %v4496 = vadd.f32 %v4428, %v4464
        %v4497 = vadd.f32 %v4429, %v4465
        %v4498 = vadd.f32 %v4430, %v4466
        %v4499 = vadd.f32 %v4431, %v4467
        %v4500 = vadd.f32 %v4432, %v4468
        %v4501 = vadd.f32 %v4433, %v4469
        %v4502 = vadd.f32 %v4434, %v4470
        %v4503 = vadd.f32 %v4435, %v4471
        %v4504 = vlaneseq
        %v4505 = vshrl.u32 %v4504, 7
        %v4506 = vsub.s32 1, %v4505
        %v4507 = vrot.slane %v550, %v4506
        %v4508 = vmul.f32 %v4147, %v4507
        %v4509 = vmul.f32 %v4125, %v4507
        %v4510 = vmul.f32 %v4148, %v4507
        %v4511 = vmul.f32 %v4126, %v4507
        %v4512 = vmul.f32 %v4149, %v4507
        %v4513 = vmul.f32 %v4127, %v4507
        %v4514 = vmul.f32 %v4150, %v4507
        %v4515 = vmul.f32 %v4128, %v4507
        %v4516 = vmul.f32 %v4151, %v4507
        %v4517 = vmul.f32 %v4129, %v4507
        %v4518 = vmul.f32 %v4152, %v4507
        %v4519 = vmul.f32 %v4130, %v4507
        %v4520 = vmul.f32 %v4153, %v4507
        %v4521 = vmul.f32 %v4131, %v4507
        %v4522 = vmul.f32 %v4154, %v4507
        %v4523 = vmul.f32 %v4132, %v4507
        %v4524 = vmul.f32 %v4155, %v4507
        %v4525 = vmul.f32 %v4133, %v4507
        %v4526 = vmul.f32 %v4156, %v4507
        %v4527 = vmul.f32 %v4134, %v4507
        %v4528 = vmul.f32 %v4157, %v4507
        %v4529 = vmul.f32 %v4135, %v4507
        %v4530 = vmul.f32 %v4158, %v4507
        %v4531 = vmul.f32 %v4136, %v4507
        %v4532 = vmul.f32 %v4159, %v4507
        %v4533 = vmul.f32 %v4137, %v4507
        %v4534 = vmul.f32 %v4160, %v4507
        %v4535 = vmul.f32 %v4138, %v4507
        %v4536 = vmul.f32 %v4161, %v4507
        %v4537 = vmul.f32 %v4139, %v4507
        %v4538 = vmul.f32 %v4162, %v4507
        %v4539 = vmul.f32 %v4140, %v4507
        %v4540 = vadd.f32 %v4472, %v4508
        %v4541 = vadd.f32 %v4473, %v4509
        %v4542 = vadd.f32 %v4474, %v4510
        %v4543 = vadd.f32 %v4475, %v4511
        %v4544 = vadd.f32 %v4476, %v4512
        %v4545 = vadd.f32 %v4477, %v4513
        %v4546 = vadd.f32 %v4478, %v4514
        %v4547 = vadd.f32 %v4479, %v4515
        %v4548 = vadd.f32 %v4480, %v4516
        %v4549 = vadd.f32 %v4481, %v4517
        %v4550 = vadd.f32 %v4482, %v4518
        %v4551 = vadd.f32 %v4483, %v4519
        %v4552 = vadd.f32 %v4484, %v4520
        %v4553 = vadd.f32 %v4485, %v4521
        %v4554 = vadd.f32 %v4486, %v4522
        %v4555 = vadd.f32 %v4487, %v4523
        %v4556 = vadd.f32 %v4488, %v4524
        %v4557 = vadd.f32 %v4489, %v4525
        %v4558 = vadd.f32 %v4490, %v4526
        %v4559 = vadd.f32 %v4491, %v4527
        %v4560 = vadd.f32 %v4492, %v4528
        %v4561 = vadd.f32 %v4493, %v4529
        %v4562 = vadd.f32 %v4494, %v4530
        %v4563 = vadd.f32 %v4495, %v4531
        %v4564 = vadd.f32 %v4496, %v4532
        %v4565 = vadd.f32 %v4497, %v4533
        %v4566 = vadd.f32 %v4498, %v4534
        %v4567 = vadd.f32 %v4499, %v4535
        %v4568 = vadd.f32 %v4500, %v4536
        %v4569 = vadd.f32 %v4501, %v4537
        %v4570 = vadd.f32 %v4502, %v4538
        %v4571 = vadd.f32 %v4503, %v4539
        %v4572 = vlaneseq
        %v4573 = vshrl.u32 %v4572, 7
        %v4574 = vsub.s32 0, %v4573
        %v4575 = vrot.slane %v551, %v4574
        %v4576 = vmul.f32 %v4148, %v4575
        %v4577 = vmul.f32 %v4126, %v4575
        %v4578 = vmul.f32 %v4149, %v4575
        %v4579 = vmul.f32 %v4127, %v4575
        %v4580 = vmul.f32 %v4150, %v4575
        %v4581 = vmul.f32 %v4128, %v4575
        %v4582 = vmul.f32 %v4151, %v4575
        %v4583 = vmul.f32 %v4129, %v4575
        %v4584 = vmul.f32 %v4152, %v4575
        %v4585 = vmul.f32 %v4130, %v4575
        %v4586 = vmul.f32 %v4153, %v4575
        %v4587 = vmul.f32 %v4131, %v4575
        %v4588 = vmul.f32 %v4154, %v4575
        %v4589 = vmul.f32 %v4132, %v4575
        %v4590 = vmul.f32 %v4155, %v4575
        %v4591 = vmul.f32 %v4133, %v4575
        %v4592 = vmul.f32 %v4156, %v4575
        %v4593 = vmul.f32 %v4134, %v4575
        %v4594 = vmul.f32 %v4157, %v4575
        %v4595 = vmul.f32 %v4135, %v4575
        %v4596 = vmul.f32 %v4158, %v4575
        %v4597 = vmul.f32 %v4136, %v4575
        %v4598 = vmul.f32 %v4159, %v4575
        %v4599 = vmul.f32 %v4137, %v4575
        %v4600 = vmul.f32 %v4160, %v4575
        %v4601 = vmul.f32 %v4138, %v4575
        %v4602 = vmul.f32 %v4161, %v4575
        %v4603 = vmul.f32 %v4139, %v4575
        %v4604 = vmul.f32 %v4162, %v4575
        %v4605 = vmul.f32 %v4140, %v4575
        %v4606 = vmul.f32 %v4163, %v4575
        %v4607 = vmul.f32 %v4141, %v4575
        %v4608 = vadd.f32 %v4540, %v4576
        %v4609 = vadd.f32 %v4541, %v4577
        %v4610 = vadd.f32 %v4542, %v4578
        %v4611 = vadd.f32 %v4543, %v4579
        %v4612 = vadd.f32 %v4544, %v4580
        %v4613 = vadd.f32 %v4545, %v4581
        %v4614 = vadd.f32 %v4546, %v4582
        %v4615 = vadd.f32 %v4547, %v4583
        %v4616 = vadd.f32 %v4548, %v4584
        %v4617 = vadd.f32 %v4549, %v4585
        %v4618 = vadd.f32 %v4550, %v4586
        %v4619 = vadd.f32 %v4551, %v4587
        %v4620 = vadd.f32 %v4552, %v4588
        %v4621 = vadd.f32 %v4553, %v4589
        %v4622 = vadd.f32 %v4554, %v4590
        %v4623 = vadd.f32 %v4555, %v4591
        %v4624 = vadd.f32 %v4556, %v4592
        %v4625 = vadd.f32 %v4557, %v4593
        %v4626 = vadd.f32 %v4558, %v4594
        %v4627 = vadd.f32 %v4559, %v4595
        %v4628 = vadd.f32 %v4560, %v4596
        %v4629 = vadd.f32 %v4561, %v4597
        %v4630 = vadd.f32 %v4562, %v4598
        %v4631 = vadd.f32 %v4563, %v4599
        %v4632 = vadd.f32 %v4564, %v4600
        %v4633 = vadd.f32 %v4565, %v4601
        %v4634 = vadd.f32 %v4566, %v4602
        %v4635 = vadd.f32 %v4567, %v4603
        %v4636 = vadd.f32 %v4568, %v4604
        %v4637 = vadd.f32 %v4569, %v4605
        %v4638 = vadd.f32 %v4570, %v4606
        %v4639 = vadd.f32 %v4571, %v4607
        %v4640 = vld [vmem:[%s2] sm:$0x1]
        %v4642 = vlaneseq
        %v4643 = vshrl.u32 %v4642, 7
        %v4644 = vsub.s32 0, %v4643
        %v4645 = vrot.slane %v4640, %v4644
        %v4647 = vadd.f32 %v4608, %v4645
        %v4648 = vadd.f32 %v4609, %v4645
        %v4649 = vadd.f32 %v4610, %v4645
        %v4650 = vadd.f32 %v4611, %v4645
        %v4651 = vadd.f32 %v4612, %v4645
        %v4652 = vadd.f32 %v4613, %v4645
        %v4653 = vadd.f32 %v4614, %v4645
        %v4654 = vadd.f32 %v4615, %v4645
        %v4655 = vadd.f32 %v4616, %v4645
        %v4656 = vadd.f32 %v4617, %v4645
        %v4657 = vadd.f32 %v4618, %v4645
        %v4658 = vadd.f32 %v4619, %v4645
        %v4659 = vadd.f32 %v4620, %v4645
        %v4660 = vadd.f32 %v4621, %v4645
        %v4661 = vadd.f32 %v4622, %v4645
        %v4662 = vadd.f32 %v4623, %v4645
        %v4663 = vadd.f32 %v4624, %v4645
        %v4664 = vadd.f32 %v4625, %v4645
        %v4665 = vadd.f32 %v4626, %v4645
        %v4666 = vadd.f32 %v4627, %v4645
        %v4667 = vadd.f32 %v4628, %v4645
        %v4668 = vadd.f32 %v4629, %v4645
        %v4669 = vadd.f32 %v4630, %v4645
        %v4670 = vadd.f32 %v4631, %v4645
        %v4671 = vadd.f32 %v4632, %v4645
        %v4672 = vadd.f32 %v4633, %v4645
        %v4673 = vadd.f32 %v4634, %v4645
        %v4674 = vadd.f32 %v4635, %v4645
        %v4675 = vadd.f32 %v4636, %v4645
        %v4676 = vadd.f32 %v4637, %v4645
        %v4677 = vadd.f32 %v4638, %v4645
        %v4678 = vadd.f32 %v4639, %v4645
        %4679 = vadd.xlane.f32.xlu0 %v4647
        %v4680 = vpop.xlane.xlu0 %4679
        %4681 = vadd.xlane.f32.xlu0 %v4648
        %v4682 = vpop.xlane.xlu0 %4681
        %4683 = vadd.xlane.f32.xlu0 %v4649
        %v4684 = vpop.xlane.xlu0 %4683
        %4685 = vadd.xlane.f32.xlu0 %v4650
        %v4686 = vpop.xlane.xlu0 %4685
        %4687 = vadd.xlane.f32.xlu0 %v4651
        %v4688 = vpop.xlane.xlu0 %4687
        %4689 = vadd.xlane.f32.xlu0 %v4652
        %v4690 = vpop.xlane.xlu0 %4689
        %4691 = vadd.xlane.f32.xlu0 %v4653
        %v4692 = vpop.xlane.xlu0 %4691
        %4693 = vadd.xlane.f32.xlu0 %v4654
        %v4694 = vpop.xlane.xlu0 %4693
        %4695 = vadd.xlane.f32.xlu0 %v4655
        %v4696 = vpop.xlane.xlu0 %4695
        %4697 = vadd.xlane.f32.xlu0 %v4656
        %v4698 = vpop.xlane.xlu0 %4697
        %4699 = vadd.xlane.f32.xlu0 %v4657
        %v4700 = vpop.xlane.xlu0 %4699
        %4701 = vadd.xlane.f32.xlu0 %v4658
        %v4702 = vpop.xlane.xlu0 %4701
        %4703 = vadd.xlane.f32.xlu0 %v4659
        %v4704 = vpop.xlane.xlu0 %4703
        %4705 = vadd.xlane.f32.xlu0 %v4660
        %v4706 = vpop.xlane.xlu0 %4705
        %4707 = vadd.xlane.f32.xlu0 %v4661
        %v4708 = vpop.xlane.xlu0 %4707
        %4709 = vadd.xlane.f32.xlu0 %v4662
        %v4710 = vpop.xlane.xlu0 %4709
        %4711 = vadd.xlane.f32.xlu0 %v4663
        %v4712 = vpop.xlane.xlu0 %4711
        %4713 = vadd.xlane.f32.xlu0 %v4664
        %v4714 = vpop.xlane.xlu0 %4713
        %4715 = vadd.xlane.f32.xlu0 %v4665
        %v4716 = vpop.xlane.xlu0 %4715
        %4717 = vadd.xlane.f32.xlu0 %v4666
        %v4718 = vpop.xlane.xlu0 %4717
        %4719 = vadd.xlane.f32.xlu0 %v4667
        %v4720 = vpop.xlane.xlu0 %4719
        %4721 = vadd.xlane.f32.xlu0 %v4668
        %v4722 = vpop.xlane.xlu0 %4721
        %4723 = vadd.xlane.f32.xlu0 %v4669
        %v4724 = vpop.xlane.xlu0 %4723
        %4725 = vadd.xlane.f32.xlu0 %v4670
        %v4726 = vpop.xlane.xlu0 %4725
        %4727 = vadd.xlane.f32.xlu0 %v4671
        %v4728 = vpop.xlane.xlu0 %4727
        %4729 = vadd.xlane.f32.xlu0 %v4672
        %v4730 = vpop.xlane.xlu0 %4729
        %4731 = vadd.xlane.f32.xlu0 %v4673
        %v4732 = vpop.xlane.xlu0 %4731
        %4733 = vadd.xlane.f32.xlu0 %v4674
        %v4734 = vpop.xlane.xlu0 %4733
        %4735 = vadd.xlane.f32.xlu0 %v4675
        %v4736 = vpop.xlane.xlu0 %4735
        %4737 = vadd.xlane.f32.xlu0 %v4676
        %v4738 = vpop.xlane.xlu0 %4737
        %4739 = vadd.xlane.f32.xlu0 %v4677
        %v4740 = vpop.xlane.xlu0 %4739
        %4741 = vadd.xlane.f32.xlu0 %v4678
        %v4742 = vpop.xlane.xlu0 %4741
        %v4743 = vrcp.pop 128.0
        %v4744 = vmul.f32 %v4680, %v4743
        %v4745 = vmul.f32 %v4682, %v4743
        %v4746 = vmul.f32 %v4684, %v4743
        %v4747 = vmul.f32 %v4686, %v4743
        %v4748 = vmul.f32 %v4688, %v4743
        %v4749 = vmul.f32 %v4690, %v4743
        %v4750 = vmul.f32 %v4692, %v4743
        %v4751 = vmul.f32 %v4694, %v4743
        %v4752 = vmul.f32 %v4696, %v4743
        %v4753 = vmul.f32 %v4698, %v4743
        %v4754 = vmul.f32 %v4700, %v4743
        %v4755 = vmul.f32 %v4702, %v4743
        %v4756 = vmul.f32 %v4704, %v4743
        %v4757 = vmul.f32 %v4706, %v4743
        %v4758 = vmul.f32 %v4708, %v4743
        %v4759 = vmul.f32 %v4710, %v4743
        %v4760 = vmul.f32 %v4712, %v4743
        %v4761 = vmul.f32 %v4714, %v4743
        %v4762 = vmul.f32 %v4716, %v4743
        %v4763 = vmul.f32 %v4718, %v4743
        %v4764 = vmul.f32 %v4720, %v4743
        %v4765 = vmul.f32 %v4722, %v4743
        %v4766 = vmul.f32 %v4724, %v4743
        %v4767 = vmul.f32 %v4726, %v4743
        %v4768 = vmul.f32 %v4728, %v4743
        %v4769 = vmul.f32 %v4730, %v4743
        %v4770 = vmul.f32 %v4732, %v4743
        %v4771 = vmul.f32 %v4734, %v4743
        %v4772 = vmul.f32 %v4736, %v4743
        %v4773 = vmul.f32 %v4738, %v4743
        %v4774 = vmul.f32 %v4740, %v4743
        %v4775 = vmul.f32 %v4742, %v4743
        %v4776 = vsub.f32 %v4647, %v4744
        %v4777 = vsub.f32 %v4648, %v4745
        %v4778 = vsub.f32 %v4649, %v4746
        %v4779 = vsub.f32 %v4650, %v4747
        %v4780 = vsub.f32 %v4651, %v4748
        %v4781 = vsub.f32 %v4652, %v4749
        %v4782 = vsub.f32 %v4653, %v4750
        %v4783 = vsub.f32 %v4654, %v4751
        %v4784 = vsub.f32 %v4655, %v4752
        %v4785 = vsub.f32 %v4656, %v4753
        %v4786 = vsub.f32 %v4657, %v4754
        %v4787 = vsub.f32 %v4658, %v4755
        %v4788 = vsub.f32 %v4659, %v4756
        %v4789 = vsub.f32 %v4660, %v4757
        %v4790 = vsub.f32 %v4661, %v4758
        %v4791 = vsub.f32 %v4662, %v4759
        %v4792 = vsub.f32 %v4663, %v4760
        %v4793 = vsub.f32 %v4664, %v4761
        %v4794 = vsub.f32 %v4665, %v4762
        %v4795 = vsub.f32 %v4666, %v4763
        %v4796 = vsub.f32 %v4667, %v4764
        %v4797 = vsub.f32 %v4668, %v4765
        %v4798 = vsub.f32 %v4669, %v4766
        %v4799 = vsub.f32 %v4670, %v4767
        %v4800 = vsub.f32 %v4671, %v4768
        %v4801 = vsub.f32 %v4672, %v4769
        %v4802 = vsub.f32 %v4673, %v4770
        %v4803 = vsub.f32 %v4674, %v4771
        %v4804 = vsub.f32 %v4675, %v4772
        %v4805 = vsub.f32 %v4676, %v4773
        %v4806 = vsub.f32 %v4677, %v4774
        %v4807 = vsub.f32 %v4678, %v4775
        %v4808 = vmul.f32 %v4776, %v4776
        %v4809 = vmul.f32 %v4777, %v4777
        %v4810 = vmul.f32 %v4778, %v4778
        %v4811 = vmul.f32 %v4779, %v4779
        %v4812 = vmul.f32 %v4780, %v4780
        %v4813 = vmul.f32 %v4781, %v4781
        %v4814 = vmul.f32 %v4782, %v4782
        %v4815 = vmul.f32 %v4783, %v4783
        %v4816 = vmul.f32 %v4784, %v4784
        %v4817 = vmul.f32 %v4785, %v4785
        %v4818 = vmul.f32 %v4786, %v4786
        %v4819 = vmul.f32 %v4787, %v4787
        %v4820 = vmul.f32 %v4788, %v4788
        %v4821 = vmul.f32 %v4789, %v4789
        %v4822 = vmul.f32 %v4790, %v4790
        %v4823 = vmul.f32 %v4791, %v4791
        %v4824 = vmul.f32 %v4792, %v4792
        %v4825 = vmul.f32 %v4793, %v4793
        %v4826 = vmul.f32 %v4794, %v4794
        %v4827 = vmul.f32 %v4795, %v4795
        %v4828 = vmul.f32 %v4796, %v4796
        %v4829 = vmul.f32 %v4797, %v4797
        %v4830 = vmul.f32 %v4798, %v4798
        %v4831 = vmul.f32 %v4799, %v4799
        %v4832 = vmul.f32 %v4800, %v4800
        %v4833 = vmul.f32 %v4801, %v4801
        %v4834 = vmul.f32 %v4802, %v4802
        %v4835 = vmul.f32 %v4803, %v4803
        %v4836 = vmul.f32 %v4804, %v4804
        %v4837 = vmul.f32 %v4805, %v4805
        %v4838 = vmul.f32 %v4806, %v4806
        %v4839 = vmul.f32 %v4807, %v4807
        %4840 = vadd.xlane.f32.xlu0 %v4808
        %v4841 = vpop.xlane.xlu0 %4840
        %4842 = vadd.xlane.f32.xlu0 %v4809
        %v4843 = vpop.xlane.xlu0 %4842
        %4844 = vadd.xlane.f32.xlu0 %v4810
        %v4845 = vpop.xlane.xlu0 %4844
        %4846 = vadd.xlane.f32.xlu0 %v4811
        %v4847 = vpop.xlane.xlu0 %4846
        %4848 = vadd.xlane.f32.xlu0 %v4812
        %v4849 = vpop.xlane.xlu0 %4848
        %4850 = vadd.xlane.f32.xlu0 %v4813
        %v4851 = vpop.xlane.xlu0 %4850
        %4852 = vadd.xlane.f32.xlu0 %v4814
        %v4853 = vpop.xlane.xlu0 %4852
        %4854 = vadd.xlane.f32.xlu0 %v4815
        %v4855 = vpop.xlane.xlu0 %4854
        %4856 = vadd.xlane.f32.xlu0 %v4816
        %v4857 = vpop.xlane.xlu0 %4856
        %4858 = vadd.xlane.f32.xlu0 %v4817
        %v4859 = vpop.xlane.xlu0 %4858
        %4860 = vadd.xlane.f32.xlu0 %v4818
        %v4861 = vpop.xlane.xlu0 %4860
        %4862 = vadd.xlane.f32.xlu0 %v4819
        %v4863 = vpop.xlane.xlu0 %4862
        %4864 = vadd.xlane.f32.xlu0 %v4820
        %v4865 = vpop.xlane.xlu0 %4864
        %4866 = vadd.xlane.f32.xlu0 %v4821
        %v4867 = vpop.xlane.xlu0 %4866
        %4868 = vadd.xlane.f32.xlu0 %v4822
        %v4869 = vpop.xlane.xlu0 %4868
        %4870 = vadd.xlane.f32.xlu0 %v4823
        %v4871 = vpop.xlane.xlu0 %4870
        %4872 = vadd.xlane.f32.xlu0 %v4824
        %v4873 = vpop.xlane.xlu0 %4872
        %4874 = vadd.xlane.f32.xlu0 %v4825
        %v4875 = vpop.xlane.xlu0 %4874
        %4876 = vadd.xlane.f32.xlu0 %v4826
        %v4877 = vpop.xlane.xlu0 %4876
        %4878 = vadd.xlane.f32.xlu0 %v4827
        %v4879 = vpop.xlane.xlu0 %4878
        %4880 = vadd.xlane.f32.xlu0 %v4828
        %v4881 = vpop.xlane.xlu0 %4880
        %4882 = vadd.xlane.f32.xlu0 %v4829
        %v4883 = vpop.xlane.xlu0 %4882
        %4884 = vadd.xlane.f32.xlu0 %v4830
        %v4885 = vpop.xlane.xlu0 %4884
        %4886 = vadd.xlane.f32.xlu0 %v4831
        %v4887 = vpop.xlane.xlu0 %4886
        %4888 = vadd.xlane.f32.xlu0 %v4832
        %v4889 = vpop.xlane.xlu0 %4888
        %4890 = vadd.xlane.f32.xlu0 %v4833
        %v4891 = vpop.xlane.xlu0 %4890
        %4892 = vadd.xlane.f32.xlu0 %v4834
        %v4893 = vpop.xlane.xlu0 %4892
        %4894 = vadd.xlane.f32.xlu0 %v4835
        %v4895 = vpop.xlane.xlu0 %4894
        %4896 = vadd.xlane.f32.xlu0 %v4836
        %v4897 = vpop.xlane.xlu0 %4896
        %4898 = vadd.xlane.f32.xlu0 %v4837
        %v4899 = vpop.xlane.xlu0 %4898
        %4900 = vadd.xlane.f32.xlu0 %v4838
        %v4901 = vpop.xlane.xlu0 %4900
        %4902 = vadd.xlane.f32.xlu0 %v4839
        %v4903 = vpop.xlane.xlu0 %4902
        %v4904 = vmul.f32 %v4841, %v4743
        %v4905 = vmul.f32 %v4843, %v4743
        %v4906 = vmul.f32 %v4845, %v4743
        %v4907 = vmul.f32 %v4847, %v4743
        %v4908 = vmul.f32 %v4849, %v4743
        %v4909 = vmul.f32 %v4851, %v4743
        %v4910 = vmul.f32 %v4853, %v4743
        %v4911 = vmul.f32 %v4855, %v4743
        %v4912 = vmul.f32 %v4857, %v4743
        %v4913 = vmul.f32 %v4859, %v4743
        %v4914 = vmul.f32 %v4861, %v4743
        %v4915 = vmul.f32 %v4863, %v4743
        %v4916 = vmul.f32 %v4865, %v4743
        %v4917 = vmul.f32 %v4867, %v4743
        %v4918 = vmul.f32 %v4869, %v4743
        %v4919 = vmul.f32 %v4871, %v4743
        %v4920 = vmul.f32 %v4873, %v4743
        %v4921 = vmul.f32 %v4875, %v4743
        %v4922 = vmul.f32 %v4877, %v4743
        %v4923 = vmul.f32 %v4879, %v4743
        %v4924 = vmul.f32 %v4881, %v4743
        %v4925 = vmul.f32 %v4883, %v4743
        %v4926 = vmul.f32 %v4885, %v4743
        %v4927 = vmul.f32 %v4887, %v4743
        %v4928 = vmul.f32 %v4889, %v4743
        %v4929 = vmul.f32 %v4891, %v4743
        %v4930 = vmul.f32 %v4893, %v4743
        %v4931 = vmul.f32 %v4895, %v4743
        %v4932 = vmul.f32 %v4897, %v4743
        %v4933 = vmul.f32 %v4899, %v4743
        %v4934 = vmul.f32 %v4901, %v4743
        %v4935 = vmul.f32 %v4903, %v4743
        %v4936 = vadd.f32 %v4904, 1e-06
        %v4937 = vadd.f32 %v4905, 1e-06
        %v4938 = vadd.f32 %v4906, 1e-06
        %v4939 = vadd.f32 %v4907, 1e-06
        %v4940 = vadd.f32 %v4908, 1e-06
        %v4941 = vadd.f32 %v4909, 1e-06
        %v4942 = vadd.f32 %v4910, 1e-06
        %v4943 = vadd.f32 %v4911, 1e-06
        %v4944 = vadd.f32 %v4912, 1e-06
        %v4945 = vadd.f32 %v4913, 1e-06
        %v4946 = vadd.f32 %v4914, 1e-06
        %v4947 = vadd.f32 %v4915, 1e-06
        %v4948 = vadd.f32 %v4916, 1e-06
        %v4949 = vadd.f32 %v4917, 1e-06
        %v4950 = vadd.f32 %v4918, 1e-06
        %v4951 = vadd.f32 %v4919, 1e-06
        %v4952 = vadd.f32 %v4920, 1e-06
        %v4953 = vadd.f32 %v4921, 1e-06
        %v4954 = vadd.f32 %v4922, 1e-06
        %v4955 = vadd.f32 %v4923, 1e-06
        %v4956 = vadd.f32 %v4924, 1e-06
        %v4957 = vadd.f32 %v4925, 1e-06
        %v4958 = vadd.f32 %v4926, 1e-06
        %v4959 = vadd.f32 %v4927, 1e-06
        %v4960 = vadd.f32 %v4928, 1e-06
        %v4961 = vadd.f32 %v4929, 1e-06
        %v4962 = vadd.f32 %v4930, 1e-06
        %v4963 = vadd.f32 %v4931, 1e-06
        %v4964 = vadd.f32 %v4932, 1e-06
        %v4965 = vadd.f32 %v4933, 1e-06
        %v4966 = vadd.f32 %v4934, 1e-06
        %v4967 = vadd.f32 %v4935, 1e-06
        %v4968 = vrsqrt.pop %v4936
        %v4969 = vrsqrt.pop %v4937
        %v4970 = vrsqrt.pop %v4938
        %v4971 = vrsqrt.pop %v4939
        %v4972 = vrsqrt.pop %v4940
        %v4973 = vrsqrt.pop %v4941
        %v4974 = vrsqrt.pop %v4942
        %v4975 = vrsqrt.pop %v4943
        %v4976 = vrsqrt.pop %v4944
        %v4977 = vrsqrt.pop %v4945
        %v4978 = vrsqrt.pop %v4946
        %v4979 = vrsqrt.pop %v4947
        %v4980 = vrsqrt.pop %v4948
        %v4981 = vrsqrt.pop %v4949
        %v4982 = vrsqrt.pop %v4950
        %v4983 = vrsqrt.pop %v4951
        %v4984 = vrsqrt.pop %v4952
        %v4985 = vrsqrt.pop %v4953
        %v4986 = vrsqrt.pop %v4954
        %v4987 = vrsqrt.pop %v4955
        %v4988 = vrsqrt.pop %v4956
        %v4989 = vrsqrt.pop %v4957
        %v4990 = vrsqrt.pop %v4958
        %v4991 = vrsqrt.pop %v4959
        %v4992 = vrsqrt.pop %v4960
        %v4993 = vrsqrt.pop %v4961
        %v4994 = vrsqrt.pop %v4962
        %v4995 = vrsqrt.pop %v4963
        %v4996 = vrsqrt.pop %v4964
        %v4997 = vrsqrt.pop %v4965
        %v4998 = vrsqrt.pop %v4966
        %v4999 = vrsqrt.pop %v4967
        %v5000 = vmul.f32 %v4776, %v4968
        %v5001 = vmul.f32 %v4777, %v4969
        %v5002 = vmul.f32 %v4778, %v4970
        %v5003 = vmul.f32 %v4779, %v4971
        %v5004 = vmul.f32 %v4780, %v4972
        %v5005 = vmul.f32 %v4781, %v4973
        %v5006 = vmul.f32 %v4782, %v4974
        %v5007 = vmul.f32 %v4783, %v4975
        %v5008 = vmul.f32 %v4784, %v4976
        %v5009 = vmul.f32 %v4785, %v4977
        %v5010 = vmul.f32 %v4786, %v4978
        %v5011 = vmul.f32 %v4787, %v4979
        %v5012 = vmul.f32 %v4788, %v4980
        %v5013 = vmul.f32 %v4789, %v4981
        %v5014 = vmul.f32 %v4790, %v4982
        %v5015 = vmul.f32 %v4791, %v4983
        %v5016 = vmul.f32 %v4792, %v4984
        %v5017 = vmul.f32 %v4793, %v4985
        %v5018 = vmul.f32 %v4794, %v4986
        %v5019 = vmul.f32 %v4795, %v4987
        %v5020 = vmul.f32 %v4796, %v4988
        %v5021 = vmul.f32 %v4797, %v4989
        %v5022 = vmul.f32 %v4798, %v4990
        %v5023 = vmul.f32 %v4799, %v4991
        %v5024 = vmul.f32 %v4800, %v4992
        %v5025 = vmul.f32 %v4801, %v4993
        %v5026 = vmul.f32 %v4802, %v4994
        %v5027 = vmul.f32 %v4803, %v4995
        %v5028 = vmul.f32 %v4804, %v4996
        %v5029 = vmul.f32 %v4805, %v4997
        %v5030 = vmul.f32 %v4806, %v4998
        %v5031 = vmul.f32 %v4807, %v4999
        %v5032 = vld [vmem:[%s3] sm:$0x1]
        %v5034 = vlaneseq
        %v5035 = vshrl.u32 %v5034, 7
        %v5036 = vsub.s32 0, %v5035
        %v5037 = vrot.slane %v5032, %v5036
        %v5039 = vmul.f32 %v5000, %v5037
        %v5040 = vmul.f32 %v5001, %v5037
        %v5041 = vmul.f32 %v5002, %v5037
        %v5042 = vmul.f32 %v5003, %v5037
        %v5043 = vmul.f32 %v5004, %v5037
        %v5044 = vmul.f32 %v5005, %v5037
        %v5045 = vmul.f32 %v5006, %v5037
        %v5046 = vmul.f32 %v5007, %v5037
        %v5047 = vmul.f32 %v5008, %v5037
        %v5048 = vmul.f32 %v5009, %v5037
        %v5049 = vmul.f32 %v5010, %v5037
        %v5050 = vmul.f32 %v5011, %v5037
        %v5051 = vmul.f32 %v5012, %v5037
        %v5052 = vmul.f32 %v5013, %v5037
        %v5053 = vmul.f32 %v5014, %v5037
        %v5054 = vmul.f32 %v5015, %v5037
        %v5055 = vmul.f32 %v5016, %v5037
        %v5056 = vmul.f32 %v5017, %v5037
        %v5057 = vmul.f32 %v5018, %v5037
        %v5058 = vmul.f32 %v5019, %v5037
        %v5059 = vmul.f32 %v5020, %v5037
        %v5060 = vmul.f32 %v5021, %v5037
        %v5061 = vmul.f32 %v5022, %v5037
        %v5062 = vmul.f32 %v5023, %v5037
        %v5063 = vmul.f32 %v5024, %v5037
        %v5064 = vmul.f32 %v5025, %v5037
        %v5065 = vmul.f32 %v5026, %v5037
        %v5066 = vmul.f32 %v5027, %v5037
        %v5067 = vmul.f32 %v5028, %v5037
        %v5068 = vmul.f32 %v5029, %v5037
        %v5069 = vmul.f32 %v5030, %v5037
        %v5070 = vmul.f32 %v5031, %v5037
        %v5071 = vld [vmem:[%s4] sm:$0x1]
        %v5073 = vlaneseq
        %v5074 = vshrl.u32 %v5073, 7
        %v5075 = vsub.s32 0, %v5074
        %v5076 = vrot.slane %v5071, %v5075
        %v5078 = vadd.f32 %v5039, %v5076
        %v5079 = vadd.f32 %v5040, %v5076
        %v5080 = vadd.f32 %v5041, %v5076
        %v5081 = vadd.f32 %v5042, %v5076
        %v5082 = vadd.f32 %v5043, %v5076
        %v5083 = vadd.f32 %v5044, %v5076
        %v5084 = vadd.f32 %v5045, %v5076
        %v5085 = vadd.f32 %v5046, %v5076
        %v5086 = vadd.f32 %v5047, %v5076
        %v5087 = vadd.f32 %v5048, %v5076
        %v5088 = vadd.f32 %v5049, %v5076
        %v5089 = vadd.f32 %v5050, %v5076
        %v5090 = vadd.f32 %v5051, %v5076
        %v5091 = vadd.f32 %v5052, %v5076
        %v5092 = vadd.f32 %v5053, %v5076
        %v5093 = vadd.f32 %v5054, %v5076
        %v5094 = vadd.f32 %v5055, %v5076
        %v5095 = vadd.f32 %v5056, %v5076
        %v5096 = vadd.f32 %v5057, %v5076
        %v5097 = vadd.f32 %v5058, %v5076
        %v5098 = vadd.f32 %v5059, %v5076
        %v5099 = vadd.f32 %v5060, %v5076
        %v5100 = vadd.f32 %v5061, %v5076
        %v5101 = vadd.f32 %v5062, %v5076
        %v5102 = vadd.f32 %v5063, %v5076
        %v5103 = vadd.f32 %v5064, %v5076
        %v5104 = vadd.f32 %v5065, %v5076
        %v5105 = vadd.f32 %v5066, %v5076
        %v5106 = vadd.f32 %v5067, %v5076
        %v5107 = vadd.f32 %v5068, %v5076
        %v5108 = vadd.f32 %v5069, %v5076
        %v5109 = vadd.f32 %v5070, %v5076
        %v5110 = vpack.c.bf16 %v5079, %v5078
        %v5111 = vpack.c.bf16 %v5081, %v5080
        %v5112 = vpack.c.bf16 %v5083, %v5082
        %v5113 = vpack.c.bf16 %v5085, %v5084
        %v5114 = vpack.c.bf16 %v5087, %v5086
        %v5115 = vpack.c.bf16 %v5089, %v5088
        %v5116 = vpack.c.bf16 %v5091, %v5090
        %v5117 = vpack.c.bf16 %v5093, %v5092
        %v5118 = vpack.c.bf16 %v5095, %v5094
        %v5119 = vpack.c.bf16 %v5097, %v5096
        %v5120 = vpack.c.bf16 %v5099, %v5098
        %v5121 = vpack.c.bf16 %v5101, %v5100
        %v5122 = vpack.c.bf16 %v5103, %v5102
        %v5123 = vpack.c.bf16 %v5105, %v5104
        %v5124 = vpack.c.bf16 %v5107, %v5106
        %v5125 = vpack.c.bf16 %v5109, %v5108
        %v5126 = vld [vmem:[#allocation8] sm:$0xff]
        %v5127 = vld [vmem:[#allocation8 + $0x8] sm:$0xff]
        %v5128 = vld [vmem:[#allocation8 + $0x10] sm:$0xff]
        %v5129 = vld [vmem:[#allocation8 + $0x18] sm:$0xff]
        %v5130 = vld [vmem:[#allocation8 + $0x20] sm:$0xff]
        %v5131 = vld [vmem:[#allocation8 + $0x28] sm:$0xff]
        %v5132 = vld [vmem:[#allocation8 + $0x30] sm:$0xff]
        %v5133 = vld [vmem:[#allocation8 + $0x38] sm:$0xff]
        %v5134 = vld [vmem:[#allocation8 + $0x40] sm:$0xff]
        %v5135 = vld [vmem:[#allocation8 + $0x48] sm:$0xff]
        %v5136 = vld [vmem:[#allocation8 + $0x50] sm:$0xff]
        %v5137 = vld [vmem:[#allocation8 + $0x58] sm:$0xff]
        %v5138 = vld [vmem:[#allocation8 + $0x60] sm:$0xff]
        %v5139 = vld [vmem:[#allocation8 + $0x68] sm:$0xff]
        %v5140 = vld [vmem:[#allocation8 + $0x70] sm:$0xff]
        %v5141 = vld [vmem:[#allocation8 + $0x78] sm:$0xff]
        %v5142 = vld [vmem:[%s6] sm:$0x3]
        %v5144 = vlaneseq
        %v5145 = vshrl.u32 %v5144, 7
        %v5146 = vsub.s32 0, %v5145
        %v5147 = vrot.slane %v5142, %v5146
        %v5148 = vlaneseq
        %v5149 = vshrl.u32 %v5148, 7
        %v5150 = vsub.s32 1, %v5149
        %v5151 = vrot.slane %v5142, %v5150
        %v5170 = vunpack.c.l.b16 %v5126
        %v5171 = vunpack.c.h.b16 %v5126
        %v5172 = vunpack.c.l.b16 %v5127
        %v5173 = vunpack.c.h.b16 %v5127
        %v5174 = vunpack.c.l.b16 %v5128
        %v5175 = vunpack.c.h.b16 %v5128
        %v5176 = vunpack.c.l.b16 %v5129
        %v5177 = vunpack.c.h.b16 %v5129
        %v5178 = vunpack.c.l.b16 %v5130
        %v5179 = vunpack.c.h.b16 %v5130
        %v5180 = vunpack.c.l.b16 %v5131
        %v5181 = vunpack.c.h.b16 %v5131
        %v5182 = vunpack.c.l.b16 %v5132
        %v5183 = vunpack.c.h.b16 %v5132
        %v5184 = vunpack.c.l.b16 %v5133
        %v5185 = vunpack.c.h.b16 %v5133
        %v5186 = vunpack.c.l.b16 %v5134
        %v5187 = vunpack.c.h.b16 %v5134
        %v5188 = vunpack.c.l.b16 %v5135
        %v5189 = vunpack.c.h.b16 %v5135
        %v5190 = vunpack.c.l.b16 %v5136
        %v5191 = vunpack.c.h.b16 %v5136
        %v5192 = vunpack.c.l.b16 %v5137
        %v5193 = vunpack.c.h.b16 %v5137
        %v5194 = vunpack.c.l.b16 %v5138
        %v5195 = vunpack.c.h.b16 %v5138
        %v5196 = vunpack.c.l.b16 %v5139
        %v5197 = vunpack.c.h.b16 %v5139
        %v5198 = vunpack.c.l.b16 %v5140
        %v5199 = vunpack.c.h.b16 %v5140
        %v5200 = vunpack.c.l.b16 %v5141
        %v5201 = vunpack.c.h.b16 %v5141
        %v5202 = vpack.c.b16 %v5172, %v5170
        %v5203 = vpack.c.b16 %v5173, %v5171
        %v5204 = vpack.c.b16 %v5176, %v5174
        %v5205 = vpack.c.b16 %v5177, %v5175
        %v5206 = vpack.c.b16 %v5180, %v5178
        %v5207 = vpack.c.b16 %v5181, %v5179
        %v5208 = vpack.c.b16 %v5184, %v5182
        %v5209 = vpack.c.b16 %v5185, %v5183
        %v5210 = vpack.c.b16 %v5188, %v5186
        %v5211 = vpack.c.b16 %v5189, %v5187
        %v5212 = vpack.c.b16 %v5192, %v5190
        %v5213 = vpack.c.b16 %v5193, %v5191
        %v5214 = vpack.c.b16 %v5196, %v5194
        %v5215 = vpack.c.b16 %v5197, %v5195
        %v5216 = vpack.c.b16 %v5200, %v5198
        %v5217 = vpack.c.b16 %v5201, %v5199
        %5234 = vmatprep.subr.bf16.mxu0 %v5203
        %5235 = vmatpush1.bf16.msra.mxu0 %v5202
        %5236 = vmatprep.subr.bf16.mxu0 %v5205
        %5237 = vmatpush1.bf16.msra.mxu0 %v5204
        %5238 = vmatprep.subr.bf16.mxu0 %v5207
        %5239 = vmatpush1.bf16.msra.mxu0 %v5206
        %5240 = vmatprep.subr.bf16.mxu0 %v5209
        %5241 = vmatpush1.bf16.msra.mxu0 %v5208
        %5242 = vmatprep.subr.bf16.mxu0 %v5211
        %5243 = vmatpush1.bf16.msra.mxu0 %v5210
        %5244 = vmatprep.subr.bf16.mxu0 %v5213
        %5245 = vmatpush1.bf16.msra.mxu0 %v5212
        %5246 = vmatprep.subr.bf16.mxu0 %v5215
        %5247 = vmatpush1.bf16.msra.mxu0 %v5214
        %5248 = vmatprep.subr.bf16.mxu0 %v5217
        %5249 = vmatpush1.bf16.msra.mxu0 %v5216
        %5250 = vmatprep.subr.bf16.mxu0 0
        %5251 = vmatpush1.bf16.msra.mxu0 0
        %5252 = vmatprep.subr.bf16.mxu0 0
        %5253 = vmatpush1.bf16.msra.mxu0 0
        %5254 = vmatprep.subr.bf16.mxu0 0
        %5255 = vmatpush1.bf16.msra.mxu0 0
        %5256 = vmatprep.subr.bf16.mxu0 0
        %5257 = vmatpush1.bf16.msra.mxu0 0
        %5258 = vmatprep.subr.bf16.mxu0 0
        %5259 = vmatpush1.bf16.msra.mxu0 0
        %5260 = vmatprep.subr.bf16.mxu0 0
        %5261 = vmatpush1.bf16.msra.mxu0 0
        %5262 = vmatprep.subr.bf16.mxu0 0
        %5263 = vmatpush1.bf16.msra.mxu0 0
        %5264 = vmatprep.subr.bf16.mxu0 0
        %5265 = vmatpush1.bf16.msra.mxu0 0
        %5266 = vmatprep.mubr.bf16.mxu0 0
        %5267 = vmatmul.mubr.bf16.gmra.mrb[0].mxu0 %v5110
        %v5268 = vpop.f32.mrb[0].mxu0
        %v5269 = vadd.f32 %v5147, %v5268
        %v5270 = vpop.f32.mrb[0].mxu0
        %v5271 = vadd.f32 %v5151, %v5270
        %v5272 = vpop.f32.mrb[0].mxu0
        %v5273 = vadd.f32 %v5147, %v5272
        %v5274 = vpop.f32.mrb[0].mxu0
        %v5275 = vadd.f32 %v5151, %v5274
        %5276 = vmatprep.mubr.bf16.mxu0 0
        %5277 = vmatmul.mubr.bf16.gmra.mrb[0].mxu0 %v5111
        %v5278 = vpop.f32.mrb[0].mxu0
        %v5279 = vadd.f32 %v5147, %v5278
        %v5280 = vpop.f32.mrb[0].mxu0
        %v5281 = vadd.f32 %v5151, %v5280
        %v5282 = vpop.f32.mrb[0].mxu0
        %v5283 = vadd.f32 %v5147, %v5282
        %v5284 = vpop.f32.mrb[0].mxu0
        %v5285 = vadd.f32 %v5151, %v5284
        %5286 = vmatprep.mubr.bf16.mxu0 0
        %5287 = vmatmul.mubr.bf16.gmra.mrb[0].mxu0 %v5112
        %v5288 = vpop.f32.mrb[0].mxu0
        %v5289 = vadd.f32 %v5147, %v5288
        %v5290 = vpop.f32.mrb[0].mxu0
        %v5291 = vadd.f32 %v5151, %v5290
        %v5292 = vpop.f32.mrb[0].mxu0
        %v5293 = vadd.f32 %v5147, %v5292
        %v5294 = vpop.f32.mrb[0].mxu0
        %v5295 = vadd.f32 %v5151, %v5294
        %5296 = vmatprep.mubr.bf16.mxu0 0
        %5297 = vmatmul.mubr.bf16.gmra.mrb[0].mxu0 %v5113
        %v5298 = vpop.f32.mrb[0].mxu0
        %v5299 = vadd.f32 %v5147, %v5298
        %v5300 = vpop.f32.mrb[0].mxu0
        %v5301 = vadd.f32 %v5151, %v5300
        %v5302 = vpop.f32.mrb[0].mxu0
        %v5303 = vadd.f32 %v5147, %v5302
        %v5304 = vpop.f32.mrb[0].mxu0
        %v5305 = vadd.f32 %v5151, %v5304
        %5306 = vmatprep.mubr.bf16.mxu0 0
        %5307 = vmatmul.mubr.bf16.gmra.mrb[0].mxu0 %v5114
        %v5308 = vpop.f32.mrb[0].mxu0
        %v5309 = vadd.f32 %v5147, %v5308
        %v5310 = vpop.f32.mrb[0].mxu0
        %v5311 = vadd.f32 %v5151, %v5310
        %v5312 = vpop.f32.mrb[0].mxu0
        %v5313 = vadd.f32 %v5147, %v5312
        %v5314 = vpop.f32.mrb[0].mxu0
        %v5315 = vadd.f32 %v5151, %v5314
        %5316 = vmatprep.mubr.bf16.mxu0 0
        %5317 = vmatmul.mubr.bf16.gmra.mrb[0].mxu0 %v5115
        %v5318 = vpop.f32.mrb[0].mxu0
        %v5319 = vadd.f32 %v5147, %v5318
        %v5320 = vpop.f32.mrb[0].mxu0
        %v5321 = vadd.f32 %v5151, %v5320
        %v5322 = vpop.f32.mrb[0].mxu0
        %v5323 = vadd.f32 %v5147, %v5322
        %v5324 = vpop.f32.mrb[0].mxu0
        %v5325 = vadd.f32 %v5151, %v5324
        %5326 = vmatprep.mubr.bf16.mxu0 0
        %5327 = vmatmul.mubr.bf16.gmra.mrb[0].mxu0 %v5116
        %v5328 = vpop.f32.mrb[0].mxu0
        %v5329 = vadd.f32 %v5147, %v5328
        %v5330 = vpop.f32.mrb[0].mxu0
        %v5331 = vadd.f32 %v5151, %v5330
        %v5332 = vpop.f32.mrb[0].mxu0
        %v5333 = vadd.f32 %v5147, %v5332
        %v5334 = vpop.f32.mrb[0].mxu0
        %v5335 = vadd.f32 %v5151, %v5334
        %5336 = vmatprep.mubr.bf16.mxu0 0
        %5337 = vmatmul.mubr.bf16.gmra.mrb[0].mxu0 %v5117
        %v5338 = vpop.f32.mrb[0].mxu0
        %v5339 = vadd.f32 %v5147, %v5338
        %v5340 = vpop.f32.mrb[0].mxu0
        %v5341 = vadd.f32 %v5151, %v5340
        %v5342 = vpop.f32.mrb[0].mxu0
        %v5343 = vadd.f32 %v5147, %v5342
        %v5344 = vpop.f32.mrb[0].mxu0
        %v5345 = vadd.f32 %v5151, %v5344
        %5346 = vmatprep.mubr.bf16.mxu0 0
        %5347 = vmatmul.mubr.bf16.gmra.mrb[0].mxu0 %v5118
        %v5348 = vpop.f32.mrb[0].mxu0
        %v5349 = vadd.f32 %v5147, %v5348
        %v5350 = vpop.f32.mrb[0].mxu0
        %v5351 = vadd.f32 %v5151, %v5350
        %v5352 = vpop.f32.mrb[0].mxu0
        %v5353 = vadd.f32 %v5147, %v5352
        %v5354 = vpop.f32.mrb[0].mxu0
        %v5355 = vadd.f32 %v5151, %v5354
        %5356 = vmatprep.mubr.bf16.mxu0 0
        %5357 = vmatmul.mubr.bf16.gmra.mrb[0].mxu0 %v5119
        %v5358 = vpop.f32.mrb[0].mxu0
        %v5359 = vadd.f32 %v5147, %v5358
        %v5360 = vpop.f32.mrb[0].mxu0
        %v5361 = vadd.f32 %v5151, %v5360
        %v5362 = vpop.f32.mrb[0].mxu0
        %v5363 = vadd.f32 %v5147, %v5362
        %v5364 = vpop.f32.mrb[0].mxu0
        %v5365 = vadd.f32 %v5151, %v5364
        %5366 = vmatprep.mubr.bf16.mxu0 0
        %5367 = vmatmul.mubr.bf16.gmra.mrb[0].mxu0 %v5120
        %v5368 = vpop.f32.mrb[0].mxu0
        %v5369 = vadd.f32 %v5147, %v5368
        %v5370 = vpop.f32.mrb[0].mxu0
        %v5371 = vadd.f32 %v5151, %v5370
        %v5372 = vpop.f32.mrb[0].mxu0
        %v5373 = vadd.f32 %v5147, %v5372
        %v5374 = vpop.f32.mrb[0].mxu0
        %v5375 = vadd.f32 %v5151, %v5374
        %5376 = vmatprep.mubr.bf16.mxu0 0
        %5377 = vmatmul.mubr.bf16.gmra.mrb[0].mxu0 %v5121
        %v5378 = vpop.f32.mrb[0].mxu0
        %v5379 = vadd.f32 %v5147, %v5378
        %v5380 = vpop.f32.mrb[0].mxu0
        %v5381 = vadd.f32 %v5151, %v5380
        %v5382 = vpop.f32.mrb[0].mxu0
        %v5383 = vadd.f32 %v5147, %v5382
        %v5384 = vpop.f32.mrb[0].mxu0
        %v5385 = vadd.f32 %v5151, %v5384
        %5386 = vmatprep.mubr.bf16.mxu0 0
        %5387 = vmatmul.mubr.bf16.gmra.mrb[0].mxu0 %v5122
        %v5388 = vpop.f32.mrb[0].mxu0
        %v5389 = vadd.f32 %v5147, %v5388
        %v5390 = vpop.f32.mrb[0].mxu0
        %v5391 = vadd.f32 %v5151, %v5390
        %v5392 = vpop.f32.mrb[0].mxu0
        %v5393 = vadd.f32 %v5147, %v5392
        %v5394 = vpop.f32.mrb[0].mxu0
        %v5395 = vadd.f32 %v5151, %v5394
        %5396 = vmatprep.mubr.bf16.mxu0 0
        %5397 = vmatmul.mubr.bf16.gmra.mrb[0].mxu0 %v5123
        %v5398 = vpop.f32.mrb[0].mxu0
        %v5399 = vadd.f32 %v5147, %v5398
        %v5400 = vpop.f32.mrb[0].mxu0
        %v5401 = vadd.f32 %v5151, %v5400
        %v5402 = vpop.f32.mrb[0].mxu0
        %v5403 = vadd.f32 %v5147, %v5402
        %v5404 = vpop.f32.mrb[0].mxu0
        %v5405 = vadd.f32 %v5151, %v5404
        %5406 = vmatprep.mubr.bf16.mxu0 0
        %5407 = vmatmul.mubr.bf16.gmra.mrb[0].mxu0 %v5124
        %v5408 = vpop.f32.mrb[0].mxu0
        %v5409 = vadd.f32 %v5147, %v5408
        %v5410 = vpop.f32.mrb[0].mxu0
        %v5411 = vadd.f32 %v5151, %v5410
        %v5412 = vpop.f32.mrb[0].mxu0
        %v5413 = vadd.f32 %v5147, %v5412
        %v5414 = vpop.f32.mrb[0].mxu0
        %v5415 = vadd.f32 %v5151, %v5414
        %5416 = vmatprep.mubr.bf16.mxu0 0
        %5417 = vmatmul.mubr.bf16.gmra.mrb[0].mxu0 %v5125
        %v5418 = vpop.f32.mrb[0].mxu0
        %v5419 = vadd.f32 %v5147, %v5418
        %v5420 = vpop.f32.mrb[0].mxu0
        %v5421 = vadd.f32 %v5151, %v5420
        %v5422 = vpop.f32.mrb[0].mxu0
        %v5423 = vadd.f32 %v5147, %v5422
        %v5424 = vpop.f32.mrb[0].mxu0
        %v5425 = vadd.f32 %v5151, %v5424
        %5426 = vdwg.mxu0
        %v5427 = vmul.f32 %v5269, 0.5
        %v5428 = vmul.f32 %v5271, 0.5
        %v5429 = vmul.f32 %v5273, 0.5
        %v5430 = vmul.f32 %v5275, 0.5
        %v5431 = vmul.f32 %v5279, 0.5
        %v5432 = vmul.f32 %v5281, 0.5
        %v5433 = vmul.f32 %v5283, 0.5
        %v5434 = vmul.f32 %v5285, 0.5
        %v5435 = vmul.f32 %v5289, 0.5
        %v5436 = vmul.f32 %v5291, 0.5
        %v5437 = vmul.f32 %v5293, 0.5
        %v5438 = vmul.f32 %v5295, 0.5
        %v5439 = vmul.f32 %v5299, 0.5
        %v5440 = vmul.f32 %v5301, 0.5
        %v5441 = vmul.f32 %v5303, 0.5
        %v5442 = vmul.f32 %v5305, 0.5
        %v5443 = vmul.f32 %v5309, 0.5
        %v5444 = vmul.f32 %v5311, 0.5
        %v5445 = vmul.f32 %v5313, 0.5
        %v5446 = vmul.f32 %v5315, 0.5
        %v5447 = vmul.f32 %v5319, 0.5
        %v5448 = vmul.f32 %v5321, 0.5
        %v5449 = vmul.f32 %v5323, 0.5
        %v5450 = vmul.f32 %v5325, 0.5
        %v5451 = vmul.f32 %v5329, 0.5
        %v5452 = vmul.f32 %v5331, 0.5
        %v5453 = vmul.f32 %v5333, 0.5
        %v5454 = vmul.f32 %v5335, 0.5
        %v5455 = vmul.f32 %v5339, 0.5
        %v5456 = vmul.f32 %v5341, 0.5
        %v5457 = vmul.f32 %v5343, 0.5
        %v5458 = vmul.f32 %v5345, 0.5
        %v5459 = vmul.f32 %v5349, 0.5
        %v5460 = vmul.f32 %v5351, 0.5
        %v5461 = vmul.f32 %v5353, 0.5
        %v5462 = vmul.f32 %v5355, 0.5
        %v5463 = vmul.f32 %v5359, 0.5
        %v5464 = vmul.f32 %v5361, 0.5
        %v5465 = vmul.f32 %v5363, 0.5
        %v5466 = vmul.f32 %v5365, 0.5
        %v5467 = vmul.f32 %v5369, 0.5
        %v5468 = vmul.f32 %v5371, 0.5
        %v5469 = vmul.f32 %v5373, 0.5
        %v5470 = vmul.f32 %v5375, 0.5
        %v5471 = vmul.f32 %v5379, 0.5
        %v5472 = vmul.f32 %v5381, 0.5
        %v5473 = vmul.f32 %v5383, 0.5
        %v5474 = vmul.f32 %v5385, 0.5
        %v5475 = vmul.f32 %v5389, 0.5
        %v5476 = vmul.f32 %v5391, 0.5
        %v5477 = vmul.f32 %v5393, 0.5
        %v5478 = vmul.f32 %v5395, 0.5
        %v5479 = vmul.f32 %v5399, 0.5
        %v5480 = vmul.f32 %v5401, 0.5
        %v5481 = vmul.f32 %v5403, 0.5
        %v5482 = vmul.f32 %v5405, 0.5
        %v5483 = vmul.f32 %v5409, 0.5
        %v5484 = vmul.f32 %v5411, 0.5
        %v5485 = vmul.f32 %v5413, 0.5
        %v5486 = vmul.f32 %v5415, 0.5
        %v5487 = vmul.f32 %v5419, 0.5
        %v5488 = vmul.f32 %v5421, 0.5
        %v5489 = vmul.f32 %v5423, 0.5
        %v5490 = vmul.f32 %v5425, 0.5
        %v5491 = vmul.f32 %v5269, 0.70710677
        %v5492 = vmul.f32 %v5271, 0.70710677
        %v5493 = vmul.f32 %v5273, 0.70710677
        %v5494 = vmul.f32 %v5275, 0.70710677
        %v5495 = vmul.f32 %v5279, 0.70710677
        %v5496 = vmul.f32 %v5281, 0.70710677
        %v5497 = vmul.f32 %v5283, 0.70710677
        %v5498 = vmul.f32 %v5285, 0.70710677
        %v5499 = vmul.f32 %v5289, 0.70710677
        %v5500 = vmul.f32 %v5291, 0.70710677
        %v5501 = vmul.f32 %v5293, 0.70710677
        %v5502 = vmul.f32 %v5295, 0.70710677
        %v5503 = vmul.f32 %v5299, 0.70710677
        %v5504 = vmul.f32 %v5301, 0.70710677
        %v5505 = vmul.f32 %v5303, 0.70710677
        %v5506 = vmul.f32 %v5305, 0.70710677
        %v5507 = vmul.f32 %v5309, 0.70710677
        %v5508 = vmul.f32 %v5311, 0.70710677
        %v5509 = vmul.f32 %v5313, 0.70710677
        %v5510 = vmul.f32 %v5315, 0.70710677
        %v5511 = vmul.f32 %v5319, 0.70710677
        %v5512 = vmul.f32 %v5321, 0.70710677
        %v5513 = vmul.f32 %v5323, 0.70710677
        %v5514 = vmul.f32 %v5325, 0.70710677
        %v5515 = vmul.f32 %v5329, 0.70710677
        %v5516 = vmul.f32 %v5331, 0.70710677
        %v5517 = vmul.f32 %v5333, 0.70710677
        %v5518 = vmul.f32 %v5335, 0.70710677
        %v5519 = vmul.f32 %v5339, 0.70710677
        %v5520 = vmul.f32 %v5341, 0.70710677
        %v5521 = vmul.f32 %v5343, 0.70710677
        %v5522 = vmul.f32 %v5345, 0.70710677
        %v5523 = vmul.f32 %v5349, 0.70710677
        %v5524 = vmul.f32 %v5351, 0.70710677
        %v5525 = vmul.f32 %v5353, 0.70710677
        %v5526 = vmul.f32 %v5355, 0.70710677
        %v5527 = vmul.f32 %v5359, 0.70710677
        %v5528 = vmul.f32 %v5361, 0.70710677
        %v5529 = vmul.f32 %v5363, 0.70710677
        %v5530 = vmul.f32 %v5365, 0.70710677
        %v5531 = vmul.f32 %v5369, 0.70710677
        %v5532 = vmul.f32 %v5371, 0.70710677
        %v5533 = vmul.f32 %v5373, 0.70710677
        %v5534 = vmul.f32 %v5375, 0.70710677
        %v5535 = vmul.f32 %v5379, 0.70710677
        %v5536 = vmul.f32 %v5381, 0.70710677
        %v5537 = vmul.f32 %v5383, 0.70710677
        %v5538 = vmul.f32 %v5385, 0.70710677
        %v5539 = vmul.f32 %v5389, 0.70710677
        %v5540 = vmul.f32 %v5391, 0.70710677
        %v5541 = vmul.f32 %v5393, 0.70710677
        %v5542 = vmul.f32 %v5395, 0.70710677
        %v5543 = vmul.f32 %v5399, 0.70710677
        %v5544 = vmul.f32 %v5401, 0.70710677
        %v5545 = vmul.f32 %v5403, 0.70710677
        %v5546 = vmul.f32 %v5405, 0.70710677
        %v5547 = vmul.f32 %v5409, 0.70710677
        %v5548 = vmul.f32 %v5411, 0.70710677
        %v5549 = vmul.f32 %v5413, 0.70710677
        %v5550 = vmul.f32 %v5415, 0.70710677
        %v5551 = vmul.f32 %v5419, 0.70710677
        %v5552 = vmul.f32 %v5421, 0.70710677
        %v5553 = vmul.f32 %v5423, 0.70710677
        %v5554 = vmul.f32 %v5425, 0.70710677
        %vm5555 = vcmp.lt.f32.partialorder %v5491, 0.0
        %vm5556 = vcmp.lt.f32.partialorder %v5492, 0.0
        %vm5557 = vcmp.lt.f32.partialorder %v5493, 0.0
        %vm5558 = vcmp.lt.f32.partialorder %v5494, 0.0
        %vm5559 = vcmp.lt.f32.partialorder %v5495, 0.0
        %vm5560 = vcmp.lt.f32.partialorder %v5496, 0.0
        %vm5561 = vcmp.lt.f32.partialorder %v5497, 0.0
        %vm5562 = vcmp.lt.f32.partialorder %v5498, 0.0
        %vm5563 = vcmp.lt.f32.partialorder %v5499, 0.0
        %vm5564 = vcmp.lt.f32.partialorder %v5500, 0.0
        %vm5565 = vcmp.lt.f32.partialorder %v5501, 0.0
        %vm5566 = vcmp.lt.f32.partialorder %v5502, 0.0
        %vm5567 = vcmp.lt.f32.partialorder %v5503, 0.0
        %vm5568 = vcmp.lt.f32.partialorder %v5504, 0.0
        %vm5569 = vcmp.lt.f32.partialorder %v5505, 0.0
        %vm5570 = vcmp.lt.f32.partialorder %v5506, 0.0
        %vm5571 = vcmp.lt.f32.partialorder %v5507, 0.0
        %vm5572 = vcmp.lt.f32.partialorder %v5508, 0.0
        %vm5573 = vcmp.lt.f32.partialorder %v5509, 0.0
        %vm5574 = vcmp.lt.f32.partialorder %v5510, 0.0
        %vm5575 = vcmp.lt.f32.partialorder %v5511, 0.0
        %vm5576 = vcmp.lt.f32.partialorder %v5512, 0.0
        %vm5577 = vcmp.lt.f32.partialorder %v5513, 0.0
        %vm5578 = vcmp.lt.f32.partialorder %v5514, 0.0
        %vm5579 = vcmp.lt.f32.partialorder %v5515, 0.0
        %vm5580 = vcmp.lt.f32.partialorder %v5516, 0.0
        %vm5581 = vcmp.lt.f32.partialorder %v5517, 0.0
        %vm5582 = vcmp.lt.f32.partialorder %v5518, 0.0
        %vm5583 = vcmp.lt.f32.partialorder %v5519, 0.0
        %vm5584 = vcmp.lt.f32.partialorder %v5520, 0.0
        %vm5585 = vcmp.lt.f32.partialorder %v5521, 0.0
        %vm5586 = vcmp.lt.f32.partialorder %v5522, 0.0
        %vm5587 = vcmp.lt.f32.partialorder %v5523, 0.0
        %vm5588 = vcmp.lt.f32.partialorder %v5524, 0.0
        %vm5589 = vcmp.lt.f32.partialorder %v5525, 0.0
        %vm5590 = vcmp.lt.f32.partialorder %v5526, 0.0
        %vm5591 = vcmp.lt.f32.partialorder %v5527, 0.0
        %vm5592 = vcmp.lt.f32.partialorder %v5528, 0.0
        %vm5593 = vcmp.lt.f32.partialorder %v5529, 0.0
        %vm5594 = vcmp.lt.f32.partialorder %v5530, 0.0
        %vm5595 = vcmp.lt.f32.partialorder %v5531, 0.0
        %vm5596 = vcmp.lt.f32.partialorder %v5532, 0.0
        %vm5597 = vcmp.lt.f32.partialorder %v5533, 0.0
        %vm5598 = vcmp.lt.f32.partialorder %v5534, 0.0
        %vm5599 = vcmp.lt.f32.partialorder %v5535, 0.0
        %vm5600 = vcmp.lt.f32.partialorder %v5536, 0.0
        %vm5601 = vcmp.lt.f32.partialorder %v5537, 0.0
        %vm5602 = vcmp.lt.f32.partialorder %v5538, 0.0
        %vm5603 = vcmp.lt.f32.partialorder %v5539, 0.0
        %vm5604 = vcmp.lt.f32.partialorder %v5540, 0.0
        %vm5605 = vcmp.lt.f32.partialorder %v5541, 0.0
        %vm5606 = vcmp.lt.f32.partialorder %v5542, 0.0
        %vm5607 = vcmp.lt.f32.partialorder %v5543, 0.0
        %vm5608 = vcmp.lt.f32.partialorder %v5544, 0.0
        %vm5609 = vcmp.lt.f32.partialorder %v5545, 0.0
        %vm5610 = vcmp.lt.f32.partialorder %v5546, 0.0
        %vm5611 = vcmp.lt.f32.partialorder %v5547, 0.0
        %vm5612 = vcmp.lt.f32.partialorder %v5548, 0.0
        %vm5613 = vcmp.lt.f32.partialorder %v5549, 0.0
        %vm5614 = vcmp.lt.f32.partialorder %v5550, 0.0
        %vm5615 = vcmp.lt.f32.partialorder %v5551, 0.0
        %vm5616 = vcmp.lt.f32.partialorder %v5552, 0.0
        %vm5617 = vcmp.lt.f32.partialorder %v5553, 0.0
        %vm5618 = vcmp.lt.f32.partialorder %v5554, 0.0
        %v5619 = vsel %vm5555, -1.0, 1.0
        %v5620 = vsel %vm5556, -1.0, 1.0
        %v5621 = vsel %vm5557, -1.0, 1.0
        %v5622 = vsel %vm5558, -1.0, 1.0
        %v5623 = vsel %vm5559, -1.0, 1.0
        %v5624 = vsel %vm5560, -1.0, 1.0
        %v5625 = vsel %vm5561, -1.0, 1.0
        %v5626 = vsel %vm5562, -1.0, 1.0
        %v5627 = vsel %vm5563, -1.0, 1.0
        %v5628 = vsel %vm5564, -1.0, 1.0
        %v5629 = vsel %vm5565, -1.0, 1.0
        %v5630 = vsel %vm5566, -1.0, 1.0
        %v5631 = vsel %vm5567, -1.0, 1.0
        %v5632 = vsel %vm5568, -1.0, 1.0
        %v5633 = vsel %vm5569, -1.0, 1.0
        %v5634 = vsel %vm5570, -1.0, 1.0
        %v5635 = vsel %vm5571, -1.0, 1.0
        %v5636 = vsel %vm5572, -1.0, 1.0
        %v5637 = vsel %vm5573, -1.0, 1.0
        %v5638 = vsel %vm5574, -1.0, 1.0
        %v5639 = vsel %vm5575, -1.0, 1.0
        %v5640 = vsel %vm5576, -1.0, 1.0
        %v5641 = vsel %vm5577, -1.0, 1.0
        %v5642 = vsel %vm5578, -1.0, 1.0
        %v5643 = vsel %vm5579, -1.0, 1.0
        %v5644 = vsel %vm5580, -1.0, 1.0
        %v5645 = vsel %vm5581, -1.0, 1.0
        %v5646 = vsel %vm5582, -1.0, 1.0
        %v5647 = vsel %vm5583, -1.0, 1.0
        %v5648 = vsel %vm5584, -1.0, 1.0
        %v5649 = vsel %vm5585, -1.0, 1.0
        %v5650 = vsel %vm5586, -1.0, 1.0
        %v5651 = vsel %vm5587, -1.0, 1.0
        %v5652 = vsel %vm5588, -1.0, 1.0
        %v5653 = vsel %vm5589, -1.0, 1.0
        %v5654 = vsel %vm5590, -1.0, 1.0
        %v5655 = vsel %vm5591, -1.0, 1.0
        %v5656 = vsel %vm5592, -1.0, 1.0
        %v5657 = vsel %vm5593, -1.0, 1.0
        %v5658 = vsel %vm5594, -1.0, 1.0
        %v5659 = vsel %vm5595, -1.0, 1.0
        %v5660 = vsel %vm5596, -1.0, 1.0
        %v5661 = vsel %vm5597, -1.0, 1.0
        %v5662 = vsel %vm5598, -1.0, 1.0
        %v5663 = vsel %vm5599, -1.0, 1.0
        %v5664 = vsel %vm5600, -1.0, 1.0
        %v5665 = vsel %vm5601, -1.0, 1.0
        %v5666 = vsel %vm5602, -1.0, 1.0
        %v5667 = vsel %vm5603, -1.0, 1.0
        %v5668 = vsel %vm5604, -1.0, 1.0
        %v5669 = vsel %vm5605, -1.0, 1.0
        %v5670 = vsel %vm5606, -1.0, 1.0
        %v5671 = vsel %vm5607, -1.0, 1.0
        %v5672 = vsel %vm5608, -1.0, 1.0
        %v5673 = vsel %vm5609, -1.0, 1.0
        %v5674 = vsel %vm5610, -1.0, 1.0
        %v5675 = vsel %vm5611, -1.0, 1.0
        %v5676 = vsel %vm5612, -1.0, 1.0
        %v5677 = vsel %vm5613, -1.0, 1.0
        %v5678 = vsel %vm5614, -1.0, 1.0
        %v5679 = vsel %vm5615, -1.0, 1.0
        %v5680 = vsel %vm5616, -1.0, 1.0
        %v5681 = vsel %vm5617, -1.0, 1.0
        %v5682 = vsel %vm5618, -1.0, 1.0
        %v5683 = vand.u32 2147483647, %v5491
        %v5684 = vand.u32 2147483647, %v5492
        %v5685 = vand.u32 2147483647, %v5493
        %v5686 = vand.u32 2147483647, %v5494
        %v5687 = vand.u32 2147483647, %v5495
        %v5688 = vand.u32 2147483647, %v5496
        %v5689 = vand.u32 2147483647, %v5497
        %v5690 = vand.u32 2147483647, %v5498
        %v5691 = vand.u32 2147483647, %v5499
        %v5692 = vand.u32 2147483647, %v5500
        %v5693 = vand.u32 2147483647, %v5501
        %v5694 = vand.u32 2147483647, %v5502
        %v5695 = vand.u32 2147483647, %v5503
        %v5696 = vand.u32 2147483647, %v5504
        %v5697 = vand.u32 2147483647, %v5505
        %v5698 = vand.u32 2147483647, %v5506
        %v5699 = vand.u32 2147483647, %v5507
        %v5700 = vand.u32 2147483647, %v5508
        %v5701 = vand.u32 2147483647, %v5509
        %v5702 = vand.u32 2147483647, %v5510
        %v5703 = vand.u32 2147483647, %v5511
        %v5704 = vand.u32 2147483647, %v5512
        %v5705 = vand.u32 2147483647, %v5513
        %v5706 = vand.u32 2147483647, %v5514
        %v5707 = vand.u32 2147483647, %v5515
        %v5708 = vand.u32 2147483647, %v5516
        %v5709 = vand.u32 2147483647, %v5517
        %v5710 = vand.u32 2147483647, %v5518
        %v5711 = vand.u32 2147483647, %v5519
        %v5712 = vand.u32 2147483647, %v5520
        %v5713 = vand.u32 2147483647, %v5521
        %v5714 = vand.u32 2147483647, %v5522
        %v5715 = vand.u32 2147483647, %v5523
        %v5716 = vand.u32 2147483647, %v5524
        %v5717 = vand.u32 2147483647, %v5525
        %v5718 = vand.u32 2147483647, %v5526
        %v5719 = vand.u32 2147483647, %v5527
        %v5720 = vand.u32 2147483647, %v5528
        %v5721 = vand.u32 2147483647, %v5529
        %v5722 = vand.u32 2147483647, %v5530
        %v5723 = vand.u32 2147483647, %v5531
        %v5724 = vand.u32 2147483647, %v5532
        %v5725 = vand.u32 2147483647, %v5533
        %v5726 = vand.u32 2147483647, %v5534
        %v5727 = vand.u32 2147483647, %v5535
        %v5728 = vand.u32 2147483647, %v5536
        %v5729 = vand.u32 2147483647, %v5537
        %v5730 = vand.u32 2147483647, %v5538
        %v5731 = vand.u32 2147483647, %v5539
        %v5732 = vand.u32 2147483647, %v5540
        %v5733 = vand.u32 2147483647, %v5541
        %v5734 = vand.u32 2147483647, %v5542
        %v5735 = vand.u32 2147483647, %v5543
        %v5736 = vand.u32 2147483647, %v5544
        %v5737 = vand.u32 2147483647, %v5545
        %v5738 = vand.u32 2147483647, %v5546
        %v5739 = vand.u32 2147483647, %v5547
        %v5740 = vand.u32 2147483647, %v5548
        %v5741 = vand.u32 2147483647, %v5549
        %v5742 = vand.u32 2147483647, %v5550
        %v5743 = vand.u32 2147483647, %v5551
        %v5744 = vand.u32 2147483647, %v5552
        %v5745 = vand.u32 2147483647, %v5553
        %v5746 = vand.u32 2147483647, %v5554
        %v5747 = vmul.f32 %v5683, 0.3275911
        %v5748 = vmul.f32 %v5684, 0.3275911
        %v5749 = vmul.f32 %v5685, 0.3275911
        %v5750 = vmul.f32 %v5686, 0.3275911
        %v5751 = vmul.f32 %v5687, 0.3275911
        %v5752 = vmul.f32 %v5688, 0.3275911
        %v5753 = vmul.f32 %v5689, 0.3275911
        %v5754 = vmul.f32 %v5690, 0.3275911
        %v5755 = vmul.f32 %v5691, 0.3275911
        %v5756 = vmul.f32 %v5692, 0.3275911
        %v5757 = vmul.f32 %v5693, 0.3275911
        %v5758 = vmul.f32 %v5694, 0.3275911
        %v5759 = vmul.f32 %v5695, 0.3275911
        %v5760 = vmul.f32 %v5696, 0.3275911
        %v5761 = vmul.f32 %v5697, 0.3275911
        %v5762 = vmul.f32 %v5698, 0.3275911
        %v5763 = vmul.f32 %v5699, 0.3275911
        %v5764 = vmul.f32 %v5700, 0.3275911
        %v5765 = vmul.f32 %v5701, 0.3275911
        %v5766 = vmul.f32 %v5702, 0.3275911
        %v5767 = vmul.f32 %v5703, 0.3275911
        %v5768 = vmul.f32 %v5704, 0.3275911
        %v5769 = vmul.f32 %v5705, 0.3275911
        %v5770 = vmul.f32 %v5706, 0.3275911
        %v5771 = vmul.f32 %v5707, 0.3275911
        %v5772 = vmul.f32 %v5708, 0.3275911
        %v5773 = vmul.f32 %v5709, 0.3275911
        %v5774 = vmul.f32 %v5710, 0.3275911
        %v5775 = vmul.f32 %v5711, 0.3275911
        %v5776 = vmul.f32 %v5712, 0.3275911
        %v5777 = vmul.f32 %v5713, 0.3275911
        %v5778 = vmul.f32 %v5714, 0.3275911
        %v5779 = vmul.f32 %v5715, 0.3275911
        %v5780 = vmul.f32 %v5716, 0.3275911
        %v5781 = vmul.f32 %v5717, 0.3275911
        %v5782 = vmul.f32 %v5718, 0.3275911
        %v5783 = vmul.f32 %v5719, 0.3275911
        %v5784 = vmul.f32 %v5720, 0.3275911
        %v5785 = vmul.f32 %v5721, 0.3275911
        %v5786 = vmul.f32 %v5722, 0.3275911
        %v5787 = vmul.f32 %v5723, 0.3275911
        %v5788 = vmul.f32 %v5724, 0.3275911
        %v5789 = vmul.f32 %v5725, 0.3275911
        %v5790 = vmul.f32 %v5726, 0.3275911
        %v5791 = vmul.f32 %v5727, 0.3275911
        %v5792 = vmul.f32 %v5728, 0.3275911
        %v5793 = vmul.f32 %v5729, 0.3275911
        %v5794 = vmul.f32 %v5730, 0.3275911
        %v5795 = vmul.f32 %v5731, 0.3275911
        %v5796 = vmul.f32 %v5732, 0.3275911
        %v5797 = vmul.f32 %v5733, 0.3275911
        %v5798 = vmul.f32 %v5734, 0.3275911
        %v5799 = vmul.f32 %v5735, 0.3275911
        %v5800 = vmul.f32 %v5736, 0.3275911
        %v5801 = vmul.f32 %v5737, 0.3275911
        %v5802 = vmul.f32 %v5738, 0.3275911
        %v5803 = vmul.f32 %v5739, 0.3275911
        %v5804 = vmul.f32 %v5740, 0.3275911
        %v5805 = vmul.f32 %v5741, 0.3275911
        %v5806 = vmul.f32 %v5742, 0.3275911
        %v5807 = vmul.f32 %v5743, 0.3275911
        %v5808 = vmul.f32 %v5744, 0.3275911
        %v5809 = vmul.f32 %v5745, 0.3275911
        %v5810 = vmul.f32 %v5746, 0.3275911
        %v5811 = vadd.f32 %v5747, 1.0
        %v5812 = vadd.f32 %v5748, 1.0
        %v5813 = vadd.f32 %v5749, 1.0
        %v5814 = vadd.f32 %v5750, 1.0
        %v5815 = vadd.f32 %v5751, 1.0
        %v5816 = vadd.f32 %v5752, 1.0
        %v5817 = vadd.f32 %v5753, 1.0
        %v5818 = vadd.f32 %v5754, 1.0
        %v5819 = vadd.f32 %v5755, 1.0
        %v5820 = vadd.f32 %v5756, 1.0
        %v5821 = vadd.f32 %v5757, 1.0
        %v5822 = vadd.f32 %v5758, 1.0
        %v5823 = vadd.f32 %v5759, 1.0
        %v5824 = vadd.f32 %v5760, 1.0
        %v5825 = vadd.f32 %v5761, 1.0
        %v5826 = vadd.f32 %v5762, 1.0
        %v5827 = vadd.f32 %v5763, 1.0
        %v5828 = vadd.f32 %v5764, 1.0
        %v5829 = vadd.f32 %v5765, 1.0
        %v5830 = vadd.f32 %v5766, 1.0
        %v5831 = vadd.f32 %v5767, 1.0
        %v5832 = vadd.f32 %v5768, 1.0
        %v5833 = vadd.f32 %v5769, 1.0
        %v5834 = vadd.f32 %v5770, 1.0
        %v5835 = vadd.f32 %v5771, 1.0
        %v5836 = vadd.f32 %v5772, 1.0
        %v5837 = vadd.f32 %v5773, 1.0
        %v5838 = vadd.f32 %v5774, 1.0
        %v5839 = vadd.f32 %v5775, 1.0
        %v5840 = vadd.f32 %v5776, 1.0
        %v5841 = vadd.f32 %v5777, 1.0
        %v5842 = vadd.f32 %v5778, 1.0
        %v5843 = vadd.f32 %v5779, 1.0
        %v5844 = vadd.f32 %v5780, 1.0
        %v5845 = vadd.f32 %v5781, 1.0
        %v5846 = vadd.f32 %v5782, 1.0
        %v5847 = vadd.f32 %v5783, 1.0
        %v5848 = vadd.f32 %v5784, 1.0
        %v5849 = vadd.f32 %v5785, 1.0
        %v5850 = vadd.f32 %v5786, 1.0
        %v5851 = vadd.f32 %v5787, 1.0
        %v5852 = vadd.f32 %v5788, 1.0
        %v5853 = vadd.f32 %v5789, 1.0
        %v5854 = vadd.f32 %v5790, 1.0
        %v5855 = vadd.f32 %v5791, 1.0
        %v5856 = vadd.f32 %v5792, 1.0
        %v5857 = vadd.f32 %v5793, 1.0
        %v5858 = vadd.f32 %v5794, 1.0
        %v5859 = vadd.f32 %v5795, 1.0
        %v5860 = vadd.f32 %v5796, 1.0
        %v5861 = vadd.f32 %v5797, 1.0
        %v5862 = vadd.f32 %v5798, 1.0
        %v5863 = vadd.f32 %v5799, 1.0
        %v5864 = vadd.f32 %v5800, 1.0
        %v5865 = vadd.f32 %v5801, 1.0
        %v5866 = vadd.f32 %v5802, 1.0
        %v5867 = vadd.f32 %v5803, 1.0
        %v5868 = vadd.f32 %v5804, 1.0
        %v5869 = vadd.f32 %v5805, 1.0
        %v5870 = vadd.f32 %v5806, 1.0
        %v5871 = vadd.f32 %v5807, 1.0
        %v5872 = vadd.f32 %v5808, 1.0
        %v5873 = vadd.f32 %v5809, 1.0
        %v5874 = vadd.f32 %v5810, 1.0
        %v5875 = vrcp.pop %v5811
        %v5876 = vrcp.pop %v5812
        %v5877 = vrcp.pop %v5813
        %v5878 = vrcp.pop %v5814
        %v5879 = vrcp.pop %v5815
        %v5880 = vrcp.pop %v5816
        %v5881 = vrcp.pop %v5817
        %v5882 = vrcp.pop %v5818
        %v5883 = vrcp.pop %v5819
        %v5884 = vrcp.pop %v5820
        %v5885 = vrcp.pop %v5821
        %v5886 = vrcp.pop %v5822
        %v5887 = vrcp.pop %v5823
        %v5888 = vrcp.pop %v5824
        %v5889 = vrcp.pop %v5825
        %v5890 = vrcp.pop %v5826
        %v5891 = vrcp.pop %v5827
        %v5892 = vrcp.pop %v5828
        %v5893 = vrcp.pop %v5829
        %v5894 = vrcp.pop %v5830
        %v5895 = vrcp.pop %v5831
        %v5896 = vrcp.pop %v5832
        %v5897 = vrcp.pop %v5833
        %v5898 = vrcp.pop %v5834
        %v5899 = vrcp.pop %v5835
        %v5900 = vrcp.pop %v5836
        %v5901 = vrcp.pop %v5837
        %v5902 = vrcp.pop %v5838
        %v5903 = vrcp.pop %v5839
        %v5904 = vrcp.pop %v5840
        %v5905 = vrcp.pop %v5841
        %v5906 = vrcp.pop %v5842
        %v5907 = vrcp.pop %v5843
        %v5908 = vrcp.pop %v5844
        %v5909 = vrcp.pop %v5845
        %v5910 = vrcp.pop %v5846
        %v5911 = vrcp.pop %v5847
        %v5912 = vrcp.pop %v5848
        %v5913 = vrcp.pop %v5849
        %v5914 = vrcp.pop %v5850
        %v5915 = vrcp.pop %v5851
        %v5916 = vrcp.pop %v5852
        %v5917 = vrcp.pop %v5853
        %v5918 = vrcp.pop %v5854
        %v5919 = vrcp.pop %v5855
        %v5920 = vrcp.pop %v5856
        %v5921 = vrcp.pop %v5857
        %v5922 = vrcp.pop %v5858
        %v5923 = vrcp.pop %v5859
        %v5924 = vrcp.pop %v5860
        %v5925 = vrcp.pop %v5861
        %v5926 = vrcp.pop %v5862
        %v5927 = vrcp.pop %v5863
        %v5928 = vrcp.pop %v5864
        %v5929 = vrcp.pop %v5865
        %v5930 = vrcp.pop %v5866
        %v5931 = vrcp.pop %v5867
        %v5932 = vrcp.pop %v5868
        %v5933 = vrcp.pop %v5869
        %v5934 = vrcp.pop %v5870
        %v5935 = vrcp.pop %v5871
        %v5936 = vrcp.pop %v5872
        %v5937 = vrcp.pop %v5873
        %v5938 = vrcp.pop %v5874
        %v5939 = vmul.f32 %v5875, 1.0614054
        %v5940 = vmul.f32 %v5876, 1.0614054
        %v5941 = vmul.f32 %v5877, 1.0614054
        %v5942 = vmul.f32 %v5878, 1.0614054
        %v5943 = vmul.f32 %v5879, 1.0614054
        %v5944 = vmul.f32 %v5880, 1.0614054
        %v5945 = vmul.f32 %v5881, 1.0614054
        %v5946 = vmul.f32 %v5882, 1.0614054
        %v5947 = vmul.f32 %v5883, 1.0614054
        %v5948 = vmul.f32 %v5884, 1.0614054
        %v5949 = vmul.f32 %v5885, 1.0614054
        %v5950 = vmul.f32 %v5886, 1.0614054
        %v5951 = vmul.f32 %v5887, 1.0614054
        %v5952 = vmul.f32 %v5888, 1.0614054
        %v5953 = vmul.f32 %v5889, 1.0614054
        %v5954 = vmul.f32 %v5890, 1.0614054
        %v5955 = vmul.f32 %v5891, 1.0614054
        %v5956 = vmul.f32 %v5892, 1.0614054
        %v5957 = vmul.f32 %v5893, 1.0614054
        %v5958 = vmul.f32 %v5894, 1.0614054
        %v5959 = vmul.f32 %v5895, 1.0614054
        %v5960 = vmul.f32 %v5896, 1.0614054
        %v5961 = vmul.f32 %v5897, 1.0614054
        %v5962 = vmul.f32 %v5898, 1.0614054
        %v5963 = vmul.f32 %v5899, 1.0614054
        %v5964 = vmul.f32 %v5900, 1.0614054
        %v5965 = vmul.f32 %v5901, 1.0614054
        %v5966 = vmul.f32 %v5902, 1.0614054
        %v5967 = vmul.f32 %v5903, 1.0614054
        %v5968 = vmul.f32 %v5904, 1.0614054
        %v5969 = vmul.f32 %v5905, 1.0614054
        %v5970 = vmul.f32 %v5906, 1.0614054
        %v5971 = vmul.f32 %v5907, 1.0614054
        %v5972 = vmul.f32 %v5908, 1.0614054
        %v5973 = vmul.f32 %v5909, 1.0614054
        %v5974 = vmul.f32 %v5910, 1.0614054
        %v5975 = vmul.f32 %v5911, 1.0614054
        %v5976 = vmul.f32 %v5912, 1.0614054
        %v5977 = vmul.f32 %v5913, 1.0614054
        %v5978 = vmul.f32 %v5914, 1.0614054
        %v5979 = vmul.f32 %v5915, 1.0614054
        %v5980 = vmul.f32 %v5916, 1.0614054
        %v5981 = vmul.f32 %v5917, 1.0614054
        %v5982 = vmul.f32 %v5918, 1.0614054
        %v5983 = vmul.f32 %v5919, 1.0614054
        %v5984 = vmul.f32 %v5920, 1.0614054
        %v5985 = vmul.f32 %v5921, 1.0614054
        %v5986 = vmul.f32 %v5922, 1.0614054
        %v5987 = vmul.f32 %v5923, 1.0614054
        %v5988 = vmul.f32 %v5924, 1.0614054
        %v5989 = vmul.f32 %v5925, 1.0614054
        %v5990 = vmul.f32 %v5926, 1.0614054
        %v5991 = vmul.f32 %v5927, 1.0614054
        %v5992 = vmul.f32 %v5928, 1.0614054
        %v5993 = vmul.f32 %v5929, 1.0614054
        %v5994 = vmul.f32 %v5930, 1.0614054
        %v5995 = vmul.f32 %v5931, 1.0614054
        %v5996 = vmul.f32 %v5932, 1.0614054
        %v5997 = vmul.f32 %v5933, 1.0614054
        %v5998 = vmul.f32 %v5934, 1.0614054
        %v5999 = vmul.f32 %v5935, 1.0614054
        %v6000 = vmul.f32 %v5936, 1.0614054
        %v6001 = vmul.f32 %v5937, 1.0614054
        %v6002 = vmul.f32 %v5938, 1.0614054
        %v6003 = vadd.f32 %v5939, -1.4531521
        %v6004 = vadd.f32 %v5940, -1.4531521
        %v6005 = vadd.f32 %v5941, -1.4531521
        %v6006 = vadd.f32 %v5942, -1.4531521
        %v6007 = vadd.f32 %v5943, -1.4531521
        %v6008 = vadd.f32 %v5944, -1.4531521
        %v6009 = vadd.f32 %v5945, -1.4531521
        %v6010 = vadd.f32 %v5946, -1.4531521
        %v6011 = vadd.f32 %v5947, -1.4531521
        %v6012 = vadd.f32 %v5948, -1.4531521
        %v6013 = vadd.f32 %v5949, -1.4531521
        %v6014 = vadd.f32 %v5950, -1.4531521
        %v6015 = vadd.f32 %v5951, -1.4531521
        %v6016 = vadd.f32 %v5952, -1.4531521
        %v6017 = vadd.f32 %v5953, -1.4531521
        %v6018 = vadd.f32 %v5954, -1.4531521
        %v6019 = vadd.f32 %v5955, -1.4531521
        %v6020 = vadd.f32 %v5956, -1.4531521
        %v6021 = vadd.f32 %v5957, -1.4531521
        %v6022 = vadd.f32 %v5958, -1.4531521
        %v6023 = vadd.f32 %v5959, -1.4531521
        %v6024 = vadd.f32 %v5960, -1.4531521
        %v6025 = vadd.f32 %v5961, -1.4531521
        %v6026 = vadd.f32 %v5962, -1.4531521
        %v6027 = vadd.f32 %v5963, -1.4531521
        %v6028 = vadd.f32 %v5964, -1.4531521
        %v6029 = vadd.f32 %v5965, -1.4531521
        %v6030 = vadd.f32 %v5966, -1.4531521
        %v6031 = vadd.f32 %v5967, -1.4531521
        %v6032 = vadd.f32 %v5968, -1.4531521
        %v6033 = vadd.f32 %v5969, -1.4531521
        %v6034 = vadd.f32 %v5970, -1.4531521
        %v6035 = vadd.f32 %v5971, -1.4531521
        %v6036 = vadd.f32 %v5972, -1.4531521
        %v6037 = vadd.f32 %v5973, -1.4531521
        %v6038 = vadd.f32 %v5974, -1.4531521
        %v6039 = vadd.f32 %v5975, -1.4531521
        %v6040 = vadd.f32 %v5976, -1.4531521
        %v6041 = vadd.f32 %v5977, -1.4531521
        %v6042 = vadd.f32 %v5978, -1.4531521
        %v6043 = vadd.f32 %v5979, -1.4531521
        %v6044 = vadd.f32 %v5980, -1.4531521
        %v6045 = vadd.f32 %v5981, -1.4531521
        %v6046 = vadd.f32 %v5982, -1.4531521
        %v6047 = vadd.f32 %v5983, -1.4531521
        %v6048 = vadd.f32 %v5984, -1.4531521
        %v6049 = vadd.f32 %v5985, -1.4531521
        %v6050 = vadd.f32 %v5986, -1.4531521
        %v6051 = vadd.f32 %v5987, -1.4531521
        %v6052 = vadd.f32 %v5988, -1.4531521
        %v6053 = vadd.f32 %v5989, -1.4531521
        %v6054 = vadd.f32 %v5990, -1.4531521
        %v6055 = vadd.f32 %v5991, -1.4531521
        %v6056 = vadd.f32 %v5992, -1.4531521
        %v6057 = vadd.f32 %v5993, -1.4531521
        %v6058 = vadd.f32 %v5994, -1.4531521
        %v6059 = vadd.f32 %v5995, -1.4531521
        %v6060 = vadd.f32 %v5996, -1.4531521
        %v6061 = vadd.f32 %v5997, -1.4531521
        %v6062 = vadd.f32 %v5998, -1.4531521
        %v6063 = vadd.f32 %v5999, -1.4531521
        %v6064 = vadd.f32 %v6000, -1.4531521
        %v6065 = vadd.f32 %v6001, -1.4531521
        %v6066 = vadd.f32 %v6002, -1.4531521
        %v6067 = vmul.f32 %v6003, %v5875
        %v6068 = vmul.f32 %v6004, %v5876
        %v6069 = vmul.f32 %v6005, %v5877
        %v6070 = vmul.f32 %v6006, %v5878
        %v6071 = vmul.f32 %v6007, %v5879
        %v6072 = vmul.f32 %v6008, %v5880
        %v6073 = vmul.f32 %v6009, %v5881
        %v6074 = vmul.f32 %v6010, %v5882
        %v6075 = vmul.f32 %v6011, %v5883
        %v6076 = vmul.f32 %v6012, %v5884
        %v6077 = vmul.f32 %v6013, %v5885
        %v6078 = vmul.f32 %v6014, %v5886
        %v6079 = vmul.f32 %v6015, %v5887
        %v6080 = vmul.f32 %v6016, %v5888
        %v6081 = vmul.f32 %v6017, %v5889
        %v6082 = vmul.f32 %v6018, %v5890
        %v6083 = vmul.f32 %v6019, %v5891
        %v6084 = vmul.f32 %v6020, %v5892
        %v6085 = vmul.f32 %v6021, %v5893
        %v6086 = vmul.f32 %v6022, %v5894
        %v6087 = vmul.f32 %v6023, %v5895
        %v6088 = vmul.f32 %v6024, %v5896
        %v6089 = vmul.f32 %v6025, %v5897
        %v6090 = vmul.f32 %v6026, %v5898
        %v6091 = vmul.f32 %v6027, %v5899
        %v6092 = vmul.f32 %v6028, %v5900
        %v6093 = vmul.f32 %v6029, %v5901
        %v6094 = vmul.f32 %v6030, %v5902
        %v6095 = vmul.f32 %v6031, %v5903
        %v6096 = vmul.f32 %v6032, %v5904
        %v6097 = vmul.f32 %v6033, %v5905
        %v6098 = vmul.f32 %v6034, %v5906
        %v6099 = vmul.f32 %v6035, %v5907
        %v6100 = vmul.f32 %v6036, %v5908
        %v6101 = vmul.f32 %v6037, %v5909
        %v6102 = vmul.f32 %v6038, %v5910
        %v6103 = vmul.f32 %v6039, %v5911
        %v6104 = vmul.f32 %v6040, %v5912
        %v6105 = vmul.f32 %v6041, %v5913
        %v6106 = vmul.f32 %v6042, %v5914
        %v6107 = vmul.f32 %v6043, %v5915
        %v6108 = vmul.f32 %v6044, %v5916
        %v6109 = vmul.f32 %v6045, %v5917
        %v6110 = vmul.f32 %v6046, %v5918
        %v6111 = vmul.f32 %v6047, %v5919
        %v6112 = vmul.f32 %v6048, %v5920
        %v6113 = vmul.f32 %v6049, %v5921
        %v6114 = vmul.f32 %v6050, %v5922
        %v6115 = vmul.f32 %v6051, %v5923
        %v6116 = vmul.f32 %v6052, %v5924
        %v6117 = vmul.f32 %v6053, %v5925
        %v6118 = vmul.f32 %v6054, %v5926
        %v6119 = vmul.f32 %v6055, %v5927
        %v6120 = vmul.f32 %v6056, %v5928
        %v6121 = vmul.f32 %v6057, %v5929
        %v6122 = vmul.f32 %v6058, %v5930
        %v6123 = vmul.f32 %v6059, %v5931
        %v6124 = vmul.f32 %v6060, %v5932
        %v6125 = vmul.f32 %v6061, %v5933
        %v6126 = vmul.f32 %v6062, %v5934
        %v6127 = vmul.f32 %v6063, %v5935
        %v6128 = vmul.f32 %v6064, %v5936
        %v6129 = vmul.f32 %v6065, %v5937
        %v6130 = vmul.f32 %v6066, %v5938
        %v6131 = vadd.f32 %v6067, 1.4214138
        %v6132 = vadd.f32 %v6068, 1.4214138
        %v6133 = vadd.f32 %v6069, 1.4214138
        %v6134 = vadd.f32 %v6070, 1.4214138
        %v6135 = vadd.f32 %v6071, 1.4214138
        %v6136 = vadd.f32 %v6072, 1.4214138
        %v6137 = vadd.f32 %v6073, 1.4214138
        %v6138 = vadd.f32 %v6074, 1.4214138
        %v6139 = vadd.f32 %v6075, 1.4214138
        %v6140 = vadd.f32 %v6076, 1.4214138
        %v6141 = vadd.f32 %v6077, 1.4214138
        %v6142 = vadd.f32 %v6078, 1.4214138
        %v6143 = vadd.f32 %v6079, 1.4214138
        %v6144 = vadd.f32 %v6080, 1.4214138
        %v6145 = vadd.f32 %v6081, 1.4214138
        %v6146 = vadd.f32 %v6082, 1.4214138
        %v6147 = vadd.f32 %v6083, 1.4214138
        %v6148 = vadd.f32 %v6084, 1.4214138
        %v6149 = vadd.f32 %v6085, 1.4214138
        %v6150 = vadd.f32 %v6086, 1.4214138
        %v6151 = vadd.f32 %v6087, 1.4214138
        %v6152 = vadd.f32 %v6088, 1.4214138
        %v6153 = vadd.f32 %v6089, 1.4214138
        %v6154 = vadd.f32 %v6090, 1.4214138
        %v6155 = vadd.f32 %v6091, 1.4214138
        %v6156 = vadd.f32 %v6092, 1.4214138
        %v6157 = vadd.f32 %v6093, 1.4214138
        %v6158 = vadd.f32 %v6094, 1.4214138
        %v6159 = vadd.f32 %v6095, 1.4214138
        %v6160 = vadd.f32 %v6096, 1.4214138
        %v6161 = vadd.f32 %v6097, 1.4214138
        %v6162 = vadd.f32 %v6098, 1.4214138
        %v6163 = vadd.f32 %v6099, 1.4214138
        %v6164 = vadd.f32 %v6100, 1.4214138
        %v6165 = vadd.f32 %v6101, 1.4214138
        %v6166 = vadd.f32 %v6102, 1.4214138
        %v6167 = vadd.f32 %v6103, 1.4214138
        %v6168 = vadd.f32 %v6104, 1.4214138
        %v6169 = vadd.f32 %v6105, 1.4214138
        %v6170 = vadd.f32 %v6106, 1.4214138
        %v6171 = vadd.f32 %v6107, 1.4214138
        %v6172 = vadd.f32 %v6108, 1.4214138
        %v6173 = vadd.f32 %v6109, 1.4214138
        %v6174 = vadd.f32 %v6110, 1.4214138
        %v6175 = vadd.f32 %v6111, 1.4214138
        %v6176 = vadd.f32 %v6112, 1.4214138
        %v6177 = vadd.f32 %v6113, 1.4214138
        %v6178 = vadd.f32 %v6114, 1.4214138
        %v6179 = vadd.f32 %v6115, 1.4214138
        %v6180 = vadd.f32 %v6116, 1.4214138
        %v6181 = vadd.f32 %v6117, 1.4214138
        %v6182 = vadd.f32 %v6118, 1.4214138
        %v6183 = vadd.f32 %v6119, 1.4214138
        %v6184 = vadd.f32 %v6120, 1.4214138
        %v6185 = vadd.f32 %v6121, 1.4214138
        %v6186 = vadd.f32 %v6122, 1.4214138
        %v6187 = vadd.f32 %v6123, 1.4214138
        %v6188 = vadd.f32 %v6124, 1.4214138
        %v6189 = vadd.f32 %v6125, 1.4214138
        %v6190 = vadd.f32 %v6126, 1.4214138
        %v6191 = vadd.f32 %v6127, 1.4214138
        %v6192 = vadd.f32 %v6128, 1.4214138
        %v6193 = vadd.f32 %v6129, 1.4214138
        %v6194 = vadd.f32 %v6130, 1.4214138
        %v6195 = vmul.f32 %v6131, %v5875
        %v6196 = vmul.f32 %v6132, %v5876
        %v6197 = vmul.f32 %v6133, %v5877
        %v6198 = vmul.f32 %v6134, %v5878
        %v6199 = vmul.f32 %v6135, %v5879
        %v6200 = vmul.f32 %v6136, %v5880
        %v6201 = vmul.f32 %v6137, %v5881
        %v6202 = vmul.f32 %v6138, %v5882
        %v6203 = vmul.f32 %v6139, %v5883
        %v6204 = vmul.f32 %v6140, %v5884
        %v6205 = vmul.f32 %v6141, %v5885
        %v6206 = vmul.f32 %v6142, %v5886
        %v6207 = vmul.f32 %v6143, %v5887
        %v6208 = vmul.f32 %v6144, %v5888
        %v6209 = vmul.f32 %v6145, %v5889
        %v6210 = vmul.f32 %v6146, %v5890
        %v6211 = vmul.f32 %v6147, %v5891
        %v6212 = vmul.f32 %v6148, %v5892
        %v6213 = vmul.f32 %v6149, %v5893
        %v6214 = vmul.f32 %v6150, %v5894
        %v6215 = vmul.f32 %v6151, %v5895
        %v6216 = vmul.f32 %v6152, %v5896
        %v6217 = vmul.f32 %v6153, %v5897
        %v6218 = vmul.f32 %v6154, %v5898
        %v6219 = vmul.f32 %v6155, %v5899
        %v6220 = vmul.f32 %v6156, %v5900
        %v6221 = vmul.f32 %v6157, %v5901
        %v6222 = vmul.f32 %v6158, %v5902
        %v6223 = vmul.f32 %v6159, %v5903
        %v6224 = vmul.f32 %v6160, %v5904
        %v6225 = vmul.f32 %v6161, %v5905
        %v6226 = vmul.f32 %v6162, %v5906
        %v6227 = vmul.f32 %v6163, %v5907
        %v6228 = vmul.f32 %v6164, %v5908
        %v6229 = vmul.f32 %v6165, %v5909
        %v6230 = vmul.f32 %v6166, %v5910
        %v6231 = vmul.f32 %v6167, %v5911
        %v6232 = vmul.f32 %v6168, %v5912
        %v6233 = vmul.f32 %v6169, %v5913
        %v6234 = vmul.f32 %v6170, %v5914
        %v6235 = vmul.f32 %v6171, %v5915
        %v6236 = vmul.f32 %v6172, %v5916
        %v6237 = vmul.f32 %v6173, %v5917
        %v6238 = vmul.f32 %v6174, %v5918
        %v6239 = vmul.f32 %v6175, %v5919
        %v6240 = vmul.f32 %v6176, %v5920
        %v6241 = vmul.f32 %v6177, %v5921
        %v6242 = vmul.f32 %v6178, %v5922
        %v6243 = vmul.f32 %v6179, %v5923
        %v6244 = vmul.f32 %v6180, %v5924
        %v6245 = vmul.f32 %v6181, %v5925
        %v6246 = vmul.f32 %v6182, %v5926
        %v6247 = vmul.f32 %v6183, %v5927
        %v6248 = vmul.f32 %v6184, %v5928
        %v6249 = vmul.f32 %v6185, %v5929
        %v6250 = vmul.f32 %v6186, %v5930
        %v6251 = vmul.f32 %v6187, %v5931
        %v6252 = vmul.f32 %v6188, %v5932
        %v6253 = vmul.f32 %v6189, %v5933
        %v6254 = vmul.f32 %v6190, %v5934
        %v6255 = vmul.f32 %v6191, %v5935
        %v6256 = vmul.f32 %v6192, %v5936
        %v6257 = vmul.f32 %v6193, %v5937
        %v6258 = vmul.f32 %v6194, %v5938
        %v6259 = vadd.f32 %v6195, -0.28449672
        %v6260 = vadd.f32 %v6196, -0.28449672
        %v6261 = vadd.f32 %v6197, -0.28449672
        %v6262 = vadd.f32 %v6198, -0.28449672
        %v6263 = vadd.f32 %v6199, -0.28449672
        %v6264 = vadd.f32 %v6200, -0.28449672
        %v6265 = vadd.f32 %v6201, -0.28449672
        %v6266 = vadd.f32 %v6202, -0.28449672
        %v6267 = vadd.f32 %v6203, -0.28449672
        %v6268 = vadd.f32 %v6204, -0.28449672
        %v6269 = vadd.f32 %v6205, -0.28449672
        %v6270 = vadd.f32 %v6206, -0.28449672
        %v6271 = vadd.f32 %v6207, -0.28449672
        %v6272 = vadd.f32 %v6208, -0.28449672
        %v6273 = vadd.f32 %v6209, -0.28449672
        %v6274 = vadd.f32 %v6210, -0.28449672
        %v6275 = vadd.f32 %v6211, -0.28449672
        %v6276 = vadd.f32 %v6212, -0.28449672
        %v6277 = vadd.f32 %v6213, -0.28449672
        %v6278 = vadd.f32 %v6214, -0.28449672
        %v6279 = vadd.f32 %v6215, -0.28449672
        %v6280 = vadd.f32 %v6216, -0.28449672
        %v6281 = vadd.f32 %v6217, -0.28449672
        %v6282 = vadd.f32 %v6218, -0.28449672
        %v6283 = vadd.f32 %v6219, -0.28449672
        %v6284 = vadd.f32 %v6220, -0.28449672
        %v6285 = vadd.f32 %v6221, -0.28449672
        %v6286 = vadd.f32 %v6222, -0.28449672
        %v6287 = vadd.f32 %v6223, -0.28449672
        %v6288 = vadd.f32 %v6224, -0.28449672
        %v6289 = vadd.f32 %v6225, -0.28449672
        %v6290 = vadd.f32 %v6226, -0.28449672
        %v6291 = vadd.f32 %v6227, -0.28449672
        %v6292 = vadd.f32 %v6228, -0.28449672
        %v6293 = vadd.f32 %v6229, -0.28449672
        %v6294 = vadd.f32 %v6230, -0.28449672
        %v6295 = vadd.f32 %v6231, -0.28449672
        %v6296 = vadd.f32 %v6232, -0.28449672
        %v6297 = vadd.f32 %v6233, -0.28449672
        %v6298 = vadd.f32 %v6234, -0.28449672
        %v6299 = vadd.f32 %v6235, -0.28449672
        %v6300 = vadd.f32 %v6236, -0.28449672
        %v6301 = vadd.f32 %v6237, -0.28449672
        %v6302 = vadd.f32 %v6238, -0.28449672
        %v6303 = vadd.f32 %v6239, -0.28449672
        %v6304 = vadd.f32 %v6240, -0.28449672
        %v6305 = vadd.f32 %v6241, -0.28449672
        %v6306 = vadd.f32 %v6242, -0.28449672
        %v6307 = vadd.f32 %v6243, -0.28449672
        %v6308 = vadd.f32 %v6244, -0.28449672
        %v6309 = vadd.f32 %v6245, -0.28449672
        %v6310 = vadd.f32 %v6246, -0.28449672
        %v6311 = vadd.f32 %v6247, -0.28449672
        %v6312 = vadd.f32 %v6248, -0.28449672
        %v6313 = vadd.f32 %v6249, -0.28449672
        %v6314 = vadd.f32 %v6250, -0.28449672
        %v6315 = vadd.f32 %v6251, -0.28449672
        %v6316 = vadd.f32 %v6252, -0.28449672
        %v6317 = vadd.f32 %v6253, -0.28449672
        %v6318 = vadd.f32 %v6254, -0.28449672
        %v6319 = vadd.f32 %v6255, -0.28449672
        %v6320 = vadd.f32 %v6256, -0.28449672
        %v6321 = vadd.f32 %v6257, -0.28449672
        %v6322 = vadd.f32 %v6258, -0.28449672
        %v6323 = vmul.f32 %v6259, %v5875
        %v6324 = vmul.f32 %v6260, %v5876
        %v6325 = vmul.f32 %v6261, %v5877
        %v6326 = vmul.f32 %v6262, %v5878
        %v6327 = vmul.f32 %v6263, %v5879
        %v6328 = vmul.f32 %v6264, %v5880
        %v6329 = vmul.f32 %v6265, %v5881
        %v6330 = vmul.f32 %v6266, %v5882
        %v6331 = vmul.f32 %v6267, %v5883
        %v6332 = vmul.f32 %v6268, %v5884
        %v6333 = vmul.f32 %v6269, %v5885
        %v6334 = vmul.f32 %v6270, %v5886
        %v6335 = vmul.f32 %v6271, %v5887
        %v6336 = vmul.f32 %v6272, %v5888
        %v6337 = vmul.f32 %v6273, %v5889
        %v6338 = vmul.f32 %v6274, %v5890
        %v6339 = vmul.f32 %v6275, %v5891
        %v6340 = vmul.f32 %v6276, %v5892
        %v6341 = vmul.f32 %v6277, %v5893
        %v6342 = vmul.f32 %v6278, %v5894
        %v6343 = vmul.f32 %v6279, %v5895
        %v6344 = vmul.f32 %v6280, %v5896
        %v6345 = vmul.f32 %v6281, %v5897
        %v6346 = vmul.f32 %v6282, %v5898
        %v6347 = vmul.f32 %v6283, %v5899
        %v6348 = vmul.f32 %v6284, %v5900
        %v6349 = vmul.f32 %v6285, %v5901
        %v6350 = vmul.f32 %v6286, %v5902
        %v6351 = vmul.f32 %v6287, %v5903
        %v6352 = vmul.f32 %v6288, %v5904
        %v6353 = vmul.f32 %v6289, %v5905
        %v6354 = vmul.f32 %v6290, %v5906
        %v6355 = vmul.f32 %v6291, %v5907
        %v6356 = vmul.f32 %v6292, %v5908
        %v6357 = vmul.f32 %v6293, %v5909
        %v6358 = vmul.f32 %v6294, %v5910
        %v6359 = vmul.f32 %v6295, %v5911
        %v6360 = vmul.f32 %v6296, %v5912
        %v6361 = vmul.f32 %v6297, %v5913
        %v6362 = vmul.f32 %v6298, %v5914
        %v6363 = vmul.f32 %v6299, %v5915
        %v6364 = vmul.f32 %v6300, %v5916
        %v6365 = vmul.f32 %v6301, %v5917
        %v6366 = vmul.f32 %v6302, %v5918
        %v6367 = vmul.f32 %v6303, %v5919
        %v6368 = vmul.f32 %v6304, %v5920
        %v6369 = vmul.f32 %v6305, %v5921
        %v6370 = vmul.f32 %v6306, %v5922
        %v6371 = vmul.f32 %v6307, %v5923
        %v6372 = vmul.f32 %v6308, %v5924
        %v6373 = vmul.f32 %v6309, %v5925
        %v6374 = vmul.f32 %v6310, %v5926
        %v6375 = vmul.f32 %v6311, %v5927
        %v6376 = vmul.f32 %v6312, %v5928
        %v6377 = vmul.f32 %v6313, %v5929
        %v6378 = vmul.f32 %v6314, %v5930
        %v6379 = vmul.f32 %v6315, %v5931
        %v6380 = vmul.f32 %v6316, %v5932
        %v6381 = vmul.f32 %v6317, %v5933
        %v6382 = vmul.f32 %v6318, %v5934
        %v6383 = vmul.f32 %v6319, %v5935
        %v6384 = vmul.f32 %v6320, %v5936
        %v6385 = vmul.f32 %v6321, %v5937
        %v6386 = vmul.f32 %v6322, %v5938
        %v6387 = vadd.f32 %v6323, 0.2548296
        %v6388 = vadd.f32 %v6324, 0.2548296
        %v6389 = vadd.f32 %v6325, 0.2548296
        %v6390 = vadd.f32 %v6326, 0.2548296
        %v6391 = vadd.f32 %v6327, 0.2548296
        %v6392 = vadd.f32 %v6328, 0.2548296
        %v6393 = vadd.f32 %v6329, 0.2548296
        %v6394 = vadd.f32 %v6330, 0.2548296
        %v6395 = vadd.f32 %v6331, 0.2548296
        %v6396 = vadd.f32 %v6332, 0.2548296
        %v6397 = vadd.f32 %v6333, 0.2548296
        %v6398 = vadd.f32 %v6334, 0.2548296
        %v6399 = vadd.f32 %v6335, 0.2548296
        %v6400 = vadd.f32 %v6336, 0.2548296
        %v6401 = vadd.f32 %v6337, 0.2548296
        %v6402 = vadd.f32 %v6338, 0.2548296
        %v6403 = vadd.f32 %v6339, 0.2548296
        %v6404 = vadd.f32 %v6340, 0.2548296
        %v6405 = vadd.f32 %v6341, 0.2548296
        %v6406 = vadd.f32 %v6342, 0.2548296
        %v6407 = vadd.f32 %v6343, 0.2548296
        %v6408 = vadd.f32 %v6344, 0.2548296
        %v6409 = vadd.f32 %v6345, 0.2548296
        %v6410 = vadd.f32 %v6346, 0.2548296
        %v6411 = vadd.f32 %v6347, 0.2548296
        %v6412 = vadd.f32 %v6348, 0.2548296
        %v6413 = vadd.f32 %v6349, 0.2548296
        %v6414 = vadd.f32 %v6350, 0.2548296
        %v6415 = vadd.f32 %v6351, 0.2548296
        %v6416 = vadd.f32 %v6352, 0.2548296
        %v6417 = vadd.f32 %v6353, 0.2548296
        %v6418 = vadd.f32 %v6354, 0.2548296
        %v6419 = vadd.f32 %v6355, 0.2548296
        %v6420 = vadd.f32 %v6356, 0.2548296
        %v6421 = vadd.f32 %v6357, 0.2548296
        %v6422 = vadd.f32 %v6358, 0.2548296
        %v6423 = vadd.f32 %v6359, 0.2548296
        %v6424 = vadd.f32 %v6360, 0.2548296
        %v6425 = vadd.f32 %v6361, 0.2548296
        %v6426 = vadd.f32 %v6362, 0.2548296
        %v6427 = vadd.f32 %v6363, 0.2548296
        %v6428 = vadd.f32 %v6364, 0.2548296
        %v6429 = vadd.f32 %v6365, 0.2548296
        %v6430 = vadd.f32 %v6366, 0.2548296
        %v6431 = vadd.f32 %v6367, 0.2548296
        %v6432 = vadd.f32 %v6368, 0.2548296
        %v6433 = vadd.f32 %v6369, 0.2548296
        %v6434 = vadd.f32 %v6370, 0.2548296
        %v6435 = vadd.f32 %v6371, 0.2548296
        %v6436 = vadd.f32 %v6372, 0.2548296
        %v6437 = vadd.f32 %v6373, 0.2548296
        %v6438 = vadd.f32 %v6374, 0.2548296
        %v6439 = vadd.f32 %v6375, 0.2548296
        %v6440 = vadd.f32 %v6376, 0.2548296
        %v6441 = vadd.f32 %v6377, 0.2548296
        %v6442 = vadd.f32 %v6378, 0.2548296
        %v6443 = vadd.f32 %v6379, 0.2548296
        %v6444 = vadd.f32 %v6380, 0.2548296
        %v6445 = vadd.f32 %v6381, 0.2548296
        %v6446 = vadd.f32 %v6382, 0.2548296
        %v6447 = vadd.f32 %v6383, 0.2548296
        %v6448 = vadd.f32 %v6384, 0.2548296
        %v6449 = vadd.f32 %v6385, 0.2548296
        %v6450 = vadd.f32 %v6386, 0.2548296
        %v6451 = vmul.f32 %v6387, %v5875
        %v6452 = vmul.f32 %v6388, %v5876
        %v6453 = vmul.f32 %v6389, %v5877
        %v6454 = vmul.f32 %v6390, %v5878
        %v6455 = vmul.f32 %v6391, %v5879
        %v6456 = vmul.f32 %v6392, %v5880
        %v6457 = vmul.f32 %v6393, %v5881
        %v6458 = vmul.f32 %v6394, %v5882
        %v6459 = vmul.f32 %v6395, %v5883
        %v6460 = vmul.f32 %v6396, %v5884
        %v6461 = vmul.f32 %v6397, %v5885
        %v6462 = vmul.f32 %v6398, %v5886
        %v6463 = vmul.f32 %v6399, %v5887
        %v6464 = vmul.f32 %v6400, %v5888
        %v6465 = vmul.f32 %v6401, %v5889
        %v6466 = vmul.f32 %v6402, %v5890
        %v6467 = vmul.f32 %v6403, %v5891
        %v6468 = vmul.f32 %v6404, %v5892
        %v6469 = vmul.f32 %v6405, %v5893
        %v6470 = vmul.f32 %v6406, %v5894
        %v6471 = vmul.f32 %v6407, %v5895
        %v6472 = vmul.f32 %v6408, %v5896
        %v6473 = vmul.f32 %v6409, %v5897
        %v6474 = vmul.f32 %v6410, %v5898
        %v6475 = vmul.f32 %v6411, %v5899
        %v6476 = vmul.f32 %v6412, %v5900
        %v6477 = vmul.f32 %v6413, %v5901
        %v6478 = vmul.f32 %v6414, %v5902
        %v6479 = vmul.f32 %v6415, %v5903
        %v6480 = vmul.f32 %v6416, %v5904
        %v6481 = vmul.f32 %v6417, %v5905
        %v6482 = vmul.f32 %v6418, %v5906
        %v6483 = vmul.f32 %v6419, %v5907
        %v6484 = vmul.f32 %v6420, %v5908
        %v6485 = vmul.f32 %v6421, %v5909
        %v6486 = vmul.f32 %v6422, %v5910
        %v6487 = vmul.f32 %v6423, %v5911
        %v6488 = vmul.f32 %v6424, %v5912
        %v6489 = vmul.f32 %v6425, %v5913
        %v6490 = vmul.f32 %v6426, %v5914
        %v6491 = vmul.f32 %v6427, %v5915
        %v6492 = vmul.f32 %v6428, %v5916
        %v6493 = vmul.f32 %v6429, %v5917
        %v6494 = vmul.f32 %v6430, %v5918
        %v6495 = vmul.f32 %v6431, %v5919
        %v6496 = vmul.f32 %v6432, %v5920
        %v6497 = vmul.f32 %v6433, %v5921
        %v6498 = vmul.f32 %v6434, %v5922
        %v6499 = vmul.f32 %v6435, %v5923
        %v6500 = vmul.f32 %v6436, %v5924
        %v6501 = vmul.f32 %v6437, %v5925
        %v6502 = vmul.f32 %v6438, %v5926
        %v6503 = vmul.f32 %v6439, %v5927
        %v6504 = vmul.f32 %v6440, %v5928
        %v6505 = vmul.f32 %v6441, %v5929
        %v6506 = vmul.f32 %v6442, %v5930
        %v6507 = vmul.f32 %v6443, %v5931
        %v6508 = vmul.f32 %v6444, %v5932
        %v6509 = vmul.f32 %v6445, %v5933
        %v6510 = vmul.f32 %v6446, %v5934
        %v6511 = vmul.f32 %v6447, %v5935
        %v6512 = vmul.f32 %v6448, %v5936
        %v6513 = vmul.f32 %v6449, %v5937
        %v6514 = vmul.f32 %v6450, %v5938
        %v6515 = vsub.f32 0.0, %v5683
        %v6516 = vsub.f32 0.0, %v5684
        %v6517 = vsub.f32 0.0, %v5685
        %v6518 = vsub.f32 0.0, %v5686
        %v6519 = vsub.f32 0.0, %v5687
        %v6520 = vsub.f32 0.0, %v5688
        %v6521 = vsub.f32 0.0, %v5689
        %v6522 = vsub.f32 0.0, %v5690
        %v6523 = vsub.f32 0.0, %v5691
        %v6524 = vsub.f32 0.0, %v5692
        %v6525 = vsub.f32 0.0, %v5693
        %v6526 = vsub.f32 0.0, %v5694
        %v6527 = vsub.f32 0.0, %v5695
        %v6528 = vsub.f32 0.0, %v5696
        %v6529 = vsub.f32 0.0, %v5697
        %v6530 = vsub.f32 0.0, %v5698
        %v6531 = vsub.f32 0.0, %v5699
        %v6532 = vsub.f32 0.0, %v5700
        %v6533 = vsub.f32 0.0, %v5701
        %v6534 = vsub.f32 0.0, %v5702
        %v6535 = vsub.f32 0.0, %v5703
        %v6536 = vsub.f32 0.0, %v5704
        %v6537 = vsub.f32 0.0, %v5705
        %v6538 = vsub.f32 0.0, %v5706
        %v6539 = vsub.f32 0.0, %v5707
        %v6540 = vsub.f32 0.0, %v5708
        %v6541 = vsub.f32 0.0, %v5709
        %v6542 = vsub.f32 0.0, %v5710
        %v6543 = vsub.f32 0.0, %v5711
        %v6544 = vsub.f32 0.0, %v5712
        %v6545 = vsub.f32 0.0, %v5713
        %v6546 = vsub.f32 0.0, %v5714
        %v6547 = vsub.f32 0.0, %v5715
        %v6548 = vsub.f32 0.0, %v5716
        %v6549 = vsub.f32 0.0, %v5717
        %v6550 = vsub.f32 0.0, %v5718
        %v6551 = vsub.f32 0.0, %v5719
        %v6552 = vsub.f32 0.0, %v5720
        %v6553 = vsub.f32 0.0, %v5721
        %v6554 = vsub.f32 0.0, %v5722
        %v6555 = vsub.f32 0.0, %v5723
        %v6556 = vsub.f32 0.0, %v5724
        %v6557 = vsub.f32 0.0, %v5725
        %v6558 = vsub.f32 0.0, %v5726
        %v6559 = vsub.f32 0.0, %v5727
        %v6560 = vsub.f32 0.0, %v5728
        %v6561 = vsub.f32 0.0, %v5729
        %v6562 = vsub.f32 0.0, %v5730
        %v6563 = vsub.f32 0.0, %v5731
        %v6564 = vsub.f32 0.0, %v5732
        %v6565 = vsub.f32 0.0, %v5733
        %v6566 = vsub.f32 0.0, %v5734
        %v6567 = vsub.f32 0.0, %v5735
        %v6568 = vsub.f32 0.0, %v5736
        %v6569 = vsub.f32 0.0, %v5737
        %v6570 = vsub.f32 0.0, %v5738
        %v6571 = vsub.f32 0.0, %v5739
        %v6572 = vsub.f32 0.0, %v5740
        %v6573 = vsub.f32 0.0, %v5741
        %v6574 = vsub.f32 0.0, %v5742
        %v6575 = vsub.f32 0.0, %v5743
        %v6576 = vsub.f32 0.0, %v5744
        %v6577 = vsub.f32 0.0, %v5745
        %v6578 = vsub.f32 0.0, %v5746
        %v6579 = vmul.f32 %v6515, %v5683
        %v6580 = vmul.f32 %v6516, %v5684
        %v6581 = vmul.f32 %v6517, %v5685
        %v6582 = vmul.f32 %v6518, %v5686
        %v6583 = vmul.f32 %v6519, %v5687
        %v6584 = vmul.f32 %v6520, %v5688
        %v6585 = vmul.f32 %v6521, %v5689
        %v6586 = vmul.f32 %v6522, %v5690
        %v6587 = vmul.f32 %v6523, %v5691
        %v6588 = vmul.f32 %v6524, %v5692
        %v6589 = vmul.f32 %v6525, %v5693
        %v6590 = vmul.f32 %v6526, %v5694
        %v6591 = vmul.f32 %v6527, %v5695
        %v6592 = vmul.f32 %v6528, %v5696
        %v6593 = vmul.f32 %v6529, %v5697
        %v6594 = vmul.f32 %v6530, %v5698
        %v6595 = vmul.f32 %v6531, %v5699
        %v6596 = vmul.f32 %v6532, %v5700
        %v6597 = vmul.f32 %v6533, %v5701
        %v6598 = vmul.f32 %v6534, %v5702
        %v6599 = vmul.f32 %v6535, %v5703
        %v6600 = vmul.f32 %v6536, %v5704
        %v6601 = vmul.f32 %v6537, %v5705
        %v6602 = vmul.f32 %v6538, %v5706
        %v6603 = vmul.f32 %v6539, %v5707
        %v6604 = vmul.f32 %v6540, %v5708
        %v6605 = vmul.f32 %v6541, %v5709
        %v6606 = vmul.f32 %v6542, %v5710
        %v6607 = vmul.f32 %v6543, %v5711
        %v6608 = vmul.f32 %v6544, %v5712
        %v6609 = vmul.f32 %v6545, %v5713
        %v6610 = vmul.f32 %v6546, %v5714
        %v6611 = vmul.f32 %v6547, %v5715
        %v6612 = vmul.f32 %v6548, %v5716
        %v6613 = vmul.f32 %v6549, %v5717
        %v6614 = vmul.f32 %v6550, %v5718
        %v6615 = vmul.f32 %v6551, %v5719
        %v6616 = vmul.f32 %v6552, %v5720
        %v6617 = vmul.f32 %v6553, %v5721
        %v6618 = vmul.f32 %v6554, %v5722
        %v6619 = vmul.f32 %v6555, %v5723
        %v6620 = vmul.f32 %v6556, %v5724
        %v6621 = vmul.f32 %v6557, %v5725
        %v6622 = vmul.f32 %v6558, %v5726
        %v6623 = vmul.f32 %v6559, %v5727
        %v6624 = vmul.f32 %v6560, %v5728
        %v6625 = vmul.f32 %v6561, %v5729
        %v6626 = vmul.f32 %v6562, %v5730
        %v6627 = vmul.f32 %v6563, %v5731
        %v6628 = vmul.f32 %v6564, %v5732
        %v6629 = vmul.f32 %v6565, %v5733
        %v6630 = vmul.f32 %v6566, %v5734
        %v6631 = vmul.f32 %v6567, %v5735
        %v6632 = vmul.f32 %v6568, %v5736
        %v6633 = vmul.f32 %v6569, %v5737
        %v6634 = vmul.f32 %v6570, %v5738
        %v6635 = vmul.f32 %v6571, %v5739
        %v6636 = vmul.f32 %v6572, %v5740
        %v6637 = vmul.f32 %v6573, %v5741
        %v6638 = vmul.f32 %v6574, %v5742
        %v6639 = vmul.f32 %v6575, %v5743
        %v6640 = vmul.f32 %v6576, %v5744
        %v6641 = vmul.f32 %v6577, %v5745
        %v6642 = vmul.f32 %v6578, %v5746
        %v6643 = vmul.f32 %v6579, 1.442695
        %v6644 = vpow.pop %v6643
        %v6645 = vmul.f32 %v6580, 1.442695
        %v6646 = vpow.pop %v6645
        %v6647 = vmul.f32 %v6581, 1.442695
        %v6648 = vpow.pop %v6647
        %v6649 = vmul.f32 %v6582, 1.442695
        %v6650 = vpow.pop %v6649
        %v6651 = vmul.f32 %v6583, 1.442695
        %v6652 = vpow.pop %v6651
        %v6653 = vmul.f32 %v6584, 1.442695
        %v6654 = vpow.pop %v6653
        %v6655 = vmul.f32 %v6585, 1.442695
        %v6656 = vpow.pop %v6655
        %v6657 = vmul.f32 %v6586, 1.442695
        %v6658 = vpow.pop %v6657
        %v6659 = vmul.f32 %v6587, 1.442695
        %v6660 = vpow.pop %v6659
        %v6661 = vmul.f32 %v6588, 1.442695
        %v6662 = vpow.pop %v6661
        %v6663 = vmul.f32 %v6589, 1.442695
        %v6664 = vpow.pop %v6663
        %v6665 = vmul.f32 %v6590, 1.442695
        %v6666 = vpow.pop %v6665
        %v6667 = vmul.f32 %v6591, 1.442695
        %v6668 = vpow.pop %v6667
        %v6669 = vmul.f32 %v6592, 1.442695
        %v6670 = vpow.pop %v6669
        %v6671 = vmul.f32 %v6593, 1.442695
        %v6672 = vpow.pop %v6671
        %v6673 = vmul.f32 %v6594, 1.442695
        %v6674 = vpow.pop %v6673
        %v6675 = vmul.f32 %v6595, 1.442695
        %v6676 = vpow.pop %v6675
        %v6677 = vmul.f32 %v6596, 1.442695
        %v6678 = vpow.pop %v6677
        %v6679 = vmul.f32 %v6597, 1.442695
        %v6680 = vpow.pop %v6679
        %v6681 = vmul.f32 %v6598, 1.442695
        %v6682 = vpow.pop %v6681
        %v6683 = vmul.f32 %v6599, 1.442695
        %v6684 = vpow.pop %v6683
        %v6685 = vmul.f32 %v6600, 1.442695
        %v6686 = vpow.pop %v6685
        %v6687 = vmul.f32 %v6601, 1.442695
        %v6688 = vpow.pop %v6687
        %v6689 = vmul.f32 %v6602, 1.442695
        %v6690 = vpow.pop %v6689
        %v6691 = vmul.f32 %v6603, 1.442695
        %v6692 = vpow.pop %v6691
        %v6693 = vmul.f32 %v6604, 1.442695
        %v6694 = vpow.pop %v6693
        %v6695 = vmul.f32 %v6605, 1.442695
        %v6696 = vpow.pop %v6695
        %v6697 = vmul.f32 %v6606, 1.442695
        %v6698 = vpow.pop %v6697
        %v6699 = vmul.f32 %v6607, 1.442695
        %v6700 = vpow.pop %v6699
        %v6701 = vmul.f32 %v6608, 1.442695
        %v6702 = vpow.pop %v6701
        %v6703 = vmul.f32 %v6609, 1.442695
        %v6704 = vpow.pop %v6703
        %v6705 = vmul.f32 %v6610, 1.442695
        %v6706 = vpow.pop %v6705
        %v6707 = vmul.f32 %v6611, 1.442695
        %v6708 = vpow.pop %v6707
        %v6709 = vmul.f32 %v6612, 1.442695
        %v6710 = vpow.pop %v6709
        %v6711 = vmul.f32 %v6613, 1.442695
        %v6712 = vpow.pop %v6711
        %v6713 = vmul.f32 %v6614, 1.442695
        %v6714 = vpow.pop %v6713
        %v6715 = vmul.f32 %v6615, 1.442695
        %v6716 = vpow.pop %v6715
        %v6717 = vmul.f32 %v6616, 1.442695
        %v6718 = vpow.pop %v6717
        %v6719 = vmul.f32 %v6617, 1.442695
        %v6720 = vpow.pop %v6719
        %v6721 = vmul.f32 %v6618, 1.442695
        %v6722 = vpow.pop %v6721
        %v6723 = vmul.f32 %v6619, 1.442695
        %v6724 = vpow.pop %v6723
        %v6725 = vmul.f32 %v6620, 1.442695
        %v6726 = vpow.pop %v6725
        %v6727 = vmul.f32 %v6621, 1.442695
        %v6728 = vpow.pop %v6727
        %v6729 = vmul.f32 %v6622, 1.442695
        %v6730 = vpow.pop %v6729
        %v6731 = vmul.f32 %v6623, 1.442695
        %v6732 = vpow.pop %v6731
        %v6733 = vmul.f32 %v6624, 1.442695
        %v6734 = vpow.pop %v6733
        %v6735 = vmul.f32 %v6625, 1.442695
        %v6736 = vpow.pop %v6735
        %v6737 = vmul.f32 %v6626, 1.442695
        %v6738 = vpow.pop %v6737
        %v6739 = vmul.f32 %v6627, 1.442695
        %v6740 = vpow.pop %v6739
        %v6741 = vmul.f32 %v6628, 1.442695
        %v6742 = vpow.pop %v6741
        %v6743 = vmul.f32 %v6629, 1.442695
        %v6744 = vpow.pop %v6743
        %v6745 = vmul.f32 %v6630, 1.442695
        %v6746 = vpow.pop %v6745
        %v6747 = vmul.f32 %v6631, 1.442695
        %v6748 = vpow.pop %v6747
        %v6749 = vmul.f32 %v6632, 1.442695
        %v6750 = vpow.pop %v6749
        %v6751 = vmul.f32 %v6633, 1.442695
        %v6752 = vpow.pop %v6751
        %v6753 = vmul.f32 %v6634, 1.442695
        %v6754 = vpow.pop %v6753
        %v6755 = vmul.f32 %v6635, 1.442695
        %v6756 = vpow.pop %v6755
        %v6757 = vmul.f32 %v6636, 1.442695
        %v6758 = vpow.pop %v6757
        %v6759 = vmul.f32 %v6637, 1.442695
        %v6760 = vpow.pop %v6759
        %v6761 = vmul.f32 %v6638, 1.442695
        %v6762 = vpow.pop %v6761
        %v6763 = vmul.f32 %v6639, 1.442695
        %v6764 = vpow.pop %v6763
        %v6765 = vmul.f32 %v6640, 1.442695
        %v6766 = vpow.pop %v6765
        %v6767 = vmul.f32 %v6641, 1.442695
        %v6768 = vpow.pop %v6767
        %v6769 = vmul.f32 %v6642, 1.442695
        %v6770 = vpow.pop %v6769
        %v6771 = vmul.f32 %v6451, %v6644
        %v6772 = vmul.f32 %v6452, %v6646
        %v6773 = vmul.f32 %v6453, %v6648
        %v6774 = vmul.f32 %v6454, %v6650
        %v6775 = vmul.f32 %v6455, %v6652
        %v6776 = vmul.f32 %v6456, %v6654
        %v6777 = vmul.f32 %v6457, %v6656
        %v6778 = vmul.f32 %v6458, %v6658
        %v6779 = vmul.f32 %v6459, %v6660
        %v6780 = vmul.f32 %v6460, %v6662
        %v6781 = vmul.f32 %v6461, %v6664
        %v6782 = vmul.f32 %v6462, %v6666
        %v6783 = vmul.f32 %v6463, %v6668
        %v6784 = vmul.f32 %v6464, %v6670
        %v6785 = vmul.f32 %v6465, %v6672
        %v6786 = vmul.f32 %v6466, %v6674
        %v6787 = vmul.f32 %v6467, %v6676
        %v6788 = vmul.f32 %v6468, %v6678
        %v6789 = vmul.f32 %v6469, %v6680
        %v6790 = vmul.f32 %v6470, %v6682
        %v6791 = vmul.f32 %v6471, %v6684
        %v6792 = vmul.f32 %v6472, %v6686
        %v6793 = vmul.f32 %v6473, %v6688
        %v6794 = vmul.f32 %v6474, %v6690
        %v6795 = vmul.f32 %v6475, %v6692
        %v6796 = vmul.f32 %v6476, %v6694
        %v6797 = vmul.f32 %v6477, %v6696
        %v6798 = vmul.f32 %v6478, %v6698
        %v6799 = vmul.f32 %v6479, %v6700
        %v6800 = vmul.f32 %v6480, %v6702
        %v6801 = vmul.f32 %v6481, %v6704
        %v6802 = vmul.f32 %v6482, %v6706
        %v6803 = vmul.f32 %v6483, %v6708
        %v6804 = vmul.f32 %v6484, %v6710
        %v6805 = vmul.f32 %v6485, %v6712
        %v6806 = vmul.f32 %v6486, %v6714
        %v6807 = vmul.f32 %v6487, %v6716
        %v6808 = vmul.f32 %v6488, %v6718
        %v6809 = vmul.f32 %v6489, %v6720
        %v6810 = vmul.f32 %v6490, %v6722
        %v6811 = vmul.f32 %v6491, %v6724
        %v6812 = vmul.f32 %v6492, %v6726
        %v6813 = vmul.f32 %v6493, %v6728
        %v6814 = vmul.f32 %v6494, %v6730
        %v6815 = vmul.f32 %v6495, %v6732
        %v6816 = vmul.f32 %v6496, %v6734
        %v6817 = vmul.f32 %v6497, %v6736
        %v6818 = vmul.f32 %v6498, %v6738
        %v6819 = vmul.f32 %v6499, %v6740
        %v6820 = vmul.f32 %v6500, %v6742
        %v6821 = vmul.f32 %v6501, %v6744
        %v6822 = vmul.f32 %v6502, %v6746
        %v6823 = vmul.f32 %v6503, %v6748
        %v6824 = vmul.f32 %v6504, %v6750
        %v6825 = vmul.f32 %v6505, %v6752
        %v6826 = vmul.f32 %v6506, %v6754
        %v6827 = vmul.f32 %v6507, %v6756
        %v6828 = vmul.f32 %v6508, %v6758
        %v6829 = vmul.f32 %v6509, %v6760
        %v6830 = vmul.f32 %v6510, %v6762
        %v6831 = vmul.f32 %v6511, %v6764
        %v6832 = vmul.f32 %v6512, %v6766
        %v6833 = vmul.f32 %v6513, %v6768
        %v6834 = vmul.f32 %v6514, %v6770
        %v6835 = vsub.f32 1.0, %v6771
        %v6836 = vsub.f32 1.0, %v6772
        %v6837 = vsub.f32 1.0, %v6773
        %v6838 = vsub.f32 1.0, %v6774
        %v6839 = vsub.f32 1.0, %v6775
        %v6840 = vsub.f32 1.0, %v6776
        %v6841 = vsub.f32 1.0, %v6777
        %v6842 = vsub.f32 1.0, %v6778
        %v6843 = vsub.f32 1.0, %v6779
        %v6844 = vsub.f32 1.0, %v6780
        %v6845 = vsub.f32 1.0, %v6781
        %v6846 = vsub.f32 1.0, %v6782
        %v6847 = vsub.f32 1.0, %v6783
        %v6848 = vsub.f32 1.0, %v6784
        %v6849 = vsub.f32 1.0, %v6785
        %v6850 = vsub.f32 1.0, %v6786
        %v6851 = vsub.f32 1.0, %v6787
        %v6852 = vsub.f32 1.0, %v6788
        %v6853 = vsub.f32 1.0, %v6789
        %v6854 = vsub.f32 1.0, %v6790
        %v6855 = vsub.f32 1.0, %v6791
        %v6856 = vsub.f32 1.0, %v6792
        %v6857 = vsub.f32 1.0, %v6793
        %v6858 = vsub.f32 1.0, %v6794
        %v6859 = vsub.f32 1.0, %v6795
        %v6860 = vsub.f32 1.0, %v6796
        %v6861 = vsub.f32 1.0, %v6797
        %v6862 = vsub.f32 1.0, %v6798
        %v6863 = vsub.f32 1.0, %v6799
        %v6864 = vsub.f32 1.0, %v6800
        %v6865 = vsub.f32 1.0, %v6801
        %v6866 = vsub.f32 1.0, %v6802
        %v6867 = vsub.f32 1.0, %v6803
        %v6868 = vsub.f32 1.0, %v6804
        %v6869 = vsub.f32 1.0, %v6805
        %v6870 = vsub.f32 1.0, %v6806
        %v6871 = vsub.f32 1.0, %v6807
        %v6872 = vsub.f32 1.0, %v6808
        %v6873 = vsub.f32 1.0, %v6809
        %v6874 = vsub.f32 1.0, %v6810
        %v6875 = vsub.f32 1.0, %v6811
        %v6876 = vsub.f32 1.0, %v6812
        %v6877 = vsub.f32 1.0, %v6813
        %v6878 = vsub.f32 1.0, %v6814
        %v6879 = vsub.f32 1.0, %v6815
        %v6880 = vsub.f32 1.0, %v6816
        %v6881 = vsub.f32 1.0, %v6817
        %v6882 = vsub.f32 1.0, %v6818
        %v6883 = vsub.f32 1.0, %v6819
        %v6884 = vsub.f32 1.0, %v6820
        %v6885 = vsub.f32 1.0, %v6821
        %v6886 = vsub.f32 1.0, %v6822
        %v6887 = vsub.f32 1.0, %v6823
        %v6888 = vsub.f32 1.0, %v6824
        %v6889 = vsub.f32 1.0, %v6825
        %v6890 = vsub.f32 1.0, %v6826
        %v6891 = vsub.f32 1.0, %v6827
        %v6892 = vsub.f32 1.0, %v6828
        %v6893 = vsub.f32 1.0, %v6829
        %v6894 = vsub.f32 1.0, %v6830
        %v6895 = vsub.f32 1.0, %v6831
        %v6896 = vsub.f32 1.0, %v6832
        %v6897 = vsub.f32 1.0, %v6833
        %v6898 = vsub.f32 1.0, %v6834
        %v6899 = vmul.f32 %v5619, %v6835
        %v6900 = vmul.f32 %v5620, %v6836
        %v6901 = vmul.f32 %v5621, %v6837
        %v6902 = vmul.f32 %v5622, %v6838
        %v6903 = vmul.f32 %v5623, %v6839
        %v6904 = vmul.f32 %v5624, %v6840
        %v6905 = vmul.f32 %v5625, %v6841
        %v6906 = vmul.f32 %v5626, %v6842
        %v6907 = vmul.f32 %v5627, %v6843
        %v6908 = vmul.f32 %v5628, %v6844
        %v6909 = vmul.f32 %v5629, %v6845
        %v6910 = vmul.f32 %v5630, %v6846
        %v6911 = vmul.f32 %v5631, %v6847
        %v6912 = vmul.f32 %v5632, %v6848
        %v6913 = vmul.f32 %v5633, %v6849
        %v6914 = vmul.f32 %v5634, %v6850
        %v6915 = vmul.f32 %v5635, %v6851
        %v6916 = vmul.f32 %v5636, %v6852
        %v6917 = vmul.f32 %v5637, %v6853
        %v6918 = vmul.f32 %v5638, %v6854
        %v6919 = vmul.f32 %v5639, %v6855
        %v6920 = vmul.f32 %v5640, %v6856
        %v6921 = vmul.f32 %v5641, %v6857
        %v6922 = vmul.f32 %v5642, %v6858
        %v6923 = vmul.f32 %v5643, %v6859
        %v6924 = vmul.f32 %v5644, %v6860
        %v6925 = vmul.f32 %v5645, %v6861
        %v6926 = vmul.f32 %v5646, %v6862
        %v6927 = vmul.f32 %v5647, %v6863
        %v6928 = vmul.f32 %v5648, %v6864
        %v6929 = vmul.f32 %v5649, %v6865
        %v6930 = vmul.f32 %v5650, %v6866
        %v6931 = vmul.f32 %v5651, %v6867
        %v6932 = vmul.f32 %v5652, %v6868
        %v6933 = vmul.f32 %v5653, %v6869
        %v6934 = vmul.f32 %v5654, %v6870
        %v6935 = vmul.f32 %v5655, %v6871
        %v6936 = vmul.f32 %v5656, %v6872
        %v6937 = vmul.f32 %v5657, %v6873
        %v6938 = vmul.f32 %v5658, %v6874
        %v6939 = vmul.f32 %v5659, %v6875
        %v6940 = vmul.f32 %v5660, %v6876
        %v6941 = vmul.f32 %v5661, %v6877
        %v6942 = vmul.f32 %v5662, %v6878
        %v6943 = vmul.f32 %v5663, %v6879
        %v6944 = vmul.f32 %v5664, %v6880
        %v6945 = vmul.f32 %v5665, %v6881
        %v6946 = vmul.f32 %v5666, %v6882
        %v6947 = vmul.f32 %v5667, %v6883
        %v6948 = vmul.f32 %v5668, %v6884
        %v6949 = vmul.f32 %v5669, %v6885
        %v6950 = vmul.f32 %v5670, %v6886
        %v6951 = vmul.f32 %v5671, %v6887
        %v6952 = vmul.f32 %v5672, %v6888
        %v6953 = vmul.f32 %v5673, %v6889
        %v6954 = vmul.f32 %v5674, %v6890
        %v6955 = vmul.f32 %v5675, %v6891
        %v6956 = vmul.f32 %v5676, %v6892
        %v6957 = vmul.f32 %v5677, %v6893
        %v6958 = vmul.f32 %v5678, %v6894
        %v6959 = vmul.f32 %v5679, %v6895
        %v6960 = vmul.f32 %v5680, %v6896
        %v6961 = vmul.f32 %v5681, %v6897
        %v6962 = vmul.f32 %v5682, %v6898
        %v6963 = vadd.f32 %v6899, 1.0
        %v6964 = vadd.f32 %v6900, 1.0
        %v6965 = vadd.f32 %v6901, 1.0
        %v6966 = vadd.f32 %v6902, 1.0
        %v6967 = vadd.f32 %v6903, 1.0
        %v6968 = vadd.f32 %v6904, 1.0
        %v6969 = vadd.f32 %v6905, 1.0
        %v6970 = vadd.f32 %v6906, 1.0
        %v6971 = vadd.f32 %v6907, 1.0
        %v6972 = vadd.f32 %v6908, 1.0
        %v6973 = vadd.f32 %v6909, 1.0
        %v6974 = vadd.f32 %v6910, 1.0
        %v6975 = vadd.f32 %v6911, 1.0
        %v6976 = vadd.f32 %v6912, 1.0
        %v6977 = vadd.f32 %v6913, 1.0
        %v6978 = vadd.f32 %v6914, 1.0
        %v6979 = vadd.f32 %v6915, 1.0
        %v6980 = vadd.f32 %v6916, 1.0
        %v6981 = vadd.f32 %v6917, 1.0
        %v6982 = vadd.f32 %v6918, 1.0
        %v6983 = vadd.f32 %v6919, 1.0
        %v6984 = vadd.f32 %v6920, 1.0
        %v6985 = vadd.f32 %v6921, 1.0
        %v6986 = vadd.f32 %v6922, 1.0
        %v6987 = vadd.f32 %v6923, 1.0
        %v6988 = vadd.f32 %v6924, 1.0
        %v6989 = vadd.f32 %v6925, 1.0
        %v6990 = vadd.f32 %v6926, 1.0
        %v6991 = vadd.f32 %v6927, 1.0
        %v6992 = vadd.f32 %v6928, 1.0
        %v6993 = vadd.f32 %v6929, 1.0
        %v6994 = vadd.f32 %v6930, 1.0
        %v6995 = vadd.f32 %v6931, 1.0
        %v6996 = vadd.f32 %v6932, 1.0
        %v6997 = vadd.f32 %v6933, 1.0
        %v6998 = vadd.f32 %v6934, 1.0
        %v6999 = vadd.f32 %v6935, 1.0
        %v7000 = vadd.f32 %v6936, 1.0
        %v7001 = vadd.f32 %v6937, 1.0
        %v7002 = vadd.f32 %v6938, 1.0
        %v7003 = vadd.f32 %v6939, 1.0
        %v7004 = vadd.f32 %v6940, 1.0
        %v7005 = vadd.f32 %v6941, 1.0
        %v7006 = vadd.f32 %v6942, 1.0
        %v7007 = vadd.f32 %v6943, 1.0
        %v7008 = vadd.f32 %v6944, 1.0
        %v7009 = vadd.f32 %v6945, 1.0
        %v7010 = vadd.f32 %v6946, 1.0
        %v7011 = vadd.f32 %v6947, 1.0
        %v7012 = vadd.f32 %v6948, 1.0
        %v7013 = vadd.f32 %v6949, 1.0
        %v7014 = vadd.f32 %v6950, 1.0
        %v7015 = vadd.f32 %v6951, 1.0
        %v7016 = vadd.f32 %v6952, 1.0
        %v7017 = vadd.f32 %v6953, 1.0
        %v7018 = vadd.f32 %v6954, 1.0
        %v7019 = vadd.f32 %v6955, 1.0
        %v7020 = vadd.f32 %v6956, 1.0
        %v7021 = vadd.f32 %v6957, 1.0
        %v7022 = vadd.f32 %v6958, 1.0
        %v7023 = vadd.f32 %v6959, 1.0
        %v7024 = vadd.f32 %v6960, 1.0
        %v7025 = vadd.f32 %v6961, 1.0
        %v7026 = vadd.f32 %v6962, 1.0
        %v7027 = vmul.f32 %v5427, %v6963
        %v7028 = vmul.f32 %v5428, %v6964
        %v7029 = vmul.f32 %v5429, %v6965
        %v7030 = vmul.f32 %v5430, %v6966
        %v7031 = vmul.f32 %v5431, %v6967
        %v7032 = vmul.f32 %v5432, %v6968
        %v7033 = vmul.f32 %v5433, %v6969
        %v7034 = vmul.f32 %v5434, %v6970
        %v7035 = vmul.f32 %v5435, %v6971
        %v7036 = vmul.f32 %v5436, %v6972
        %v7037 = vmul.f32 %v5437, %v6973
        %v7038 = vmul.f32 %v5438, %v6974
        %v7039 = vmul.f32 %v5439, %v6975
        %v7040 = vmul.f32 %v5440, %v6976
        %v7041 = vmul.f32 %v5441, %v6977
        %v7042 = vmul.f32 %v5442, %v6978
        %v7043 = vmul.f32 %v5443, %v6979
        %v7044 = vmul.f32 %v5444, %v6980
        %v7045 = vmul.f32 %v5445, %v6981
        %v7046 = vmul.f32 %v5446, %v6982
        %v7047 = vmul.f32 %v5447, %v6983
        %v7048 = vmul.f32 %v5448, %v6984
        %v7049 = vmul.f32 %v5449, %v6985
        %v7050 = vmul.f32 %v5450, %v6986
        %v7051 = vmul.f32 %v5451, %v6987
        %v7052 = vmul.f32 %v5452, %v6988
        %v7053 = vmul.f32 %v5453, %v6989
        %v7054 = vmul.f32 %v5454, %v6990
        %v7055 = vmul.f32 %v5455, %v6991
        %v7056 = vmul.f32 %v5456, %v6992
        %v7057 = vmul.f32 %v5457, %v6993
        %v7058 = vmul.f32 %v5458, %v6994
        %v7059 = vmul.f32 %v5459, %v6995
        %v7060 = vmul.f32 %v5460, %v6996
        %v7061 = vmul.f32 %v5461, %v6997
        %v7062 = vmul.f32 %v5462, %v6998
        %v7063 = vmul.f32 %v5463, %v6999
        %v7064 = vmul.f32 %v5464, %v7000
        %v7065 = vmul.f32 %v5465, %v7001
        %v7066 = vmul.f32 %v5466, %v7002
        %v7067 = vmul.f32 %v5467, %v7003
        %v7068 = vmul.f32 %v5468, %v7004
        %v7069 = vmul.f32 %v5469, %v7005
        %v7070 = vmul.f32 %v5470, %v7006
        %v7071 = vmul.f32 %v5471, %v7007
        %v7072 = vmul.f32 %v5472, %v7008
        %v7073 = vmul.f32 %v5473, %v7009
        %v7074 = vmul.f32 %v5474, %v7010
        %v7075 = vmul.f32 %v5475, %v7011
        %v7076 = vmul.f32 %v5476, %v7012
        %v7077 = vmul.f32 %v5477, %v7013
        %v7078 = vmul.f32 %v5478, %v7014
        %v7079 = vmul.f32 %v5479, %v7015
        %v7080 = vmul.f32 %v5480, %v7016
        %v7081 = vmul.f32 %v5481, %v7017
        %v7082 = vmul.f32 %v5482, %v7018
        %v7083 = vmul.f32 %v5483, %v7019
        %v7084 = vmul.f32 %v5484, %v7020
        %v7085 = vmul.f32 %v5485, %v7021
        %v7086 = vmul.f32 %v5486, %v7022
        %v7087 = vmul.f32 %v5487, %v7023
        %v7088 = vmul.f32 %v5488, %v7024
        %v7089 = vmul.f32 %v5489, %v7025
        %v7090 = vmul.f32 %v5490, %v7026
        %v7091 = vpack.c.bf16 %v7029, %v7027
        %v7092 = vpack.c.bf16 %v7030, %v7028
        %v7093 = vpack.c.bf16 %v7033, %v7031
        %v7094 = vpack.c.bf16 %v7034, %v7032
        %v7095 = vpack.c.bf16 %v7037, %v7035
        %v7096 = vpack.c.bf16 %v7038, %v7036
        %v7097 = vpack.c.bf16 %v7041, %v7039
        %v7098 = vpack.c.bf16 %v7042, %v7040
        %v7099 = vpack.c.bf16 %v7045, %v7043
        %v7100 = vpack.c.bf16 %v7046, %v7044
        %v7101 = vpack.c.bf16 %v7049, %v7047
        %v7102 = vpack.c.bf16 %v7050, %v7048
        %v7103 = vpack.c.bf16 %v7053, %v7051
        %v7104 = vpack.c.bf16 %v7054, %v7052
        %v7105 = vpack.c.bf16 %v7057, %v7055
        %v7106 = vpack.c.bf16 %v7058, %v7056
        %v7107 = vpack.c.bf16 %v7061, %v7059
        %v7108 = vpack.c.bf16 %v7062, %v7060
        %v7109 = vpack.c.bf16 %v7065, %v7063
        %v7110 = vpack.c.bf16 %v7066, %v7064
        %v7111 = vpack.c.bf16 %v7069, %v7067
        %v7112 = vpack.c.bf16 %v7070, %v7068
        %v7113 = vpack.c.bf16 %v7073, %v7071
        %v7114 = vpack.c.bf16 %v7074, %v7072
        %v7115 = vpack.c.bf16 %v7077, %v7075
        %v7116 = vpack.c.bf16 %v7078, %v7076
        %v7117 = vpack.c.bf16 %v7081, %v7079
        %v7118 = vpack.c.bf16 %v7082, %v7080
        %v7119 = vpack.c.bf16 %v7085, %v7083
        %v7120 = vpack.c.bf16 %v7086, %v7084
        %v7121 = vpack.c.bf16 %v7089, %v7087
        %v7122 = vpack.c.bf16 %v7090, %v7088
        %v7123 = vld [vmem:[#allocation9] sm:$0xf]
        %v7124 = vld [vmem:[#allocation9 + $0x4] sm:$0xf]
        %v7125 = vld [vmem:[#allocation9 + $0x8] sm:$0xf]
        %v7126 = vld [vmem:[#allocation9 + $0xc] sm:$0xf]
        %v7127 = vld [vmem:[#allocation9 + $0x10] sm:$0xf]
        %v7128 = vld [vmem:[#allocation9 + $0x14] sm:$0xf]
        %v7129 = vld [vmem:[#allocation9 + $0x18] sm:$0xf]
        %v7130 = vld [vmem:[#allocation9 + $0x1c] sm:$0xf]
        %v7131 = vld [vmem:[#allocation9 + $0x20] sm:$0xf]
        %v7132 = vld [vmem:[#allocation9 + $0x24] sm:$0xf]
        %v7133 = vld [vmem:[#allocation9 + $0x28] sm:$0xf]
        %v7134 = vld [vmem:[#allocation9 + $0x2c] sm:$0xf]
        %v7135 = vld [vmem:[#allocation9 + $0x30] sm:$0xf]
        %v7136 = vld [vmem:[#allocation9 + $0x34] sm:$0xf]
        %v7137 = vld [vmem:[#allocation9 + $0x38] sm:$0xf]
        %v7138 = vld [vmem:[#allocation9 + $0x3c] sm:$0xf]
        %v7139 = vld [vmem:[#allocation9 + $0x40] sm:$0xf]
        %v7140 = vld [vmem:[#allocation9 + $0x44] sm:$0xf]
        %v7141 = vld [vmem:[#allocation9 + $0x48] sm:$0xf]
        %v7142 = vld [vmem:[#allocation9 + $0x4c] sm:$0xf]
        %v7143 = vld [vmem:[#allocation9 + $0x50] sm:$0xf]
        %v7144 = vld [vmem:[#allocation9 + $0x54] sm:$0xf]
        %v7145 = vld [vmem:[#allocation9 + $0x58] sm:$0xf]
        %v7146 = vld [vmem:[#allocation9 + $0x5c] sm:$0xf]
        %v7147 = vld [vmem:[#allocation9 + $0x60] sm:$0xf]
        %v7148 = vld [vmem:[#allocation9 + $0x64] sm:$0xf]
        %v7149 = vld [vmem:[#allocation9 + $0x68] sm:$0xf]
        %v7150 = vld [vmem:[#allocation9 + $0x6c] sm:$0xf]
        %v7151 = vld [vmem:[#allocation9 + $0x70] sm:$0xf]
        %v7152 = vld [vmem:[#allocation9 + $0x74] sm:$0xf]
        %v7153 = vld [vmem:[#allocation9 + $0x78] sm:$0xf]
        %v7154 = vld [vmem:[#allocation9 + $0x7c] sm:$0xf]
        %v7155 = vld [vmem:[%s8] sm:$0x1]
        %v7157 = vlaneseq
        %v7158 = vshrl.u32 %v7157, 7
        %v7159 = vsub.s32 0, %v7158
        %v7160 = vrot.slane %v7155, %v7159
        %v7194 = vunpack.c.l.b16 %v7123
        %v7195 = vunpack.c.l.b16 %v7124
        %v7196 = vunpack.c.l.b16 %v7125
        %v7197 = vunpack.c.l.b16 %v7126
        %v7198 = vunpack.c.l.b16 %v7127
        %v7199 = vunpack.c.l.b16 %v7128
        %v7200 = vunpack.c.l.b16 %v7129
        %v7201 = vunpack.c.l.b16 %v7130
        %v7202 = vunpack.c.l.b16 %v7131
        %v7203 = vunpack.c.l.b16 %v7132
        %v7204 = vunpack.c.l.b16 %v7133
        %v7205 = vunpack.c.l.b16 %v7134
        %v7206 = vunpack.c.l.b16 %v7135
        %v7207 = vunpack.c.l.b16 %v7136
        %v7208 = vunpack.c.l.b16 %v7137
        %v7209 = vunpack.c.l.b16 %v7138
        %v7210 = vunpack.c.l.b16 %v7139
        %v7211 = vunpack.c.l.b16 %v7140
        %v7212 = vunpack.c.l.b16 %v7141
        %v7213 = vunpack.c.l.b16 %v7142
        %v7214 = vunpack.c.l.b16 %v7143
        %v7215 = vunpack.c.l.b16 %v7144
        %v7216 = vunpack.c.l.b16 %v7145
        %v7217 = vunpack.c.l.b16 %v7146
        %v7218 = vunpack.c.l.b16 %v7147
        %v7219 = vunpack.c.l.b16 %v7148
        %v7220 = vunpack.c.l.b16 %v7149
        %v7221 = vunpack.c.l.b16 %v7150
        %v7222 = vunpack.c.l.b16 %v7151
        %v7223 = vunpack.c.l.b16 %v7152
        %v7224 = vunpack.c.l.b16 %v7153
        %v7225 = vunpack.c.l.b16 %v7154
        %v7226 = vpack.c.b16 %v7195, %v7194
        %v7227 = vpack.c.b16 %v7197, %v7196
        %v7228 = vpack.c.b16 %v7199, %v7198
        %v7229 = vpack.c.b16 %v7201, %v7200
        %v7230 = vpack.c.b16 %v7203, %v7202
        %v7231 = vpack.c.b16 %v7205, %v7204
        %v7232 = vpack.c.b16 %v7207, %v7206
        %v7233 = vpack.c.b16 %v7209, %v7208
        %v7234 = vpack.c.b16 %v7211, %v7210
        %v7235 = vpack.c.b16 %v7213, %v7212
        %v7236 = vpack.c.b16 %v7215, %v7214
        %v7237 = vpack.c.b16 %v7217, %v7216
        %v7238 = vpack.c.b16 %v7219, %v7218
        %v7239 = vpack.c.b16 %v7221, %v7220
        %v7240 = vpack.c.b16 %v7223, %v7222
        %v7241 = vpack.c.b16 %v7225, %v7224
        %7258 = vmatprep.subr.bf16.mxu0 0
        %7259 = vmatpush1.bf16.msra.mxu0 %v7226
        %7260 = vmatprep.subr.bf16.mxu0 0
        %7261 = vmatpush1.bf16.msra.mxu0 %v7227
        %7262 = vmatprep.subr.bf16.mxu0 0
        %7263 = vmatpush1.bf16.msra.mxu0 %v7228
        %7264 = vmatprep.subr.bf16.mxu0 0
        %7265 = vmatpush1.bf16.msra.mxu0 %v7229
        %7266 = vmatprep.subr.bf16.mxu0 0
        %7267 = vmatpush1.bf16.msra.mxu0 %v7230
        %7268 = vmatprep.subr.bf16.mxu0 0
        %7269 = vmatpush1.bf16.msra.mxu0 %v7231
        %7270 = vmatprep.subr.bf16.mxu0 0
        %7271 = vmatpush1.bf16.msra.mxu0 %v7232
        %7272 = vmatprep.subr.bf16.mxu0 0
        %7273 = vmatpush1.bf16.msra.mxu0 %v7233
        %7274 = vmatprep.subr.bf16.mxu0 0
        %7275 = vmatpush1.bf16.msra.mxu0 %v7234
        %7276 = vmatprep.subr.bf16.mxu0 0
        %7277 = vmatpush1.bf16.msra.mxu0 %v7235
        %7278 = vmatprep.subr.bf16.mxu0 0
        %7279 = vmatpush1.bf16.msra.mxu0 %v7236
        %7280 = vmatprep.subr.bf16.mxu0 0
        %7281 = vmatpush1.bf16.msra.mxu0 %v7237
        %7282 = vmatprep.subr.bf16.mxu0 0
        %7283 = vmatpush1.bf16.msra.mxu0 %v7238
        %7284 = vmatprep.subr.bf16.mxu0 0
        %7285 = vmatpush1.bf16.msra.mxu0 %v7239
        %7286 = vmatprep.subr.bf16.mxu0 0
        %7287 = vmatpush1.bf16.msra.mxu0 %v7240
        %7288 = vmatprep.subr.bf16.mxu0 0
        %7289 = vmatpush1.bf16.msra.mxu0 %v7241
        %7290 = vmatprep.mubr.bf16.mxu0 %v7092
        %7291 = vmatmul.mubr.bf16.gmra.mrb[0].mxu0 %v7091
        %v7292 = vpop.f32.mrb[0].mxu0
        %v7293 = vadd.f32 %v7160, %v7292
        %v7294 = vpop.f32.mrb[0].mxu0
        %v7295 = vpop.f32.mrb[0].mxu0
        %v7296 = vadd.f32 %v7160, %v7295
        %v7297 = vpop.f32.mrb[0].mxu0
        %7298 = vmatprep.mubr.bf16.mxu0 %v7094
        %7299 = vmatmul.mubr.bf16.gmra.mrb[0].mxu0 %v7093
        %v7300 = vpop.f32.mrb[0].mxu0
        %v7301 = vadd.f32 %v7160, %v7300
        %v7302 = vpop.f32.mrb[0].mxu0
        %v7303 = vpop.f32.mrb[0].mxu0
        %v7304 = vadd.f32 %v7160, %v7303
        %v7305 = vpop.f32.mrb[0].mxu0
        %7306 = vmatprep.mubr.bf16.mxu0 %v7096
        %7307 = vmatmul.mubr.bf16.gmra.mrb[0].mxu0 %v7095
        %v7308 = vpop.f32.mrb[0].mxu0
        %v7309 = vadd.f32 %v7160, %v7308
        %v7310 = vpop.f32.mrb[0].mxu0
        %v7311 = vpop.f32.mrb[0].mxu0
        %v7312 = vadd.f32 %v7160, %v7311
        %v7313 = vpop.f32.mrb[0].mxu0
        %7314 = vmatprep.mubr.bf16.mxu0 %v7098
        %7315 = vmatmul.mubr.bf16.gmra.mrb[0].mxu0 %v7097
        %v7316 = vpop.f32.mrb[0].mxu0
        %v7317 = vadd.f32 %v7160, %v7316
        %v7318 = vpop.f32.mrb[0].mxu0
        %v7319 = vpop.f32.mrb[0].mxu0
        %v7320 = vadd.f32 %v7160, %v7319
        %v7321 = vpop.f32.mrb[0].mxu0
        %7322 = vmatprep.mubr.bf16.mxu0 %v7100
        %7323 = vmatmul.mubr.bf16.gmra.mrb[0].mxu0 %v7099
        %v7324 = vpop.f32.mrb[0].mxu0
        %v7325 = vadd.f32 %v7160, %v7324
        %v7326 = vpop.f32.mrb[0].mxu0
        %v7327 = vpop.f32.mrb[0].mxu0
        %v7328 = vadd.f32 %v7160, %v7327
        %v7329 = vpop.f32.mrb[0].mxu0
        %7330 = vmatprep.mubr.bf16.mxu0 %v7102
        %7331 = vmatmul.mubr.bf16.gmra.mrb[0].mxu0 %v7101
        %v7332 = vpop.f32.mrb[0].mxu0
        %v7333 = vadd.f32 %v7160, %v7332
        %v7334 = vpop.f32.mrb[0].mxu0
        %v7335 = vpop.f32.mrb[0].mxu0
        %v7336 = vadd.f32 %v7160, %v7335
        %v7337 = vpop.f32.mrb[0].mxu0
        %7338 = vmatprep.mubr.bf16.mxu0 %v7104
        %7339 = vmatmul.mubr.bf16.gmra.mrb[0].mxu0 %v7103
        %v7340 = vpop.f32.mrb[0].mxu0
        %v7341 = vadd.f32 %v7160, %v7340
        %v7342 = vpop.f32.mrb[0].mxu0
        %v7343 = vpop.f32.mrb[0].mxu0
        %v7344 = vadd.f32 %v7160, %v7343
        %v7345 = vpop.f32.mrb[0].mxu0
        %7346 = vmatprep.mubr.bf16.mxu0 %v7106
        %7347 = vmatmul.mubr.bf16.gmra.mrb[0].mxu0 %v7105
        %v7348 = vpop.f32.mrb[0].mxu0
        %v7349 = vadd.f32 %v7160, %v7348
        %v7350 = vpop.f32.mrb[0].mxu0
        %v7351 = vpop.f32.mrb[0].mxu0
        %v7352 = vadd.f32 %v7160, %v7351
        %v7353 = vpop.f32.mrb[0].mxu0
        %7354 = vmatprep.mubr.bf16.mxu0 %v7108
        %7355 = vmatmul.mubr.bf16.gmra.mrb[0].mxu0 %v7107
        %v7356 = vpop.f32.mrb[0].mxu0
        %v7357 = vadd.f32 %v7160, %v7356
        %v7358 = vpop.f32.mrb[0].mxu0
        %v7359 = vpop.f32.mrb[0].mxu0
        %v7360 = vadd.f32 %v7160, %v7359
        %v7361 = vpop.f32.mrb[0].mxu0
        %7362 = vmatprep.mubr.bf16.mxu0 %v7110
        %7363 = vmatmul.mubr.bf16.gmra.mrb[0].mxu0 %v7109
        %v7364 = vpop.f32.mrb[0].mxu0
        %v7365 = vadd.f32 %v7160, %v7364
        %v7366 = vpop.f32.mrb[0].mxu0
        %v7367 = vpop.f32.mrb[0].mxu0
        %v7368 = vadd.f32 %v7160, %v7367
        %v7369 = vpop.f32.mrb[0].mxu0
        %7370 = vmatprep.mubr.bf16.mxu0 %v7112
        %7371 = vmatmul.mubr.bf16.gmra.mrb[0].mxu0 %v7111
        %v7372 = vpop.f32.mrb[0].mxu0
        %v7373 = vadd.f32 %v7160, %v7372
        %v7374 = vpop.f32.mrb[0].mxu0
        %v7375 = vpop.f32.mrb[0].mxu0
        %v7376 = vadd.f32 %v7160, %v7375
        %v7377 = vpop.f32.mrb[0].mxu0
        %7378 = vmatprep.mubr.bf16.mxu0 %v7114
        %7379 = vmatmul.mubr.bf16.gmra.mrb[0].mxu0 %v7113
        %v7380 = vpop.f32.mrb[0].mxu0
        %v7381 = vadd.f32 %v7160, %v7380
        %v7382 = vpop.f32.mrb[0].mxu0
        %v7383 = vpop.f32.mrb[0].mxu0
        %v7384 = vadd.f32 %v7160, %v7383
        %v7385 = vpop.f32.mrb[0].mxu0
        %7386 = vmatprep.mubr.bf16.mxu0 %v7116
        %7387 = vmatmul.mubr.bf16.gmra.mrb[0].mxu0 %v7115
        %v7388 = vpop.f32.mrb[0].mxu0
        %v7389 = vadd.f32 %v7160, %v7388
        %v7390 = vpop.f32.mrb[0].mxu0
        %v7391 = vpop.f32.mrb[0].mxu0
        %v7392 = vadd.f32 %v7160, %v7391
        %v7393 = vpop.f32.mrb[0].mxu0
        %7394 = vmatprep.mubr.bf16.mxu0 %v7118
        %7395 = vmatmul.mubr.bf16.gmra.mrb[0].mxu0 %v7117
        %v7396 = vpop.f32.mrb[0].mxu0
        %v7397 = vadd.f32 %v7160, %v7396
        %v7398 = vpop.f32.mrb[0].mxu0
        %v7399 = vpop.f32.mrb[0].mxu0
        %v7400 = vadd.f32 %v7160, %v7399
        %v7401 = vpop.f32.mrb[0].mxu0
        %7402 = vmatprep.mubr.bf16.mxu0 %v7120
        %7403 = vmatmul.mubr.bf16.gmra.mrb[0].mxu0 %v7119
        %v7404 = vpop.f32.mrb[0].mxu0
        %v7405 = vadd.f32 %v7160, %v7404
        %v7406 = vpop.f32.mrb[0].mxu0
        %v7407 = vpop.f32.mrb[0].mxu0
        %v7408 = vadd.f32 %v7160, %v7407
        %v7409 = vpop.f32.mrb[0].mxu0
        %7410 = vmatprep.mubr.bf16.mxu0 %v7122
        %7411 = vmatmul.mubr.bf16.gmra.mrb[0].mxu0 %v7121
        %v7412 = vpop.f32.mrb[0].mxu0
        %v7413 = vadd.f32 %v7160, %v7412
        %v7414 = vpop.f32.mrb[0].mxu0
        %v7415 = vpop.f32.mrb[0].mxu0
        %v7416 = vadd.f32 %v7160, %v7415
        %v7417 = vpop.f32.mrb[0].mxu0
        %7418 = vdwg.mxu0
        %v7419 = vld [vmem:[%s9] sm:$0x1]
        %v7421 = vlaneseq
        %v7422 = vshrl.u32 %v7421, 7
        %v7423 = vsub.s32 0, %v7422
        %v7424 = vrot.slane %v7419, %v7423
        %v7426 = vmul.f32 %v7293, %v7424
        %v7427 = vmul.f32 %v7296, %v7424
        %v7428 = vmul.f32 %v7301, %v7424
        %v7429 = vmul.f32 %v7304, %v7424
        %v7430 = vmul.f32 %v7309, %v7424
        %v7431 = vmul.f32 %v7312, %v7424
        %v7432 = vmul.f32 %v7317, %v7424
        %v7433 = vmul.f32 %v7320, %v7424
        %v7434 = vmul.f32 %v7325, %v7424
        %v7435 = vmul.f32 %v7328, %v7424
        %v7436 = vmul.f32 %v7333, %v7424
        %v7437 = vmul.f32 %v7336, %v7424
        %v7438 = vmul.f32 %v7341, %v7424
        %v7439 = vmul.f32 %v7344, %v7424
        %v7440 = vmul.f32 %v7349, %v7424
        %v7441 = vmul.f32 %v7352, %v7424
        %v7442 = vmul.f32 %v7357, %v7424
        %v7443 = vmul.f32 %v7360, %v7424
        %v7444 = vmul.f32 %v7365, %v7424
        %v7445 = vmul.f32 %v7368, %v7424
        %v7446 = vmul.f32 %v7373, %v7424
        %v7447 = vmul.f32 %v7376, %v7424
        %v7448 = vmul.f32 %v7381, %v7424
        %v7449 = vmul.f32 %v7384, %v7424
        %v7450 = vmul.f32 %v7389, %v7424
        %v7451 = vmul.f32 %v7392, %v7424
        %v7452 = vmul.f32 %v7397, %v7424
        %v7453 = vmul.f32 %v7400, %v7424
        %v7454 = vmul.f32 %v7405, %v7424
        %v7455 = vmul.f32 %v7408, %v7424
        %v7456 = vmul.f32 %v7413, %v7424
        %v7457 = vmul.f32 %v7416, %v7424
        %v7458 = vld [vmem:[%s373] sm:$0xff]
        %v7459 = vld [vmem:[%s373 + $0x8] sm:$0xff]
        %v7460 = vld [vmem:[%s373 + $0x10] sm:$0xff]
        %v7461 = vld [vmem:[%s373 + $0x18] sm:$0xff]
        %v7462 = vld [vmem:[%s373 + $0x20] sm:$0xff]
        %v7463 = vld [vmem:[%s373 + $0x28] sm:$0xff]
        %v7464 = vld [vmem:[%s373 + $0x30] sm:$0xff]
        %v7465 = vld [vmem:[%s373 + $0x38] sm:$0xff]
        %v7466 = vld [vmem:[%s373 + $0x40] sm:$0xff]
        %v7467 = vld [vmem:[%s373 + $0x48] sm:$0xff]
        %v7468 = vld [vmem:[%s373 + $0x50] sm:$0xff]
        %v7469 = vld [vmem:[%s373 + $0x58] sm:$0xff]
        %v7470 = vld [vmem:[%s373 + $0x60] sm:$0xff]
        %v7471 = vld [vmem:[%s373 + $0x68] sm:$0xff]
        %v7472 = vld [vmem:[%s373 + $0x70] sm:$0xff]
        %v7473 = vld [vmem:[%s373 + $0x78] sm:$0xff]
        %v7474 = vld [vmem:[%s373 + $0x80] sm:$0xff]
        %v7475 = vld [vmem:[%s373 + $0x88] sm:$0xff]
        %v7476 = vld [vmem:[%s373 + $0x90] sm:$0xff]
        %v7477 = vld [vmem:[%s373 + $0x98] sm:$0xff]
        %v7478 = vld [vmem:[%s373 + $0xa0] sm:$0xff]
        %v7479 = vld [vmem:[%s373 + $0xa8] sm:$0xff]
        %v7480 = vld [vmem:[%s373 + $0xb0] sm:$0xff]
        %v7481 = vld [vmem:[%s373 + $0xb8] sm:$0xff]
        %v7482 = vld [vmem:[%s373 + $0xc0] sm:$0xff]
        %v7483 = vld [vmem:[%s373 + $0xc8] sm:$0xff]
        %v7484 = vld [vmem:[%s373 + $0xd0] sm:$0xff]
        %v7485 = vld [vmem:[%s373 + $0xd8] sm:$0xff]
        %v7486 = vld [vmem:[%s373 + $0xe0] sm:$0xff]
        %v7487 = vld [vmem:[%s373 + $0xe8] sm:$0xff]
        %v7488 = vld [vmem:[%s373 + $0xf0] sm:$0xff]
        %v7489 = vld [vmem:[%s373 + $0xf8] sm:$0xff]
        %v7490 = vadd.f32 %v7426, %v7458
        %v7491 = vadd.f32 %v7427, %v7459
        %v7492 = vadd.f32 %v7428, %v7460
        %v7493 = vadd.f32 %v7429, %v7461
        %v7494 = vadd.f32 %v7430, %v7462
        %v7495 = vadd.f32 %v7431, %v7463
        %v7496 = vadd.f32 %v7432, %v7464
        %v7497 = vadd.f32 %v7433, %v7465
        %v7498 = vadd.f32 %v7434, %v7466
        %v7499 = vadd.f32 %v7435, %v7467
        %v7500 = vadd.f32 %v7436, %v7468
        %v7501 = vadd.f32 %v7437, %v7469
        %v7502 = vadd.f32 %v7438, %v7470
        %v7503 = vadd.f32 %v7439, %v7471
        %v7504 = vadd.f32 %v7440, %v7472
        %v7505 = vadd.f32 %v7441, %v7473
        %v7506 = vadd.f32 %v7442, %v7474
        %v7507 = vadd.f32 %v7443, %v7475
        %v7508 = vadd.f32 %v7444, %v7476
        %v7509 = vadd.f32 %v7445, %v7477
        %v7510 = vadd.f32 %v7446, %v7478
        %v7511 = vadd.f32 %v7447, %v7479
        %v7512 = vadd.f32 %v7448, %v7480
        %v7513 = vadd.f32 %v7449, %v7481
        %v7514 = vadd.f32 %v7450, %v7482
        %v7515 = vadd.f32 %v7451, %v7483
        %v7516 = vadd.f32 %v7452, %v7484
        %v7517 = vadd.f32 %v7453, %v7485
        %v7518 = vadd.f32 %v7454, %v7486
        %v7519 = vadd.f32 %v7455, %v7487
        %v7520 = vadd.f32 %v7456, %v7488
        %v7521 = vadd.f32 %v7457, %v7489
        %7522 = vst [vmem:[%s421] sm:$0xff] %v7490
        %7523 = vst [vmem:[%s421 + $0x8] sm:$0xff] %v7491
        %7524 = vst [vmem:[%s421 + $0x10] sm:$0xff] %v7492
        %7525 = vst [vmem:[%s421 + $0x18] sm:$0xff] %v7493
        %7526 = vst [vmem:[%s421 + $0x20] sm:$0xff] %v7494
        %7527 = vst [vmem:[%s421 + $0x28] sm:$0xff] %v7495
        %7528 = vst [vmem:[%s421 + $0x30] sm:$0xff] %v7496
        %7529 = vst [vmem:[%s421 + $0x38] sm:$0xff] %v7497
        %7530 = vst [vmem:[%s421 + $0x40] sm:$0xff] %v7498
        %7531 = vst [vmem:[%s421 + $0x48] sm:$0xff] %v7499
        %7532 = vst [vmem:[%s421 + $0x50] sm:$0xff] %v7500
        %7533 = vst [vmem:[%s421 + $0x58] sm:$0xff] %v7501
        %7534 = vst [vmem:[%s421 + $0x60] sm:$0xff] %v7502
        %7535 = vst [vmem:[%s421 + $0x68] sm:$0xff] %v7503
        %7536 = vst [vmem:[%s421 + $0x70] sm:$0xff] %v7504
        %7537 = vst [vmem:[%s421 + $0x78] sm:$0xff] %v7505
        %7538 = vst [vmem:[%s421 + $0x80] sm:$0xff] %v7506
        %7539 = vst [vmem:[%s421 + $0x88] sm:$0xff] %v7507
        %7540 = vst [vmem:[%s421 + $0x90] sm:$0xff] %v7508
        %7541 = vst [vmem:[%s421 + $0x98] sm:$0xff] %v7509
        %7542 = vst [vmem:[%s421 + $0xa0] sm:$0xff] %v7510
        %7543 = vst [vmem:[%s421 + $0xa8] sm:$0xff] %v7511
        %7544 = vst [vmem:[%s421 + $0xb0] sm:$0xff] %v7512
        %7545 = vst [vmem:[%s421 + $0xb8] sm:$0xff] %v7513
        %7546 = vst [vmem:[%s421 + $0xc0] sm:$0xff] %v7514
        %7547 = vst [vmem:[%s421 + $0xc8] sm:$0xff] %v7515
        %7548 = vst [vmem:[%s421 + $0xd0] sm:$0xff] %v7516
        %7549 = vst [vmem:[%s421 + $0xd8] sm:$0xff] %v7517
        %7550 = vst [vmem:[%s421 + $0xe0] sm:$0xff] %v7518
        %7551 = vst [vmem:[%s421 + $0xe8] sm:$0xff] %v7519
        %7552 = vst [vmem:[%s421 + $0xf0] sm:$0xff] %v7520
        %7553 = vst [vmem:[%s421 + $0xf8] sm:$0xff] %v7521
        %s7554 = sand.u32 %s252, 1
        %s7555 = scalar_lea.sflag [#allocation5], %s7554
        %s7556 = sand.u32 %s252, 1
        %s7557 = smul.addr %s7556, 256
        %s7558 = scalar_lea.vmem [#allocation11], %s7557
        // Predicated region
        $region77: #{convnext_block.1} parent=59 // pred_check
          %p7559 = pneg %p262
        $region78: #{convnext_block.1} parent=59 // pred_check_branch
          %7561 = sbr.rel (%p7559) target = $region80
        $region79: #{convnext_block.1} parent=59 // pred_region
          %s7563 = ssub.s32 4096, 4096
          %7564 = vsyncadd %s7555, %s7563
          %s7565 = smul.addr %s29, 32
          %s7566 = smul.addr %s7565, 128
          %s7567 = scalar_lea.hbm %s10, %s7566
          %s7568 = sshll.u32 %s7558, 4
          %s7569 = int_to_ptr.vmem [resolvable:$true] %s7568
          %7574 = dma.vmem_to_hbm [thread:$0]  %s7569, 4096, %s7567, %s7555, 128, 128, 8
        $region80: #{convnext_block.1} parent=59 // pred_fallthru
          _
      $region60: #{convnext_block.1} parent=5 // pred_fallthru
        _
      %p7575 = scmp.le.s32.totalorder 2, %s24
      // Predicated region
      $region81: #{convnext_block.1} parent=5 // pred_check
        %p7576 = pneg %p7575
      $region82: #{convnext_block.1} parent=5 // pred_check_branch
        %7578 = sbr.rel (%p7576) target = $region84
      $region83: #{convnext_block.1} parent=5 // pred_region
        %s7579 = ssub.s32 %s24, 2
        // Predicated region
        $region85: #{convnext_block.1} parent=83 // pred_check
          %p7580 = pneg %p268
        $region86: #{convnext_block.1} parent=83 // pred_check_branch
          %7582 = sbr.rel (%p7580) target = $region88
        $region87: #{convnext_block.1} parent=83 // pred_region
          %s7583 = sand.u32 %s253, 1
          %s7584 = scalar_lea.sflag [#allocation5], %s7583
          %s7585 = sand.u32 %s253, 1
          %s7586 = smul.addr %s7585, 256
          %s7587 = scalar_lea.vmem [#allocation11], %s7586
          %7588 = dma.done %s7584, 4096
        $region88: #{convnext_block.1} parent=83 // pred_fallthru
          _
      $region84: #{convnext_block.1} parent=5 // pred_fallthru
        _
    $region6: #{convnext_block.1} parent=1 // loop_footer
      %s28 = sadd.s32 1, %s24
    $region7: #{convnext_block.1} parent=1 // loop_footer_branch
      %23 = sbr.rel target = $region3
    $region8: #{convnext_block.1} parent=1 // loop_exit
      _
    %7589 = vsyncpa [#allocation4], 1
    %s7590 = scalar_lea.sflag [#allocation4], 1
    %7591 = vsyncpa %s7590, 1
    %7592 = vsyncpa [#allocation7], 1
    %7593 = vsyncpa [#allocation10], 1
    %7594 = vsyncpa [#allocation5], 1
    %s7595 = scalar_lea.sflag [#allocation5], 1
    %7596 = vsyncpa %s7595, 1

</llo_original>
